<compile_context>
chip_gen: v7x
topology: tpu7x:2x2x1
jax: 0.10.0
libtpu: 0.0.40
codegen_flags: <defaults>
</compile_context>

<pallas_src>
import functools

import jax
import jax.numpy as jnp
import numpy as np
from jax.experimental import pallas as pl
from jax.experimental.pallas import tpu as pltpu

_VMEM = pl.BlockSpec(memory_space=pltpu.MemorySpace.VMEM)
_NEG = -1e30   # padding value for the unused logit lanes


# ----------------------------------------------------------------------------
# Kernels
# ----------------------------------------------------------------------------
def _sample_kernel(*refs):
  """z = mean + exp(sigma) * eps, elementwise, for every parameter group."""
  n_out = len(refs) // 4                     # 3*n inputs followed by n outputs
  ins, outs = refs[:3 * n_out], refs[3 * n_out:]
  for i in range(n_out):
    m, s, e = ins[3 * i], ins[3 * i + 1], ins[3 * i + 2]
    outs[i][...] = m[...] + jnp.exp(s[...]) * e[...]


def _vicnn_fused_kernel(x_ref, g1_ref, b1_ref, g2_ref, b2_ref,
                        w1_ref, l1b_ref, w2_ref, l2b_ref, o_ref, *, bb):
  """Whole VICNN forward for one block of `bb` images.

  Activation layout: rows = spatial_row*bb + image, lanes = spatial_col*C + chan.
  """
  f32 = jnp.float32
  x = x_ref[...]                                           # (28, bb, 28) = (h, b, w)

  # ---- conv1: 5x5 valid, Cin=1 -> Cout=16, as 5 banded MXU matmuls ----------
  y1 = jnp.zeros((24 * bb, 384), f32)                      # lanes = ow*16 + c
  for dy in range(5):
    lhs = x[dy:dy + 24].reshape(24 * bb, 28)               # rows = oh*bb + b
    y1 = y1 + jnp.dot(lhs, g1_ref[dy], preferred_element_type=f32)
  y1 = y1 + b1_ref[...]

  # ---- 2x2 max-pool (lane pairs, then row-block pairs) + ReLU ---------------
  y1 = jnp.concatenate(
      [jnp.maximum(y1[:, (2 * p) * 16:(2 * p + 1) * 16],
                   y1[:, (2 * p + 1) * 16:(2 * p + 2) * 16]) for p in range(12)],
      axis=-1)                                             # (24*bb, 192)
  h1 = jnp.concatenate(
      [jnp.maximum(y1[(2 * p) * bb:(2 * p + 1) * bb, :],
                   y1[(2 * p + 1) * bb:(2 * p + 2) * bb, :]) for p in range(12)],
      axis=0)                                              # (12*bb, 192)
  h1 = jnp.maximum(h1, 0.0)

  # ---- conv2: 5x5 valid, Cin=16 -> Cout=32 ----------------------------------
  y2 = jnp.zeros((8 * bb, 256), f32)                       # lanes = ow*32 + c
  for dy in range(5):
    y2 = y2 + jnp.dot(h1[dy * bb:(dy + 8) * bb, :], g2_ref[dy],
                      preferred_element_type=f32)
  y2 = y2 + b2_ref[...]

  y2 = jnp.concatenate(
      [jnp.maximum(y2[:, (2 * p) * 32:(2 * p + 1) * 32],
                   y2[:, (2 * p + 1) * 32:(2 * p + 2) * 32]) for p in range(4)],
      axis=-1)                                             # (8*bb, 128) lane-dense
  h2 = jnp.concatenate(
      [jnp.maximum(y2[(2 * p) * bb:(2 * p + 1) * bb, :],
                   y2[(2 * p + 1) * bb:(2 * p + 2) * bb, :]) for p in range(4)],
      axis=0)                                              # (4*bb, 128)
  h2 = jnp.maximum(h2, 0.0)

  # ---- linear1 (flatten permutation folded into w1) + ReLU ------------------
  acc = jnp.zeros((bb, 128), f32)
  for p in range(4):
    acc = acc + jnp.dot(h2[p * bb:(p + 1) * bb, :], w1_ref[p],
                        preferred_element_type=f32)
  h3 = jnp.maximum(acc + l1b_ref[...], 0.0)

  # ---- linear2 (padded to 128 lanes) + log_softmax --------------------------
  logits = jnp.dot(h3, w2_ref[...], preferred_element_type=f32) + l2b_ref[...]
  m = jnp.max(logits, axis=-1, keepdims=True)
  lse = m + jnp.log(jnp.sum(jnp.exp(logits - m), axis=-1, keepdims=True))
  o_ref[...] = (logits - lse).astype(o_ref.dtype)


# ----------------------------------------------------------------------------
# Parameter layout prep (one-time glue, applied to mean / sigma / eps alike)
# ----------------------------------------------------------------------------
def _expand_conv1(p):
  # p: (16, 1, 5, 5) torch OIHW -> banded (5, 28, 24*16):
  #   G[dy, w, ow*16 + c] = p[c, 0, dy, w-ow]  if 0 <= w-ow < 5 else 0
  w = jnp.transpose(p, (2, 3, 1, 0)).reshape(5, 5, 16)           # (dy, dx, c)
  dx = jnp.arange(28)[:, None] - jnp.arange(24)[None, :]         # (w, ow)
  valid = (dx >= 0) & (dx < 5)
  g = w[:, jnp.clip(dx, 0, 4), :]                                # (5, 28, 24, 16)
  g = jnp.where(valid[None, :, :, None], g, 0.0)
  return g.reshape(5, 28, 384)


def _expand_conv2(p):
  # p: (32, 16, 5, 5) -> banded (5, 12*16, 8*32):
  #   G[dy, w*16 + ci, ow*32 + co] = p[co, ci, dy, w-ow]  if 0 <= w-ow < 5 else 0
  w = jnp.transpose(p, (2, 3, 1, 0))                             # (dy, dx, ci, co)
  dx = jnp.arange(12)[:, None] - jnp.arange(8)[None, :]          # (w, ow)
  valid = (dx >= 0) & (dx < 5)
  g = w[:, jnp.clip(dx, 0, 4), :, :]                             # (5, 12, 8, 16, 32)
  g = jnp.where(valid[None, :, :, None, None], g, 0.0)
  g = jnp.transpose(g, (0, 1, 3, 2, 4))                          # (dy, w, ci, ow, co)
  return g.reshape(5, 192, 256)


def _expand_l1(p):
  # p: (128, 512); torch flatten index = c*16 + h*4 + w (NCHW view(-1, 512)).
  # Our feature lives at (row-block h, lane w*32 + c) -> fold permutation in.
  co = jnp.arange(32)
  ph = jnp.arange(4)
  pw = jnp.arange(4)
  idx = co[None, None, :] * 16 + ph[:, None, None] * 4 + pw[None, :, None]   # (4,4,32)
  cols = p[:, idx]                                               # (128, 4, 4, 32)
  return jnp.transpose(cols, (1, 2, 3, 0)).reshape(4, 128, 128)  # (h, w*32+c, k)


def _expand_l2w(p):
  # p: (10, 128) -> (128, 128) with zero-padded extra output columns.
  return jnp.pad(jnp.transpose(p), ((0, 0), (0, 118)))


def _expand_l2b(p, fill):
  return jnp.pad(p, (0, 118), constant_values=fill).reshape(1, 128)


def _tile_bias(b, reps):
  return jnp.tile(b, reps).reshape(1, -1)


def _sample_weights(P):
  """One-shot Pallas kernel: sample all z = mean + exp(sigma)*eps in final layouts."""
  triples = [
      (_expand_conv1(P['c1_wm']), _expand_conv1(P['c1_ws']), _expand_conv1(P['c1_we'])),
      (_tile_bias(P['c1_bm'], 24), _tile_bias(P['c1_bs'], 24), _tile_bias(P['c1_be'], 24)),
      (_expand_conv2(P['c2_wm']), _expand_conv2(P['c2_ws']), _expand_conv2(P['c2_we'])),
      (_tile_bias(P['c2_bm'], 8), _tile_bias(P['c2_bs'], 8), _tile_bias(P['c2_be'], 8)),
      (_expand_l1(P['l1_wm']), _expand_l1(P['l1_ws']), _expand_l1(P['l1_we'])),
      (P['l1_bm'].reshape(1, 128), P['l1_bs'].reshape(1, 128), P['l1_be'].reshape(1, 128)),
      (_expand_l2w(P['l2_wm']), _expand_l2w(P['l2_ws']), _expand_l2w(P['l2_we'])),
      (_expand_l2b(P['l2_bm'], _NEG), _expand_l2b(P['l2_bs'], 0.0), _expand_l2b(P['l2_be'], 0.0)),
  ]
  flat = [a for t in triples for a in t]
  out_shape = tuple(jax.ShapeDtypeStruct(t[0].shape, jnp.float32) for t in triples)
  return pl.pallas_call(
      _sample_kernel,
      out_shape=out_shape,
      in_specs=[_VMEM] * len(flat),
      out_specs=tuple(_VMEM for _ in out_shape),
  )(*flat)


# ----------------------------------------------------------------------------
# Fused forward wrapper
# ----------------------------------------------------------------------------
def _fused_forward(x_t, zs, bb):
  g1, b1t, g2, b2t, w1r, l1b, w2p, l2bp = zs
  bp = x_t.shape[1]
  grid = (bp // bb,)

  def c3(a):
    return pl.BlockSpec(a.shape, lambda i: (0, 0, 0))

  def c2(a):
    return pl.BlockSpec(a.shape, lambda i: (0, 0))

  return pl.pallas_call(
      functools.partial(_vicnn_fused_kernel, bb=bb),
      out_shape=jax.ShapeDtypeStruct((bp, 128), jnp.float32),
      grid_spec=pltpu.PrefetchScalarGridSpec(
          num_scalar_prefetch=0,
          grid=grid,
          in_specs=[
              pl.BlockSpec((28, bb, 28), lambda i: (0, i, 0)),   # x, blocked on batch
              c3(g1), c2(b1t), c3(g2), c2(b2t),                  # weights: constant
              c3(w1r), c2(l1b), c2(w2p), c2(l2bp),               #   blocks -> DMA'd once
          ],
          out_specs=pl.BlockSpec((bb, 128), lambda i: (i, 0)),   # lane-dense output
      ),
      compiler_params=pltpu.CompilerParams(
          dimension_semantics=("parallel",),
          vmem_limit_bytes=32 * 1024 * 1024),
  )(x_t, g1, b1t, g2, b2t, w1r, l1b, w2p, l2bp)


@jax.jit
def vicnn_forward_pallas(x_nchw, P):
  B = x_nchw.shape[0]
  bb = 32 if B >= 32 else 8 * ((B + 7) // 8)     # batch block (rows per grid step)
  bp = ((B + bb - 1) // bb) * bb
  x = x_nchw[:, 0, :, :]                         # (B, 28, 28)
  x = jnp.pad(x, ((0, bp - B), (0, 0), (0, 0)))
  x_t = jnp.transpose(x, (1, 0, 2))              # (28, Bpad, 28) = (h, b, w)
  zs = _sample_weights(P)
  out = _fused_forward(x_t, zs, bb)              # (Bpad, 128)
  return out[:B, :10]


# ----------------------------------------------------------------------------
# Parameters (mirror the torch module's __init__ + sampled eps, deterministic)
# ----------------------------------------------------------------------------
def init_params(key, prior_sigma_w=1.0, prior_sigma_b=5.0, init_sigma_scale=1e-7):
  ks = iter(jax.random.split(key, 64))

  def u(shape):
    return jax.random.uniform(next(ks), shape, jnp.float32) - 0.5

  def n(shape):
    return jax.random.normal(next(ks), shape, jnp.float32)

  def logc(shape, prior):
    return jnp.full(shape, float(np.log(init_sigma_scale * prior)), jnp.float32)

  P = {}
  for name, (co, ci) in [('c1', (16, 1)), ('c2', (32, 16))]:
    wshape = (co, ci, 5, 5)
    P[f'{name}_wm'] = u(wshape)
    P[f'{name}_ws'] = logc(wshape, prior_sigma_w)
    P[f'{name}_we'] = n(wshape)
    P[f'{name}_bm'] = u((co,))
    P[f'{name}_bs'] = logc((co,), prior_sigma_b)
    P[f'{name}_be'] = n((co,))
  for name, (o, i) in [('l1', (128, 512)), ('l2', (10, 128))]:
    wshape = (o, i)
    P[f'{name}_wm'] = u(wshape)
    P[f'{name}_ws'] = logc(wshape, prior_sigma_w)
    P[f'{name}_we'] = n(wshape)
    P[f'{name}_bm'] = u((o,))
    P[f'{name}_bs'] = logc((o,), prior_sigma_b)
    P[f'{name}_be'] = n((o,))
  return P


# ----------------------------------------------------------------------------
# Pure-JAX reference (independent path: lax.conv + reduce_window) for validation
# ----------------------------------------------------------------------------
def vicnn_forward_ref(x, P):
  def z(m, s, e):
    return m + jnp.exp(s) * e

  def conv_block(y, name):
    zw = z(P[f'{name}_wm'], P[f'{name}_ws'], P[f'{name}_we'])
    zb = z(P[f'{name}_bm'], P[f'{name}_bs'], P[f'{name}_be'])
    y = jax.lax.conv_general_dilated(
        y, zw, (1, 1), 'VALID',
        dimension_numbers=('NCHW', 'OIHW', 'NCHW')) + zb[None, :, None, None]
    y = jax.lax.reduce_window(y, -jnp.inf, jax.lax.max,
                              (1, 1, 2, 2), (1, 1, 2, 2), 'VALID')
    return jnp.maximum(y, 0.0)

  y = conv_block(x, 'c1')
  y = conv_block(y, 'c2')
  y = y.reshape(y.shape[0], -1)
  h = jnp.maximum(y @ z(P['l1_wm'], P['l1_ws'], P['l1_we']).T
                  + z(P['l1_bm'], P['l1_bs'], P['l1_be']), 0.0)
  logits = h @ z(P['l2_wm'], P['l2_ws'], P['l2_we']).T \
      + z(P['l2_bm'], P['l2_bs'], P['l2_be'])
  return jax.nn.log_softmax(logits, axis=-1)


if __name__ == "__main__":
  key = jax.random.PRNGKey(0)
  kp, kx = jax.random.split(key)
  params = init_params(kp)
  # The module's flatten to 512 features forces 1x28x28 inputs (MNIST-style).
  x = jax.random.normal(kx, (2, 1, 28, 28), jnp.float32)

  out = vicnn_forward_pallas(x, params)
  out = jax.block_until_ready(out)

  ref = vicnn_forward_ref(x, params)
  assert out.shape == (2, 10), out.shape
  if not bool(jnp.allclose(out, ref, atol=2e-3, rtol=2e-3)):
    raise AssertionError(f"mismatch vs reference: max abs diff "
                         f"{float(jnp.max(jnp.abs(out - ref)))}")
  print("KERNEL_OK")
</pallas_src>

<mosaic_0001>
module attributes {stable_mosaic.version = 11 : i64} {
  func.func @_sample_kernel(%arg0: memref<5x28x384xf32, #tpu.memory_space<vmem>>, %arg1: memref<5x28x384xf32, #tpu.memory_space<vmem>>, %arg2: memref<5x28x384xf32, #tpu.memory_space<vmem>>, %arg3: memref<1x384xf32, #tpu.memory_space<vmem>>, %arg4: memref<1x384xf32, #tpu.memory_space<vmem>>, %arg5: memref<1x384xf32, #tpu.memory_space<vmem>>, %arg6: memref<5x192x256xf32, #tpu.memory_space<vmem>>, %arg7: memref<5x192x256xf32, #tpu.memory_space<vmem>>, %arg8: memref<5x192x256xf32, #tpu.memory_space<vmem>>, %arg9: memref<1x256xf32, #tpu.memory_space<vmem>>, %arg10: memref<1x256xf32, #tpu.memory_space<vmem>>, %arg11: memref<1x256xf32, #tpu.memory_space<vmem>>, %arg12: memref<4x128x128xf32, #tpu.memory_space<vmem>>, %arg13: memref<4x128x128xf32, #tpu.memory_space<vmem>>, %arg14: memref<4x128x128xf32, #tpu.memory_space<vmem>>, %arg15: memref<1x128xf32, #tpu.memory_space<vmem>>, %arg16: memref<1x128xf32, #tpu.memory_space<vmem>>, %arg17: memref<1x128xf32, #tpu.memory_space<vmem>>, %arg18: memref<128x128xf32, #tpu.memory_space<vmem>>, %arg19: memref<128x128xf32, #tpu.memory_space<vmem>>, %arg20: memref<128x128xf32, #tpu.memory_space<vmem>>, %arg21: memref<1x128xf32, #tpu.memory_space<vmem>>, %arg22: memref<1x128xf32, #tpu.memory_space<vmem>>, %arg23: memref<1x128xf32, #tpu.memory_space<vmem>>, %arg24: memref<5x28x384xf32, #tpu.memory_space<vmem>>, %arg25: memref<1x384xf32, #tpu.memory_space<vmem>>, %arg26: memref<5x192x256xf32, #tpu.memory_space<vmem>>, %arg27: memref<1x256xf32, #tpu.memory_space<vmem>>, %arg28: memref<4x128x128xf32, #tpu.memory_space<vmem>>, %arg29: memref<1x128xf32, #tpu.memory_space<vmem>>, %arg30: memref<128x128xf32, #tpu.memory_space<vmem>>, %arg31: memref<1x128xf32, #tpu.memory_space<vmem>>) attributes {dimension_semantics = [], scalar_prefetch = 0 : i64, scratch_operands = 0 : i64, tpu.core_type = #tpu.core_type<tc>} {
    %c0 = arith.constant 0 : index
    %c0_0 = arith.constant 0 : index
    %c0_1 = arith.constant 0 : index
    %0 = vector.load %arg0[%c0, %c0_0, %c0_1] : memref<5x28x384xf32, #tpu.memory_space<vmem>>, vector<5x28x384xf32>
    %c0_2 = arith.constant 0 : index
    %c0_3 = arith.constant 0 : index
    %c0_4 = arith.constant 0 : index
    %1 = vector.load %arg1[%c0_2, %c0_3, %c0_4] : memref<5x28x384xf32, #tpu.memory_space<vmem>>, vector<5x28x384xf32>
    %2 = math.exp %1 : vector<5x28x384xf32>
    %c0_5 = arith.constant 0 : index
    %c0_6 = arith.constant 0 : index
    %c0_7 = arith.constant 0 : index
    %3 = vector.load %arg2[%c0_5, %c0_6, %c0_7] : memref<5x28x384xf32, #tpu.memory_space<vmem>>, vector<5x28x384xf32>
    %4 = arith.mulf %2, %3 : vector<5x28x384xf32>
    %5 = arith.addf %0, %4 : vector<5x28x384xf32>
    %c0_8 = arith.constant 0 : index
    %c0_9 = arith.constant 0 : index
    %c0_10 = arith.constant 0 : index
    %6 = vector.load %arg24[%c0_8, %c0_9, %c0_10] : memref<5x28x384xf32, #tpu.memory_space<vmem>>, vector<5x28x384xf32>
    tpu.vector_store %arg24[%c0_8, %c0_9, %c0_10], %5 {strides = array<i32>} : memref<5x28x384xf32, #tpu.memory_space<vmem>>, vector<5x28x384xf32>,
    %c0_11 = arith.constant 0 : index
    %c0_12 = arith.constant 0 : index
    %7 = vector.load %arg3[%c0_11, %c0_12] : memref<1x384xf32, #tpu.memory_space<vmem>>, vector<1x384xf32>
    %c0_13 = arith.constant 0 : index
    %c0_14 = arith.constant 0 : index
    %8 = vector.load %arg4[%c0_13, %c0_14] : memref<1x384xf32, #tpu.memory_space<vmem>>, vector<1x384xf32>
    %9 = math.exp %8 : vector<1x384xf32>
    %c0_15 = arith.constant 0 : index
    %c0_16 = arith.constant 0 : index
    %10 = vector.load %arg5[%c0_15, %c0_16] : memref<1x384xf32, #tpu.memory_space<vmem>>, vector<1x384xf32>
    %11 = arith.mulf %9, %10 : vector<1x384xf32>
    %12 = arith.addf %7, %11 : vector<1x384xf32>
    %c0_17 = arith.constant 0 : index
    %c0_18 = arith.constant 0 : index
    %13 = vector.load %arg25[%c0_17, %c0_18] : memref<1x384xf32, #tpu.memory_space<vmem>>, vector<1x384xf32>
    tpu.vector_store %arg25[%c0_17, %c0_18], %12 {strides = array<i32>} : memref<1x384xf32, #tpu.memory_space<vmem>>, vector<1x384xf32>,
    %c0_19 = arith.constant 0 : index
    %c0_20 = arith.constant 0 : index
    %c0_21 = arith.constant 0 : index
    %14 = vector.load %arg6[%c0_19, %c0_20, %c0_21] : memref<5x192x256xf32, #tpu.memory_space<vmem>>, vector<5x192x256xf32>
    %c0_22 = arith.constant 0 : index
    %c0_23 = arith.constant 0 : index
    %c0_24 = arith.constant 0 : index
    %15 = vector.load %arg7[%c0_22, %c0_23, %c0_24] : memref<5x192x256xf32, #tpu.memory_space<vmem>>, vector<5x192x256xf32>
    %16 = math.exp %15 : vector<5x192x256xf32>
    %c0_25 = arith.constant 0 : index
    %c0_26 = arith.constant 0 : index
    %c0_27 = arith.constant 0 : index
    %17 = vector.load %arg8[%c0_25, %c0_26, %c0_27] : memref<5x192x256xf32, #tpu.memory_space<vmem>>, vector<5x192x256xf32>
    %18 = arith.mulf %16, %17 : vector<5x192x256xf32>
    %19 = arith.addf %14, %18 : vector<5x192x256xf32>
    %c0_28 = arith.constant 0 : index
    %c0_29 = arith.constant 0 : index
    %c0_30 = arith.constant 0 : index
    %20 = vector.load %arg26[%c0_28, %c0_29, %c0_30] : memref<5x192x256xf32, #tpu.memory_space<vmem>>, vector<5x192x256xf32>
    tpu.vector_store %arg26[%c0_28, %c0_29, %c0_30], %19 {strides = array<i32>} : memref<5x192x256xf32, #tpu.memory_space<vmem>>, vector<5x192x256xf32>,
    %c0_31 = arith.constant 0 : index
    %c0_32 = arith.constant 0 : index
    %21 = vector.load %arg9[%c0_31, %c0_32] : memref<1x256xf32, #tpu.memory_space<vmem>>, vector<1x256xf32>
    %c0_33 = arith.constant 0 : index
    %c0_34 = arith.constant 0 : index
    %22 = vector.load %arg10[%c0_33, %c0_34] : memref<1x256xf32, #tpu.memory_space<vmem>>, vector<1x256xf32>
    %23 = math.exp %22 : vector<1x256xf32>
    %c0_35 = arith.constant 0 : index
    %c0_36 = arith.constant 0 : index
    %24 = vector.load %arg11[%c0_35, %c0_36] : memref<1x256xf32, #tpu.memory_space<vmem>>, vector<1x256xf32>
    %25 = arith.mulf %23, %24 : vector<1x256xf32>
    %26 = arith.addf %21, %25 : vector<1x256xf32>
    %c0_37 = arith.constant 0 : index
    %c0_38 = arith.constant 0 : index
    %27 = vector.load %arg27[%c0_37, %c0_38] : memref<1x256xf32, #tpu.memory_space<vmem>>, vector<1x256xf32>
    tpu.vector_store %arg27[%c0_37, %c0_38], %26 {strides = array<i32>} : memref<1x256xf32, #tpu.memory_space<vmem>>, vector<1x256xf32>,
    %c0_39 = arith.constant 0 : index
    %c0_40 = arith.constant 0 : index
    %c0_41 = arith.constant 0 : index
    %28 = vector.load %arg12[%c0_39, %c0_40, %c0_41] : memref<4x128x128xf32, #tpu.memory_space<vmem>>, vector<4x128x128xf32>
    %c0_42 = arith.constant 0 : index
    %c0_43 = arith.constant 0 : index
    %c0_44 = arith.constant 0 : index
    %29 = vector.load %arg13[%c0_42, %c0_43, %c0_44] : memref<4x128x128xf32, #tpu.memory_space<vmem>>, vector<4x128x128xf32>
    %30 = math.exp %29 : vector<4x128x128xf32>
    %c0_45 = arith.constant 0 : index
    %c0_46 = arith.constant 0 : index
    %c0_47 = arith.constant 0 : index
    %31 = vector.load %arg14[%c0_45, %c0_46, %c0_47] : memref<4x128x128xf32, #tpu.memory_space<vmem>>, vector<4x128x128xf32>
    %32 = arith.mulf %30, %31 : vector<4x128x128xf32>
    %33 = arith.addf %28, %32 : vector<4x128x128xf32>
    %c0_48 = arith.constant 0 : index
    %c0_49 = arith.constant 0 : index
    %c0_50 = arith.constant 0 : index
    %34 = vector.load %arg28[%c0_48, %c0_49, %c0_50] : memref<4x128x128xf32, #tpu.memory_space<vmem>>, vector<4x128x128xf32>
    tpu.vector_store %arg28[%c0_48, %c0_49, %c0_50], %33 {strides = array<i32>} : memref<4x128x128xf32, #tpu.memory_space<vmem>>, vector<4x128x128xf32>,
    %c0_51 = arith.constant 0 : index
    %c0_52 = arith.constant 0 : index
    %35 = vector.load %arg15[%c0_51, %c0_52] : memref<1x128xf32, #tpu.memory_space<vmem>>, vector<1x128xf32>
    %c0_53 = arith.constant 0 : index
    %c0_54 = arith.constant 0 : index
    %36 = vector.load %arg16[%c0_53, %c0_54] : memref<1x128xf32, #tpu.memory_space<vmem>>, vector<1x128xf32>
    %37 = math.exp %36 : vector<1x128xf32>
    %c0_55 = arith.constant 0 : index
    %c0_56 = arith.constant 0 : index
    %38 = vector.load %arg17[%c0_55, %c0_56] : memref<1x128xf32, #tpu.memory_space<vmem>>, vector<1x128xf32>
    %39 = arith.mulf %37, %38 : vector<1x128xf32>
    %40 = arith.addf %35, %39 : vector<1x128xf32>
    %c0_57 = arith.constant 0 : index
    %c0_58 = arith.constant 0 : index
    %41 = vector.load %arg29[%c0_57, %c0_58] : memref<1x128xf32, #tpu.memory_space<vmem>>, vector<1x128xf32>
    tpu.vector_store %arg29[%c0_57, %c0_58], %40 {strides = array<i32>} : memref<1x128xf32, #tpu.memory_space<vmem>>, vector<1x128xf32>,
    %c0_59 = arith.constant 0 : index
    %c0_60 = arith.constant 0 : index
    %42 = vector.load %arg18[%c0_59, %c0_60] : memref<128x128xf32, #tpu.memory_space<vmem>>, vector<128x128xf32>
    %c0_61 = arith.constant 0 : index
    %c0_62 = arith.constant 0 : index
    %43 = vector.load %arg19[%c0_61, %c0_62] : memref<128x128xf32, #tpu.memory_space<vmem>>, vector<128x128xf32>
    %44 = math.exp %43 : vector<128x128xf32>
    %c0_63 = arith.constant 0 : index
    %c0_64 = arith.constant 0 : index
    %45 = vector.load %arg20[%c0_63, %c0_64] : memref<128x128xf32, #tpu.memory_space<vmem>>, vector<128x128xf32>
    %46 = arith.mulf %44, %45 : vector<128x128xf32>
    %47 = arith.addf %42, %46 : vector<128x128xf32>
    %c0_65 = arith.constant 0 : index
    %c0_66 = arith.constant 0 : index
    %48 = vector.load %arg30[%c0_65, %c0_66] : memref<128x128xf32, #tpu.memory_space<vmem>>, vector<128x128xf32>
    tpu.vector_store %arg30[%c0_65, %c0_66], %47 {strides = array<i32>} : memref<128x128xf32, #tpu.memory_space<vmem>>, vector<128x128xf32>,
    %c0_67 = arith.constant 0 : index
    %c0_68 = arith.constant 0 : index
    %49 = vector.load %arg21[%c0_67, %c0_68] : memref<1x128xf32, #tpu.memory_space<vmem>>, vector<1x128xf32>
    %c0_69 = arith.constant 0 : index
    %c0_70 = arith.constant 0 : index
    %50 = vector.load %arg22[%c0_69, %c0_70] : memref<1x128xf32, #tpu.memory_space<vmem>>, vector<1x128xf32>
    %51 = math.exp %50 : vector<1x128xf32>
    %c0_71 = arith.constant 0 : index
    %c0_72 = arith.constant 0 : index
    %52 = vector.load %arg23[%c0_71, %c0_72] : memref<1x128xf32, #tpu.memory_space<vmem>>, vector<1x128xf32>
    %53 = arith.mulf %51, %52 : vector<1x128xf32>
    %54 = arith.addf %49, %53 : vector<1x128xf32>
    %c0_73 = arith.constant 0 : index
    %c0_74 = arith.constant 0 : index
    %55 = vector.load %arg31[%c0_73, %c0_74] : memref<1x128xf32, #tpu.memory_space<vmem>>, vector<1x128xf32>
    tpu.vector_store %arg31[%c0_73, %c0_74], %54 {strides = array<i32>} : memref<1x128xf32, #tpu.memory_space<vmem>>, vector<1x128xf32>,
    return
  }
}

module attributes {stable_mosaic.version = 11 : i64} {
  func.func @_vicnn_fused_kernel(%arg0: i32, %arg1: memref<28x8x28xf32, #tpu.memory_space<vmem>>, %arg2: memref<5x28x384xf32, #tpu.memory_space<vmem>>, %arg3: memref<1x384xf32, #tpu.memory_space<vmem>>, %arg4: memref<5x192x256xf32, #tpu.memory_space<vmem>>, %arg5: memref<1x256xf32, #tpu.memory_space<vmem>>, %arg6: memref<4x128x128xf32, #tpu.memory_space<vmem>>, %arg7: memref<1x128xf32, #tpu.memory_space<vmem>>, %arg8: memref<128x128xf32, #tpu.memory_space<vmem>>, %arg9: memref<1x128xf32, #tpu.memory_space<vmem>>, %arg10: memref<8x128xf32, #tpu.memory_space<vmem>>) attributes {dimension_semantics = [#tpu.dimension_semantics<parallel>], iteration_bounds = array<i64: 1>, scalar_prefetch = 0 : i64, scratch_operands = 0 : i64, tpu.core_type = #tpu.core_type<tc>, window_params = [{transform_indices = @transform_0, window_bounds = array<i64: 28, 8, 28>}, {pipeline_mode = #tpu.pipeline_mode<synchronous>, transform_indices = @transform_1, window_bounds = array<i64: 5, 28, 384>}, {pipeline_mode = #tpu.pipeline_mode<synchronous>, transform_indices = @transform_2, window_bounds = array<i64: 1, 384>}, {pipeline_mode = #tpu.pipeline_mode<synchronous>, transform_indices = @transform_3, window_bounds = array<i64: 5, 192, 256>}, {pipeline_mode = #tpu.pipeline_mode<synchronous>, transform_indices = @transform_4, window_bounds = array<i64: 1, 256>}, {pipeline_mode = #tpu.pipeline_mode<synchronous>, transform_indices = @transform_5, window_bounds = array<i64: 4, 128, 128>}, {pipeline_mode = #tpu.pipeline_mode<synchronous>, transform_indices = @transform_6, window_bounds = array<i64: 1, 128>}, {pipeline_mode = #tpu.pipeline_mode<synchronous>, transform_indices = @transform_7, window_bounds = array<i64: 128, 128>}, {pipeline_mode = #tpu.pipeline_mode<synchronous>, transform_indices = @transform_8, window_bounds = array<i64: 1, 128>}, {transform_indices = @transform_9, window_bounds = array<i64: 8, 128>}]} {
    %c0 = arith.constant 0 : index
    %c0_0 = arith.constant 0 : index
    %c0_1 = arith.constant 0 : index
    %0 = vector.load %arg1[%c0, %c0_0, %c0_1] : memref<28x8x28xf32, #tpu.memory_space<vmem>>, vector<28x8x28xf32>
    %cst = arith.constant 0.000000e+00 : f32
    %1 = vector.broadcast %cst : f32 to vector<192x384xf32>
    %2 = vector.extract_strided_slice %0 {offsets = [0, 0, 0], sizes = [24, 8, 28], strides = [1, 1, 1]} : vector<28x8x28xf32> to vector<24x8x28xf32>
    %3 = vector.shape_cast %2 : vector<24x8x28xf32> to vector<192x28xf32>
    %c0_2 = arith.constant 0 : index
    %c0_3 = arith.constant 0 : index
    %c0_4 = arith.constant 0 : index
    %4 = vector.load %arg2[%c0_2, %c0_3, %c0_4] : memref<5x28x384xf32, #tpu.memory_space<vmem>>, vector<1x28x384xf32>
    %5 = vector.shape_cast %4 : vector<1x28x384xf32> to vector<28x384xf32>
    %cst_5 = arith.constant dense<0.000000e+00> : vector<192x384xf32>
    %6 = tpu.matmul %3, %5, %cst_5 {dimension_numbers = #tpu.dot_dimension_numbers<[1], [0], [0], [1], [0, 0, 1, 1], [], []>} : vector<192x28xf32>, vector<28x384xf32>, vector<192x384xf32> -> vector<192x384xf32>
    %7 = arith.addf %1, %6 : vector<192x384xf32>
    %8 = vector.extract_strided_slice %0 {offsets = [1, 0, 0], sizes = [24, 8, 28], strides = [1, 1, 1]} : vector<28x8x28xf32> to vector<24x8x28xf32>
    %9 = vector.shape_cast %8 : vector<24x8x28xf32> to vector<192x28xf32>
    %c1 = arith.constant 1 : index
    %c0_6 = arith.constant 0 : index
    %c0_7 = arith.constant 0 : index
    %10 = vector.load %arg2[%c1, %c0_6, %c0_7] : memref<5x28x384xf32, #tpu.memory_space<vmem>>, vector<1x28x384xf32>
    %11 = vector.shape_cast %10 : vector<1x28x384xf32> to vector<28x384xf32>
    %cst_8 = arith.constant dense<0.000000e+00> : vector<192x384xf32>
    %12 = tpu.matmul %9, %11, %cst_8 {dimension_numbers = #tpu.dot_dimension_numbers<[1], [0], [0], [1], [0, 0, 1, 1], [], []>} : vector<192x28xf32>, vector<28x384xf32>, vector<192x384xf32> -> vector<192x384xf32>
    %13 = arith.addf %7, %12 : vector<192x384xf32>
    %14 = vector.extract_strided_slice %0 {offsets = [2, 0, 0], sizes = [24, 8, 28], strides = [1, 1, 1]} : vector<28x8x28xf32> to vector<24x8x28xf32>
    %15 = vector.shape_cast %14 : vector<24x8x28xf32> to vector<192x28xf32>
    %c2 = arith.constant 2 : index
    %c0_9 = arith.constant 0 : index
    %c0_10 = arith.constant 0 : index
    %16 = vector.load %arg2[%c2, %c0_9, %c0_10] : memref<5x28x384xf32, #tpu.memory_space<vmem>>, vector<1x28x384xf32>
    %17 = vector.shape_cast %16 : vector<1x28x384xf32> to vector<28x384xf32>
    %cst_11 = arith.constant dense<0.000000e+00> : vector<192x384xf32>
    %18 = tpu.matmul %15, %17, %cst_11 {dimension_numbers = #tpu.dot_dimension_numbers<[1], [0], [0], [1], [0, 0, 1, 1], [], []>} : vector<192x28xf32>, vector<28x384xf32>, vector<192x384xf32> -> vector<192x384xf32>
    %19 = arith.addf %13, %18 : vector<192x384xf32>
    %20 = vector.extract_strided_slice %0 {offsets = [3, 0, 0], sizes = [24, 8, 28], strides = [1, 1, 1]} : vector<28x8x28xf32> to vector<24x8x28xf32>
    %21 = vector.shape_cast %20 : vector<24x8x28xf32> to vector<192x28xf32>
    %c3 = arith.constant 3 : index
    %c0_12 = arith.constant 0 : index
    %c0_13 = arith.constant 0 : index
    %22 = vector.load %arg2[%c3, %c0_12, %c0_13] : memref<5x28x384xf32, #tpu.memory_space<vmem>>, vector<1x28x384xf32>
    %23 = vector.shape_cast %22 : vector<1x28x384xf32> to vector<28x384xf32>
    %cst_14 = arith.constant dense<0.000000e+00> : vector<192x384xf32>
    %24 = tpu.matmul %21, %23, %cst_14 {dimension_numbers = #tpu.dot_dimension_numbers<[1], [0], [0], [1], [0, 0, 1, 1], [], []>} : vector<192x28xf32>, vector<28x384xf32>, vector<192x384xf32> -> vector<192x384xf32>
    %25 = arith.addf %19, %24 : vector<192x384xf32>
    %26 = vector.extract_strided_slice %0 {offsets = [4, 0, 0], sizes = [24, 8, 28], strides = [1, 1, 1]} : vector<28x8x28xf32> to vector<24x8x28xf32>
    %27 = vector.shape_cast %26 : vector<24x8x28xf32> to vector<192x28xf32>
    %c4 = arith.constant 4 : index
    %c0_15 = arith.constant 0 : index
    %c0_16 = arith.constant 0 : index
    %28 = vector.load %arg2[%c4, %c0_15, %c0_16] : memref<5x28x384xf32, #tpu.memory_space<vmem>>, vector<1x28x384xf32>
    %29 = vector.shape_cast %28 : vector<1x28x384xf32> to vector<28x384xf32>
    %cst_17 = arith.constant dense<0.000000e+00> : vector<192x384xf32>
    %30 = tpu.matmul %27, %29, %cst_17 {dimension_numbers = #tpu.dot_dimension_numbers<[1], [0], [0], [1], [0, 0, 1, 1], [], []>} : vector<192x28xf32>, vector<28x384xf32>, vector<192x384xf32> -> vector<192x384xf32>
    %31 = arith.addf %25, %30 : vector<192x384xf32>
    %c0_18 = arith.constant 0 : index
    %c0_19 = arith.constant 0 : index
    %32 = vector.load %arg3[%c0_18, %c0_19] : memref<1x384xf32, #tpu.memory_space<vmem>>, vector<1x384xf32>
    %33 = vector.broadcast %32 : vector<1x384xf32> to vector<192x384xf32>
    %34 = arith.addf %31, %33 : vector<192x384xf32>
    %35 = vector.extract_strided_slice %34 {offsets = [0, 0], sizes = [192, 16], strides = [1, 1]} : vector<192x384xf32> to vector<192x16xf32>
    %36 = vector.extract_strided_slice %34 {offsets = [0, 16], sizes = [192, 16], strides = [1, 1]} : vector<192x384xf32> to vector<192x16xf32>
    %37 = arith.maximumf %35, %36 : vector<192x16xf32>
    %38 = vector.extract_strided_slice %34 {offsets = [0, 32], sizes = [192, 16], strides = [1, 1]} : vector<192x384xf32> to vector<192x16xf32>
    %39 = vector.extract_strided_slice %34 {offsets = [0, 48], sizes = [192, 16], strides = [1, 1]} : vector<192x384xf32> to vector<192x16xf32>
    %40 = arith.maximumf %38, %39 : vector<192x16xf32>
    %41 = vector.extract_strided_slice %34 {offsets = [0, 64], sizes = [192, 16], strides = [1, 1]} : vector<192x384xf32> to vector<192x16xf32>
    %42 = vector.extract_strided_slice %34 {offsets = [0, 80], sizes = [192, 16], strides = [1, 1]} : vector<192x384xf32> to vector<192x16xf32>
    %43 = arith.maximumf %41, %42 : vector<192x16xf32>
    %44 = vector.extract_strided_slice %34 {offsets = [0, 96], sizes = [192, 16], strides = [1, 1]} : vector<192x384xf32> to vector<192x16xf32>
    %45 = vector.extract_strided_slice %34 {offsets = [0, 112], sizes = [192, 16], strides = [1, 1]} : vector<192x384xf32> to vector<192x16xf32>
    %46 = arith.maximumf %44, %45 : vector<192x16xf32>
    %47 = vector.extract_strided_slice %34 {offsets = [0, 128], sizes = [192, 16], strides = [1, 1]} : vector<192x384xf32> to vector<192x16xf32>
    %48 = vector.extract_strided_slice %34 {offsets = [0, 144], sizes = [192, 16], strides = [1, 1]} : vector<192x384xf32> to vector<192x16xf32>
    %49 = arith.maximumf %47, %48 : vector<192x16xf32>
    %50 = vector.extract_strided_slice %34 {offsets = [0, 160], sizes = [192, 16], strides = [1, 1]} : vector<192x384xf32> to vector<192x16xf32>
    %51 = vector.extract_strided_slice %34 {offsets = [0, 176], sizes = [192, 16], strides = [1, 1]} : vector<192x384xf32> to vector<192x16xf32>
    %52 = arith.maximumf %50, %51 : vector<192x16xf32>
    %53 = vector.extract_strided_slice %34 {offsets = [0, 192], sizes = [192, 16], strides = [1, 1]} : vector<192x384xf32> to vector<192x16xf32>
    %54 = vector.extract_strided_slice %34 {offsets = [0, 208], sizes = [192, 16], strides = [1, 1]} : vector<192x384xf32> to vector<192x16xf32>
    %55 = arith.maximumf %53, %54 : vector<192x16xf32>
    %56 = vector.extract_strided_slice %34 {offsets = [0, 224], sizes = [192, 16], strides = [1, 1]} : vector<192x384xf32> to vector<192x16xf32>
    %57 = vector.extract_strided_slice %34 {offsets = [0, 240], sizes = [192, 16], strides = [1, 1]} : vector<192x384xf32> to vector<192x16xf32>
    %58 = arith.maximumf %56, %57 : vector<192x16xf32>
    %59 = vector.extract_strided_slice %34 {offsets = [0, 256], sizes = [192, 16], strides = [1, 1]} : vector<192x384xf32> to vector<192x16xf32>
    %60 = vector.extract_strided_slice %34 {offsets = [0, 272], sizes = [192, 16], strides = [1, 1]} : vector<192x384xf32> to vector<192x16xf32>
    %61 = arith.maximumf %59, %60 : vector<192x16xf32>
    %62 = vector.extract_strided_slice %34 {offsets = [0, 288], sizes = [192, 16], strides = [1, 1]} : vector<192x384xf32> to vector<192x16xf32>
    %63 = vector.extract_strided_slice %34 {offsets = [0, 304], sizes = [192, 16], strides = [1, 1]} : vector<192x384xf32> to vector<192x16xf32>
    %64 = arith.maximumf %62, %63 : vector<192x16xf32>
    %65 = vector.extract_strided_slice %34 {offsets = [0, 320], sizes = [192, 16], strides = [1, 1]} : vector<192x384xf32> to vector<192x16xf32>
    %66 = vector.extract_strided_slice %34 {offsets = [0, 336], sizes = [192, 16], strides = [1, 1]} : vector<192x384xf32> to vector<192x16xf32>
    %67 = arith.maximumf %65, %66 : vector<192x16xf32>
    %68 = vector.extract_strided_slice %34 {offsets = [0, 352], sizes = [192, 16], strides = [1, 1]} : vector<192x384xf32> to vector<192x16xf32>
    %69 = vector.extract_strided_slice %34 {offsets = [0, 368], sizes = [192, 16], strides = [1, 1]} : vector<192x384xf32> to vector<192x16xf32>
    %70 = arith.maximumf %68, %69 : vector<192x16xf32>
    %71 = tpu.concatenate %37, %40, %43, %46, %49, %52, %55, %58, %61, %64, %67, %70 in 1 : vector<192x16xf32>, vector<192x16xf32>, vector<192x16xf32>, vector<192x16xf32>, vector<192x16xf32>, vector<192x16xf32>, vector<192x16xf32>, vector<192x16xf32>, vector<192x16xf32>, vector<192x16xf32>, vector<192x16xf32>, vector<192x16xf32> -> vector<192x192xf32>
    %72 = vector.extract_strided_slice %71 {offsets = [0, 0], sizes = [8, 192], strides = [1, 1]} : vector<192x192xf32> to vector<8x192xf32>
    %73 = vector.extract_strided_slice %71 {offsets = [8, 0], sizes = [8, 192], strides = [1, 1]} : vector<192x192xf32> to vector<8x192xf32>
    %74 = arith.maximumf %72, %73 : vector<8x192xf32>
    %75 = vector.extract_strided_slice %71 {offsets = [16, 0], sizes = [8, 192], strides = [1, 1]} : vector<192x192xf32> to vector<8x192xf32>
    %76 = vector.extract_strided_slice %71 {offsets = [24, 0], sizes = [8, 192], strides = [1, 1]} : vector<192x192xf32> to vector<8x192xf32>
    %77 = arith.maximumf %75, %76 : vector<8x192xf32>
    %78 = vector.extract_strided_slice %71 {offsets = [32, 0], sizes = [8, 192], strides = [1, 1]} : vector<192x192xf32> to vector<8x192xf32>
    %79 = vector.extract_strided_slice %71 {offsets = [40, 0], sizes = [8, 192], strides = [1, 1]} : vector<192x192xf32> to vector<8x192xf32>
    %80 = arith.maximumf %78, %79 : vector<8x192xf32>
    %81 = vector.extract_strided_slice %71 {offsets = [48, 0], sizes = [8, 192], strides = [1, 1]} : vector<192x192xf32> to vector<8x192xf32>
    %82 = vector.extract_strided_slice %71 {offsets = [56, 0], sizes = [8, 192], strides = [1, 1]} : vector<192x192xf32> to vector<8x192xf32>
    %83 = arith.maximumf %81, %82 : vector<8x192xf32>
    %84 = vector.extract_strided_slice %71 {offsets = [64, 0], sizes = [8, 192], strides = [1, 1]} : vector<192x192xf32> to vector<8x192xf32>
    %85 = vector.extract_strided_slice %71 {offsets = [72, 0], sizes = [8, 192], strides = [1, 1]} : vector<192x192xf32> to vector<8x192xf32>
    %86 = arith.maximumf %84, %85 : vector<8x192xf32>
    %87 = vector.extract_strided_slice %71 {offsets = [80, 0], sizes = [8, 192], strides = [1, 1]} : vector<192x192xf32> to vector<8x192xf32>
    %88 = vector.extract_strided_slice %71 {offsets = [88, 0], sizes = [8, 192], strides = [1, 1]} : vector<192x192xf32> to vector<8x192xf32>
    %89 = arith.maximumf %87, %88 : vector<8x192xf32>
    %90 = vector.extract_strided_slice %71 {offsets = [96, 0], sizes = [8, 192], strides = [1, 1]} : vector<192x192xf32> to vector<8x192xf32>
    %91 = vector.extract_strided_slice %71 {offsets = [104, 0], sizes = [8, 192], strides = [1, 1]} : vector<192x192xf32> to vector<8x192xf32>
    %92 = arith.maximumf %90, %91 : vector<8x192xf32>
    %93 = vector.extract_strided_slice %71 {offsets = [112, 0], sizes = [8, 192], strides = [1, 1]} : vector<192x192xf32> to vector<8x192xf32>
    %94 = vector.extract_strided_slice %71 {offsets = [120, 0], sizes = [8, 192], strides = [1, 1]} : vector<192x192xf32> to vector<8x192xf32>
    %95 = arith.maximumf %93, %94 : vector<8x192xf32>
    %96 = vector.extract_strided_slice %71 {offsets = [128, 0], sizes = [8, 192], strides = [1, 1]} : vector<192x192xf32> to vector<8x192xf32>
    %97 = vector.extract_strided_slice %71 {offsets = [136, 0], sizes = [8, 192], strides = [1, 1]} : vector<192x192xf32> to vector<8x192xf32>
    %98 = arith.maximumf %96, %97 : vector<8x192xf32>
    %99 = vector.extract_strided_slice %71 {offsets = [144, 0], sizes = [8, 192], strides = [1, 1]} : vector<192x192xf32> to vector<8x192xf32>
    %100 = vector.extract_strided_slice %71 {offsets = [152, 0], sizes = [8, 192], strides = [1, 1]} : vector<192x192xf32> to vector<8x192xf32>
    %101 = arith.maximumf %99, %100 : vector<8x192xf32>
    %102 = vector.extract_strided_slice %71 {offsets = [160, 0], sizes = [8, 192], strides = [1, 1]} : vector<192x192xf32> to vector<8x192xf32>
    %103 = vector.extract_strided_slice %71 {offsets = [168, 0], sizes = [8, 192], strides = [1, 1]} : vector<192x192xf32> to vector<8x192xf32>
    %104 = arith.maximumf %102, %103 : vector<8x192xf32>
    %105 = vector.extract_strided_slice %71 {offsets = [176, 0], sizes = [8, 192], strides = [1, 1]} : vector<192x192xf32> to vector<8x192xf32>
    %106 = vector.extract_strided_slice %71 {offsets = [184, 0], sizes = [8, 192], strides = [1, 1]} : vector<192x192xf32> to vector<8x192xf32>
    %107 = arith.maximumf %105, %106 : vector<8x192xf32>
    %108 = tpu.concatenate %74, %77, %80, %83, %86, %89, %92, %95, %98, %101, %104, %107 in 0 : vector<8x192xf32>, vector<8x192xf32>, vector<8x192xf32>, vector<8x192xf32>, vector<8x192xf32>, vector<8x192xf32>, vector<8x192xf32>, vector<8x192xf32>, vector<8x192xf32>, vector<8x192xf32>, vector<8x192xf32>, vector<8x192xf32> -> vector<96x192xf32>
    %cst_20 = arith.constant 0.000000e+00 : f32
    %109 = vector.broadcast %cst_20 : f32 to vector<96x192xf32>
    %110 = arith.maximumf %108, %109 : vector<96x192xf32>
    %cst_21 = arith.constant 0.000000e+00 : f32
    %111 = vector.broadcast %cst_21 : f32 to vector<64x256xf32>
    %112 = vector.extract_strided_slice %110 {offsets = [0, 0], sizes = [64, 192], strides = [1, 1]} : vector<96x192xf32> to vector<64x192xf32>
    %c0_22 = arith.constant 0 : index
    %c0_23 = arith.constant 0 : index
    %c0_24 = arith.constant 0 : index
    %113 = vector.load %arg4[%c0_22, %c0_23, %c0_24] : memref<5x192x256xf32, #tpu.memory_space<vmem>>, vector<1x192x256xf32>
    %114 = vector.shape_cast %113 : vector<1x192x256xf32> to vector<192x256xf32>
    %cst_25 = arith.constant dense<0.000000e+00> : vector<64x256xf32>
    %115 = tpu.matmul %112, %114, %cst_25 {dimension_numbers = #tpu.dot_dimension_numbers<[1], [0], [0], [1], [0, 0, 1, 1], [], []>} : vector<64x192xf32>, vector<192x256xf32>, vector<64x256xf32> -> vector<64x256xf32>
    %116 = arith.addf %111, %115 : vector<64x256xf32>
    %117 = vector.extract_strided_slice %110 {offsets = [8, 0], sizes = [64, 192], strides = [1, 1]} : vector<96x192xf32> to vector<64x192xf32>
    %c1_26 = arith.constant 1 : index
    %c0_27 = arith.constant 0 : index
    %c0_28 = arith.constant 0 : index
    %118 = vector.load %arg4[%c1_26, %c0_27, %c0_28] : memref<5x192x256xf32, #tpu.memory_space<vmem>>, vector<1x192x256xf32>
    %119 = vector.shape_cast %118 : vector<1x192x256xf32> to vector<192x256xf32>
    %cst_29 = arith.constant dense<0.000000e+00> : vector<64x256xf32>
    %120 = tpu.matmul %117, %119, %cst_29 {dimension_numbers = #tpu.dot_dimension_numbers<[1], [0], [0], [1], [0, 0, 1, 1], [], []>} : vector<64x192xf32>, vector<192x256xf32>, vector<64x256xf32> -> vector<64x256xf32>
    %121 = arith.addf %116, %120 : vector<64x256xf32>
    %122 = vector.extract_strided_slice %110 {offsets = [16, 0], sizes = [64, 192], strides = [1, 1]} : vector<96x192xf32> to vector<64x192xf32>
    %c2_30 = arith.constant 2 : index
    %c0_31 = arith.constant 0 : index
    %c0_32 = arith.constant 0 : index
    %123 = vector.load %arg4[%c2_30, %c0_31, %c0_32] : memref<5x192x256xf32, #tpu.memory_space<vmem>>, vector<1x192x256xf32>
    %124 = vector.shape_cast %123 : vector<1x192x256xf32> to vector<192x256xf32>
    %cst_33 = arith.constant dense<0.000000e+00> : vector<64x256xf32>
    %125 = tpu.matmul %122, %124, %cst_33 {dimension_numbers = #tpu.dot_dimension_numbers<[1], [0], [0], [1], [0, 0, 1, 1], [], []>} : vector<64x192xf32>, vector<192x256xf32>, vector<64x256xf32> -> vector<64x256xf32>
    %126 = arith.addf %121, %125 : vector<64x256xf32>
    %127 = vector.extract_strided_slice %110 {offsets = [24, 0], sizes = [64, 192], strides = [1, 1]} : vector<96x192xf32> to vector<64x192xf32>
    %c3_34 = arith.constant 3 : index
    %c0_35 = arith.constant 0 : index
    %c0_36 = arith.constant 0 : index
    %128 = vector.load %arg4[%c3_34, %c0_35, %c0_36] : memref<5x192x256xf32, #tpu.memory_space<vmem>>, vector<1x192x256xf32>
    %129 = vector.shape_cast %128 : vector<1x192x256xf32> to vector<192x256xf32>
    %cst_37 = arith.constant dense<0.000000e+00> : vector<64x256xf32>
    %130 = tpu.matmul %127, %129, %cst_37 {dimension_numbers = #tpu.dot_dimension_numbers<[1], [0], [0], [1], [0, 0, 1, 1], [], []>} : vector<64x192xf32>, vector<192x256xf32>, vector<64x256xf32> -> vector<64x256xf32>
    %131 = arith.addf %126, %130 : vector<64x256xf32>
    %132 = vector.extract_strided_slice %110 {offsets = [32, 0], sizes = [64, 192], strides = [1, 1]} : vector<96x192xf32> to vector<64x192xf32>
    %c4_38 = arith.constant 4 : index
    %c0_39 = arith.constant 0 : index
    %c0_40 = arith.constant 0 : index
    %133 = vector.load %arg4[%c4_38, %c0_39, %c0_40] : memref<5x192x256xf32, #tpu.memory_space<vmem>>, vector<1x192x256xf32>
    %134 = vector.shape_cast %133 : vector<1x192x256xf32> to vector<192x256xf32>
    %cst_41 = arith.constant dense<0.000000e+00> : vector<64x256xf32>
    %135 = tpu.matmul %132, %134, %cst_41 {dimension_numbers = #tpu.dot_dimension_numbers<[1], [0], [0], [1], [0, 0, 1, 1], [], []>} : vector<64x192xf32>, vector<192x256xf32>, vector<64x256xf32> -> vector<64x256xf32>
    %136 = arith.addf %131, %135 : vector<64x256xf32>
    %c0_42 = arith.constant 0 : index
    %c0_43 = arith.constant 0 : index
    %137 = vector.load %arg5[%c0_42, %c0_43] : memref<1x256xf32, #tpu.memory_space<vmem>>, vector<1x256xf32>
    %138 = vector.broadcast %137 : vector<1x256xf32> to vector<64x256xf32>
    %139 = arith.addf %136, %138 : vector<64x256xf32>
    %140 = vector.extract_strided_slice %139 {offsets = [0, 0], sizes = [64, 32], strides = [1, 1]} : vector<64x256xf32> to vector<64x32xf32>
    %141 = vector.extract_strided_slice %139 {offsets = [0, 32], sizes = [64, 32], strides = [1, 1]} : vector<64x256xf32> to vector<64x32xf32>
    %142 = arith.maximumf %140, %141 : vector<64x32xf32>
    %143 = vector.extract_strided_slice %139 {offsets = [0, 64], sizes = [64, 32], strides = [1, 1]} : vector<64x256xf32> to vector<64x32xf32>
    %144 = vector.extract_strided_slice %139 {offsets = [0, 96], sizes = [64, 32], strides = [1, 1]} : vector<64x256xf32> to vector<64x32xf32>
    %145 = arith.maximumf %143, %144 : vector<64x32xf32>
    %146 = vector.extract_strided_slice %139 {offsets = [0, 128], sizes = [64, 32], strides = [1, 1]} : vector<64x256xf32> to vector<64x32xf32>
    %147 = vector.extract_strided_slice %139 {offsets = [0, 160], sizes = [64, 32], strides = [1, 1]} : vector<64x256xf32> to vector<64x32xf32>
    %148 = arith.maximumf %146, %147 : vector<64x32xf32>
    %149 = vector.extract_strided_slice %139 {offsets = [0, 192], sizes = [64, 32], strides = [1, 1]} : vector<64x256xf32> to vector<64x32xf32>
    %150 = vector.extract_strided_slice %139 {offsets = [0, 224], sizes = [64, 32], strides = [1, 1]} : vector<64x256xf32> to vector<64x32xf32>
    %151 = arith.maximumf %149, %150 : vector<64x32xf32>
    %152 = tpu.concatenate %142, %145, %148, %151 in 1 : vector<64x32xf32>, vector<64x32xf32>, vector<64x32xf32>, vector<64x32xf32> -> vector<64x128xf32>
    %153 = vector.extract_strided_slice %152 {offsets = [0, 0], sizes = [8, 128], strides = [1, 1]} : vector<64x128xf32> to vector<8x128xf32>
    %154 = vector.extract_strided_slice %152 {offsets = [8, 0], sizes = [8, 128], strides = [1, 1]} : vector<64x128xf32> to vector<8x128xf32>
    %155 = arith.maximumf %153, %154 : vector<8x128xf32>
    %156 = vector.extract_strided_slice %152 {offsets = [16, 0], sizes = [8, 128], strides = [1, 1]} : vector<64x128xf32> to vector<8x128xf32>
    %157 = vector.extract_strided_slice %152 {offsets = [24, 0], sizes = [8, 128], strides = [1, 1]} : vector<64x128xf32> to vector<8x128xf32>
    %158 = arith.maximumf %156, %157 : vector<8x128xf32>
    %159 = vector.extract_strided_slice %152 {offsets = [32, 0], sizes = [8, 128], strides = [1, 1]} : vector<64x128xf32> to vector<8x128xf32>
    %160 = vector.extract_strided_slice %152 {offsets = [40, 0], sizes = [8, 128], strides = [1, 1]} : vector<64x128xf32> to vector<8x128xf32>
    %161 = arith.maximumf %159, %160 : vector<8x128xf32>
    %162 = vector.extract_strided_slice %152 {offsets = [48, 0], sizes = [8, 128], strides = [1, 1]} : vector<64x128xf32> to vector<8x128xf32>
    %163 = vector.extract_strided_slice %152 {offsets = [56, 0], sizes = [8, 128], strides = [1, 1]} : vector<64x128xf32> to vector<8x128xf32>
    %164 = arith.maximumf %162, %163 : vector<8x128xf32>
    %165 = tpu.concatenate %155, %158, %161, %164 in 0 : vector<8x128xf32>, vector<8x128xf32>, vector<8x128xf32>, vector<8x128xf32> -> vector<32x128xf32>
    %cst_44 = arith.constant 0.000000e+00 : f32
    %166 = vector.broadcast %cst_44 : f32 to vector<32x128xf32>
    %167 = arith.maximumf %165, %166 : vector<32x128xf32>
    %cst_45 = arith.constant 0.000000e+00 : f32
    %168 = vector.broadcast %cst_45 : f32 to vector<8x128xf32>
    %169 = vector.extract_strided_slice %167 {offsets = [0, 0], sizes = [8, 128], strides = [1, 1]} : vector<32x128xf32> to vector<8x128xf32>
    %c0_46 = arith.constant 0 : index
    %c0_47 = arith.constant 0 : index
    %c0_48 = arith.constant 0 : index
    %170 = vector.load %arg6[%c0_46, %c0_47, %c0_48] : memref<4x128x128xf32, #tpu.memory_space<vmem>>, vector<1x128x128xf32>
    %171 = vector.shape_cast %170 : vector<1x128x128xf32> to vector<128x128xf32>
    %cst_49 = arith.constant dense<0.000000e+00> : vector<8x128xf32>
    %172 = tpu.matmul %169, %171, %cst_49 {dimension_numbers = #tpu.dot_dimension_numbers<[1], [0], [0], [1], [0, 0, 1, 1], [], []>} : vector<8x128xf32>, vector<128x128xf32>, vector<8x128xf32> -> vector<8x128xf32>
    %173 = arith.addf %168, %172 : vector<8x128xf32>
    %174 = vector.extract_strided_slice %167 {offsets = [8, 0], sizes = [8, 128], strides = [1, 1]} : vector<32x128xf32> to vector<8x128xf32>
    %c1_50 = arith.constant 1 : index
    %c0_51 = arith.constant 0 : index
    %c0_52 = arith.constant 0 : index
    %175 = vector.load %arg6[%c1_50, %c0_51, %c0_52] : memref<4x128x128xf32, #tpu.memory_space<vmem>>, vector<1x128x128xf32>
    %176 = vector.shape_cast %175 : vector<1x128x128xf32> to vector<128x128xf32>
    %cst_53 = arith.constant dense<0.000000e+00> : vector<8x128xf32>
    %177 = tpu.matmul %174, %176, %cst_53 {dimension_numbers = #tpu.dot_dimension_numbers<[1], [0], [0], [1], [0, 0, 1, 1], [], []>} : vector<8x128xf32>, vector<128x128xf32>, vector<8x128xf32> -> vector<8x128xf32>
    %178 = arith.addf %173, %177 : vector<8x128xf32>
    %179 = vector.extract_strided_slice %167 {offsets = [16, 0], sizes = [8, 128], strides = [1, 1]} : vector<32x128xf32> to vector<8x128xf32>
    %c2_54 = arith.constant 2 : index
    %c0_55 = arith.constant 0 : index
    %c0_56 = arith.constant 0 : index
    %180 = vector.load %arg6[%c2_54, %c0_55, %c0_56] : memref<4x128x128xf32, #tpu.memory_space<vmem>>, vector<1x128x128xf32>
    %181 = vector.shape_cast %180 : vector<1x128x128xf32> to vector<128x128xf32>
    %cst_57 = arith.constant dense<0.000000e+00> : vector<8x128xf32>
    %182 = tpu.matmul %179, %181, %cst_57 {dimension_numbers = #tpu.dot_dimension_numbers<[1], [0], [0], [1], [0, 0, 1, 1], [], []>} : vector<8x128xf32>, vector<128x128xf32>, vector<8x128xf32> -> vector<8x128xf32>
    %183 = arith.addf %178, %182 : vector<8x128xf32>
    %184 = vector.extract_strided_slice %167 {offsets = [24, 0], sizes = [8, 128], strides = [1, 1]} : vector<32x128xf32> to vector<8x128xf32>
    %c3_58 = arith.constant 3 : index
    %c0_59 = arith.constant 0 : index
    %c0_60 = arith.constant 0 : index
    %185 = vector.load %arg6[%c3_58, %c0_59, %c0_60] : memref<4x128x128xf32, #tpu.memory_space<vmem>>, vector<1x128x128xf32>
    %186 = vector.shape_cast %185 : vector<1x128x128xf32> to vector<128x128xf32>
    %cst_61 = arith.constant dense<0.000000e+00> : vector<8x128xf32>
    %187 = tpu.matmul %184, %186, %cst_61 {dimension_numbers = #tpu.dot_dimension_numbers<[1], [0], [0], [1], [0, 0, 1, 1], [], []>} : vector<8x128xf32>, vector<128x128xf32>, vector<8x128xf32> -> vector<8x128xf32>
    %188 = arith.addf %183, %187 : vector<8x128xf32>
    %c0_62 = arith.constant 0 : index
    %c0_63 = arith.constant 0 : index
    %189 = vector.load %arg7[%c0_62, %c0_63] : memref<1x128xf32, #tpu.memory_space<vmem>>, vector<1x128xf32>
    %190 = vector.broadcast %189 : vector<1x128xf32> to vector<8x128xf32>
    %191 = arith.addf %188, %190 : vector<8x128xf32>
    %cst_64 = arith.constant 0.000000e+00 : f32
    %192 = vector.broadcast %cst_64 : f32 to vector<8x128xf32>
    %193 = arith.maximumf %191, %192 : vector<8x128xf32>
    %c0_65 = arith.constant 0 : index
    %c0_66 = arith.constant 0 : index
    %194 = vector.load %arg8[%c0_65, %c0_66] : memref<128x128xf32, #tpu.memory_space<vmem>>, vector<128x128xf32>
    %cst_67 = arith.constant dense<0.000000e+00> : vector<8x128xf32>
    %195 = tpu.matmul %193, %194, %cst_67 {dimension_numbers = #tpu.dot_dimension_numbers<[1], [0], [0], [1], [0, 0, 1, 1], [], []>} : vector<8x128xf32>, vector<128x128xf32>, vector<8x128xf32> -> vector<8x128xf32>
    %c0_68 = arith.constant 0 : index
    %c0_69 = arith.constant 0 : index
    %196 = vector.load %arg9[%c0_68, %c0_69] : memref<1x128xf32, #tpu.memory_space<vmem>>, vector<1x128xf32>
    %197 = vector.broadcast %196 : vector<1x128xf32> to vector<8x128xf32>
    %198 = arith.addf %195, %197 : vector<8x128xf32>
    %cst_70 = arith.constant dense<0xFF800000> : vector<8xf32>
    %199 = vector.multi_reduction <maximumf>, %198, %cst_70 [1] : vector<8x128xf32> to vector<8xf32>
    %200 = vector.shape_cast %199 : vector<8xf32> to vector<8x1xf32>
    %201 = vector.broadcast %200 : vector<8x1xf32> to vector<8x128xf32>
    %202 = arith.subf %198, %201 : vector<8x128xf32>
    %203 = math.exp %202 : vector<8x128xf32>
    %cst_71 = arith.constant dense<0.000000e+00> : vector<8xf32>
    %204 = vector.multi_reduction <add>, %203, %cst_71 [1] : vector<8x128xf32> to vector<8xf32>
    %205 = vector.shape_cast %204 : vector<8xf32> to vector<8x1xf32>
    %206 = math.log %205 : vector<8x1xf32>
    %207 = arith.addf %200, %206 : vector<8x1xf32>
    %208 = vector.broadcast %207 : vector<8x1xf32> to vector<8x128xf32>
    %209 = arith.subf %198, %208 : vector<8x128xf32>
    %c0_72 = arith.constant 0 : index
    %c0_73 = arith.constant 0 : index
    %210 = vector.load %arg10[%c0_72, %c0_73] : memref<8x128xf32, #tpu.memory_space<vmem>>, vector<8x128xf32>
    tpu.vector_store %arg10[%c0_72, %c0_73], %209 {strides = array<i32>} : memref<8x128xf32, #tpu.memory_space<vmem>>, vector<8x128xf32>,
    return
  }
  func.func @transform_0(%arg0: i32) -> (i32, i32, i32) {
    %c0_i32 = arith.constant 0 : i32
    %c0_i32_0 = arith.constant 0 : i32
    %c0_i32_1 = arith.constant 0 : i32
    return %c0_i32, %arg0, %c0_i32_0 : i32, i32, i32
  }
  func.func @transform_1(%arg0: i32) -> (i32, i32, i32) {
    %c0_i32 = arith.constant 0 : i32
    %c0_i32_0 = arith.constant 0 : i32
    %c0_i32_1 = arith.constant 0 : i32
    %c0_i32_2 = arith.constant 0 : i32
    return %c0_i32, %c0_i32_0, %c0_i32_1 : i32, i32, i32
  }
  func.func @transform_2(%arg0: i32) -> (i32, i32) {
    %c0_i32 = arith.constant 0 : i32
    %c0_i32_0 = arith.constant 0 : i32
    %c0_i32_1 = arith.constant 0 : i32
    return %c0_i32, %c0_i32_0 : i32, i32
  }
  func.func @transform_3(%arg0: i32) -> (i32, i32, i32) {
    %c0_i32 = arith.constant 0 : i32
    %c0_i32_0 = arith.constant 0 : i32
    %c0_i32_1 = arith.constant 0 : i32
    %c0_i32_2 = arith.constant 0 : i32
    return %c0_i32, %c0_i32_0, %c0_i32_1 : i32, i32, i32
  }
  func.func @transform_4(%arg0: i32) -> (i32, i32) {
    %c0_i32 = arith.constant 0 : i32
    %c0_i32_0 = arith.constant 0 : i32
    %c0_i32_1 = arith.constant 0 : i32
    return %c0_i32, %c0_i32_0 : i32, i32
  }
  func.func @transform_5(%arg0: i32) -> (i32, i32, i32) {
    %c0_i32 = arith.constant 0 : i32
    %c0_i32_0 = arith.constant 0 : i32
    %c0_i32_1 = arith.constant 0 : i32
    %c0_i32_2 = arith.constant 0 : i32
    return %c0_i32, %c0_i32_0, %c0_i32_1 : i32, i32, i32
  }
  func.func @transform_6(%arg0: i32) -> (i32, i32) {
    %c0_i32 = arith.constant 0 : i32
    %c0_i32_0 = arith.constant 0 : i32
    %c0_i32_1 = arith.constant 0 : i32
    return %c0_i32, %c0_i32_0 : i32, i32
  }
  func.func @transform_7(%arg0: i32) -> (i32, i32) {
    %c0_i32 = arith.constant 0 : i32
    %c0_i32_0 = arith.constant 0 : i32
    %c0_i32_1 = arith.constant 0 : i32
    return %c0_i32, %c0_i32_0 : i32, i32
  }
  func.func @transform_8(%arg0: i32) -> (i32, i32) {
    %c0_i32 = arith.constant 0 : i32
    %c0_i32_0 = arith.constant 0 : i32
    %c0_i32_1 = arith.constant 0 : i32
    return %c0_i32, %c0_i32_0 : i32, i32
  }
  func.func @transform_9(%arg0: i32) -> (i32, i32) {
    %c0_i32 = arith.constant 0 : i32
    %c0_i32_0 = arith.constant 0 : i32
    return %arg0, %c0_i32 : i32, i32
  }
}

</mosaic_0001>

<llo_original>
// kernel: tile.33
$region0: #{tile.33}
  #allocation0 [shape = 's32[1]{0}', space=sflag, size = 0x4, scoped, tag = 'scoped memory for tile.33']
  %s0 = inlined_call_operand.vmem [shape: f32[16], index: 0, kind: input, shape index: {}]
  %s1 = inlined_call_operand.vmem [shape: f32[24,16], index: 1, kind: output, shape index: {}]
  // Predicated region
  $region2: #{tile.33} parent=0 // pred_check
    _
  $region3: #{tile.33} parent=0 // pred_check_branch
    %3 = sbr.rel (0) target = $region5
  $region4: #{tile.33} parent=0 // pred_region
    _
  $region5: #{tile.33} parent=0 // pred_fallthru
    _
  %v4 = vld [vmem:[%s0] ss:$0 sm:$0xff]
  %5 = vst [vmem:[%s1] sm:$0xff] %v4
  %s6 = scalar_lea.vmem %s1, 8
  %7 = vst [vmem:[%s6] sm:$0xff] %v4
  %s8 = scalar_lea.vmem %s1, 16
  %9 = vst [vmem:[%s8] sm:$0xff] %v4

// kernel: tile.34
$region0: #{tile.34}
  %s0 = inlined_call_operand.vmem [shape: f32[24,16], index: 0, kind: input, shape index: {}]
  %s1 = inlined_call_operand.vmem [shape: f32[1,384], index: 1, kind: output, shape index: {}]
  $region1: #{tile.34} parent=0
    #allocation0 [shape = 'u8[12288]{0}', space=vmem, size = 0x3000, scoped, tag = 'scoped mem for output reshape']
    %v2 = vld [vmem:[%s0] ss:$8 sm:$0x7]
    %vm3 = vcmask 130048
    %4 = vst.msk [vmem:[#allocation0] ss:$8 sm:$0x7] %vm3, %v2
    %s5 = scalar_lea.vmem %s0, 7
    %v6 = vld [vmem:[%s5] ss:$8 sm:$0x7]
    %7 = vrot.lane.b32.xlu0 %v6, 112
    %v8 = vpop.permute.xlu0 %7
    %vm9 = vcmask 1048448
    %10 = vst.msk [vmem:[#allocation0] ss:$8 sm:$0x7] %vm9, %v8
    %s11 = scalar_lea.vmem %s0, 6
    %v12 = vld [vmem:[%s11] ss:$8 sm:$0x7]
    %13 = vrot.lane.b32.xlu0 %v12, 96
    %v14 = vpop.permute.xlu0 %13
    %vm15 = vcmask 917248
    %16 = vst.msk [vmem:[#allocation0] ss:$8 sm:$0x7] %vm15, %v14
    %s17 = scalar_lea.vmem %s0, 5
    %v18 = vld [vmem:[%s17] ss:$8 sm:$0x7]
    %19 = vrot.lane.b32.xlu0 %v18, 80
    %v20 = vpop.permute.xlu0 %19
    %vm21 = vcmask 786048
    %22 = vst.msk [vmem:[#allocation0] ss:$8 sm:$0x7] %vm21, %v20
    %s23 = scalar_lea.vmem %s0, 4
    %v24 = vld [vmem:[%s23] ss:$8 sm:$0x7]
    %25 = vrot.lane.b32.xlu0 %v24, 64
    %v26 = vpop.permute.xlu0 %25
    %vm27 = vcmask 654848
    %28 = vst.msk [vmem:[#allocation0] ss:$8 sm:$0x7] %vm27, %v26
    %s29 = scalar_lea.vmem %s0, 3
    %v30 = vld [vmem:[%s29] ss:$8 sm:$0x7]
    %31 = vrot.lane.b32.xlu0 %v30, 48
    %v32 = vpop.permute.xlu0 %31
    %vm33 = vcmask 523648
    %34 = vst.msk [vmem:[#allocation0] ss:$8 sm:$0x7] %vm33, %v32
    %s35 = scalar_lea.vmem %s0, 2
    %v36 = vld [vmem:[%s35] ss:$8 sm:$0x7]
    %37 = vrot.lane.b32.xlu0 %v36, 32
    %v38 = vpop.permute.xlu0 %37
    %vm39 = vcmask 392448
    %40 = vst.msk [vmem:[#allocation0] ss:$8 sm:$0x7] %vm39, %v38
    %s41 = scalar_lea.vmem %s0, 1
    %v42 = vld [vmem:[%s41] ss:$8 sm:$0x7]
    %43 = vrot.lane.b32.xlu0 %v42, 16
    %v44 = vpop.permute.xlu0 %43
    %vm45 = vcmask 261248
    %46 = vst.msk [vmem:[#allocation0] ss:$8 sm:$0x7] %vm45, %v44
    %s48 = sshllo.u32 0, 1
    %v50 = vld [vmem:[#allocation0] sm:%s48]
    %s51 = sshllo.u32 0, 1
    %52 = vst [vmem:[%s1] sm:%s51] %v50
    %s53 = scalar_lea.vmem [#allocation0], 8
    %v54 = vld [vmem:[%s53] sm:%s48]
    %s55 = sshllo.u32 0, 1
    %s56 = scalar_lea.vmem %s1, 1
    %57 = vst [vmem:[%s56] sm:%s55] %v54
    %s58 = scalar_lea.vmem [#allocation0], 16
    %v59 = vld [vmem:[%s58] sm:%s48]
    %s60 = sshllo.u32 0, 1
    %s61 = smul.addr 1, 2
    %s62 = scalar_lea.vmem %s1, %s61
    %63 = vst [vmem:[%s62] sm:%s60] %v59

// kernel: tile.48
$region0: #{tile.48}
  #allocation0 [shape = 's32[1]{0}', space=sflag, size = 0x4, scoped, tag = 'scoped memory for tile.48']
  %s0 = inlined_call_operand.vmem [shape: f32[32], index: 0, kind: input, shape index: {}]
  %s1 = inlined_call_operand.vmem [shape: f32[8,32], index: 1, kind: output, shape index: {}]
  // Predicated region
  $region2: #{tile.48} parent=0 // pred_check
    _
  $region3: #{tile.48} parent=0 // pred_check_branch
    %3 = sbr.rel (0) target = $region5
  $region4: #{tile.48} parent=0 // pred_region
    _
  $region5: #{tile.48} parent=0 // pred_fallthru
    _
  %v4 = vld [vmem:[%s0] ss:$0 sm:$0xff]
  %5 = vst [vmem:[%s1] sm:$0xff] %v4

// kernel: tile.49
$region0: #{tile.49}
  %s0 = inlined_call_operand.vmem [shape: f32[8,32], index: 0, kind: input, shape index: {}]
  %s1 = inlined_call_operand.vmem [shape: f32[1,256], index: 1, kind: output, shape index: {}]
  $region1: #{tile.49} parent=0
    #allocation0 [shape = 'u8[8192]{0}', space=vmem, size = 0x2000, scoped, tag = 'scoped mem for output reshape']
    %s2 = smov 3
    %v3 = vld [vmem:[%s0] ss:$4 sm:%s2]
    %vm4 = vcmask 261120
    %5 = vst.msk [vmem:[#allocation0] ss:$8 sm:$0x3] %vm4, %v3
    %s6 = scalar_lea.vmem %s0, 3
    %s7 = smov 3
    %v8 = vld [vmem:[%s6] ss:$4 sm:%s7]
    %9 = vrot.lane.b32.xlu0 %v8, 96
    %v10 = vpop.permute.xlu0 %9
    %vm11 = vcmask 1048320
    %12 = vst.msk [vmem:[#allocation0] ss:$8 sm:$0x3] %vm11, %v10
    %s13 = scalar_lea.vmem %s0, 2
    %s14 = smov 3
    %v15 = vld [vmem:[%s13] ss:$4 sm:%s14]
    %16 = vrot.lane.b32.xlu0 %v15, 64
    %v17 = vpop.permute.xlu0 %16
    %vm18 = vcmask 785920
    %19 = vst.msk [vmem:[#allocation0] ss:$8 sm:$0x3] %vm18, %v17
    %s20 = scalar_lea.vmem %s0, 1
    %s21 = smov 3
    %v22 = vld [vmem:[%s20] ss:$4 sm:%s21]
    %23 = vrot.lane.b32.xlu0 %v22, 32
    %v24 = vpop.permute.xlu0 %23
    %vm25 = vcmask 523520
    %26 = vst.msk [vmem:[#allocation0] ss:$8 sm:$0x3] %vm25, %v24
    %s28 = sshllo.u32 0, 1
    %v30 = vld [vmem:[#allocation0] sm:%s28]
    %s31 = sshllo.u32 0, 1
    %32 = vst [vmem:[%s1] sm:%s31] %v30
    %s33 = scalar_lea.vmem [#allocation0], 8
    %v34 = vld [vmem:[%s33] sm:%s28]
    %s35 = sshllo.u32 0, 1
    %s36 = scalar_lea.vmem %s1, 1
    %37 = vst [vmem:[%s36] sm:%s35] %v34

// kernel: vicnn_forward_pallas.2
$region0: #{vicnn_forward_pallas.2}
  #allocation0 [shape = 'u32[]', space=smem, size = 0x4, offset = 0x4, fixed_abs, tag = 'smem constant byte address 0x4 - core index']
  #allocation1 [shape = 'u32[144,128]{1,0:T(1,128)}', space=vmem, size = 0x12000, scoped, tag = 'internal scratch']
  %s0 = inlined_call_operand.smem [shape: u32[32], index: -1, kind: input, shape index: {}]
  %s1 = sld [smem:[%s0]]
  %s2 = scalar_lea.smem %s0, 1
  %s3 = sld [smem:[%s2]]
  %s4 = scalar_lea.smem %s0, 2
  %s5 = sld [smem:[%s4]]
  %s6 = scalar_lea.smem %s0, 3
  %s7 = sld [smem:[%s6]]
  %s8 = scalar_lea.smem %s0, 4
  %s9 = sld [smem:[%s8]]
  %s10 = scalar_lea.smem %s0, 5
  %s11 = sld [smem:[%s10]]
  %s12 = scalar_lea.smem %s0, 6
  %s13 = sld [smem:[%s12]]
  %s14 = scalar_lea.smem %s0, 7
  %s15 = sld [smem:[%s14]]
  %s16 = scalar_lea.smem %s0, 8
  %s17 = sld [smem:[%s16]]
  %s18 = scalar_lea.smem %s0, 9
  %s19 = sld [smem:[%s18]]
  %s20 = scalar_lea.smem %s0, 10
  %s21 = sld [smem:[%s20]]
  %s22 = scalar_lea.smem %s0, 11
  %s23 = sld [smem:[%s22]]
  %s24 = scalar_lea.smem %s0, 12
  %s25 = sld [smem:[%s24]]
  %s26 = scalar_lea.smem %s0, 13
  %s27 = sld [smem:[%s26]]
  %s28 = scalar_lea.smem %s0, 14
  %s29 = sld [smem:[%s28]]
  %s30 = scalar_lea.smem %s0, 15
  %s31 = sld [smem:[%s30]]
  %s32 = scalar_lea.smem %s0, 16
  %s33 = sld [smem:[%s32]]
  %s34 = scalar_lea.smem %s0, 17
  %s35 = sld [smem:[%s34]]
  %s36 = scalar_lea.smem %s0, 18
  %s37 = sld [smem:[%s36]]
  %s38 = scalar_lea.smem %s0, 19
  %s39 = sld [smem:[%s38]]
  %s40 = scalar_lea.smem %s0, 20
  %s41 = sld [smem:[%s40]]
  %s42 = scalar_lea.smem %s0, 21
  %s43 = sld [smem:[%s42]]
  %s44 = scalar_lea.smem %s0, 22
  %s45 = sld [smem:[%s44]]
  %s46 = scalar_lea.smem %s0, 23
  %s47 = sld [smem:[%s46]]
  %s48 = scalar_lea.smem %s0, 24
  %s49 = sld [smem:[%s48]]
  %s50 = scalar_lea.smem %s0, 25
  %s51 = sld [smem:[%s50]]
  %s52 = scalar_lea.smem %s0, 26
  %s53 = sld [smem:[%s52]]
  %s54 = scalar_lea.smem %s0, 27
  %s55 = sld [smem:[%s54]]
  %s56 = scalar_lea.smem %s0, 28
  %s57 = sld [smem:[%s56]]
  %s58 = scalar_lea.smem %s0, 29
  %s59 = sld [smem:[%s58]]
  %s60 = scalar_lea.smem %s0, 30
  %s61 = sld [smem:[%s60]]
  %s62 = scalar_lea.smem %s0, 31
  %s63 = sld [smem:[%s62]]
  %64 = xla_tuple %s49, %s51, %s53, %s55, %s57, %s59, %s61, %s63
  %s65 = sld [smem:[#allocation0]]
  $region162: #{vicnn_forward_pallas.2} parent=0
    _
  %s67 = ssub.s32 1, %s65
  %s68 = scalar_select 0, %s67, %s65
  // Predicated region
  $region2: #{vicnn_forward_pallas.2} parent=0 // pred_check
    _
  $region3: #{vicnn_forward_pallas.2} parent=0 // pred_check_branch
    %70 = sbr.rel (0) target = $region5
  $region4: #{vicnn_forward_pallas.2} parent=0 // pred_region
    _
  $region5: #{vicnn_forward_pallas.2} parent=0 // pred_fallthru
    _
  // Predicated region
  $region6: #{vicnn_forward_pallas.2} parent=0 // pred_check
    _
  $region7: #{vicnn_forward_pallas.2} parent=0 // pred_check_branch
    %72 = sbr.rel (0) target = $region9
  $region8: #{vicnn_forward_pallas.2} parent=0 // pred_region
    _
  $region9: #{vicnn_forward_pallas.2} parent=0 // pred_fallthru
    _
  // Predicated region
  $region10: #{vicnn_forward_pallas.2} parent=0 // pred_check
    _
  $region11: #{vicnn_forward_pallas.2} parent=0 // pred_check_branch
    %74 = sbr.rel (0) target = $region13
  $region12: #{vicnn_forward_pallas.2} parent=0 // pred_region
    _
  $region13: #{vicnn_forward_pallas.2} parent=0 // pred_fallthru
    _
  // Predicated region
  $region14: #{vicnn_forward_pallas.2} parent=0 // pred_check
    _
  $region15: #{vicnn_forward_pallas.2} parent=0 // pred_check_branch
    %76 = sbr.rel (0) target = $region17
  $region16: #{vicnn_forward_pallas.2} parent=0 // pred_region
    _
  $region17: #{vicnn_forward_pallas.2} parent=0 // pred_fallthru
    _
  // Predicated region
  $region18: #{vicnn_forward_pallas.2} parent=0 // pred_check
    _
  $region19: #{vicnn_forward_pallas.2} parent=0 // pred_check_branch
    %78 = sbr.rel (0) target = $region21
  $region20: #{vicnn_forward_pallas.2} parent=0 // pred_region
    _
  $region21: #{vicnn_forward_pallas.2} parent=0 // pred_fallthru
    _
  // Predicated region
  $region22: #{vicnn_forward_pallas.2} parent=0 // pred_check
    _
  $region23: #{vicnn_forward_pallas.2} parent=0 // pred_check_branch
    %80 = sbr.rel (0) target = $region25
  $region24: #{vicnn_forward_pallas.2} parent=0 // pred_region
    _
  $region25: #{vicnn_forward_pallas.2} parent=0 // pred_fallthru
    _
  // Predicated region
  $region26: #{vicnn_forward_pallas.2} parent=0 // pred_check
    _
  $region27: #{vicnn_forward_pallas.2} parent=0 // pred_check_branch
    %82 = sbr.rel (0) target = $region29
  $region28: #{vicnn_forward_pallas.2} parent=0 // pred_region
    _
  $region29: #{vicnn_forward_pallas.2} parent=0 // pred_fallthru
    _
  // Predicated region
  $region30: #{vicnn_forward_pallas.2} parent=0 // pred_check
    _
  $region31: #{vicnn_forward_pallas.2} parent=0 // pred_check_branch
    %84 = sbr.rel (0) target = $region33
  $region32: #{vicnn_forward_pallas.2} parent=0 // pred_region
    _
  $region33: #{vicnn_forward_pallas.2} parent=0 // pred_fallthru
    _
  // Predicated region
  $region34: #{vicnn_forward_pallas.2} parent=0 // pred_check
    _
  $region35: #{vicnn_forward_pallas.2} parent=0 // pred_check_branch
    %86 = sbr.rel (0) target = $region37
  $region36: #{vicnn_forward_pallas.2} parent=0 // pred_region
    _
  $region37: #{vicnn_forward_pallas.2} parent=0 // pred_fallthru
    _
  // Predicated region
  $region38: #{vicnn_forward_pallas.2} parent=0 // pred_check
    _
  $region39: #{vicnn_forward_pallas.2} parent=0 // pred_check_branch
    %88 = sbr.rel (0) target = $region41
  $region40: #{vicnn_forward_pallas.2} parent=0 // pred_region
    _
  $region41: #{vicnn_forward_pallas.2} parent=0 // pred_fallthru
    _
  // Predicated region
  $region42: #{vicnn_forward_pallas.2} parent=0 // pred_check
    _
  $region43: #{vicnn_forward_pallas.2} parent=0 // pred_check_branch
    %90 = sbr.rel (0) target = $region45
  $region44: #{vicnn_forward_pallas.2} parent=0 // pred_region
    _
  $region45: #{vicnn_forward_pallas.2} parent=0 // pred_fallthru
    _
  // Predicated region
  $region46: #{vicnn_forward_pallas.2} parent=0 // pred_check
    _
  $region47: #{vicnn_forward_pallas.2} parent=0 // pred_check_branch
    %92 = sbr.rel (0) target = $region49
  $region48: #{vicnn_forward_pallas.2} parent=0 // pred_region
    _
  $region49: #{vicnn_forward_pallas.2} parent=0 // pred_fallthru
    _
  // Predicated region
  $region50: #{vicnn_forward_pallas.2} parent=0 // pred_check
    _
  $region51: #{vicnn_forward_pallas.2} parent=0 // pred_check_branch
    %94 = sbr.rel (0) target = $region53
  $region52: #{vicnn_forward_pallas.2} parent=0 // pred_region
    _
  $region53: #{vicnn_forward_pallas.2} parent=0 // pred_fallthru
    _
  // Predicated region
  $region54: #{vicnn_forward_pallas.2} parent=0 // pred_check
    _
  $region55: #{vicnn_forward_pallas.2} parent=0 // pred_check_branch
    %96 = sbr.rel (0) target = $region57
  $region56: #{vicnn_forward_pallas.2} parent=0 // pred_region
    _
  $region57: #{vicnn_forward_pallas.2} parent=0 // pred_fallthru
    _
  // Predicated region
  $region58: #{vicnn_forward_pallas.2} parent=0 // pred_check
    _
  $region59: #{vicnn_forward_pallas.2} parent=0 // pred_check_branch
    %98 = sbr.rel (0) target = $region61
  $region60: #{vicnn_forward_pallas.2} parent=0 // pred_region
    _
  $region61: #{vicnn_forward_pallas.2} parent=0 // pred_fallthru
    _
  // Predicated region
  $region62: #{vicnn_forward_pallas.2} parent=0 // pred_check
    _
  $region63: #{vicnn_forward_pallas.2} parent=0 // pred_check_branch
    %100 = sbr.rel (0) target = $region65
  $region64: #{vicnn_forward_pallas.2} parent=0 // pred_region
    _
  $region65: #{vicnn_forward_pallas.2} parent=0 // pred_fallthru
    _
  // Predicated region
  $region66: #{vicnn_forward_pallas.2} parent=0 // pred_check
    _
  $region67: #{vicnn_forward_pallas.2} parent=0 // pred_check_branch
    %102 = sbr.rel (0) target = $region69
  $region68: #{vicnn_forward_pallas.2} parent=0 // pred_region
    _
  $region69: #{vicnn_forward_pallas.2} parent=0 // pred_fallthru
    _
  // Predicated region
  $region70: #{vicnn_forward_pallas.2} parent=0 // pred_check
    _
  $region71: #{vicnn_forward_pallas.2} parent=0 // pred_check_branch
    %104 = sbr.rel (0) target = $region73
  $region72: #{vicnn_forward_pallas.2} parent=0 // pred_region
    _
  $region73: #{vicnn_forward_pallas.2} parent=0 // pred_fallthru
    _
  // Predicated region
  $region74: #{vicnn_forward_pallas.2} parent=0 // pred_check
    _
  $region75: #{vicnn_forward_pallas.2} parent=0 // pred_check_branch
    %106 = sbr.rel (0) target = $region77
  $region76: #{vicnn_forward_pallas.2} parent=0 // pred_region
    _
  $region77: #{vicnn_forward_pallas.2} parent=0 // pred_fallthru
    _
  // Predicated region
  $region78: #{vicnn_forward_pallas.2} parent=0 // pred_check
    _
  $region79: #{vicnn_forward_pallas.2} parent=0 // pred_check_branch
    %108 = sbr.rel (0) target = $region81
  $region80: #{vicnn_forward_pallas.2} parent=0 // pred_region
    _
  $region81: #{vicnn_forward_pallas.2} parent=0 // pred_fallthru
    _
  // Predicated region
  $region82: #{vicnn_forward_pallas.2} parent=0 // pred_check
    _
  $region83: #{vicnn_forward_pallas.2} parent=0 // pred_check_branch
    %110 = sbr.rel (0) target = $region85
  $region84: #{vicnn_forward_pallas.2} parent=0 // pred_region
    _
  $region85: #{vicnn_forward_pallas.2} parent=0 // pred_fallthru
    _
  // Predicated region
  $region86: #{vicnn_forward_pallas.2} parent=0 // pred_check
    _
  $region87: #{vicnn_forward_pallas.2} parent=0 // pred_check_branch
    %112 = sbr.rel (0) target = $region89
  $region88: #{vicnn_forward_pallas.2} parent=0 // pred_region
    _
  $region89: #{vicnn_forward_pallas.2} parent=0 // pred_fallthru
    _
  // Predicated region
  $region90: #{vicnn_forward_pallas.2} parent=0 // pred_check
    _
  $region91: #{vicnn_forward_pallas.2} parent=0 // pred_check_branch
    %114 = sbr.rel (0) target = $region93
  $region92: #{vicnn_forward_pallas.2} parent=0 // pred_region
    _
  $region93: #{vicnn_forward_pallas.2} parent=0 // pred_fallthru
    _
  // Predicated region
  $region94: #{vicnn_forward_pallas.2} parent=0 // pred_check
    _
  $region95: #{vicnn_forward_pallas.2} parent=0 // pred_check_branch
    %116 = sbr.rel (0) target = $region97
  $region96: #{vicnn_forward_pallas.2} parent=0 // pred_region
    _
  $region97: #{vicnn_forward_pallas.2} parent=0 // pred_fallthru
    _
  %v117 = vld [vmem:[%s1] sm:$0xff]
  %v118 = vld [vmem:[%s1 + $0x8] sm:$0xff]
  %v119 = vld [vmem:[%s1 + $0x10] sm:$0xff]
  %v120 = vld [vmem:[%s1 + $0x18] sm:$0xff]
  %v121 = vld [vmem:[%s1 + $0x20] sm:$0xff]
  %v122 = vld [vmem:[%s1 + $0x28] sm:$0xff]
  %v123 = vld [vmem:[%s1 + $0x30] sm:$0xff]
  %v124 = vld [vmem:[%s1 + $0x38] sm:$0xff]
  %v125 = vld [vmem:[%s1 + $0x40] sm:$0xff]
  %v126 = vld [vmem:[%s1 + $0x48] sm:$0xf]
  %v127 = vld [vmem:[%s1 + $0x50] sm:$0xf]
  %v128 = vld [vmem:[%s1 + $0x58] sm:$0xf]
  %v129 = vld [vmem:[%s1 + $0x60] sm:$0xff]
  %v130 = vld [vmem:[%s1 + $0x68] sm:$0xff]
  %v131 = vld [vmem:[%s1 + $0x70] sm:$0xff]
  %v132 = vld [vmem:[%s1 + $0x78] sm:$0xff]
  %v133 = vld [vmem:[%s1 + $0x80] sm:$0xff]
  %v134 = vld [vmem:[%s1 + $0x88] sm:$0xff]
  %v135 = vld [vmem:[%s1 + $0x90] sm:$0xff]
  %v136 = vld [vmem:[%s1 + $0x98] sm:$0xff]
  %v137 = vld [vmem:[%s1 + $0xa0] sm:$0xff]
  %v138 = vld [vmem:[%s1 + $0xa8] sm:$0xf]
  %v139 = vld [vmem:[%s1 + $0xb0] sm:$0xf]
  %v140 = vld [vmem:[%s1 + $0xb8] sm:$0xf]
  %v141 = vld [vmem:[%s1 + $0xc0] sm:$0xff]
  %v142 = vld [vmem:[%s1 + $0xc8] sm:$0xff]
  %v143 = vld [vmem:[%s1 + $0xd0] sm:$0xff]
  %v144 = vld [vmem:[%s1 + $0xd8] sm:$0xff]
  %v145 = vld [vmem:[%s1 + $0xe0] sm:$0xff]
  %v146 = vld [vmem:[%s1 + $0xe8] sm:$0xff]
  %v147 = vld [vmem:[%s1 + $0xf0] sm:$0xff]
  %v148 = vld [vmem:[%s1 + $0xf8] sm:$0xff]
  %v149 = vld [vmem:[%s1 + $0x100] sm:$0xff]
  %v150 = vld [vmem:[%s1 + $0x108] sm:$0xf]
  %v151 = vld [vmem:[%s1 + $0x110] sm:$0xf]
  %v152 = vld [vmem:[%s1 + $0x118] sm:$0xf]
  %v153 = vld [vmem:[%s1 + $0x120] sm:$0xff]
  %v154 = vld [vmem:[%s1 + $0x128] sm:$0xff]
  %v155 = vld [vmem:[%s1 + $0x130] sm:$0xff]
  %v156 = vld [vmem:[%s1 + $0x138] sm:$0xff]
  %v157 = vld [vmem:[%s1 + $0x140] sm:$0xff]
  %v158 = vld [vmem:[%s1 + $0x148] sm:$0xff]
  %v159 = vld [vmem:[%s1 + $0x150] sm:$0xff]
  %v160 = vld [vmem:[%s1 + $0x158] sm:$0xff]
  %v161 = vld [vmem:[%s1 + $0x160] sm:$0xff]
  %v162 = vld [vmem:[%s1 + $0x168] sm:$0xf]
  %v163 = vld [vmem:[%s1 + $0x170] sm:$0xf]
  %v164 = vld [vmem:[%s1 + $0x178] sm:$0xf]
  %v165 = vld [vmem:[%s1 + $0x180] sm:$0xff]
  %v166 = vld [vmem:[%s1 + $0x188] sm:$0xff]
  %v167 = vld [vmem:[%s1 + $0x190] sm:$0xff]
  %v168 = vld [vmem:[%s1 + $0x198] sm:$0xff]
  %v169 = vld [vmem:[%s1 + $0x1a0] sm:$0xff]
  %v170 = vld [vmem:[%s1 + $0x1a8] sm:$0xff]
  %v171 = vld [vmem:[%s1 + $0x1b0] sm:$0xff]
  %v172 = vld [vmem:[%s1 + $0x1b8] sm:$0xff]
  %v173 = vld [vmem:[%s1 + $0x1c0] sm:$0xff]
  %v174 = vld [vmem:[%s1 + $0x1c8] sm:$0xf]
  %v175 = vld [vmem:[%s1 + $0x1d0] sm:$0xf]
  %v176 = vld [vmem:[%s1 + $0x1d8] sm:$0xf]
  %v177 = vld [vmem:[%s3] sm:$0xff]
  %v178 = vld [vmem:[%s3 + $0x8] sm:$0xff]
  %v179 = vld [vmem:[%s3 + $0x10] sm:$0xff]
  %v180 = vld [vmem:[%s3 + $0x18] sm:$0xff]
  %v181 = vld [vmem:[%s3 + $0x20] sm:$0xff]
  %v182 = vld [vmem:[%s3 + $0x28] sm:$0xff]
  %v183 = vld [vmem:[%s3 + $0x30] sm:$0xff]
  %v184 = vld [vmem:[%s3 + $0x38] sm:$0xff]
  %v185 = vld [vmem:[%s3 + $0x40] sm:$0xff]
  %v186 = vld [vmem:[%s3 + $0x48] sm:$0xf]
  %v187 = vld [vmem:[%s3 + $0x50] sm:$0xf]
  %v188 = vld [vmem:[%s3 + $0x58] sm:$0xf]
  %v189 = vld [vmem:[%s3 + $0x60] sm:$0xff]
  %v190 = vld [vmem:[%s3 + $0x68] sm:$0xff]
  %v191 = vld [vmem:[%s3 + $0x70] sm:$0xff]
  %v192 = vld [vmem:[%s3 + $0x78] sm:$0xff]
  %v193 = vld [vmem:[%s3 + $0x80] sm:$0xff]
  %v194 = vld [vmem:[%s3 + $0x88] sm:$0xff]
  %v195 = vld [vmem:[%s3 + $0x90] sm:$0xff]
  %v196 = vld [vmem:[%s3 + $0x98] sm:$0xff]
  %v197 = vld [vmem:[%s3 + $0xa0] sm:$0xff]
  %v198 = vld [vmem:[%s3 + $0xa8] sm:$0xf]
  %v199 = vld [vmem:[%s3 + $0xb0] sm:$0xf]
  %v200 = vld [vmem:[%s3 + $0xb8] sm:$0xf]
  %v201 = vld [vmem:[%s3 + $0xc0] sm:$0xff]
  %v202 = vld [vmem:[%s3 + $0xc8] sm:$0xff]
  %v203 = vld [vmem:[%s3 + $0xd0] sm:$0xff]
  %v204 = vld [vmem:[%s3 + $0xd8] sm:$0xff]
  %v205 = vld [vmem:[%s3 + $0xe0] sm:$0xff]
  %v206 = vld [vmem:[%s3 + $0xe8] sm:$0xff]
  %v207 = vld [vmem:[%s3 + $0xf0] sm:$0xff]
  %v208 = vld [vmem:[%s3 + $0xf8] sm:$0xff]
  %v209 = vld [vmem:[%s3 + $0x100] sm:$0xff]
  %v210 = vld [vmem:[%s3 + $0x108] sm:$0xf]
  %v211 = vld [vmem:[%s3 + $0x110] sm:$0xf]
  %v212 = vld [vmem:[%s3 + $0x118] sm:$0xf]
  %v213 = vld [vmem:[%s3 + $0x120] sm:$0xff]
  %v214 = vld [vmem:[%s3 + $0x128] sm:$0xff]
  %v215 = vld [vmem:[%s3 + $0x130] sm:$0xff]
  %v216 = vld [vmem:[%s3 + $0x138] sm:$0xff]
  %v217 = vld [vmem:[%s3 + $0x140] sm:$0xff]
  %v218 = vld [vmem:[%s3 + $0x148] sm:$0xff]
  %v219 = vld [vmem:[%s3 + $0x150] sm:$0xff]
  %v220 = vld [vmem:[%s3 + $0x158] sm:$0xff]
  %v221 = vld [vmem:[%s3 + $0x160] sm:$0xff]
  %v222 = vld [vmem:[%s3 + $0x168] sm:$0xf]
  %v223 = vld [vmem:[%s3 + $0x170] sm:$0xf]
  %v224 = vld [vmem:[%s3 + $0x178] sm:$0xf]
  %v225 = vld [vmem:[%s3 + $0x180] sm:$0xff]
  %v226 = vld [vmem:[%s3 + $0x188] sm:$0xff]
  %v227 = vld [vmem:[%s3 + $0x190] sm:$0xff]
  %v228 = vld [vmem:[%s3 + $0x198] sm:$0xff]
  %v229 = vld [vmem:[%s3 + $0x1a0] sm:$0xff]
  %v230 = vld [vmem:[%s3 + $0x1a8] sm:$0xff]
  %v231 = vld [vmem:[%s3 + $0x1b0] sm:$0xff]
  %v232 = vld [vmem:[%s3 + $0x1b8] sm:$0xff]
  %v233 = vld [vmem:[%s3 + $0x1c0] sm:$0xff]
  %v234 = vld [vmem:[%s3 + $0x1c8] sm:$0xf]
  %v235 = vld [vmem:[%s3 + $0x1d0] sm:$0xf]
  %v236 = vld [vmem:[%s3 + $0x1d8] sm:$0xf]
  %v237 = vmul.f32 %v177, 1.442695
  %v238 = vpow.pop %v237
  %v239 = vmul.f32 %v178, 1.442695
  %v240 = vpow.pop %v239
  %v241 = vmul.f32 %v179, 1.442695
  %v242 = vpow.pop %v241
  %v243 = vmul.f32 %v180, 1.442695
  %v244 = vpow.pop %v243
  %v245 = vmul.f32 %v181, 1.442695
  %v246 = vpow.pop %v245
  %v247 = vmul.f32 %v182, 1.442695
  %v248 = vpow.pop %v247
  %v249 = vmul.f32 %v183, 1.442695
  %v250 = vpow.pop %v249
  %v251 = vmul.f32 %v184, 1.442695
  %v252 = vpow.pop %v251
  %v253 = vmul.f32 %v185, 1.442695
  %v254 = vpow.pop %v253
  %v255 = vmul.f32 %v186, 1.442695
  %v256 = vpow.pop %v255
  %v257 = vmul.f32 %v187, 1.442695
  %v258 = vpow.pop %v257
  %v259 = vmul.f32 %v188, 1.442695
  %v260 = vpow.pop %v259
  %v261 = vmul.f32 %v189, 1.442695
  %v262 = vpow.pop %v261
  %v263 = vmul.f32 %v190, 1.442695
  %v264 = vpow.pop %v263
  %v265 = vmul.f32 %v191, 1.442695
  %v266 = vpow.pop %v265
  %v267 = vmul.f32 %v192, 1.442695
  %v268 = vpow.pop %v267
  %v269 = vmul.f32 %v193, 1.442695
  %v270 = vpow.pop %v269
  %v271 = vmul.f32 %v194, 1.442695
  %v272 = vpow.pop %v271
  %v273 = vmul.f32 %v195, 1.442695
  %v274 = vpow.pop %v273
  %v275 = vmul.f32 %v196, 1.442695
  %v276 = vpow.pop %v275
  %v277 = vmul.f32 %v197, 1.442695
  %v278 = vpow.pop %v277
  %v279 = vmul.f32 %v198, 1.442695
  %v280 = vpow.pop %v279
  %v281 = vmul.f32 %v199, 1.442695
  %v282 = vpow.pop %v281
  %v283 = vmul.f32 %v200, 1.442695
  %v284 = vpow.pop %v283
  %v285 = vmul.f32 %v201, 1.442695
  %v286 = vpow.pop %v285
  %v287 = vmul.f32 %v202, 1.442695
  %v288 = vpow.pop %v287
  %v289 = vmul.f32 %v203, 1.442695
  %v290 = vpow.pop %v289
  %v291 = vmul.f32 %v204, 1.442695
  %v292 = vpow.pop %v291
  %v293 = vmul.f32 %v205, 1.442695
  %v294 = vpow.pop %v293
  %v295 = vmul.f32 %v206, 1.442695
  %v296 = vpow.pop %v295
  %v297 = vmul.f32 %v207, 1.442695
  %v298 = vpow.pop %v297
  %v299 = vmul.f32 %v208, 1.442695
  %v300 = vpow.pop %v299
  %v301 = vmul.f32 %v209, 1.442695
  %v302 = vpow.pop %v301
  %v303 = vmul.f32 %v210, 1.442695
  %v304 = vpow.pop %v303
  %v305 = vmul.f32 %v211, 1.442695
  %v306 = vpow.pop %v305
  %v307 = vmul.f32 %v212, 1.442695
  %v308 = vpow.pop %v307
  %v309 = vmul.f32 %v213, 1.442695
  %v310 = vpow.pop %v309
  %v311 = vmul.f32 %v214, 1.442695
  %v312 = vpow.pop %v311
  %v313 = vmul.f32 %v215, 1.442695
  %v314 = vpow.pop %v313
  %v315 = vmul.f32 %v216, 1.442695
  %v316 = vpow.pop %v315
  %v317 = vmul.f32 %v217, 1.442695
  %v318 = vpow.pop %v317
  %v319 = vmul.f32 %v218, 1.442695
  %v320 = vpow.pop %v319
  %v321 = vmul.f32 %v219, 1.442695
  %v322 = vpow.pop %v321
  %v323 = vmul.f32 %v220, 1.442695
  %v324 = vpow.pop %v323
  %v325 = vmul.f32 %v221, 1.442695
  %v326 = vpow.pop %v325
  %v327 = vmul.f32 %v222, 1.442695
  %v328 = vpow.pop %v327
  %v329 = vmul.f32 %v223, 1.442695
  %v330 = vpow.pop %v329
  %v331 = vmul.f32 %v224, 1.442695
  %v332 = vpow.pop %v331
  %v333 = vmul.f32 %v225, 1.442695
  %v334 = vpow.pop %v333
  %v335 = vmul.f32 %v226, 1.442695
  %v336 = vpow.pop %v335
  %v337 = vmul.f32 %v227, 1.442695
  %v338 = vpow.pop %v337
  %v339 = vmul.f32 %v228, 1.442695
  %v340 = vpow.pop %v339
  %v341 = vmul.f32 %v229, 1.442695
  %v342 = vpow.pop %v341
  %v343 = vmul.f32 %v230, 1.442695
  %v344 = vpow.pop %v343
  %v345 = vmul.f32 %v231, 1.442695
  %v346 = vpow.pop %v345
  %v347 = vmul.f32 %v232, 1.442695
  %v348 = vpow.pop %v347
  %v349 = vmul.f32 %v233, 1.442695
  %v350 = vpow.pop %v349
  %v351 = vmul.f32 %v234, 1.442695
  %v352 = vpow.pop %v351
  %v353 = vmul.f32 %v235, 1.442695
  %v354 = vpow.pop %v353
  %v355 = vmul.f32 %v236, 1.442695
  %v356 = vpow.pop %v355
  %v357 = vld [vmem:[%s5] sm:$0xff]
  %v358 = vld [vmem:[%s5 + $0x8] sm:$0xff]
  %v359 = vld [vmem:[%s5 + $0x10] sm:$0xff]
  %v360 = vld [vmem:[%s5 + $0x18] sm:$0xff]
  %v361 = vld [vmem:[%s5 + $0x20] sm:$0xff]
  %v362 = vld [vmem:[%s5 + $0x28] sm:$0xff]
  %v363 = vld [vmem:[%s5 + $0x30] sm:$0xff]
  %v364 = vld [vmem:[%s5 + $0x38] sm:$0xff]
  %v365 = vld [vmem:[%s5 + $0x40] sm:$0xff]
  %v366 = vld [vmem:[%s5 + $0x48] sm:$0xf]
  %v367 = vld [vmem:[%s5 + $0x50] sm:$0xf]
  %v368 = vld [vmem:[%s5 + $0x58] sm:$0xf]
  %v369 = vld [vmem:[%s5 + $0x60] sm:$0xff]
  %v370 = vld [vmem:[%s5 + $0x68] sm:$0xff]
  %v371 = vld [vmem:[%s5 + $0x70] sm:$0xff]
  %v372 = vld [vmem:[%s5 + $0x78] sm:$0xff]
  %v373 = vld [vmem:[%s5 + $0x80] sm:$0xff]
  %v374 = vld [vmem:[%s5 + $0x88] sm:$0xff]
  %v375 = vld [vmem:[%s5 + $0x90] sm:$0xff]
  %v376 = vld [vmem:[%s5 + $0x98] sm:$0xff]
  %v377 = vld [vmem:[%s5 + $0xa0] sm:$0xff]
  %v378 = vld [vmem:[%s5 + $0xa8] sm:$0xf]
  %v379 = vld [vmem:[%s5 + $0xb0] sm:$0xf]
  %v380 = vld [vmem:[%s5 + $0xb8] sm:$0xf]
  %v381 = vld [vmem:[%s5 + $0xc0] sm:$0xff]
  %v382 = vld [vmem:[%s5 + $0xc8] sm:$0xff]
  %v383 = vld [vmem:[%s5 + $0xd0] sm:$0xff]
  %v384 = vld [vmem:[%s5 + $0xd8] sm:$0xff]
  %v385 = vld [vmem:[%s5 + $0xe0] sm:$0xff]
  %v386 = vld [vmem:[%s5 + $0xe8] sm:$0xff]
  %v387 = vld [vmem:[%s5 + $0xf0] sm:$0xff]
  %v388 = vld [vmem:[%s5 + $0xf8] sm:$0xff]
  %v389 = vld [vmem:[%s5 + $0x100] sm:$0xff]
  %v390 = vld [vmem:[%s5 + $0x108] sm:$0xf]
  %v391 = vld [vmem:[%s5 + $0x110] sm:$0xf]
  %v392 = vld [vmem:[%s5 + $0x118] sm:$0xf]
  %v393 = vld [vmem:[%s5 + $0x120] sm:$0xff]
  %v394 = vld [vmem:[%s5 + $0x128] sm:$0xff]
  %v395 = vld [vmem:[%s5 + $0x130] sm:$0xff]
  %v396 = vld [vmem:[%s5 + $0x138] sm:$0xff]
  %v397 = vld [vmem:[%s5 + $0x140] sm:$0xff]
  %v398 = vld [vmem:[%s5 + $0x148] sm:$0xff]
  %v399 = vld [vmem:[%s5 + $0x150] sm:$0xff]
  %v400 = vld [vmem:[%s5 + $0x158] sm:$0xff]
  %v401 = vld [vmem:[%s5 + $0x160] sm:$0xff]
  %v402 = vld [vmem:[%s5 + $0x168] sm:$0xf]
  %v403 = vld [vmem:[%s5 + $0x170] sm:$0xf]
  %v404 = vld [vmem:[%s5 + $0x178] sm:$0xf]
  %v405 = vld [vmem:[%s5 + $0x180] sm:$0xff]
  %v406 = vld [vmem:[%s5 + $0x188] sm:$0xff]
  %v407 = vld [vmem:[%s5 + $0x190] sm:$0xff]
  %v408 = vld [vmem:[%s5 + $0x198] sm:$0xff]
  %v409 = vld [vmem:[%s5 + $0x1a0] sm:$0xff]
  %v410 = vld [vmem:[%s5 + $0x1a8] sm:$0xff]
  %v411 = vld [vmem:[%s5 + $0x1b0] sm:$0xff]
  %v412 = vld [vmem:[%s5 + $0x1b8] sm:$0xff]
  %v413 = vld [vmem:[%s5 + $0x1c0] sm:$0xff]
  %v414 = vld [vmem:[%s5 + $0x1c8] sm:$0xf]
  %v415 = vld [vmem:[%s5 + $0x1d0] sm:$0xf]
  %v416 = vld [vmem:[%s5 + $0x1d8] sm:$0xf]
  %v417 = vmul.f32 %v238, %v357
  %v418 = vmul.f32 %v240, %v358
  %v419 = vmul.f32 %v242, %v359
  %v420 = vmul.f32 %v244, %v360
  %v421 = vmul.f32 %v246, %v361
  %v422 = vmul.f32 %v248, %v362
  %v423 = vmul.f32 %v250, %v363
  %v424 = vmul.f32 %v252, %v364
  %v425 = vmul.f32 %v254, %v365
  %v426 = vmul.f32 %v256, %v366
  %v427 = vmul.f32 %v258, %v367
  %v428 = vmul.f32 %v260, %v368
  %v429 = vmul.f32 %v262, %v369
  %v430 = vmul.f32 %v264, %v370
  %v431 = vmul.f32 %v266, %v371
  %v432 = vmul.f32 %v268, %v372
  %v433 = vmul.f32 %v270, %v373
  %v434 = vmul.f32 %v272, %v374
  %v435 = vmul.f32 %v274, %v375
  %v436 = vmul.f32 %v276, %v376
  %v437 = vmul.f32 %v278, %v377
  %v438 = vmul.f32 %v280, %v378
  %v439 = vmul.f32 %v282, %v379
  %v440 = vmul.f32 %v284, %v380
  %v441 = vmul.f32 %v286, %v381
  %v442 = vmul.f32 %v288, %v382
  %v443 = vmul.f32 %v290, %v383
  %v444 = vmul.f32 %v292, %v384
  %v445 = vmul.f32 %v294, %v385
  %v446 = vmul.f32 %v296, %v386
  %v447 = vmul.f32 %v298, %v387
  %v448 = vmul.f32 %v300, %v388
  %v449 = vmul.f32 %v302, %v389
  %v450 = vmul.f32 %v304, %v390
  %v451 = vmul.f32 %v306, %v391
  %v452 = vmul.f32 %v308, %v392
  %v453 = vmul.f32 %v310, %v393
  %v454 = vmul.f32 %v312, %v394
  %v455 = vmul.f32 %v314, %v395
  %v456 = vmul.f32 %v316, %v396
  %v457 = vmul.f32 %v318, %v397
  %v458 = vmul.f32 %v320, %v398
  %v459 = vmul.f32 %v322, %v399
  %v460 = vmul.f32 %v324, %v400
  %v461 = vmul.f32 %v326, %v401
  %v462 = vmul.f32 %v328, %v402
  %v463 = vmul.f32 %v330, %v403
  %v464 = vmul.f32 %v332, %v404
  %v465 = vmul.f32 %v334, %v405
  %v466 = vmul.f32 %v336, %v406
  %v467 = vmul.f32 %v338, %v407
  %v468 = vmul.f32 %v340, %v408
  %v469 = vmul.f32 %v342, %v409
  %v470 = vmul.f32 %v344, %v410
  %v471 = vmul.f32 %v346, %v411
  %v472 = vmul.f32 %v348, %v412
  %v473 = vmul.f32 %v350, %v413
  %v474 = vmul.f32 %v352, %v414
  %v475 = vmul.f32 %v354, %v415
  %v476 = vmul.f32 %v356, %v416
  %v477 = vadd.f32 %v117, %v417
  %v478 = vadd.f32 %v118, %v418
  %v479 = vadd.f32 %v119, %v419
  %v480 = vadd.f32 %v120, %v420
  %v481 = vadd.f32 %v121, %v421
  %v482 = vadd.f32 %v122, %v422
  %v483 = vadd.f32 %v123, %v423
  %v484 = vadd.f32 %v124, %v424
  %v485 = vadd.f32 %v125, %v425
  %v486 = vadd.f32 %v126, %v426
  %v487 = vadd.f32 %v127, %v427
  %v488 = vadd.f32 %v128, %v428
  %v489 = vadd.f32 %v129, %v429
  %v490 = vadd.f32 %v130, %v430
  %v491 = vadd.f32 %v131, %v431
  %v492 = vadd.f32 %v132, %v432
  %v493 = vadd.f32 %v133, %v433
  %v494 = vadd.f32 %v134, %v434
  %v495 = vadd.f32 %v135, %v435
  %v496 = vadd.f32 %v136, %v436
  %v497 = vadd.f32 %v137, %v437
  %v498 = vadd.f32 %v138, %v438
  %v499 = vadd.f32 %v139, %v439
  %v500 = vadd.f32 %v140, %v440
  %v501 = vadd.f32 %v141, %v441
  %v502 = vadd.f32 %v142, %v442
  %v503 = vadd.f32 %v143, %v443
  %v504 = vadd.f32 %v144, %v444
  %v505 = vadd.f32 %v145, %v445
  %v506 = vadd.f32 %v146, %v446
  %v507 = vadd.f32 %v147, %v447
  %v508 = vadd.f32 %v148, %v448
  %v509 = vadd.f32 %v149, %v449
  %v510 = vadd.f32 %v150, %v450
  %v511 = vadd.f32 %v151, %v451
  %v512 = vadd.f32 %v152, %v452
  %v513 = vadd.f32 %v153, %v453
  %v514 = vadd.f32 %v154, %v454
  %v515 = vadd.f32 %v155, %v455
  %v516 = vadd.f32 %v156, %v456
  %v517 = vadd.f32 %v157, %v457
  %v518 = vadd.f32 %v158, %v458
  %v519 = vadd.f32 %v159, %v459
  %v520 = vadd.f32 %v160, %v460
  %v521 = vadd.f32 %v161, %v461
  %v522 = vadd.f32 %v162, %v462
  %v523 = vadd.f32 %v163, %v463
  %v524 = vadd.f32 %v164, %v464
  %v525 = vadd.f32 %v165, %v465
  %v526 = vadd.f32 %v166, %v466
  %v527 = vadd.f32 %v167, %v467
  %v528 = vadd.f32 %v168, %v468
  %v529 = vadd.f32 %v169, %v469
  %v530 = vadd.f32 %v170, %v470
  %v531 = vadd.f32 %v171, %v471
  %v532 = vadd.f32 %v172, %v472
  %v533 = vadd.f32 %v173, %v473
  %v534 = vadd.f32 %v174, %v474
  %v535 = vadd.f32 %v175, %v475
  %v536 = vadd.f32 %v176, %v476
  %537 = vst [vmem:[%s49] sm:$0xff] %v477
  %538 = vst [vmem:[%s49 + $0x8] sm:$0xff] %v478
  %539 = vst [vmem:[%s49 + $0x10] sm:$0xff] %v479
  %540 = vst [vmem:[%s49 + $0x18] sm:$0xff] %v480
  %541 = vst [vmem:[%s49 + $0x20] sm:$0xff] %v481
  %542 = vst [vmem:[%s49 + $0x28] sm:$0xff] %v482
  %543 = vst [vmem:[%s49 + $0x30] sm:$0xff] %v483
  %544 = vst [vmem:[%s49 + $0x38] sm:$0xff] %v484
  %545 = vst [vmem:[%s49 + $0x40] sm:$0xff] %v485
  %546 = vst [vmem:[%s49 + $0x48] sm:$0xf] %v486
  %547 = vst [vmem:[%s49 + $0x50] sm:$0xf] %v487
  %548 = vst [vmem:[%s49 + $0x58] sm:$0xf] %v488
  %549 = vst [vmem:[%s49 + $0x60] sm:$0xff] %v489
  %550 = vst [vmem:[%s49 + $0x68] sm:$0xff] %v490
  %551 = vst [vmem:[%s49 + $0x70] sm:$0xff] %v491
  %552 = vst [vmem:[%s49 + $0x78] sm:$0xff] %v492
  %553 = vst [vmem:[%s49 + $0x80] sm:$0xff] %v493
  %554 = vst [vmem:[%s49 + $0x88] sm:$0xff] %v494
  %555 = vst [vmem:[%s49 + $0x90] sm:$0xff] %v495
  %556 = vst [vmem:[%s49 + $0x98] sm:$0xff] %v496
  %557 = vst [vmem:[%s49 + $0xa0] sm:$0xff] %v497
  %558 = vst [vmem:[%s49 + $0xa8] sm:$0xf] %v498
  %559 = vst [vmem:[%s49 + $0xb0] sm:$0xf] %v499
  %560 = vst [vmem:[%s49 + $0xb8] sm:$0xf] %v500
  %561 = vst [vmem:[%s49 + $0xc0] sm:$0xff] %v501
  %562 = vst [vmem:[%s49 + $0xc8] sm:$0xff] %v502
  %563 = vst [vmem:[%s49 + $0xd0] sm:$0xff] %v503
  %564 = vst [vmem:[%s49 + $0xd8] sm:$0xff] %v504
  %565 = vst [vmem:[%s49 + $0xe0] sm:$0xff] %v505
  %566 = vst [vmem:[%s49 + $0xe8] sm:$0xff] %v506
  %567 = vst [vmem:[%s49 + $0xf0] sm:$0xff] %v507
  %568 = vst [vmem:[%s49 + $0xf8] sm:$0xff] %v508
  %569 = vst [vmem:[%s49 + $0x100] sm:$0xff] %v509
  %570 = vst [vmem:[%s49 + $0x108] sm:$0xf] %v510
  %571 = vst [vmem:[%s49 + $0x110] sm:$0xf] %v511
  %572 = vst [vmem:[%s49 + $0x118] sm:$0xf] %v512
  %573 = vst [vmem:[%s49 + $0x120] sm:$0xff] %v513
  %574 = vst [vmem:[%s49 + $0x128] sm:$0xff] %v514
  %575 = vst [vmem:[%s49 + $0x130] sm:$0xff] %v515
  %576 = vst [vmem:[%s49 + $0x138] sm:$0xff] %v516
  %577 = vst [vmem:[%s49 + $0x140] sm:$0xff] %v517
  %578 = vst [vmem:[%s49 + $0x148] sm:$0xff] %v518
  %579 = vst [vmem:[%s49 + $0x150] sm:$0xff] %v519
  %580 = vst [vmem:[%s49 + $0x158] sm:$0xff] %v520
  %581 = vst [vmem:[%s49 + $0x160] sm:$0xff] %v521
  %582 = vst [vmem:[%s49 + $0x168] sm:$0xf] %v522
  %583 = vst [vmem:[%s49 + $0x170] sm:$0xf] %v523
  %584 = vst [vmem:[%s49 + $0x178] sm:$0xf] %v524
  %585 = vst [vmem:[%s49 + $0x180] sm:$0xff] %v525
  %586 = vst [vmem:[%s49 + $0x188] sm:$0xff] %v526
  %587 = vst [vmem:[%s49 + $0x190] sm:$0xff] %v527
  %588 = vst [vmem:[%s49 + $0x198] sm:$0xff] %v528
  %589 = vst [vmem:[%s49 + $0x1a0] sm:$0xff] %v529
  %590 = vst [vmem:[%s49 + $0x1a8] sm:$0xff] %v530
  %591 = vst [vmem:[%s49 + $0x1b0] sm:$0xff] %v531
  %592 = vst [vmem:[%s49 + $0x1b8] sm:$0xff] %v532
  %593 = vst [vmem:[%s49 + $0x1c0] sm:$0xff] %v533
  %594 = vst [vmem:[%s49 + $0x1c8] sm:$0xf] %v534
  %595 = vst [vmem:[%s49 + $0x1d0] sm:$0xf] %v535
  %596 = vst [vmem:[%s49 + $0x1d8] sm:$0xf] %v536
  %v597 = vld [vmem:[%s7] sm:$0x7]
  %v598 = vld [vmem:[%s9] sm:$0x7]
  %v599 = vmul.f32 %v598, 1.442695
  %v600 = vpow.pop %v599
  %v601 = vld [vmem:[%s11] sm:$0x7]
  %v602 = vmul.f32 %v600, %v601
  %v603 = vadd.f32 %v597, %v602
  %v604 = vlaneseq
  %vm605 = vcmp.ge.s32.totalorder %v604, 0
  %vm606 = vcmp.lt.s32.totalorder %v604, 384
  %vm607 = vmand %vm605, %vm606
  %608 = vst.msk [vmem:[%s51] sm:$0x7] %vm607, %v603
  %v609 = vld [vmem:[%s13] sm:$0xff]
  %v610 = vld [vmem:[%s13 + $0x8] sm:$0xff]
  %v611 = vld [vmem:[%s13 + $0x10] sm:$0xff]
  %v612 = vld [vmem:[%s13 + $0x18] sm:$0xff]
  %v613 = vld [vmem:[%s13 + $0x20] sm:$0xff]
  %v614 = vld [vmem:[%s13 + $0x28] sm:$0xff]
  %v615 = vld [vmem:[%s13 + $0x30] sm:$0xff]
  %v616 = vld [vmem:[%s13 + $0x38] sm:$0xff]
  %v617 = vld [vmem:[%s13 + $0x40] sm:$0xff]
  %v618 = vld [vmem:[%s13 + $0x48] sm:$0xff]
  %v619 = vld [vmem:[%s13 + $0x50] sm:$0xff]
  %v620 = vld [vmem:[%s13 + $0x58] sm:$0xff]
  %v621 = vld [vmem:[%s13 + $0x60] sm:$0xff]
  %v622 = vld [vmem:[%s13 + $0x68] sm:$0xff]
  %v623 = vld [vmem:[%s13 + $0x70] sm:$0xff]
  %v624 = vld [vmem:[%s13 + $0x78] sm:$0xff]
  %v625 = vld [vmem:[%s13 + $0x80] sm:$0xff]
  %v626 = vld [vmem:[%s13 + $0x88] sm:$0xff]
  %v627 = vld [vmem:[%s13 + $0x90] sm:$0xff]
  %v628 = vld [vmem:[%s13 + $0x98] sm:$0xff]
  %v629 = vld [vmem:[%s13 + $0xa0] sm:$0xff]
  %v630 = vld [vmem:[%s13 + $0xa8] sm:$0xff]
  %v631 = vld [vmem:[%s13 + $0xb0] sm:$0xff]
  %v632 = vld [vmem:[%s13 + $0xb8] sm:$0xff]
  %v633 = vld [vmem:[%s13 + $0xc0] sm:$0xff]
  %v634 = vld [vmem:[%s13 + $0xc8] sm:$0xff]
  %v635 = vld [vmem:[%s13 + $0xd0] sm:$0xff]
  %v636 = vld [vmem:[%s13 + $0xd8] sm:$0xff]
  %v637 = vld [vmem:[%s13 + $0xe0] sm:$0xff]
  %v638 = vld [vmem:[%s13 + $0xe8] sm:$0xff]
  %v639 = vld [vmem:[%s13 + $0xf0] sm:$0xff]
  %v640 = vld [vmem:[%s13 + $0xf8] sm:$0xff]
  %v641 = vld [vmem:[%s13 + $0x100] sm:$0xff]
  %v642 = vld [vmem:[%s13 + $0x108] sm:$0xff]
  %v643 = vld [vmem:[%s13 + $0x110] sm:$0xff]
  %v644 = vld [vmem:[%s13 + $0x118] sm:$0xff]
  %v645 = vld [vmem:[%s13 + $0x120] sm:$0xff]
  %v646 = vld [vmem:[%s13 + $0x128] sm:$0xff]
  %v647 = vld [vmem:[%s13 + $0x130] sm:$0xff]
  %v648 = vld [vmem:[%s13 + $0x138] sm:$0xff]
  %v649 = vld [vmem:[%s13 + $0x140] sm:$0xff]
  %v650 = vld [vmem:[%s13 + $0x148] sm:$0xff]
  %v651 = vld [vmem:[%s13 + $0x150] sm:$0xff]
  %v652 = vld [vmem:[%s13 + $0x158] sm:$0xff]
  %v653 = vld [vmem:[%s13 + $0x160] sm:$0xff]
  %v654 = vld [vmem:[%s13 + $0x168] sm:$0xff]
  %v655 = vld [vmem:[%s13 + $0x170] sm:$0xff]
  %v656 = vld [vmem:[%s13 + $0x178] sm:$0xff]
  %v657 = vld [vmem:[%s13 + $0x180] sm:$0xff]
  %v658 = vld [vmem:[%s13 + $0x188] sm:$0xff]
  %v659 = vld [vmem:[%s13 + $0x190] sm:$0xff]
  %v660 = vld [vmem:[%s13 + $0x198] sm:$0xff]
  %v661 = vld [vmem:[%s13 + $0x1a0] sm:$0xff]
  %v662 = vld [vmem:[%s13 + $0x1a8] sm:$0xff]
  %v663 = vld [vmem:[%s13 + $0x1b0] sm:$0xff]
  %v664 = vld [vmem:[%s13 + $0x1b8] sm:$0xff]
  %v665 = vld [vmem:[%s13 + $0x1c0] sm:$0xff]
  %v666 = vld [vmem:[%s13 + $0x1c8] sm:$0xff]
  %v667 = vld [vmem:[%s13 + $0x1d0] sm:$0xff]
  %v668 = vld [vmem:[%s13 + $0x1d8] sm:$0xff]
  %v669 = vld [vmem:[%s13 + $0x1e0] sm:$0xff]
  %v670 = vld [vmem:[%s13 + $0x1e8] sm:$0xff]
  %v671 = vld [vmem:[%s13 + $0x1f0] sm:$0xff]
  %v672 = vld [vmem:[%s13 + $0x1f8] sm:$0xff]
  %v673 = vld [vmem:[%s13 + $0x200] sm:$0xff]
  %v674 = vld [vmem:[%s13 + $0x208] sm:$0xff]
  %v675 = vld [vmem:[%s13 + $0x210] sm:$0xff]
  %v676 = vld [vmem:[%s13 + $0x218] sm:$0xff]
  %v677 = vld [vmem:[%s13 + $0x220] sm:$0xff]
  %v678 = vld [vmem:[%s13 + $0x228] sm:$0xff]
  %v679 = vld [vmem:[%s13 + $0x230] sm:$0xff]
  %v680 = vld [vmem:[%s13 + $0x238] sm:$0xff]
  %v681 = vld [vmem:[%s13 + $0x240] sm:$0xff]
  %v682 = vld [vmem:[%s13 + $0x248] sm:$0xff]
  %v683 = vld [vmem:[%s13 + $0x250] sm:$0xff]
  %v684 = vld [vmem:[%s13 + $0x258] sm:$0xff]
  %v685 = vld [vmem:[%s13 + $0x260] sm:$0xff]
  %v686 = vld [vmem:[%s13 + $0x268] sm:$0xff]
  %v687 = vld [vmem:[%s13 + $0x270] sm:$0xff]
  %v688 = vld [vmem:[%s13 + $0x278] sm:$0xff]
  %v689 = vld [vmem:[%s13 + $0x280] sm:$0xff]
  %v690 = vld [vmem:[%s13 + $0x288] sm:$0xff]
  %v691 = vld [vmem:[%s13 + $0x290] sm:$0xff]
  %v692 = vld [vmem:[%s13 + $0x298] sm:$0xff]
  %v693 = vld [vmem:[%s13 + $0x2a0] sm:$0xff]
  %v694 = vld [vmem:[%s13 + $0x2a8] sm:$0xff]
  %v695 = vld [vmem:[%s13 + $0x2b0] sm:$0xff]
  %v696 = vld [vmem:[%s13 + $0x2b8] sm:$0xff]
  %v697 = vld [vmem:[%s13 + $0x2c0] sm:$0xff]
  %v698 = vld [vmem:[%s13 + $0x2c8] sm:$0xff]
  %v699 = vld [vmem:[%s13 + $0x2d0] sm:$0xff]
  %v700 = vld [vmem:[%s13 + $0x2d8] sm:$0xff]
  %v701 = vld [vmem:[%s13 + $0x2e0] sm:$0xff]
  %v702 = vld [vmem:[%s13 + $0x2e8] sm:$0xff]
  %v703 = vld [vmem:[%s13 + $0x2f0] sm:$0xff]
  %v704 = vld [vmem:[%s13 + $0x2f8] sm:$0xff]
  %v705 = vld [vmem:[%s13 + $0x300] sm:$0xff]
  %v706 = vld [vmem:[%s13 + $0x308] sm:$0xff]
  %v707 = vld [vmem:[%s13 + $0x310] sm:$0xff]
  %v708 = vld [vmem:[%s13 + $0x318] sm:$0xff]
  %v709 = vld [vmem:[%s13 + $0x320] sm:$0xff]
  %v710 = vld [vmem:[%s13 + $0x328] sm:$0xff]
  %v711 = vld [vmem:[%s13 + $0x330] sm:$0xff]
  %v712 = vld [vmem:[%s13 + $0x338] sm:$0xff]
  %v713 = vld [vmem:[%s13 + $0x340] sm:$0xff]
  %v714 = vld [vmem:[%s13 + $0x348] sm:$0xff]
  %v715 = vld [vmem:[%s13 + $0x350] sm:$0xff]
  %v716 = vld [vmem:[%s13 + $0x358] sm:$0xff]
  %v717 = vld [vmem:[%s13 + $0x360] sm:$0xff]
  %v718 = vld [vmem:[%s13 + $0x368] sm:$0xff]
  %v719 = vld [vmem:[%s13 + $0x370] sm:$0xff]
  %v720 = vld [vmem:[%s13 + $0x378] sm:$0xff]
  %v721 = vld [vmem:[%s13 + $0x380] sm:$0xff]
  %v722 = vld [vmem:[%s13 + $0x388] sm:$0xff]
  %v723 = vld [vmem:[%s13 + $0x390] sm:$0xff]
  %v724 = vld [vmem:[%s13 + $0x398] sm:$0xff]
  %v725 = vld [vmem:[%s13 + $0x3a0] sm:$0xff]
  %v726 = vld [vmem:[%s13 + $0x3a8] sm:$0xff]
  %v727 = vld [vmem:[%s13 + $0x3b0] sm:$0xff]
  %v728 = vld [vmem:[%s13 + $0x3b8] sm:$0xff]
  %v729 = vld [vmem:[%s13 + $0x3c0] sm:$0xff]
  %v730 = vld [vmem:[%s13 + $0x3c8] sm:$0xff]
  %v731 = vld [vmem:[%s13 + $0x3d0] sm:$0xff]
  %v732 = vld [vmem:[%s13 + $0x3d8] sm:$0xff]
  %v733 = vld [vmem:[%s13 + $0x3e0] sm:$0xff]
  %v734 = vld [vmem:[%s13 + $0x3e8] sm:$0xff]
  %v735 = vld [vmem:[%s13 + $0x3f0] sm:$0xff]
  %v736 = vld [vmem:[%s13 + $0x3f8] sm:$0xff]
  %v737 = vld [vmem:[%s13 + $0x400] sm:$0xff]
  %v738 = vld [vmem:[%s13 + $0x408] sm:$0xff]
  %v739 = vld [vmem:[%s13 + $0x410] sm:$0xff]
  %v740 = vld [vmem:[%s13 + $0x418] sm:$0xff]
  %v741 = vld [vmem:[%s13 + $0x420] sm:$0xff]
  %v742 = vld [vmem:[%s13 + $0x428] sm:$0xff]
  %v743 = vld [vmem:[%s13 + $0x430] sm:$0xff]
  %v744 = vld [vmem:[%s13 + $0x438] sm:$0xff]
  %v745 = vld [vmem:[%s13 + $0x440] sm:$0xff]
  %v746 = vld [vmem:[%s13 + $0x448] sm:$0xff]
  %v747 = vld [vmem:[%s13 + $0x450] sm:$0xff]
  %v748 = vld [vmem:[%s13 + $0x458] sm:$0xff]
  %v749 = vld [vmem:[%s13 + $0x460] sm:$0xff]
  %v750 = vld [vmem:[%s13 + $0x468] sm:$0xff]
  %v751 = vld [vmem:[%s13 + $0x470] sm:$0xff]
  %v752 = vld [vmem:[%s13 + $0x478] sm:$0xff]
  %v753 = vld [vmem:[%s13 + $0x480] sm:$0xff]
  %v754 = vld [vmem:[%s13 + $0x488] sm:$0xff]
  %v755 = vld [vmem:[%s13 + $0x490] sm:$0xff]
  %v756 = vld [vmem:[%s13 + $0x498] sm:$0xff]
  %v757 = vld [vmem:[%s13 + $0x4a0] sm:$0xff]
  %v758 = vld [vmem:[%s13 + $0x4a8] sm:$0xff]
  %v759 = vld [vmem:[%s13 + $0x4b0] sm:$0xff]
  %v760 = vld [vmem:[%s13 + $0x4b8] sm:$0xff]
  %v761 = vld [vmem:[%s13 + $0x4c0] sm:$0xff]
  %v762 = vld [vmem:[%s13 + $0x4c8] sm:$0xff]
  %v763 = vld [vmem:[%s13 + $0x4d0] sm:$0xff]
  %v764 = vld [vmem:[%s13 + $0x4d8] sm:$0xff]
  %v765 = vld [vmem:[%s13 + $0x4e0] sm:$0xff]
  %v766 = vld [vmem:[%s13 + $0x4e8] sm:$0xff]
  %v767 = vld [vmem:[%s13 + $0x4f0] sm:$0xff]
  %v768 = vld [vmem:[%s13 + $0x4f8] sm:$0xff]
  %v769 = vld [vmem:[%s13 + $0x500] sm:$0xff]
  %v770 = vld [vmem:[%s13 + $0x508] sm:$0xff]
  %v771 = vld [vmem:[%s13 + $0x510] sm:$0xff]
  %v772 = vld [vmem:[%s13 + $0x518] sm:$0xff]
  %v773 = vld [vmem:[%s13 + $0x520] sm:$0xff]
  %v774 = vld [vmem:[%s13 + $0x528] sm:$0xff]
  %v775 = vld [vmem:[%s13 + $0x530] sm:$0xff]
  %v776 = vld [vmem:[%s13 + $0x538] sm:$0xff]
  %v777 = vld [vmem:[%s13 + $0x540] sm:$0xff]
  %v778 = vld [vmem:[%s13 + $0x548] sm:$0xff]
  %v779 = vld [vmem:[%s13 + $0x550] sm:$0xff]
  %v780 = vld [vmem:[%s13 + $0x558] sm:$0xff]
  %v781 = vld [vmem:[%s13 + $0x560] sm:$0xff]
  %v782 = vld [vmem:[%s13 + $0x568] sm:$0xff]
  %v783 = vld [vmem:[%s13 + $0x570] sm:$0xff]
  %v784 = vld [vmem:[%s13 + $0x578] sm:$0xff]
  %v785 = vld [vmem:[%s13 + $0x580] sm:$0xff]
  %v786 = vld [vmem:[%s13 + $0x588] sm:$0xff]
  %v787 = vld [vmem:[%s13 + $0x590] sm:$0xff]
  %v788 = vld [vmem:[%s13 + $0x598] sm:$0xff]
  %v789 = vld [vmem:[%s13 + $0x5a0] sm:$0xff]
  %v790 = vld [vmem:[%s13 + $0x5a8] sm:$0xff]
  %v791 = vld [vmem:[%s13 + $0x5b0] sm:$0xff]
  %v792 = vld [vmem:[%s13 + $0x5b8] sm:$0xff]
  %v793 = vld [vmem:[%s13 + $0x5c0] sm:$0xff]
  %v794 = vld [vmem:[%s13 + $0x5c8] sm:$0xff]
  %v795 = vld [vmem:[%s13 + $0x5d0] sm:$0xff]
  %v796 = vld [vmem:[%s13 + $0x5d8] sm:$0xff]
  %v797 = vld [vmem:[%s13 + $0x5e0] sm:$0xff]
  %v798 = vld [vmem:[%s13 + $0x5e8] sm:$0xff]
  %v799 = vld [vmem:[%s13 + $0x5f0] sm:$0xff]
  %v800 = vld [vmem:[%s13 + $0x5f8] sm:$0xff]
  %v801 = vld [vmem:[%s13 + $0x600] sm:$0xff]
  %v802 = vld [vmem:[%s13 + $0x608] sm:$0xff]
  %v803 = vld [vmem:[%s13 + $0x610] sm:$0xff]
  %v804 = vld [vmem:[%s13 + $0x618] sm:$0xff]
  %v805 = vld [vmem:[%s13 + $0x620] sm:$0xff]
  %v806 = vld [vmem:[%s13 + $0x628] sm:$0xff]
  %v807 = vld [vmem:[%s13 + $0x630] sm:$0xff]
  %v808 = vld [vmem:[%s13 + $0x638] sm:$0xff]
  %v809 = vld [vmem:[%s13 + $0x640] sm:$0xff]
  %v810 = vld [vmem:[%s13 + $0x648] sm:$0xff]
  %v811 = vld [vmem:[%s13 + $0x650] sm:$0xff]
  %v812 = vld [vmem:[%s13 + $0x658] sm:$0xff]
  %v813 = vld [vmem:[%s13 + $0x660] sm:$0xff]
  %v814 = vld [vmem:[%s13 + $0x668] sm:$0xff]
  %v815 = vld [vmem:[%s13 + $0x670] sm:$0xff]
  %v816 = vld [vmem:[%s13 + $0x678] sm:$0xff]
  %v817 = vld [vmem:[%s13 + $0x680] sm:$0xff]
  %v818 = vld [vmem:[%s13 + $0x688] sm:$0xff]
  %v819 = vld [vmem:[%s13 + $0x690] sm:$0xff]
  %v820 = vld [vmem:[%s13 + $0x698] sm:$0xff]
  %v821 = vld [vmem:[%s13 + $0x6a0] sm:$0xff]
  %v822 = vld [vmem:[%s13 + $0x6a8] sm:$0xff]
  %v823 = vld [vmem:[%s13 + $0x6b0] sm:$0xff]
  %v824 = vld [vmem:[%s13 + $0x6b8] sm:$0xff]
  %v825 = vld [vmem:[%s13 + $0x6c0] sm:$0xff]
  %v826 = vld [vmem:[%s13 + $0x6c8] sm:$0xff]
  %v827 = vld [vmem:[%s13 + $0x6d0] sm:$0xff]
  %v828 = vld [vmem:[%s13 + $0x6d8] sm:$0xff]
  %v829 = vld [vmem:[%s13 + $0x6e0] sm:$0xff]
  %v830 = vld [vmem:[%s13 + $0x6e8] sm:$0xff]
  %v831 = vld [vmem:[%s13 + $0x6f0] sm:$0xff]
  %v832 = vld [vmem:[%s13 + $0x6f8] sm:$0xff]
  %v833 = vld [vmem:[%s13 + $0x700] sm:$0xff]
  %v834 = vld [vmem:[%s13 + $0x708] sm:$0xff]
  %v835 = vld [vmem:[%s13 + $0x710] sm:$0xff]
  %v836 = vld [vmem:[%s13 + $0x718] sm:$0xff]
  %v837 = vld [vmem:[%s13 + $0x720] sm:$0xff]
  %v838 = vld [vmem:[%s13 + $0x728] sm:$0xff]
  %v839 = vld [vmem:[%s13 + $0x730] sm:$0xff]
  %v840 = vld [vmem:[%s13 + $0x738] sm:$0xff]
  %v841 = vld [vmem:[%s13 + $0x740] sm:$0xff]
  %v842 = vld [vmem:[%s13 + $0x748] sm:$0xff]
  %v843 = vld [vmem:[%s13 + $0x750] sm:$0xff]
  %v844 = vld [vmem:[%s13 + $0x758] sm:$0xff]
  %v845 = vld [vmem:[%s13 + $0x760] sm:$0xff]
  %v846 = vld [vmem:[%s13 + $0x768] sm:$0xff]
  %v847 = vld [vmem:[%s13 + $0x770] sm:$0xff]
  %v848 = vld [vmem:[%s13 + $0x778] sm:$0xff]
  %v849 = vld [vmem:[%s15] sm:$0xff]
  %v850 = vld [vmem:[%s15 + $0x8] sm:$0xff]
  %v851 = vld [vmem:[%s15 + $0x10] sm:$0xff]
  %v852 = vld [vmem:[%s15 + $0x18] sm:$0xff]
  %v853 = vld [vmem:[%s15 + $0x20] sm:$0xff]
  %v854 = vld [vmem:[%s15 + $0x28] sm:$0xff]
  %v855 = vld [vmem:[%s15 + $0x30] sm:$0xff]
  %v856 = vld [vmem:[%s15 + $0x38] sm:$0xff]
  %v857 = vld [vmem:[%s15 + $0x40] sm:$0xff]
  %v858 = vld [vmem:[%s15 + $0x48] sm:$0xff]
  %v859 = vld [vmem:[%s15 + $0x50] sm:$0xff]
  %v860 = vld [vmem:[%s15 + $0x58] sm:$0xff]
  %v861 = vld [vmem:[%s15 + $0x60] sm:$0xff]
  %v862 = vld [vmem:[%s15 + $0x68] sm:$0xff]
  %v863 = vld [vmem:[%s15 + $0x70] sm:$0xff]
  %v864 = vld [vmem:[%s15 + $0x78] sm:$0xff]
  %v865 = vld [vmem:[%s15 + $0x80] sm:$0xff]
  %v866 = vld [vmem:[%s15 + $0x88] sm:$0xff]
  %v867 = vld [vmem:[%s15 + $0x90] sm:$0xff]
  %v868 = vld [vmem:[%s15 + $0x98] sm:$0xff]
  %v869 = vld [vmem:[%s15 + $0xa0] sm:$0xff]
  %v870 = vld [vmem:[%s15 + $0xa8] sm:$0xff]
  %v871 = vld [vmem:[%s15 + $0xb0] sm:$0xff]
  %v872 = vld [vmem:[%s15 + $0xb8] sm:$0xff]
  %v873 = vld [vmem:[%s15 + $0xc0] sm:$0xff]
  %v874 = vld [vmem:[%s15 + $0xc8] sm:$0xff]
  %v875 = vld [vmem:[%s15 + $0xd0] sm:$0xff]
  %v876 = vld [vmem:[%s15 + $0xd8] sm:$0xff]
  %v877 = vld [vmem:[%s15 + $0xe0] sm:$0xff]
  %v878 = vld [vmem:[%s15 + $0xe8] sm:$0xff]
  %v879 = vld [vmem:[%s15 + $0xf0] sm:$0xff]
  %v880 = vld [vmem:[%s15 + $0xf8] sm:$0xff]
  %v881 = vld [vmem:[%s15 + $0x100] sm:$0xff]
  %v882 = vld [vmem:[%s15 + $0x108] sm:$0xff]
  %v883 = vld [vmem:[%s15 + $0x110] sm:$0xff]
  %v884 = vld [vmem:[%s15 + $0x118] sm:$0xff]
  %v885 = vld [vmem:[%s15 + $0x120] sm:$0xff]
  %v886 = vld [vmem:[%s15 + $0x128] sm:$0xff]
  %v887 = vld [vmem:[%s15 + $0x130] sm:$0xff]
  %v888 = vld [vmem:[%s15 + $0x138] sm:$0xff]
  %v889 = vld [vmem:[%s15 + $0x140] sm:$0xff]
  %v890 = vld [vmem:[%s15 + $0x148] sm:$0xff]
  %v891 = vld [vmem:[%s15 + $0x150] sm:$0xff]
  %v892 = vld [vmem:[%s15 + $0x158] sm:$0xff]
  %v893 = vld [vmem:[%s15 + $0x160] sm:$0xff]
  %v894 = vld [vmem:[%s15 + $0x168] sm:$0xff]
  %v895 = vld [vmem:[%s15 + $0x170] sm:$0xff]
  %v896 = vld [vmem:[%s15 + $0x178] sm:$0xff]
  %v897 = vld [vmem:[%s15 + $0x180] sm:$0xff]
  %v898 = vld [vmem:[%s15 + $0x188] sm:$0xff]
  %v899 = vld [vmem:[%s15 + $0x190] sm:$0xff]
  %v900 = vld [vmem:[%s15 + $0x198] sm:$0xff]
  %v901 = vld [vmem:[%s15 + $0x1a0] sm:$0xff]
  %v902 = vld [vmem:[%s15 + $0x1a8] sm:$0xff]
  %v903 = vld [vmem:[%s15 + $0x1b0] sm:$0xff]
  %v904 = vld [vmem:[%s15 + $0x1b8] sm:$0xff]
  %v905 = vld [vmem:[%s15 + $0x1c0] sm:$0xff]
  %v906 = vld [vmem:[%s15 + $0x1c8] sm:$0xff]
  %v907 = vld [vmem:[%s15 + $0x1d0] sm:$0xff]
  %v908 = vld [vmem:[%s15 + $0x1d8] sm:$0xff]
  %v909 = vld [vmem:[%s15 + $0x1e0] sm:$0xff]
  %v910 = vld [vmem:[%s15 + $0x1e8] sm:$0xff]
  %v911 = vld [vmem:[%s15 + $0x1f0] sm:$0xff]
  %v912 = vld [vmem:[%s15 + $0x1f8] sm:$0xff]
  %v913 = vld [vmem:[%s15 + $0x200] sm:$0xff]
  %v914 = vld [vmem:[%s15 + $0x208] sm:$0xff]
  %v915 = vld [vmem:[%s15 + $0x210] sm:$0xff]
  %v916 = vld [vmem:[%s15 + $0x218] sm:$0xff]
  %v917 = vld [vmem:[%s15 + $0x220] sm:$0xff]
  %v918 = vld [vmem:[%s15 + $0x228] sm:$0xff]
  %v919 = vld [vmem:[%s15 + $0x230] sm:$0xff]
  %v920 = vld [vmem:[%s15 + $0x238] sm:$0xff]
  %v921 = vld [vmem:[%s15 + $0x240] sm:$0xff]
  %v922 = vld [vmem:[%s15 + $0x248] sm:$0xff]
  %v923 = vld [vmem:[%s15 + $0x250] sm:$0xff]
  %v924 = vld [vmem:[%s15 + $0x258] sm:$0xff]
  %v925 = vld [vmem:[%s15 + $0x260] sm:$0xff]
  %v926 = vld [vmem:[%s15 + $0x268] sm:$0xff]
  %v927 = vld [vmem:[%s15 + $0x270] sm:$0xff]
  %v928 = vld [vmem:[%s15 + $0x278] sm:$0xff]
  %v929 = vld [vmem:[%s15 + $0x280] sm:$0xff]
  %v930 = vld [vmem:[%s15 + $0x288] sm:$0xff]
  %v931 = vld [vmem:[%s15 + $0x290] sm:$0xff]
  %v932 = vld [vmem:[%s15 + $0x298] sm:$0xff]
  %v933 = vld [vmem:[%s15 + $0x2a0] sm:$0xff]
  %v934 = vld [vmem:[%s15 + $0x2a8] sm:$0xff]
  %v935 = vld [vmem:[%s15 + $0x2b0] sm:$0xff]
  %v936 = vld [vmem:[%s15 + $0x2b8] sm:$0xff]
  %v937 = vld [vmem:[%s15 + $0x2c0] sm:$0xff]
  %v938 = vld [vmem:[%s15 + $0x2c8] sm:$0xff]
  %v939 = vld [vmem:[%s15 + $0x2d0] sm:$0xff]
  %v940 = vld [vmem:[%s15 + $0x2d8] sm:$0xff]
  %v941 = vld [vmem:[%s15 + $0x2e0] sm:$0xff]
  %v942 = vld [vmem:[%s15 + $0x2e8] sm:$0xff]
  %v943 = vld [vmem:[%s15 + $0x2f0] sm:$0xff]
  %v944 = vld [vmem:[%s15 + $0x2f8] sm:$0xff]
  %v945 = vld [vmem:[%s15 + $0x300] sm:$0xff]
  %v946 = vld [vmem:[%s15 + $0x308] sm:$0xff]
  %v947 = vld [vmem:[%s15 + $0x310] sm:$0xff]
  %v948 = vld [vmem:[%s15 + $0x318] sm:$0xff]
  %v949 = vld [vmem:[%s15 + $0x320] sm:$0xff]
  %v950 = vld [vmem:[%s15 + $0x328] sm:$0xff]
  %v951 = vld [vmem:[%s15 + $0x330] sm:$0xff]
  %v952 = vld [vmem:[%s15 + $0x338] sm:$0xff]
  %v953 = vld [vmem:[%s15 + $0x340] sm:$0xff]
  %v954 = vld [vmem:[%s15 + $0x348] sm:$0xff]
  %v955 = vld [vmem:[%s15 + $0x350] sm:$0xff]
  %v956 = vld [vmem:[%s15 + $0x358] sm:$0xff]
  %v957 = vld [vmem:[%s15 + $0x360] sm:$0xff]
  %v958 = vld [vmem:[%s15 + $0x368] sm:$0xff]
  %v959 = vld [vmem:[%s15 + $0x370] sm:$0xff]
  %v960 = vld [vmem:[%s15 + $0x378] sm:$0xff]
  %v961 = vld [vmem:[%s15 + $0x380] sm:$0xff]
  %v962 = vld [vmem:[%s15 + $0x388] sm:$0xff]
  %v963 = vld [vmem:[%s15 + $0x390] sm:$0xff]
  %v964 = vld [vmem:[%s15 + $0x398] sm:$0xff]
  %v965 = vld [vmem:[%s15 + $0x3a0] sm:$0xff]
  %v966 = vld [vmem:[%s15 + $0x3a8] sm:$0xff]
  %v967 = vld [vmem:[%s15 + $0x3b0] sm:$0xff]
  %v968 = vld [vmem:[%s15 + $0x3b8] sm:$0xff]
  %v969 = vld [vmem:[%s15 + $0x3c0] sm:$0xff]
  %v970 = vld [vmem:[%s15 + $0x3c8] sm:$0xff]
  %v971 = vld [vmem:[%s15 + $0x3d0] sm:$0xff]
  %v972 = vld [vmem:[%s15 + $0x3d8] sm:$0xff]
  %v973 = vld [vmem:[%s15 + $0x3e0] sm:$0xff]
  %v974 = vld [vmem:[%s15 + $0x3e8] sm:$0xff]
  %v975 = vld [vmem:[%s15 + $0x3f0] sm:$0xff]
  %v976 = vld [vmem:[%s15 + $0x3f8] sm:$0xff]
  %v977 = vld [vmem:[%s15 + $0x400] sm:$0xff]
  %v978 = vld [vmem:[%s15 + $0x408] sm:$0xff]
  %v979 = vld [vmem:[%s15 + $0x410] sm:$0xff]
  %v980 = vld [vmem:[%s15 + $0x418] sm:$0xff]
  %v981 = vld [vmem:[%s15 + $0x420] sm:$0xff]
  %v982 = vld [vmem:[%s15 + $0x428] sm:$0xff]
  %v983 = vld [vmem:[%s15 + $0x430] sm:$0xff]
  %v984 = vld [vmem:[%s15 + $0x438] sm:$0xff]
  %v985 = vld [vmem:[%s15 + $0x440] sm:$0xff]
  %v986 = vld [vmem:[%s15 + $0x448] sm:$0xff]
  %v987 = vld [vmem:[%s15 + $0x450] sm:$0xff]
  %v988 = vld [vmem:[%s15 + $0x458] sm:$0xff]
  %v989 = vld [vmem:[%s15 + $0x460] sm:$0xff]
  %v990 = vld [vmem:[%s15 + $0x468] sm:$0xff]
  %v991 = vld [vmem:[%s15 + $0x470] sm:$0xff]
  %v992 = vld [vmem:[%s15 + $0x478] sm:$0xff]
  %v993 = vld [vmem:[%s15 + $0x480] sm:$0xff]
  %v994 = vld [vmem:[%s15 + $0x488] sm:$0xff]
  %v995 = vld [vmem:[%s15 + $0x490] sm:$0xff]
  %v996 = vld [vmem:[%s15 + $0x498] sm:$0xff]
  %v997 = vld [vmem:[%s15 + $0x4a0] sm:$0xff]
  %v998 = vld [vmem:[%s15 + $0x4a8] sm:$0xff]
  %v999 = vld [vmem:[%s15 + $0x4b0] sm:$0xff]
  %v1000 = vld [vmem:[%s15 + $0x4b8] sm:$0xff]
  %v1001 = vld [vmem:[%s15 + $0x4c0] sm:$0xff]
  %v1002 = vld [vmem:[%s15 + $0x4c8] sm:$0xff]
  %v1003 = vld [vmem:[%s15 + $0x4d0] sm:$0xff]
  %v1004 = vld [vmem:[%s15 + $0x4d8] sm:$0xff]
  %v1005 = vld [vmem:[%s15 + $0x4e0] sm:$0xff]
  %v1006 = vld [vmem:[%s15 + $0x4e8] sm:$0xff]
  %v1007 = vld [vmem:[%s15 + $0x4f0] sm:$0xff]
  %v1008 = vld [vmem:[%s15 + $0x4f8] sm:$0xff]
  %v1009 = vld [vmem:[%s15 + $0x500] sm:$0xff]
  %v1010 = vld [vmem:[%s15 + $0x508] sm:$0xff]
  %v1011 = vld [vmem:[%s15 + $0x510] sm:$0xff]
  %v1012 = vld [vmem:[%s15 + $0x518] sm:$0xff]
  %v1013 = vld [vmem:[%s15 + $0x520] sm:$0xff]
  %v1014 = vld [vmem:[%s15 + $0x528] sm:$0xff]
  %v1015 = vld [vmem:[%s15 + $0x530] sm:$0xff]
  %v1016 = vld [vmem:[%s15 + $0x538] sm:$0xff]
  %v1017 = vld [vmem:[%s15 + $0x540] sm:$0xff]
  %v1018 = vld [vmem:[%s15 + $0x548] sm:$0xff]
  %v1019 = vld [vmem:[%s15 + $0x550] sm:$0xff]
  %v1020 = vld [vmem:[%s15 + $0x558] sm:$0xff]
  %v1021 = vld [vmem:[%s15 + $0x560] sm:$0xff]
  %v1022 = vld [vmem:[%s15 + $0x568] sm:$0xff]
  %v1023 = vld [vmem:[%s15 + $0x570] sm:$0xff]
  %v1024 = vld [vmem:[%s15 + $0x578] sm:$0xff]
  %v1025 = vld [vmem:[%s15 + $0x580] sm:$0xff]
  %v1026 = vld [vmem:[%s15 + $0x588] sm:$0xff]
  %v1027 = vld [vmem:[%s15 + $0x590] sm:$0xff]
  %v1028 = vld [vmem:[%s15 + $0x598] sm:$0xff]
  %v1029 = vld [vmem:[%s15 + $0x5a0] sm:$0xff]
  %v1030 = vld [vmem:[%s15 + $0x5a8] sm:$0xff]
  %v1031 = vld [vmem:[%s15 + $0x5b0] sm:$0xff]
  %v1032 = vld [vmem:[%s15 + $0x5b8] sm:$0xff]
  %v1033 = vld [vmem:[%s15 + $0x5c0] sm:$0xff]
  %v1034 = vld [vmem:[%s15 + $0x5c8] sm:$0xff]
  %v1035 = vld [vmem:[%s15 + $0x5d0] sm:$0xff]
  %v1036 = vld [vmem:[%s15 + $0x5d8] sm:$0xff]
  %v1037 = vld [vmem:[%s15 + $0x5e0] sm:$0xff]
  %v1038 = vld [vmem:[%s15 + $0x5e8] sm:$0xff]
  %v1039 = vld [vmem:[%s15 + $0x5f0] sm:$0xff]
  %v1040 = vld [vmem:[%s15 + $0x5f8] sm:$0xff]
  %v1041 = vld [vmem:[%s15 + $0x600] sm:$0xff]
  %v1042 = vld [vmem:[%s15 + $0x608] sm:$0xff]
  %v1043 = vld [vmem:[%s15 + $0x610] sm:$0xff]
  %v1044 = vld [vmem:[%s15 + $0x618] sm:$0xff]
  %v1045 = vld [vmem:[%s15 + $0x620] sm:$0xff]
  %v1046 = vld [vmem:[%s15 + $0x628] sm:$0xff]
  %v1047 = vld [vmem:[%s15 + $0x630] sm:$0xff]
  %v1048 = vld [vmem:[%s15 + $0x638] sm:$0xff]
  %v1049 = vld [vmem:[%s15 + $0x640] sm:$0xff]
  %v1050 = vld [vmem:[%s15 + $0x648] sm:$0xff]
  %v1051 = vld [vmem:[%s15 + $0x650] sm:$0xff]
  %v1052 = vld [vmem:[%s15 + $0x658] sm:$0xff]
  %v1053 = vld [vmem:[%s15 + $0x660] sm:$0xff]
  %v1054 = vld [vmem:[%s15 + $0x668] sm:$0xff]
  %v1055 = vld [vmem:[%s15 + $0x670] sm:$0xff]
  %v1056 = vld [vmem:[%s15 + $0x678] sm:$0xff]
  %v1057 = vld [vmem:[%s15 + $0x680] sm:$0xff]
  %v1058 = vld [vmem:[%s15 + $0x688] sm:$0xff]
  %v1059 = vld [vmem:[%s15 + $0x690] sm:$0xff]
  %v1060 = vld [vmem:[%s15 + $0x698] sm:$0xff]
  %v1061 = vld [vmem:[%s15 + $0x6a0] sm:$0xff]
  %v1062 = vld [vmem:[%s15 + $0x6a8] sm:$0xff]
  %v1063 = vld [vmem:[%s15 + $0x6b0] sm:$0xff]
  %v1064 = vld [vmem:[%s15 + $0x6b8] sm:$0xff]
  %v1065 = vld [vmem:[%s15 + $0x6c0] sm:$0xff]
  %v1066 = vld [vmem:[%s15 + $0x6c8] sm:$0xff]
  %v1067 = vld [vmem:[%s15 + $0x6d0] sm:$0xff]
  %v1068 = vld [vmem:[%s15 + $0x6d8] sm:$0xff]
  %v1069 = vld [vmem:[%s15 + $0x6e0] sm:$0xff]
  %v1070 = vld [vmem:[%s15 + $0x6e8] sm:$0xff]
  %v1071 = vld [vmem:[%s15 + $0x6f0] sm:$0xff]
  %v1072 = vld [vmem:[%s15 + $0x6f8] sm:$0xff]
  %v1073 = vld [vmem:[%s15 + $0x700] sm:$0xff]
  %v1074 = vld [vmem:[%s15 + $0x708] sm:$0xff]
  %v1075 = vld [vmem:[%s15 + $0x710] sm:$0xff]
  %v1076 = vld [vmem:[%s15 + $0x718] sm:$0xff]
  %v1077 = vld [vmem:[%s15 + $0x720] sm:$0xff]
  %v1078 = vld [vmem:[%s15 + $0x728] sm:$0xff]
  %v1079 = vld [vmem:[%s15 + $0x730] sm:$0xff]
  %v1080 = vld [vmem:[%s15 + $0x738] sm:$0xff]
  %v1081 = vld [vmem:[%s15 + $0x740] sm:$0xff]
  %v1082 = vld [vmem:[%s15 + $0x748] sm:$0xff]
  %v1083 = vld [vmem:[%s15 + $0x750] sm:$0xff]
  %v1084 = vld [vmem:[%s15 + $0x758] sm:$0xff]
  %v1085 = vld [vmem:[%s15 + $0x760] sm:$0xff]
  %v1086 = vld [vmem:[%s15 + $0x768] sm:$0xff]
  %v1087 = vld [vmem:[%s15 + $0x770] sm:$0xff]
  %v1088 = vld [vmem:[%s15 + $0x778] sm:$0xff]
  %v1089 = vmul.f32 %v849, 1.442695
  %v1090 = vpow.pop %v1089
  %v1091 = vmul.f32 %v850, 1.442695
  %v1092 = vpow.pop %v1091
  %v1093 = vmul.f32 %v851, 1.442695
  %v1094 = vpow.pop %v1093
  %v1095 = vmul.f32 %v852, 1.442695
  %v1096 = vpow.pop %v1095
  %v1097 = vmul.f32 %v853, 1.442695
  %v1098 = vpow.pop %v1097
  %v1099 = vmul.f32 %v854, 1.442695
  %v1100 = vpow.pop %v1099
  %v1101 = vmul.f32 %v855, 1.442695
  %v1102 = vpow.pop %v1101
  %v1103 = vmul.f32 %v856, 1.442695
  %v1104 = vpow.pop %v1103
  %v1105 = vmul.f32 %v857, 1.442695
  %v1106 = vpow.pop %v1105
  %v1107 = vmul.f32 %v858, 1.442695
  %v1108 = vpow.pop %v1107
  %v1109 = vmul.f32 %v859, 1.442695
  %v1110 = vpow.pop %v1109
  %v1111 = vmul.f32 %v860, 1.442695
  %v1112 = vpow.pop %v1111
  %v1113 = vmul.f32 %v861, 1.442695
  %v1114 = vpow.pop %v1113
  %v1115 = vmul.f32 %v862, 1.442695
  %v1116 = vpow.pop %v1115
  %v1117 = vmul.f32 %v863, 1.442695
  %v1118 = vpow.pop %v1117
  %v1119 = vmul.f32 %v864, 1.442695
  %v1120 = vpow.pop %v1119
  %v1121 = vmul.f32 %v865, 1.442695
  %v1122 = vpow.pop %v1121
  %v1123 = vmul.f32 %v866, 1.442695
  %v1124 = vpow.pop %v1123
  %v1125 = vmul.f32 %v867, 1.442695
  %v1126 = vpow.pop %v1125
  %v1127 = vmul.f32 %v868, 1.442695
  %v1128 = vpow.pop %v1127
  %v1129 = vmul.f32 %v869, 1.442695
  %v1130 = vpow.pop %v1129
  %v1131 = vmul.f32 %v870, 1.442695
  %v1132 = vpow.pop %v1131
  %v1133 = vmul.f32 %v871, 1.442695
  %v1134 = vpow.pop %v1133
  %v1135 = vmul.f32 %v872, 1.442695
  %v1136 = vpow.pop %v1135
  %v1137 = vmul.f32 %v873, 1.442695
  %v1138 = vpow.pop %v1137
  %v1139 = vmul.f32 %v874, 1.442695
  %v1140 = vpow.pop %v1139
  %v1141 = vmul.f32 %v875, 1.442695
  %v1142 = vpow.pop %v1141
  %v1143 = vmul.f32 %v876, 1.442695
  %v1144 = vpow.pop %v1143
  %v1145 = vmul.f32 %v877, 1.442695
  %v1146 = vpow.pop %v1145
  %v1147 = vmul.f32 %v878, 1.442695
  %v1148 = vpow.pop %v1147
  %v1149 = vmul.f32 %v879, 1.442695
  %v1150 = vpow.pop %v1149
  %v1151 = vmul.f32 %v880, 1.442695
  %v1152 = vpow.pop %v1151
  %v1153 = vmul.f32 %v881, 1.442695
  %v1154 = vpow.pop %v1153
  %v1155 = vmul.f32 %v882, 1.442695
  %v1156 = vpow.pop %v1155
  %v1157 = vmul.f32 %v883, 1.442695
  %v1158 = vpow.pop %v1157
  %v1159 = vmul.f32 %v884, 1.442695
  %v1160 = vpow.pop %v1159
  %v1161 = vmul.f32 %v885, 1.442695
  %v1162 = vpow.pop %v1161
  %v1163 = vmul.f32 %v886, 1.442695
  %v1164 = vpow.pop %v1163
  %v1165 = vmul.f32 %v887, 1.442695
  %v1166 = vpow.pop %v1165
  %v1167 = vmul.f32 %v888, 1.442695
  %v1168 = vpow.pop %v1167
  %v1169 = vmul.f32 %v889, 1.442695
  %v1170 = vpow.pop %v1169
  %v1171 = vmul.f32 %v890, 1.442695
  %v1172 = vpow.pop %v1171
  %v1173 = vmul.f32 %v891, 1.442695
  %v1174 = vpow.pop %v1173
  %v1175 = vmul.f32 %v892, 1.442695
  %v1176 = vpow.pop %v1175
  %v1177 = vmul.f32 %v893, 1.442695
  %v1178 = vpow.pop %v1177
  %v1179 = vmul.f32 %v894, 1.442695
  %v1180 = vpow.pop %v1179
  %v1181 = vmul.f32 %v895, 1.442695
  %v1182 = vpow.pop %v1181
  %v1183 = vmul.f32 %v896, 1.442695
  %v1184 = vpow.pop %v1183
  %v1185 = vmul.f32 %v897, 1.442695
  %v1186 = vpow.pop %v1185
  %v1187 = vmul.f32 %v898, 1.442695
  %v1188 = vpow.pop %v1187
  %v1189 = vmul.f32 %v899, 1.442695
  %v1190 = vpow.pop %v1189
  %v1191 = vmul.f32 %v900, 1.442695
  %v1192 = vpow.pop %v1191
  %v1193 = vmul.f32 %v901, 1.442695
  %v1194 = vpow.pop %v1193
  %v1195 = vmul.f32 %v902, 1.442695
  %v1196 = vpow.pop %v1195
  %v1197 = vmul.f32 %v903, 1.442695
  %v1198 = vpow.pop %v1197
  %v1199 = vmul.f32 %v904, 1.442695
  %v1200 = vpow.pop %v1199
  %v1201 = vmul.f32 %v905, 1.442695
  %v1202 = vpow.pop %v1201
  %v1203 = vmul.f32 %v906, 1.442695
  %v1204 = vpow.pop %v1203
  %v1205 = vmul.f32 %v907, 1.442695
  %v1206 = vpow.pop %v1205
  %v1207 = vmul.f32 %v908, 1.442695
  %v1208 = vpow.pop %v1207
  %v1209 = vmul.f32 %v909, 1.442695
  %v1210 = vpow.pop %v1209
  %v1211 = vmul.f32 %v910, 1.442695
  %v1212 = vpow.pop %v1211
  %v1213 = vmul.f32 %v911, 1.442695
  %v1214 = vpow.pop %v1213
  %v1215 = vmul.f32 %v912, 1.442695
  %v1216 = vpow.pop %v1215
  %v1217 = vmul.f32 %v913, 1.442695
  %v1218 = vpow.pop %v1217
  %v1219 = vmul.f32 %v914, 1.442695
  %v1220 = vpow.pop %v1219
  %v1221 = vmul.f32 %v915, 1.442695
  %v1222 = vpow.pop %v1221
  %v1223 = vmul.f32 %v916, 1.442695
  %v1224 = vpow.pop %v1223
  %v1225 = vmul.f32 %v917, 1.442695
  %v1226 = vpow.pop %v1225
  %v1227 = vmul.f32 %v918, 1.442695
  %v1228 = vpow.pop %v1227
  %v1229 = vmul.f32 %v919, 1.442695
  %v1230 = vpow.pop %v1229
  %v1231 = vmul.f32 %v920, 1.442695
  %v1232 = vpow.pop %v1231
  %v1233 = vmul.f32 %v921, 1.442695
  %v1234 = vpow.pop %v1233
  %v1235 = vmul.f32 %v922, 1.442695
  %v1236 = vpow.pop %v1235
  %v1237 = vmul.f32 %v923, 1.442695
  %v1238 = vpow.pop %v1237
  %v1239 = vmul.f32 %v924, 1.442695
  %v1240 = vpow.pop %v1239
  %v1241 = vmul.f32 %v925, 1.442695
  %v1242 = vpow.pop %v1241
  %v1243 = vmul.f32 %v926, 1.442695
  %v1244 = vpow.pop %v1243
  %v1245 = vmul.f32 %v927, 1.442695
  %v1246 = vpow.pop %v1245
  %v1247 = vmul.f32 %v928, 1.442695
  %v1248 = vpow.pop %v1247
  %v1249 = vmul.f32 %v929, 1.442695
  %v1250 = vpow.pop %v1249
  %v1251 = vmul.f32 %v930, 1.442695
  %v1252 = vpow.pop %v1251
  %v1253 = vmul.f32 %v931, 1.442695
  %v1254 = vpow.pop %v1253
  %v1255 = vmul.f32 %v932, 1.442695
  %v1256 = vpow.pop %v1255
  %v1257 = vmul.f32 %v933, 1.442695
  %v1258 = vpow.pop %v1257
  %v1259 = vmul.f32 %v934, 1.442695
  %v1260 = vpow.pop %v1259
  %v1261 = vmul.f32 %v935, 1.442695
  %v1262 = vpow.pop %v1261
  %v1263 = vmul.f32 %v936, 1.442695
  %v1264 = vpow.pop %v1263
  %v1265 = vmul.f32 %v937, 1.442695
  %v1266 = vpow.pop %v1265
  %v1267 = vmul.f32 %v938, 1.442695
  %v1268 = vpow.pop %v1267
  %v1269 = vmul.f32 %v939, 1.442695
  %v1270 = vpow.pop %v1269
  %v1271 = vmul.f32 %v940, 1.442695
  %v1272 = vpow.pop %v1271
  %v1273 = vmul.f32 %v941, 1.442695
  %v1274 = vpow.pop %v1273
  %v1275 = vmul.f32 %v942, 1.442695
  %v1276 = vpow.pop %v1275
  %v1277 = vmul.f32 %v943, 1.442695
  %v1278 = vpow.pop %v1277
  %v1279 = vmul.f32 %v944, 1.442695
  %v1280 = vpow.pop %v1279
  %v1281 = vmul.f32 %v945, 1.442695
  %v1282 = vpow.pop %v1281
  %v1283 = vmul.f32 %v946, 1.442695
  %v1284 = vpow.pop %v1283
  %v1285 = vmul.f32 %v947, 1.442695
  %v1286 = vpow.pop %v1285
  %v1287 = vmul.f32 %v948, 1.442695
  %v1288 = vpow.pop %v1287
  %v1289 = vmul.f32 %v949, 1.442695
  %v1290 = vpow.pop %v1289
  %v1291 = vmul.f32 %v950, 1.442695
  %v1292 = vpow.pop %v1291
  %v1293 = vmul.f32 %v951, 1.442695
  %v1294 = vpow.pop %v1293
  %v1295 = vmul.f32 %v952, 1.442695
  %v1296 = vpow.pop %v1295
  %v1297 = vmul.f32 %v953, 1.442695
  %v1298 = vpow.pop %v1297
  %v1299 = vmul.f32 %v954, 1.442695
  %v1300 = vpow.pop %v1299
  %v1301 = vmul.f32 %v955, 1.442695
  %v1302 = vpow.pop %v1301
  %v1303 = vmul.f32 %v956, 1.442695
  %v1304 = vpow.pop %v1303
  %v1305 = vmul.f32 %v957, 1.442695
  %v1306 = vpow.pop %v1305
  %v1307 = vmul.f32 %v958, 1.442695
  %v1308 = vpow.pop %v1307
  %v1309 = vmul.f32 %v959, 1.442695
  %v1310 = vpow.pop %v1309
  %v1311 = vmul.f32 %v960, 1.442695
  %v1312 = vpow.pop %v1311
  %v1313 = vmul.f32 %v961, 1.442695
  %v1314 = vpow.pop %v1313
  %v1315 = vmul.f32 %v962, 1.442695
  %v1316 = vpow.pop %v1315
  %v1317 = vmul.f32 %v963, 1.442695
  %v1318 = vpow.pop %v1317
  %v1319 = vmul.f32 %v964, 1.442695
  %v1320 = vpow.pop %v1319
  %v1321 = vmul.f32 %v965, 1.442695
  %v1322 = vpow.pop %v1321
  %v1323 = vmul.f32 %v966, 1.442695
  %v1324 = vpow.pop %v1323
  %v1325 = vmul.f32 %v967, 1.442695
  %v1326 = vpow.pop %v1325
  %v1327 = vmul.f32 %v968, 1.442695
  %v1328 = vpow.pop %v1327
  %v1329 = vmul.f32 %v969, 1.442695
  %v1330 = vpow.pop %v1329
  %v1331 = vmul.f32 %v970, 1.442695
  %v1332 = vpow.pop %v1331
  %v1333 = vmul.f32 %v971, 1.442695
  %v1334 = vpow.pop %v1333
  %v1335 = vmul.f32 %v972, 1.442695
  %v1336 = vpow.pop %v1335
  %v1337 = vmul.f32 %v973, 1.442695
  %v1338 = vpow.pop %v1337
  %v1339 = vmul.f32 %v974, 1.442695
  %v1340 = vpow.pop %v1339
  %v1341 = vmul.f32 %v975, 1.442695
  %v1342 = vpow.pop %v1341
  %v1343 = vmul.f32 %v976, 1.442695
  %v1344 = vpow.pop %v1343
  %v1345 = vmul.f32 %v977, 1.442695
  %v1346 = vpow.pop %v1345
  %v1347 = vmul.f32 %v978, 1.442695
  %v1348 = vpow.pop %v1347
  %v1349 = vmul.f32 %v979, 1.442695
  %v1350 = vpow.pop %v1349
  %v1351 = vmul.f32 %v980, 1.442695
  %v1352 = vpow.pop %v1351
  %v1353 = vmul.f32 %v981, 1.442695
  %v1354 = vpow.pop %v1353
  %v1355 = vmul.f32 %v982, 1.442695
  %v1356 = vpow.pop %v1355
  %v1357 = vmul.f32 %v983, 1.442695
  %v1358 = vpow.pop %v1357
  %v1359 = vmul.f32 %v984, 1.442695
  %v1360 = vpow.pop %v1359
  %v1361 = vmul.f32 %v985, 1.442695
  %v1362 = vpow.pop %v1361
  %v1363 = vmul.f32 %v986, 1.442695
  %v1364 = vpow.pop %v1363
  %v1365 = vmul.f32 %v987, 1.442695
  %v1366 = vpow.pop %v1365
  %v1367 = vmul.f32 %v988, 1.442695
  %v1368 = vpow.pop %v1367
  %v1369 = vmul.f32 %v989, 1.442695
  %v1370 = vpow.pop %v1369
  %v1371 = vmul.f32 %v990, 1.442695
  %v1372 = vpow.pop %v1371
  %v1373 = vmul.f32 %v991, 1.442695
  %v1374 = vpow.pop %v1373
  %v1375 = vmul.f32 %v992, 1.442695
  %v1376 = vpow.pop %v1375
  %v1377 = vmul.f32 %v993, 1.442695
  %v1378 = vpow.pop %v1377
  %v1379 = vmul.f32 %v994, 1.442695
  %v1380 = vpow.pop %v1379
  %v1381 = vmul.f32 %v995, 1.442695
  %v1382 = vpow.pop %v1381
  %v1383 = vmul.f32 %v996, 1.442695
  %v1384 = vpow.pop %v1383
  %v1385 = vmul.f32 %v997, 1.442695
  %v1386 = vpow.pop %v1385
  %v1387 = vmul.f32 %v998, 1.442695
  %v1388 = vpow.pop %v1387
  %v1389 = vmul.f32 %v999, 1.442695
  %v1390 = vpow.pop %v1389
  %v1391 = vmul.f32 %v1000, 1.442695
  %v1392 = vpow.pop %v1391
  %v1393 = vmul.f32 %v1001, 1.442695
  %v1394 = vpow.pop %v1393
  %v1395 = vmul.f32 %v1002, 1.442695
  %v1396 = vpow.pop %v1395
  %v1397 = vmul.f32 %v1003, 1.442695
  %v1398 = vpow.pop %v1397
  %v1399 = vmul.f32 %v1004, 1.442695
  %v1400 = vpow.pop %v1399
  %v1401 = vmul.f32 %v1005, 1.442695
  %v1402 = vpow.pop %v1401
  %v1403 = vmul.f32 %v1006, 1.442695
  %v1404 = vpow.pop %v1403
  %v1405 = vmul.f32 %v1007, 1.442695
  %v1406 = vpow.pop %v1405
  %v1407 = vmul.f32 %v1008, 1.442695
  %v1408 = vpow.pop %v1407
  %v1409 = vmul.f32 %v1009, 1.442695
  %v1410 = vpow.pop %v1409
  %v1411 = vmul.f32 %v1010, 1.442695
  %v1412 = vpow.pop %v1411
  %v1413 = vmul.f32 %v1011, 1.442695
  %v1414 = vpow.pop %v1413
  %v1415 = vmul.f32 %v1012, 1.442695
  %v1416 = vpow.pop %v1415
  %v1417 = vmul.f32 %v1013, 1.442695
  %v1418 = vpow.pop %v1417
  %v1419 = vmul.f32 %v1014, 1.442695
  %v1420 = vpow.pop %v1419
  %v1421 = vmul.f32 %v1015, 1.442695
  %v1422 = vpow.pop %v1421
  %v1423 = vmul.f32 %v1016, 1.442695
  %v1424 = vpow.pop %v1423
  %v1425 = vmul.f32 %v1017, 1.442695
  %v1426 = vpow.pop %v1425
  %v1427 = vmul.f32 %v1018, 1.442695
  %v1428 = vpow.pop %v1427
  %v1429 = vmul.f32 %v1019, 1.442695
  %v1430 = vpow.pop %v1429
  %v1431 = vmul.f32 %v1020, 1.442695
  %v1432 = vpow.pop %v1431
  %v1433 = vmul.f32 %v1021, 1.442695
  %v1434 = vpow.pop %v1433
  %v1435 = vmul.f32 %v1022, 1.442695
  %v1436 = vpow.pop %v1435
  %v1437 = vmul.f32 %v1023, 1.442695
  %v1438 = vpow.pop %v1437
  %v1439 = vmul.f32 %v1024, 1.442695
  %v1440 = vpow.pop %v1439
  %v1441 = vmul.f32 %v1025, 1.442695
  %v1442 = vpow.pop %v1441
  %v1443 = vmul.f32 %v1026, 1.442695
  %v1444 = vpow.pop %v1443
  %v1445 = vmul.f32 %v1027, 1.442695
  %v1446 = vpow.pop %v1445
  %v1447 = vmul.f32 %v1028, 1.442695
  %v1448 = vpow.pop %v1447
  %v1449 = vmul.f32 %v1029, 1.442695
  %v1450 = vpow.pop %v1449
  %v1451 = vmul.f32 %v1030, 1.442695
  %v1452 = vpow.pop %v1451
  %v1453 = vmul.f32 %v1031, 1.442695
  %v1454 = vpow.pop %v1453
  %v1455 = vmul.f32 %v1032, 1.442695
  %v1456 = vpow.pop %v1455
  %v1457 = vmul.f32 %v1033, 1.442695
  %v1458 = vpow.pop %v1457
  %v1459 = vmul.f32 %v1034, 1.442695
  %v1460 = vpow.pop %v1459
  %v1461 = vmul.f32 %v1035, 1.442695
  %v1462 = vpow.pop %v1461
  %v1463 = vmul.f32 %v1036, 1.442695
  %v1464 = vpow.pop %v1463
  %v1465 = vmul.f32 %v1037, 1.442695
  %v1466 = vpow.pop %v1465
  %v1467 = vmul.f32 %v1038, 1.442695
  %v1468 = vpow.pop %v1467
  %v1469 = vmul.f32 %v1039, 1.442695
  %v1470 = vpow.pop %v1469
  %v1471 = vmul.f32 %v1040, 1.442695
  %v1472 = vpow.pop %v1471
  %v1473 = vmul.f32 %v1041, 1.442695
  %v1474 = vpow.pop %v1473
  %v1475 = vmul.f32 %v1042, 1.442695
  %v1476 = vpow.pop %v1475
  %v1477 = vmul.f32 %v1043, 1.442695
  %v1478 = vpow.pop %v1477
  %v1479 = vmul.f32 %v1044, 1.442695
  %v1480 = vpow.pop %v1479
  %v1481 = vmul.f32 %v1045, 1.442695
  %v1482 = vpow.pop %v1481
  %v1483 = vmul.f32 %v1046, 1.442695
  %v1484 = vpow.pop %v1483
  %v1485 = vmul.f32 %v1047, 1.442695
  %v1486 = vpow.pop %v1485
  %v1487 = vmul.f32 %v1048, 1.442695
  %v1488 = vpow.pop %v1487
  %v1489 = vmul.f32 %v1049, 1.442695
  %v1490 = vpow.pop %v1489
  %v1491 = vmul.f32 %v1050, 1.442695
  %v1492 = vpow.pop %v1491
  %v1493 = vmul.f32 %v1051, 1.442695
  %v1494 = vpow.pop %v1493
  %v1495 = vmul.f32 %v1052, 1.442695
  %v1496 = vpow.pop %v1495
  %v1497 = vmul.f32 %v1053, 1.442695
  %v1498 = vpow.pop %v1497
  %v1499 = vmul.f32 %v1054, 1.442695
  %v1500 = vpow.pop %v1499
  %v1501 = vmul.f32 %v1055, 1.442695
  %v1502 = vpow.pop %v1501
  %v1503 = vmul.f32 %v1056, 1.442695
  %v1504 = vpow.pop %v1503
  %v1505 = vmul.f32 %v1057, 1.442695
  %v1506 = vpow.pop %v1505
  %v1507 = vmul.f32 %v1058, 1.442695
  %v1508 = vpow.pop %v1507
  %v1509 = vmul.f32 %v1059, 1.442695
  %v1510 = vpow.pop %v1509
  %v1511 = vmul.f32 %v1060, 1.442695
  %v1512 = vpow.pop %v1511
  %v1513 = vmul.f32 %v1061, 1.442695
  %v1514 = vpow.pop %v1513
  %v1515 = vmul.f32 %v1062, 1.442695
  %v1516 = vpow.pop %v1515
  %v1517 = vmul.f32 %v1063, 1.442695
  %v1518 = vpow.pop %v1517
  %v1519 = vmul.f32 %v1064, 1.442695
  %v1520 = vpow.pop %v1519
  %v1521 = vmul.f32 %v1065, 1.442695
  %v1522 = vpow.pop %v1521
  %v1523 = vmul.f32 %v1066, 1.442695
  %v1524 = vpow.pop %v1523
  %v1525 = vmul.f32 %v1067, 1.442695
  %v1526 = vpow.pop %v1525
  %v1527 = vmul.f32 %v1068, 1.442695
  %v1528 = vpow.pop %v1527
  %v1529 = vmul.f32 %v1069, 1.442695
  %v1530 = vpow.pop %v1529
  %v1531 = vmul.f32 %v1070, 1.442695
  %v1532 = vpow.pop %v1531
  %v1533 = vmul.f32 %v1071, 1.442695
  %v1534 = vpow.pop %v1533
  %v1535 = vmul.f32 %v1072, 1.442695
  %v1536 = vpow.pop %v1535
  %v1537 = vmul.f32 %v1073, 1.442695
  %v1538 = vpow.pop %v1537
  %v1539 = vmul.f32 %v1074, 1.442695
  %v1540 = vpow.pop %v1539
  %v1541 = vmul.f32 %v1075, 1.442695
  %v1542 = vpow.pop %v1541
  %v1543 = vmul.f32 %v1076, 1.442695
  %v1544 = vpow.pop %v1543
  %v1545 = vmul.f32 %v1077, 1.442695
  %v1546 = vpow.pop %v1545
  %v1547 = vmul.f32 %v1078, 1.442695
  %v1548 = vpow.pop %v1547
  %v1549 = vmul.f32 %v1079, 1.442695
  %v1550 = vpow.pop %v1549
  %v1551 = vmul.f32 %v1080, 1.442695
  %v1552 = vpow.pop %v1551
  %v1553 = vmul.f32 %v1081, 1.442695
  %v1554 = vpow.pop %v1553
  %v1555 = vmul.f32 %v1082, 1.442695
  %v1556 = vpow.pop %v1555
  %v1557 = vmul.f32 %v1083, 1.442695
  %v1558 = vpow.pop %v1557
  %v1559 = vmul.f32 %v1084, 1.442695
  %v1560 = vpow.pop %v1559
  %v1561 = vmul.f32 %v1085, 1.442695
  %v1562 = vpow.pop %v1561
  %v1563 = vmul.f32 %v1086, 1.442695
  %v1564 = vpow.pop %v1563
  %v1565 = vmul.f32 %v1087, 1.442695
  %v1566 = vpow.pop %v1565
  %v1567 = vmul.f32 %v1088, 1.442695
  %v1568 = vpow.pop %v1567
  %v1569 = vld [vmem:[%s17] sm:$0xff]
  %v1570 = vld [vmem:[%s17 + $0x8] sm:$0xff]
  %v1571 = vld [vmem:[%s17 + $0x10] sm:$0xff]
  %v1572 = vld [vmem:[%s17 + $0x18] sm:$0xff]
  %v1573 = vld [vmem:[%s17 + $0x20] sm:$0xff]
  %v1574 = vld [vmem:[%s17 + $0x28] sm:$0xff]
  %v1575 = vld [vmem:[%s17 + $0x30] sm:$0xff]
  %v1576 = vld [vmem:[%s17 + $0x38] sm:$0xff]
  %v1577 = vld [vmem:[%s17 + $0x40] sm:$0xff]
  %v1578 = vld [vmem:[%s17 + $0x48] sm:$0xff]
  %v1579 = vld [vmem:[%s17 + $0x50] sm:$0xff]
  %v1580 = vld [vmem:[%s17 + $0x58] sm:$0xff]
  %v1581 = vld [vmem:[%s17 + $0x60] sm:$0xff]
  %v1582 = vld [vmem:[%s17 + $0x68] sm:$0xff]
  %v1583 = vld [vmem:[%s17 + $0x70] sm:$0xff]
  %v1584 = vld [vmem:[%s17 + $0x78] sm:$0xff]
  %v1585 = vld [vmem:[%s17 + $0x80] sm:$0xff]
  %v1586 = vld [vmem:[%s17 + $0x88] sm:$0xff]
  %v1587 = vld [vmem:[%s17 + $0x90] sm:$0xff]
  %v1588 = vld [vmem:[%s17 + $0x98] sm:$0xff]
  %v1589 = vld [vmem:[%s17 + $0xa0] sm:$0xff]
  %v1590 = vld [vmem:[%s17 + $0xa8] sm:$0xff]
  %v1591 = vld [vmem:[%s17 + $0xb0] sm:$0xff]
  %v1592 = vld [vmem:[%s17 + $0xb8] sm:$0xff]
  %v1593 = vld [vmem:[%s17 + $0xc0] sm:$0xff]
  %v1594 = vld [vmem:[%s17 + $0xc8] sm:$0xff]
  %v1595 = vld [vmem:[%s17 + $0xd0] sm:$0xff]
  %v1596 = vld [vmem:[%s17 + $0xd8] sm:$0xff]
  %v1597 = vld [vmem:[%s17 + $0xe0] sm:$0xff]
  %v1598 = vld [vmem:[%s17 + $0xe8] sm:$0xff]
  %v1599 = vld [vmem:[%s17 + $0xf0] sm:$0xff]
  %v1600 = vld [vmem:[%s17 + $0xf8] sm:$0xff]
  %v1601 = vld [vmem:[%s17 + $0x100] sm:$0xff]
  %v1602 = vld [vmem:[%s17 + $0x108] sm:$0xff]
  %v1603 = vld [vmem:[%s17 + $0x110] sm:$0xff]
  %v1604 = vld [vmem:[%s17 + $0x118] sm:$0xff]
  %v1605 = vld [vmem:[%s17 + $0x120] sm:$0xff]
  %v1606 = vld [vmem:[%s17 + $0x128] sm:$0xff]
  %v1607 = vld [vmem:[%s17 + $0x130] sm:$0xff]
  %v1608 = vld [vmem:[%s17 + $0x138] sm:$0xff]
  %v1609 = vld [vmem:[%s17 + $0x140] sm:$0xff]
  %v1610 = vld [vmem:[%s17 + $0x148] sm:$0xff]
  %v1611 = vld [vmem:[%s17 + $0x150] sm:$0xff]
  %v1612 = vld [vmem:[%s17 + $0x158] sm:$0xff]
  %v1613 = vld [vmem:[%s17 + $0x160] sm:$0xff]
  %v1614 = vld [vmem:[%s17 + $0x168] sm:$0xff]
  %v1615 = vld [vmem:[%s17 + $0x170] sm:$0xff]
  %v1616 = vld [vmem:[%s17 + $0x178] sm:$0xff]
  %v1617 = vld [vmem:[%s17 + $0x180] sm:$0xff]
  %v1618 = vld [vmem:[%s17 + $0x188] sm:$0xff]
  %v1619 = vld [vmem:[%s17 + $0x190] sm:$0xff]
  %v1620 = vld [vmem:[%s17 + $0x198] sm:$0xff]
  %v1621 = vld [vmem:[%s17 + $0x1a0] sm:$0xff]
  %v1622 = vld [vmem:[%s17 + $0x1a8] sm:$0xff]
  %v1623 = vld [vmem:[%s17 + $0x1b0] sm:$0xff]
  %v1624 = vld [vmem:[%s17 + $0x1b8] sm:$0xff]
  %v1625 = vld [vmem:[%s17 + $0x1c0] sm:$0xff]
  %v1626 = vld [vmem:[%s17 + $0x1c8] sm:$0xff]
  %v1627 = vld [vmem:[%s17 + $0x1d0] sm:$0xff]
  %v1628 = vld [vmem:[%s17 + $0x1d8] sm:$0xff]
  %v1629 = vld [vmem:[%s17 + $0x1e0] sm:$0xff]
  %v1630 = vld [vmem:[%s17 + $0x1e8] sm:$0xff]
  %v1631 = vld [vmem:[%s17 + $0x1f0] sm:$0xff]
  %v1632 = vld [vmem:[%s17 + $0x1f8] sm:$0xff]
  %v1633 = vld [vmem:[%s17 + $0x200] sm:$0xff]
  %v1634 = vld [vmem:[%s17 + $0x208] sm:$0xff]
  %v1635 = vld [vmem:[%s17 + $0x210] sm:$0xff]
  %v1636 = vld [vmem:[%s17 + $0x218] sm:$0xff]
  %v1637 = vld [vmem:[%s17 + $0x220] sm:$0xff]
  %v1638 = vld [vmem:[%s17 + $0x228] sm:$0xff]
  %v1639 = vld [vmem:[%s17 + $0x230] sm:$0xff]
  %v1640 = vld [vmem:[%s17 + $0x238] sm:$0xff]
  %v1641 = vld [vmem:[%s17 + $0x240] sm:$0xff]
  %v1642 = vld [vmem:[%s17 + $0x248] sm:$0xff]
  %v1643 = vld [vmem:[%s17 + $0x250] sm:$0xff]
  %v1644 = vld [vmem:[%s17 + $0x258] sm:$0xff]
  %v1645 = vld [vmem:[%s17 + $0x260] sm:$0xff]
  %v1646 = vld [vmem:[%s17 + $0x268] sm:$0xff]
  %v1647 = vld [vmem:[%s17 + $0x270] sm:$0xff]
  %v1648 = vld [vmem:[%s17 + $0x278] sm:$0xff]
  %v1649 = vld [vmem:[%s17 + $0x280] sm:$0xff]
  %v1650 = vld [vmem:[%s17 + $0x288] sm:$0xff]
  %v1651 = vld [vmem:[%s17 + $0x290] sm:$0xff]
  %v1652 = vld [vmem:[%s17 + $0x298] sm:$0xff]
  %v1653 = vld [vmem:[%s17 + $0x2a0] sm:$0xff]
  %v1654 = vld [vmem:[%s17 + $0x2a8] sm:$0xff]
  %v1655 = vld [vmem:[%s17 + $0x2b0] sm:$0xff]
  %v1656 = vld [vmem:[%s17 + $0x2b8] sm:$0xff]
  %v1657 = vld [vmem:[%s17 + $0x2c0] sm:$0xff]
  %v1658 = vld [vmem:[%s17 + $0x2c8] sm:$0xff]
  %v1659 = vld [vmem:[%s17 + $0x2d0] sm:$0xff]
  %v1660 = vld [vmem:[%s17 + $0x2d8] sm:$0xff]
  %v1661 = vld [vmem:[%s17 + $0x2e0] sm:$0xff]
  %v1662 = vld [vmem:[%s17 + $0x2e8] sm:$0xff]
  %v1663 = vld [vmem:[%s17 + $0x2f0] sm:$0xff]
  %v1664 = vld [vmem:[%s17 + $0x2f8] sm:$0xff]
  %v1665 = vld [vmem:[%s17 + $0x300] sm:$0xff]
  %v1666 = vld [vmem:[%s17 + $0x308] sm:$0xff]
  %v1667 = vld [vmem:[%s17 + $0x310] sm:$0xff]
  %v1668 = vld [vmem:[%s17 + $0x318] sm:$0xff]
  %v1669 = vld [vmem:[%s17 + $0x320] sm:$0xff]
  %v1670 = vld [vmem:[%s17 + $0x328] sm:$0xff]
  %v1671 = vld [vmem:[%s17 + $0x330] sm:$0xff]
  %v1672 = vld [vmem:[%s17 + $0x338] sm:$0xff]
  %v1673 = vld [vmem:[%s17 + $0x340] sm:$0xff]
  %v1674 = vld [vmem:[%s17 + $0x348] sm:$0xff]
  %v1675 = vld [vmem:[%s17 + $0x350] sm:$0xff]
  %v1676 = vld [vmem:[%s17 + $0x358] sm:$0xff]
  %v1677 = vld [vmem:[%s17 + $0x360] sm:$0xff]
  %v1678 = vld [vmem:[%s17 + $0x368] sm:$0xff]
  %v1679 = vld [vmem:[%s17 + $0x370] sm:$0xff]
  %v1680 = vld [vmem:[%s17 + $0x378] sm:$0xff]
  %v1681 = vld [vmem:[%s17 + $0x380] sm:$0xff]
  %v1682 = vld [vmem:[%s17 + $0x388] sm:$0xff]
  %v1683 = vld [vmem:[%s17 + $0x390] sm:$0xff]
  %v1684 = vld [vmem:[%s17 + $0x398] sm:$0xff]
  %v1685 = vld [vmem:[%s17 + $0x3a0] sm:$0xff]
  %v1686 = vld [vmem:[%s17 + $0x3a8] sm:$0xff]
  %v1687 = vld [vmem:[%s17 + $0x3b0] sm:$0xff]
  %v1688 = vld [vmem:[%s17 + $0x3b8] sm:$0xff]
  %v1689 = vld [vmem:[%s17 + $0x3c0] sm:$0xff]
  %v1690 = vld [vmem:[%s17 + $0x3c8] sm:$0xff]
  %v1691 = vld [vmem:[%s17 + $0x3d0] sm:$0xff]
  %v1692 = vld [vmem:[%s17 + $0x3d8] sm:$0xff]
  %v1693 = vld [vmem:[%s17 + $0x3e0] sm:$0xff]
  %v1694 = vld [vmem:[%s17 + $0x3e8] sm:$0xff]
  %v1695 = vld [vmem:[%s17 + $0x3f0] sm:$0xff]
  %v1696 = vld [vmem:[%s17 + $0x3f8] sm:$0xff]
  %v1697 = vld [vmem:[%s17 + $0x400] sm:$0xff]
  %v1698 = vld [vmem:[%s17 + $0x408] sm:$0xff]
  %v1699 = vld [vmem:[%s17 + $0x410] sm:$0xff]
  %v1700 = vld [vmem:[%s17 + $0x418] sm:$0xff]
  %v1701 = vld [vmem:[%s17 + $0x420] sm:$0xff]
  %v1702 = vld [vmem:[%s17 + $0x428] sm:$0xff]
  %v1703 = vld [vmem:[%s17 + $0x430] sm:$0xff]
  %v1704 = vld [vmem:[%s17 + $0x438] sm:$0xff]
  %v1705 = vld [vmem:[%s17 + $0x440] sm:$0xff]
  %v1706 = vld [vmem:[%s17 + $0x448] sm:$0xff]
  %v1707 = vld [vmem:[%s17 + $0x450] sm:$0xff]
  %v1708 = vld [vmem:[%s17 + $0x458] sm:$0xff]
  %v1709 = vld [vmem:[%s17 + $0x460] sm:$0xff]
  %v1710 = vld [vmem:[%s17 + $0x468] sm:$0xff]
  %v1711 = vld [vmem:[%s17 + $0x470] sm:$0xff]
  %v1712 = vld [vmem:[%s17 + $0x478] sm:$0xff]
  %v1713 = vld [vmem:[%s17 + $0x480] sm:$0xff]
  %v1714 = vld [vmem:[%s17 + $0x488] sm:$0xff]
  %v1715 = vld [vmem:[%s17 + $0x490] sm:$0xff]
  %v1716 = vld [vmem:[%s17 + $0x498] sm:$0xff]
  %v1717 = vld [vmem:[%s17 + $0x4a0] sm:$0xff]
  %v1718 = vld [vmem:[%s17 + $0x4a8] sm:$0xff]
  %v1719 = vld [vmem:[%s17 + $0x4b0] sm:$0xff]
  %v1720 = vld [vmem:[%s17 + $0x4b8] sm:$0xff]
  %v1721 = vld [vmem:[%s17 + $0x4c0] sm:$0xff]
  %v1722 = vld [vmem:[%s17 + $0x4c8] sm:$0xff]
  %v1723 = vld [vmem:[%s17 + $0x4d0] sm:$0xff]
  %v1724 = vld [vmem:[%s17 + $0x4d8] sm:$0xff]
  %v1725 = vld [vmem:[%s17 + $0x4e0] sm:$0xff]
  %v1726 = vld [vmem:[%s17 + $0x4e8] sm:$0xff]
  %v1727 = vld [vmem:[%s17 + $0x4f0] sm:$0xff]
  %v1728 = vld [vmem:[%s17 + $0x4f8] sm:$0xff]
  %v1729 = vld [vmem:[%s17 + $0x500] sm:$0xff]
  %v1730 = vld [vmem:[%s17 + $0x508] sm:$0xff]
  %v1731 = vld [vmem:[%s17 + $0x510] sm:$0xff]
  %v1732 = vld [vmem:[%s17 + $0x518] sm:$0xff]
  %v1733 = vld [vmem:[%s17 + $0x520] sm:$0xff]
  %v1734 = vld [vmem:[%s17 + $0x528] sm:$0xff]
  %v1735 = vld [vmem:[%s17 + $0x530] sm:$0xff]
  %v1736 = vld [vmem:[%s17 + $0x538] sm:$0xff]
  %v1737 = vld [vmem:[%s17 + $0x540] sm:$0xff]
  %v1738 = vld [vmem:[%s17 + $0x548] sm:$0xff]
  %v1739 = vld [vmem:[%s17 + $0x550] sm:$0xff]
  %v1740 = vld [vmem:[%s17 + $0x558] sm:$0xff]
  %v1741 = vld [vmem:[%s17 + $0x560] sm:$0xff]
  %v1742 = vld [vmem:[%s17 + $0x568] sm:$0xff]
  %v1743 = vld [vmem:[%s17 + $0x570] sm:$0xff]
  %v1744 = vld [vmem:[%s17 + $0x578] sm:$0xff]
  %v1745 = vld [vmem:[%s17 + $0x580] sm:$0xff]
  %v1746 = vld [vmem:[%s17 + $0x588] sm:$0xff]
  %v1747 = vld [vmem:[%s17 + $0x590] sm:$0xff]
  %v1748 = vld [vmem:[%s17 + $0x598] sm:$0xff]
  %v1749 = vld [vmem:[%s17 + $0x5a0] sm:$0xff]
  %v1750 = vld [vmem:[%s17 + $0x5a8] sm:$0xff]
  %v1751 = vld [vmem:[%s17 + $0x5b0] sm:$0xff]
  %v1752 = vld [vmem:[%s17 + $0x5b8] sm:$0xff]
  %v1753 = vld [vmem:[%s17 + $0x5c0] sm:$0xff]
  %v1754 = vld [vmem:[%s17 + $0x5c8] sm:$0xff]
  %v1755 = vld [vmem:[%s17 + $0x5d0] sm:$0xff]
  %v1756 = vld [vmem:[%s17 + $0x5d8] sm:$0xff]
  %v1757 = vld [vmem:[%s17 + $0x5e0] sm:$0xff]
  %v1758 = vld [vmem:[%s17 + $0x5e8] sm:$0xff]
  %v1759 = vld [vmem:[%s17 + $0x5f0] sm:$0xff]
  %v1760 = vld [vmem:[%s17 + $0x5f8] sm:$0xff]
  %v1761 = vld [vmem:[%s17 + $0x600] sm:$0xff]
  %v1762 = vld [vmem:[%s17 + $0x608] sm:$0xff]
  %v1763 = vld [vmem:[%s17 + $0x610] sm:$0xff]
  %v1764 = vld [vmem:[%s17 + $0x618] sm:$0xff]
  %v1765 = vld [vmem:[%s17 + $0x620] sm:$0xff]
  %v1766 = vld [vmem:[%s17 + $0x628] sm:$0xff]
  %v1767 = vld [vmem:[%s17 + $0x630] sm:$0xff]
  %v1768 = vld [vmem:[%s17 + $0x638] sm:$0xff]
  %v1769 = vld [vmem:[%s17 + $0x640] sm:$0xff]
  %v1770 = vld [vmem:[%s17 + $0x648] sm:$0xff]
  %v1771 = vld [vmem:[%s17 + $0x650] sm:$0xff]
  %v1772 = vld [vmem:[%s17 + $0x658] sm:$0xff]
  %v1773 = vld [vmem:[%s17 + $0x660] sm:$0xff]
  %v1774 = vld [vmem:[%s17 + $0x668] sm:$0xff]
  %v1775 = vld [vmem:[%s17 + $0x670] sm:$0xff]
  %v1776 = vld [vmem:[%s17 + $0x678] sm:$0xff]
  %v1777 = vld [vmem:[%s17 + $0x680] sm:$0xff]
  %v1778 = vld [vmem:[%s17 + $0x688] sm:$0xff]
  %v1779 = vld [vmem:[%s17 + $0x690] sm:$0xff]
  %v1780 = vld [vmem:[%s17 + $0x698] sm:$0xff]
  %v1781 = vld [vmem:[%s17 + $0x6a0] sm:$0xff]
  %v1782 = vld [vmem:[%s17 + $0x6a8] sm:$0xff]
  %v1783 = vld [vmem:[%s17 + $0x6b0] sm:$0xff]
  %v1784 = vld [vmem:[%s17 + $0x6b8] sm:$0xff]
  %v1785 = vld [vmem:[%s17 + $0x6c0] sm:$0xff]
  %v1786 = vld [vmem:[%s17 + $0x6c8] sm:$0xff]
  %v1787 = vld [vmem:[%s17 + $0x6d0] sm:$0xff]
  %v1788 = vld [vmem:[%s17 + $0x6d8] sm:$0xff]
  %v1789 = vld [vmem:[%s17 + $0x6e0] sm:$0xff]
  %v1790 = vld [vmem:[%s17 + $0x6e8] sm:$0xff]
  %v1791 = vld [vmem:[%s17 + $0x6f0] sm:$0xff]
  %v1792 = vld [vmem:[%s17 + $0x6f8] sm:$0xff]
  %v1793 = vld [vmem:[%s17 + $0x700] sm:$0xff]
  %v1794 = vld [vmem:[%s17 + $0x708] sm:$0xff]
  %v1795 = vld [vmem:[%s17 + $0x710] sm:$0xff]
  %v1796 = vld [vmem:[%s17 + $0x718] sm:$0xff]
  %v1797 = vld [vmem:[%s17 + $0x720] sm:$0xff]
  %v1798 = vld [vmem:[%s17 + $0x728] sm:$0xff]
  %v1799 = vld [vmem:[%s17 + $0x730] sm:$0xff]
  %v1800 = vld [vmem:[%s17 + $0x738] sm:$0xff]
  %v1801 = vld [vmem:[%s17 + $0x740] sm:$0xff]
  %v1802 = vld [vmem:[%s17 + $0x748] sm:$0xff]
  %v1803 = vld [vmem:[%s17 + $0x750] sm:$0xff]
  %v1804 = vld [vmem:[%s17 + $0x758] sm:$0xff]
  %v1805 = vld [vmem:[%s17 + $0x760] sm:$0xff]
  %v1806 = vld [vmem:[%s17 + $0x768] sm:$0xff]
  %v1807 = vld [vmem:[%s17 + $0x770] sm:$0xff]
  %v1808 = vld [vmem:[%s17 + $0x778] sm:$0xff]
  %v1809 = vmul.f32 %v1090, %v1569
  %v1810 = vmul.f32 %v1092, %v1570
  %v1811 = vmul.f32 %v1094, %v1571
  %v1812 = vmul.f32 %v1096, %v1572
  %v1813 = vmul.f32 %v1098, %v1573
  %v1814 = vmul.f32 %v1100, %v1574
  %v1815 = vmul.f32 %v1102, %v1575
  %v1816 = vmul.f32 %v1104, %v1576
  %v1817 = vmul.f32 %v1106, %v1577
  %v1818 = vmul.f32 %v1108, %v1578
  %v1819 = vmul.f32 %v1110, %v1579
  %v1820 = vmul.f32 %v1112, %v1580
  %v1821 = vmul.f32 %v1114, %v1581
  %v1822 = vmul.f32 %v1116, %v1582
  %v1823 = vmul.f32 %v1118, %v1583
  %v1824 = vmul.f32 %v1120, %v1584
  %v1825 = vmul.f32 %v1122, %v1585
  %v1826 = vmul.f32 %v1124, %v1586
  %v1827 = vmul.f32 %v1126, %v1587
  %v1828 = vmul.f32 %v1128, %v1588
  %v1829 = vmul.f32 %v1130, %v1589
  %v1830 = vmul.f32 %v1132, %v1590
  %v1831 = vmul.f32 %v1134, %v1591
  %v1832 = vmul.f32 %v1136, %v1592
  %v1833 = vmul.f32 %v1138, %v1593
  %v1834 = vmul.f32 %v1140, %v1594
  %v1835 = vmul.f32 %v1142, %v1595
  %v1836 = vmul.f32 %v1144, %v1596
  %v1837 = vmul.f32 %v1146, %v1597
  %v1838 = vmul.f32 %v1148, %v1598
  %v1839 = vmul.f32 %v1150, %v1599
  %v1840 = vmul.f32 %v1152, %v1600
  %v1841 = vmul.f32 %v1154, %v1601
  %v1842 = vmul.f32 %v1156, %v1602
  %v1843 = vmul.f32 %v1158, %v1603
  %v1844 = vmul.f32 %v1160, %v1604
  %v1845 = vmul.f32 %v1162, %v1605
  %v1846 = vmul.f32 %v1164, %v1606
  %v1847 = vmul.f32 %v1166, %v1607
  %v1848 = vmul.f32 %v1168, %v1608
  %v1849 = vmul.f32 %v1170, %v1609
  %v1850 = vmul.f32 %v1172, %v1610
  %v1851 = vmul.f32 %v1174, %v1611
  %v1852 = vmul.f32 %v1176, %v1612
  %v1853 = vmul.f32 %v1178, %v1613
  %v1854 = vmul.f32 %v1180, %v1614
  %v1855 = vmul.f32 %v1182, %v1615
  %v1856 = vmul.f32 %v1184, %v1616
  %v1857 = vmul.f32 %v1186, %v1617
  %v1858 = vmul.f32 %v1188, %v1618
  %v1859 = vmul.f32 %v1190, %v1619
  %v1860 = vmul.f32 %v1192, %v1620
  %v1861 = vmul.f32 %v1194, %v1621
  %v1862 = vmul.f32 %v1196, %v1622
  %v1863 = vmul.f32 %v1198, %v1623
  %v1864 = vmul.f32 %v1200, %v1624
  %v1865 = vmul.f32 %v1202, %v1625
  %v1866 = vmul.f32 %v1204, %v1626
  %v1867 = vmul.f32 %v1206, %v1627
  %v1868 = vmul.f32 %v1208, %v1628
  %v1869 = vmul.f32 %v1210, %v1629
  %v1870 = vmul.f32 %v1212, %v1630
  %v1871 = vmul.f32 %v1214, %v1631
  %v1872 = vmul.f32 %v1216, %v1632
  %v1873 = vmul.f32 %v1218, %v1633
  %v1874 = vmul.f32 %v1220, %v1634
  %v1875 = vmul.f32 %v1222, %v1635
  %v1876 = vmul.f32 %v1224, %v1636
  %v1877 = vmul.f32 %v1226, %v1637
  %v1878 = vmul.f32 %v1228, %v1638
  %v1879 = vmul.f32 %v1230, %v1639
  %v1880 = vmul.f32 %v1232, %v1640
  %v1881 = vmul.f32 %v1234, %v1641
  %v1882 = vmul.f32 %v1236, %v1642
  %v1883 = vmul.f32 %v1238, %v1643
  %v1884 = vmul.f32 %v1240, %v1644
  %v1885 = vmul.f32 %v1242, %v1645
  %v1886 = vmul.f32 %v1244, %v1646
  %v1887 = vmul.f32 %v1246, %v1647
  %v1888 = vmul.f32 %v1248, %v1648
  %v1889 = vmul.f32 %v1250, %v1649
  %v1890 = vmul.f32 %v1252, %v1650
  %v1891 = vmul.f32 %v1254, %v1651
  %v1892 = vmul.f32 %v1256, %v1652
  %v1893 = vmul.f32 %v1258, %v1653
  %v1894 = vmul.f32 %v1260, %v1654
  %v1895 = vmul.f32 %v1262, %v1655
  %v1896 = vmul.f32 %v1264, %v1656
  %v1897 = vmul.f32 %v1266, %v1657
  %v1898 = vmul.f32 %v1268, %v1658
  %v1899 = vmul.f32 %v1270, %v1659
  %v1900 = vmul.f32 %v1272, %v1660
  %v1901 = vmul.f32 %v1274, %v1661
  %v1902 = vmul.f32 %v1276, %v1662
  %v1903 = vmul.f32 %v1278, %v1663
  %v1904 = vmul.f32 %v1280, %v1664
  %v1905 = vmul.f32 %v1282, %v1665
  %v1906 = vmul.f32 %v1284, %v1666
  %v1907 = vmul.f32 %v1286, %v1667
  %v1908 = vmul.f32 %v1288, %v1668
  %v1909 = vmul.f32 %v1290, %v1669
  %v1910 = vmul.f32 %v1292, %v1670
  %v1911 = vmul.f32 %v1294, %v1671
  %v1912 = vmul.f32 %v1296, %v1672
  %v1913 = vmul.f32 %v1298, %v1673
  %v1914 = vmul.f32 %v1300, %v1674
  %v1915 = vmul.f32 %v1302, %v1675
  %v1916 = vmul.f32 %v1304, %v1676
  %v1917 = vmul.f32 %v1306, %v1677
  %v1918 = vmul.f32 %v1308, %v1678
  %v1919 = vmul.f32 %v1310, %v1679
  %v1920 = vmul.f32 %v1312, %v1680
  %v1921 = vmul.f32 %v1314, %v1681
  %v1922 = vmul.f32 %v1316, %v1682
  %v1923 = vmul.f32 %v1318, %v1683
  %v1924 = vmul.f32 %v1320, %v1684
  %v1925 = vmul.f32 %v1322, %v1685
  %v1926 = vmul.f32 %v1324, %v1686
  %v1927 = vmul.f32 %v1326, %v1687
  %v1928 = vmul.f32 %v1328, %v1688
  %v1929 = vmul.f32 %v1330, %v1689
  %v1930 = vmul.f32 %v1332, %v1690
  %v1931 = vmul.f32 %v1334, %v1691
  %v1932 = vmul.f32 %v1336, %v1692
  %v1933 = vmul.f32 %v1338, %v1693
  %v1934 = vmul.f32 %v1340, %v1694
  %v1935 = vmul.f32 %v1342, %v1695
  %v1936 = vmul.f32 %v1344, %v1696
  %v1937 = vmul.f32 %v1346, %v1697
  %v1938 = vmul.f32 %v1348, %v1698
  %v1939 = vmul.f32 %v1350, %v1699
  %v1940 = vmul.f32 %v1352, %v1700
  %v1941 = vmul.f32 %v1354, %v1701
  %v1942 = vmul.f32 %v1356, %v1702
  %v1943 = vmul.f32 %v1358, %v1703
  %v1944 = vmul.f32 %v1360, %v1704
  %v1945 = vmul.f32 %v1362, %v1705
  %v1946 = vmul.f32 %v1364, %v1706
  %v1947 = vmul.f32 %v1366, %v1707
  %v1948 = vmul.f32 %v1368, %v1708
  %v1949 = vmul.f32 %v1370, %v1709
  %v1950 = vmul.f32 %v1372, %v1710
  %v1951 = vmul.f32 %v1374, %v1711
  %v1952 = vmul.f32 %v1376, %v1712
  %v1953 = vmul.f32 %v1378, %v1713
  %v1954 = vmul.f32 %v1380, %v1714
  %v1955 = vmul.f32 %v1382, %v1715
  %v1956 = vmul.f32 %v1384, %v1716
  %v1957 = vmul.f32 %v1386, %v1717
  %v1958 = vmul.f32 %v1388, %v1718
  %v1959 = vmul.f32 %v1390, %v1719
  %v1960 = vmul.f32 %v1392, %v1720
  %v1961 = vmul.f32 %v1394, %v1721
  %v1962 = vmul.f32 %v1396, %v1722
  %v1963 = vmul.f32 %v1398, %v1723
  %v1964 = vmul.f32 %v1400, %v1724
  %v1965 = vmul.f32 %v1402, %v1725
  %v1966 = vmul.f32 %v1404, %v1726
  %v1967 = vmul.f32 %v1406, %v1727
  %v1968 = vmul.f32 %v1408, %v1728
  %v1969 = vmul.f32 %v1410, %v1729
  %v1970 = vmul.f32 %v1412, %v1730
  %v1971 = vmul.f32 %v1414, %v1731
  %v1972 = vmul.f32 %v1416, %v1732
  %v1973 = vmul.f32 %v1418, %v1733
  %v1974 = vmul.f32 %v1420, %v1734
  %v1975 = vmul.f32 %v1422, %v1735
  %v1976 = vmul.f32 %v1424, %v1736
  %v1977 = vmul.f32 %v1426, %v1737
  %v1978 = vmul.f32 %v1428, %v1738
  %v1979 = vmul.f32 %v1430, %v1739
  %v1980 = vmul.f32 %v1432, %v1740
  %v1981 = vmul.f32 %v1434, %v1741
  %v1982 = vmul.f32 %v1436, %v1742
  %v1983 = vmul.f32 %v1438, %v1743
  %v1984 = vmul.f32 %v1440, %v1744
  %v1985 = vmul.f32 %v1442, %v1745
  %v1986 = vmul.f32 %v1444, %v1746
  %v1987 = vmul.f32 %v1446, %v1747
  %v1988 = vmul.f32 %v1448, %v1748
  %v1989 = vmul.f32 %v1450, %v1749
  %v1990 = vmul.f32 %v1452, %v1750
  %v1991 = vmul.f32 %v1454, %v1751
  %v1992 = vmul.f32 %v1456, %v1752
  %v1993 = vmul.f32 %v1458, %v1753
  %v1994 = vmul.f32 %v1460, %v1754
  %v1995 = vmul.f32 %v1462, %v1755
  %v1996 = vmul.f32 %v1464, %v1756
  %v1997 = vmul.f32 %v1466, %v1757
  %v1998 = vmul.f32 %v1468, %v1758
  %v1999 = vmul.f32 %v1470, %v1759
  %v2000 = vmul.f32 %v1472, %v1760
  %v2001 = vmul.f32 %v1474, %v1761
  %v2002 = vmul.f32 %v1476, %v1762
  %v2003 = vmul.f32 %v1478, %v1763
  %v2004 = vmul.f32 %v1480, %v1764
  %v2005 = vmul.f32 %v1482, %v1765
  %v2006 = vmul.f32 %v1484, %v1766
  %v2007 = vmul.f32 %v1486, %v1767
  %v2008 = vmul.f32 %v1488, %v1768
  %v2009 = vmul.f32 %v1490, %v1769
  %v2010 = vmul.f32 %v1492, %v1770
  %v2011 = vmul.f32 %v1494, %v1771
  %v2012 = vmul.f32 %v1496, %v1772
  %v2013 = vmul.f32 %v1498, %v1773
  %v2014 = vmul.f32 %v1500, %v1774
  %v2015 = vmul.f32 %v1502, %v1775
  %v2016 = vmul.f32 %v1504, %v1776
  %v2017 = vmul.f32 %v1506, %v1777
  %v2018 = vmul.f32 %v1508, %v1778
  %v2019 = vmul.f32 %v1510, %v1779
  %v2020 = vmul.f32 %v1512, %v1780
  %v2021 = vmul.f32 %v1514, %v1781
  %v2022 = vmul.f32 %v1516, %v1782
  %v2023 = vmul.f32 %v1518, %v1783
  %v2024 = vmul.f32 %v1520, %v1784
  %v2025 = vmul.f32 %v1522, %v1785
  %v2026 = vmul.f32 %v1524, %v1786
  %v2027 = vmul.f32 %v1526, %v1787
  %v2028 = vmul.f32 %v1528, %v1788
  %v2029 = vmul.f32 %v1530, %v1789
  %v2030 = vmul.f32 %v1532, %v1790
  %v2031 = vmul.f32 %v1534, %v1791
  %v2032 = vmul.f32 %v1536, %v1792
  %v2033 = vmul.f32 %v1538, %v1793
  %v2034 = vmul.f32 %v1540, %v1794
  %v2035 = vmul.f32 %v1542, %v1795
  %v2036 = vmul.f32 %v1544, %v1796
  %v2037 = vmul.f32 %v1546, %v1797
  %v2038 = vmul.f32 %v1548, %v1798
  %v2039 = vmul.f32 %v1550, %v1799
  %v2040 = vmul.f32 %v1552, %v1800
  %v2041 = vmul.f32 %v1554, %v1801
  %v2042 = vmul.f32 %v1556, %v1802
  %v2043 = vmul.f32 %v1558, %v1803
  %v2044 = vmul.f32 %v1560, %v1804
  %v2045 = vmul.f32 %v1562, %v1805
  %v2046 = vmul.f32 %v1564, %v1806
  %v2047 = vmul.f32 %v1566, %v1807
  %v2048 = vmul.f32 %v1568, %v1808
  %v2049 = vadd.f32 %v609, %v1809
  %v2050 = vadd.f32 %v610, %v1810
  %v2051 = vadd.f32 %v611, %v1811
  %v2052 = vadd.f32 %v612, %v1812
  %v2053 = vadd.f32 %v613, %v1813
  %v2054 = vadd.f32 %v614, %v1814
  %v2055 = vadd.f32 %v615, %v1815
  %v2056 = vadd.f32 %v616, %v1816
  %v2057 = vadd.f32 %v617, %v1817
  %v2058 = vadd.f32 %v618, %v1818
  %v2059 = vadd.f32 %v619, %v1819
  %v2060 = vadd.f32 %v620, %v1820
  %v2061 = vadd.f32 %v621, %v1821
  %v2062 = vadd.f32 %v622, %v1822
  %v2063 = vadd.f32 %v623, %v1823
  %v2064 = vadd.f32 %v624, %v1824
  %v2065 = vadd.f32 %v625, %v1825
  %v2066 = vadd.f32 %v626, %v1826
  %v2067 = vadd.f32 %v627, %v1827
  %v2068 = vadd.f32 %v628, %v1828
  %v2069 = vadd.f32 %v629, %v1829
  %v2070 = vadd.f32 %v630, %v1830
  %v2071 = vadd.f32 %v631, %v1831
  %v2072 = vadd.f32 %v632, %v1832
  %v2073 = vadd.f32 %v633, %v1833
  %v2074 = vadd.f32 %v634, %v1834
  %v2075 = vadd.f32 %v635, %v1835
  %v2076 = vadd.f32 %v636, %v1836
  %v2077 = vadd.f32 %v637, %v1837
  %v2078 = vadd.f32 %v638, %v1838
  %v2079 = vadd.f32 %v639, %v1839
  %v2080 = vadd.f32 %v640, %v1840
  %v2081 = vadd.f32 %v641, %v1841
  %v2082 = vadd.f32 %v642, %v1842
  %v2083 = vadd.f32 %v643, %v1843
  %v2084 = vadd.f32 %v644, %v1844
  %v2085 = vadd.f32 %v645, %v1845
  %v2086 = vadd.f32 %v646, %v1846
  %v2087 = vadd.f32 %v647, %v1847
  %v2088 = vadd.f32 %v648, %v1848
  %v2089 = vadd.f32 %v649, %v1849
  %v2090 = vadd.f32 %v650, %v1850
  %v2091 = vadd.f32 %v651, %v1851
  %v2092 = vadd.f32 %v652, %v1852
  %v2093 = vadd.f32 %v653, %v1853
  %v2094 = vadd.f32 %v654, %v1854
  %v2095 = vadd.f32 %v655, %v1855
  %v2096 = vadd.f32 %v656, %v1856
  %v2097 = vadd.f32 %v657, %v1857
  %v2098 = vadd.f32 %v658, %v1858
  %v2099 = vadd.f32 %v659, %v1859
  %v2100 = vadd.f32 %v660, %v1860
  %v2101 = vadd.f32 %v661, %v1861
  %v2102 = vadd.f32 %v662, %v1862
  %v2103 = vadd.f32 %v663, %v1863
  %v2104 = vadd.f32 %v664, %v1864
  %v2105 = vadd.f32 %v665, %v1865
  %v2106 = vadd.f32 %v666, %v1866
  %v2107 = vadd.f32 %v667, %v1867
  %v2108 = vadd.f32 %v668, %v1868
  %v2109 = vadd.f32 %v669, %v1869
  %v2110 = vadd.f32 %v670, %v1870
  %v2111 = vadd.f32 %v671, %v1871
  %v2112 = vadd.f32 %v672, %v1872
  %v2113 = vadd.f32 %v673, %v1873
  %v2114 = vadd.f32 %v674, %v1874
  %v2115 = vadd.f32 %v675, %v1875
  %v2116 = vadd.f32 %v676, %v1876
  %v2117 = vadd.f32 %v677, %v1877
  %v2118 = vadd.f32 %v678, %v1878
  %v2119 = vadd.f32 %v679, %v1879
  %v2120 = vadd.f32 %v680, %v1880
  %v2121 = vadd.f32 %v681, %v1881
  %v2122 = vadd.f32 %v682, %v1882
  %v2123 = vadd.f32 %v683, %v1883
  %v2124 = vadd.f32 %v684, %v1884
  %v2125 = vadd.f32 %v685, %v1885
  %v2126 = vadd.f32 %v686, %v1886
  %v2127 = vadd.f32 %v687, %v1887
  %v2128 = vadd.f32 %v688, %v1888
  %v2129 = vadd.f32 %v689, %v1889
  %v2130 = vadd.f32 %v690, %v1890
  %v2131 = vadd.f32 %v691, %v1891
  %v2132 = vadd.f32 %v692, %v1892
  %v2133 = vadd.f32 %v693, %v1893
  %v2134 = vadd.f32 %v694, %v1894
  %v2135 = vadd.f32 %v695, %v1895
  %v2136 = vadd.f32 %v696, %v1896
  %v2137 = vadd.f32 %v697, %v1897
  %v2138 = vadd.f32 %v698, %v1898
  %v2139 = vadd.f32 %v699, %v1899
  %v2140 = vadd.f32 %v700, %v1900
  %v2141 = vadd.f32 %v701, %v1901
  %v2142 = vadd.f32 %v702, %v1902
  %v2143 = vadd.f32 %v703, %v1903
  %v2144 = vadd.f32 %v704, %v1904
  %v2145 = vadd.f32 %v705, %v1905
  %v2146 = vadd.f32 %v706, %v1906
  %v2147 = vadd.f32 %v707, %v1907
  %v2148 = vadd.f32 %v708, %v1908
  %v2149 = vadd.f32 %v709, %v1909
  %v2150 = vadd.f32 %v710, %v1910
  %v2151 = vadd.f32 %v711, %v1911
  %v2152 = vadd.f32 %v712, %v1912
  %v2153 = vadd.f32 %v713, %v1913
  %v2154 = vadd.f32 %v714, %v1914
  %v2155 = vadd.f32 %v715, %v1915
  %v2156 = vadd.f32 %v716, %v1916
  %v2157 = vadd.f32 %v717, %v1917
  %v2158 = vadd.f32 %v718, %v1918
  %v2159 = vadd.f32 %v719, %v1919
  %v2160 = vadd.f32 %v720, %v1920
  %v2161 = vadd.f32 %v721, %v1921
  %v2162 = vadd.f32 %v722, %v1922
  %v2163 = vadd.f32 %v723, %v1923
  %v2164 = vadd.f32 %v724, %v1924
  %v2165 = vadd.f32 %v725, %v1925
  %v2166 = vadd.f32 %v726, %v1926
  %v2167 = vadd.f32 %v727, %v1927
  %v2168 = vadd.f32 %v728, %v1928
  %v2169 = vadd.f32 %v729, %v1929
  %v2170 = vadd.f32 %v730, %v1930
  %v2171 = vadd.f32 %v731, %v1931
  %v2172 = vadd.f32 %v732, %v1932
  %v2173 = vadd.f32 %v733, %v1933
  %v2174 = vadd.f32 %v734, %v1934
  %v2175 = vadd.f32 %v735, %v1935
  %v2176 = vadd.f32 %v736, %v1936
  %v2177 = vadd.f32 %v737, %v1937
  %v2178 = vadd.f32 %v738, %v1938
  %v2179 = vadd.f32 %v739, %v1939
  %v2180 = vadd.f32 %v740, %v1940
  %v2181 = vadd.f32 %v741, %v1941
  %v2182 = vadd.f32 %v742, %v1942
  %v2183 = vadd.f32 %v743, %v1943
  %v2184 = vadd.f32 %v744, %v1944
  %v2185 = vadd.f32 %v745, %v1945
  %v2186 = vadd.f32 %v746, %v1946
  %v2187 = vadd.f32 %v747, %v1947
  %v2188 = vadd.f32 %v748, %v1948
  %v2189 = vadd.f32 %v749, %v1949
  %v2190 = vadd.f32 %v750, %v1950
  %v2191 = vadd.f32 %v751, %v1951
  %v2192 = vadd.f32 %v752, %v1952
  %v2193 = vadd.f32 %v753, %v1953
  %v2194 = vadd.f32 %v754, %v1954
  %v2195 = vadd.f32 %v755, %v1955
  %v2196 = vadd.f32 %v756, %v1956
  %v2197 = vadd.f32 %v757, %v1957
  %v2198 = vadd.f32 %v758, %v1958
  %v2199 = vadd.f32 %v759, %v1959
  %v2200 = vadd.f32 %v760, %v1960
  %v2201 = vadd.f32 %v761, %v1961
  %v2202 = vadd.f32 %v762, %v1962
  %v2203 = vadd.f32 %v763, %v1963
  %v2204 = vadd.f32 %v764, %v1964
  %v2205 = vadd.f32 %v765, %v1965
  %v2206 = vadd.f32 %v766, %v1966
  %v2207 = vadd.f32 %v767, %v1967
  %v2208 = vadd.f32 %v768, %v1968
  %v2209 = vadd.f32 %v769, %v1969
  %v2210 = vadd.f32 %v770, %v1970
  %v2211 = vadd.f32 %v771, %v1971
  %v2212 = vadd.f32 %v772, %v1972
  %v2213 = vadd.f32 %v773, %v1973
  %v2214 = vadd.f32 %v774, %v1974
  %v2215 = vadd.f32 %v775, %v1975
  %v2216 = vadd.f32 %v776, %v1976
  %v2217 = vadd.f32 %v777, %v1977
  %v2218 = vadd.f32 %v778, %v1978
  %v2219 = vadd.f32 %v779, %v1979
  %v2220 = vadd.f32 %v780, %v1980
  %v2221 = vadd.f32 %v781, %v1981
  %v2222 = vadd.f32 %v782, %v1982
  %v2223 = vadd.f32 %v783, %v1983
  %v2224 = vadd.f32 %v784, %v1984
  %v2225 = vadd.f32 %v785, %v1985
  %v2226 = vadd.f32 %v786, %v1986
  %v2227 = vadd.f32 %v787, %v1987
  %v2228 = vadd.f32 %v788, %v1988
  %v2229 = vadd.f32 %v789, %v1989
  %v2230 = vadd.f32 %v790, %v1990
  %v2231 = vadd.f32 %v791, %v1991
  %v2232 = vadd.f32 %v792, %v1992
  %v2233 = vadd.f32 %v793, %v1993
  %v2234 = vadd.f32 %v794, %v1994
  %v2235 = vadd.f32 %v795, %v1995
  %v2236 = vadd.f32 %v796, %v1996
  %v2237 = vadd.f32 %v797, %v1997
  %v2238 = vadd.f32 %v798, %v1998
  %v2239 = vadd.f32 %v799, %v1999
  %v2240 = vadd.f32 %v800, %v2000
  %v2241 = vadd.f32 %v801, %v2001
  %v2242 = vadd.f32 %v802, %v2002
  %v2243 = vadd.f32 %v803, %v2003
  %v2244 = vadd.f32 %v804, %v2004
  %v2245 = vadd.f32 %v805, %v2005
  %v2246 = vadd.f32 %v806, %v2006
  %v2247 = vadd.f32 %v807, %v2007
  %v2248 = vadd.f32 %v808, %v2008
  %v2249 = vadd.f32 %v809, %v2009
  %v2250 = vadd.f32 %v810, %v2010
  %v2251 = vadd.f32 %v811, %v2011
  %v2252 = vadd.f32 %v812, %v2012
  %v2253 = vadd.f32 %v813, %v2013
  %v2254 = vadd.f32 %v814, %v2014
  %v2255 = vadd.f32 %v815, %v2015
  %v2256 = vadd.f32 %v816, %v2016
  %v2257 = vadd.f32 %v817, %v2017
  %v2258 = vadd.f32 %v818, %v2018
  %v2259 = vadd.f32 %v819, %v2019
  %v2260 = vadd.f32 %v820, %v2020
  %v2261 = vadd.f32 %v821, %v2021
  %v2262 = vadd.f32 %v822, %v2022
  %v2263 = vadd.f32 %v823, %v2023
  %v2264 = vadd.f32 %v824, %v2024
  %v2265 = vadd.f32 %v825, %v2025
  %v2266 = vadd.f32 %v826, %v2026
  %v2267 = vadd.f32 %v827, %v2027
  %v2268 = vadd.f32 %v828, %v2028
  %v2269 = vadd.f32 %v829, %v2029
  %v2270 = vadd.f32 %v830, %v2030
  %v2271 = vadd.f32 %v831, %v2031
  %v2272 = vadd.f32 %v832, %v2032
  %v2273 = vadd.f32 %v833, %v2033
  %v2274 = vadd.f32 %v834, %v2034
  %v2275 = vadd.f32 %v835, %v2035
  %v2276 = vadd.f32 %v836, %v2036
  %v2277 = vadd.f32 %v837, %v2037
  %v2278 = vadd.f32 %v838, %v2038
  %v2279 = vadd.f32 %v839, %v2039
  %v2280 = vadd.f32 %v840, %v2040
  %v2281 = vadd.f32 %v841, %v2041
  %v2282 = vadd.f32 %v842, %v2042
  %v2283 = vadd.f32 %v843, %v2043
  %v2284 = vadd.f32 %v844, %v2044
  %v2285 = vadd.f32 %v845, %v2045
  %v2286 = vadd.f32 %v846, %v2046
  %v2287 = vadd.f32 %v847, %v2047
  %v2288 = vadd.f32 %v848, %v2048
  %2289 = vst [vmem:[%s53] sm:$0xff] %v2049
  %2290 = vst [vmem:[%s53 + $0x8] sm:$0xff] %v2050
  %2291 = vst [vmem:[%s53 + $0x10] sm:$0xff] %v2051
  %2292 = vst [vmem:[%s53 + $0x18] sm:$0xff] %v2052
  %2293 = vst [vmem:[%s53 + $0x20] sm:$0xff] %v2053
  %2294 = vst [vmem:[%s53 + $0x28] sm:$0xff] %v2054
  %2295 = vst [vmem:[%s53 + $0x30] sm:$0xff] %v2055
  %2296 = vst [vmem:[%s53 + $0x38] sm:$0xff] %v2056
  %2297 = vst [vmem:[%s53 + $0x40] sm:$0xff] %v2057
  %2298 = vst [vmem:[%s53 + $0x48] sm:$0xff] %v2058
  %2299 = vst [vmem:[%s53 + $0x50] sm:$0xff] %v2059
  %2300 = vst [vmem:[%s53 + $0x58] sm:$0xff] %v2060
  %2301 = vst [vmem:[%s53 + $0x60] sm:$0xff] %v2061
  %2302 = vst [vmem:[%s53 + $0x68] sm:$0xff] %v2062
  %2303 = vst [vmem:[%s53 + $0x70] sm:$0xff] %v2063
  %2304 = vst [vmem:[%s53 + $0x78] sm:$0xff] %v2064
  %2305 = vst [vmem:[%s53 + $0x80] sm:$0xff] %v2065
  %2306 = vst [vmem:[%s53 + $0x88] sm:$0xff] %v2066
  %2307 = vst [vmem:[%s53 + $0x90] sm:$0xff] %v2067
  %2308 = vst [vmem:[%s53 + $0x98] sm:$0xff] %v2068
  %2309 = vst [vmem:[%s53 + $0xa0] sm:$0xff] %v2069
  %2310 = vst [vmem:[%s53 + $0xa8] sm:$0xff] %v2070
  %2311 = vst [vmem:[%s53 + $0xb0] sm:$0xff] %v2071
  %2312 = vst [vmem:[%s53 + $0xb8] sm:$0xff] %v2072
  %2313 = vst [vmem:[%s53 + $0xc0] sm:$0xff] %v2073
  %2314 = vst [vmem:[%s53 + $0xc8] sm:$0xff] %v2074
  %2315 = vst [vmem:[%s53 + $0xd0] sm:$0xff] %v2075
  %2316 = vst [vmem:[%s53 + $0xd8] sm:$0xff] %v2076
  %2317 = vst [vmem:[%s53 + $0xe0] sm:$0xff] %v2077
  %2318 = vst [vmem:[%s53 + $0xe8] sm:$0xff] %v2078
  %2319 = vst [vmem:[%s53 + $0xf0] sm:$0xff] %v2079
  %2320 = vst [vmem:[%s53 + $0xf8] sm:$0xff] %v2080
  %2321 = vst [vmem:[%s53 + $0x100] sm:$0xff] %v2081
  %2322 = vst [vmem:[%s53 + $0x108] sm:$0xff] %v2082
  %2323 = vst [vmem:[%s53 + $0x110] sm:$0xff] %v2083
  %2324 = vst [vmem:[%s53 + $0x118] sm:$0xff] %v2084
  %2325 = vst [vmem:[%s53 + $0x120] sm:$0xff] %v2085
  %2326 = vst [vmem:[%s53 + $0x128] sm:$0xff] %v2086
  %2327 = vst [vmem:[%s53 + $0x130] sm:$0xff] %v2087
  %2328 = vst [vmem:[%s53 + $0x138] sm:$0xff] %v2088
  %2329 = vst [vmem:[%s53 + $0x140] sm:$0xff] %v2089
  %2330 = vst [vmem:[%s53 + $0x148] sm:$0xff] %v2090
  %2331 = vst [vmem:[%s53 + $0x150] sm:$0xff] %v2091
  %2332 = vst [vmem:[%s53 + $0x158] sm:$0xff] %v2092
  %2333 = vst [vmem:[%s53 + $0x160] sm:$0xff] %v2093
  %2334 = vst [vmem:[%s53 + $0x168] sm:$0xff] %v2094
  %2335 = vst [vmem:[%s53 + $0x170] sm:$0xff] %v2095
  %2336 = vst [vmem:[%s53 + $0x178] sm:$0xff] %v2096
  %2337 = vst [vmem:[%s53 + $0x180] sm:$0xff] %v2097
  %2338 = vst [vmem:[%s53 + $0x188] sm:$0xff] %v2098
  %2339 = vst [vmem:[%s53 + $0x190] sm:$0xff] %v2099
  %2340 = vst [vmem:[%s53 + $0x198] sm:$0xff] %v2100
  %2341 = vst [vmem:[%s53 + $0x1a0] sm:$0xff] %v2101
  %2342 = vst [vmem:[%s53 + $0x1a8] sm:$0xff] %v2102
  %2343 = vst [vmem:[%s53 + $0x1b0] sm:$0xff] %v2103
  %2344 = vst [vmem:[%s53 + $0x1b8] sm:$0xff] %v2104
  %2345 = vst [vmem:[%s53 + $0x1c0] sm:$0xff] %v2105
  %2346 = vst [vmem:[%s53 + $0x1c8] sm:$0xff] %v2106
  %2347 = vst [vmem:[%s53 + $0x1d0] sm:$0xff] %v2107
  %2348 = vst [vmem:[%s53 + $0x1d8] sm:$0xff] %v2108
  %2349 = vst [vmem:[%s53 + $0x1e0] sm:$0xff] %v2109
  %2350 = vst [vmem:[%s53 + $0x1e8] sm:$0xff] %v2110
  %2351 = vst [vmem:[%s53 + $0x1f0] sm:$0xff] %v2111
  %2352 = vst [vmem:[%s53 + $0x1f8] sm:$0xff] %v2112
  %2353 = vst [vmem:[%s53 + $0x200] sm:$0xff] %v2113
  %2354 = vst [vmem:[%s53 + $0x208] sm:$0xff] %v2114
  %2355 = vst [vmem:[%s53 + $0x210] sm:$0xff] %v2115
  %2356 = vst [vmem:[%s53 + $0x218] sm:$0xff] %v2116
  %2357 = vst [vmem:[%s53 + $0x220] sm:$0xff] %v2117
  %2358 = vst [vmem:[%s53 + $0x228] sm:$0xff] %v2118
  %2359 = vst [vmem:[%s53 + $0x230] sm:$0xff] %v2119
  %2360 = vst [vmem:[%s53 + $0x238] sm:$0xff] %v2120
  %2361 = vst [vmem:[%s53 + $0x240] sm:$0xff] %v2121
  %2362 = vst [vmem:[%s53 + $0x248] sm:$0xff] %v2122
  %2363 = vst [vmem:[%s53 + $0x250] sm:$0xff] %v2123
  %2364 = vst [vmem:[%s53 + $0x258] sm:$0xff] %v2124
  %2365 = vst [vmem:[%s53 + $0x260] sm:$0xff] %v2125
  %2366 = vst [vmem:[%s53 + $0x268] sm:$0xff] %v2126
  %2367 = vst [vmem:[%s53 + $0x270] sm:$0xff] %v2127
  %2368 = vst [vmem:[%s53 + $0x278] sm:$0xff] %v2128
  %2369 = vst [vmem:[%s53 + $0x280] sm:$0xff] %v2129
  %2370 = vst [vmem:[%s53 + $0x288] sm:$0xff] %v2130
  %2371 = vst [vmem:[%s53 + $0x290] sm:$0xff] %v2131
  %2372 = vst [vmem:[%s53 + $0x298] sm:$0xff] %v2132
  %2373 = vst [vmem:[%s53 + $0x2a0] sm:$0xff] %v2133
  %2374 = vst [vmem:[%s53 + $0x2a8] sm:$0xff] %v2134
  %2375 = vst [vmem:[%s53 + $0x2b0] sm:$0xff] %v2135
  %2376 = vst [vmem:[%s53 + $0x2b8] sm:$0xff] %v2136
  %2377 = vst [vmem:[%s53 + $0x2c0] sm:$0xff] %v2137
  %2378 = vst [vmem:[%s53 + $0x2c8] sm:$0xff] %v2138
  %2379 = vst [vmem:[%s53 + $0x2d0] sm:$0xff] %v2139
  %2380 = vst [vmem:[%s53 + $0x2d8] sm:$0xff] %v2140
  %2381 = vst [vmem:[%s53 + $0x2e0] sm:$0xff] %v2141
  %2382 = vst [vmem:[%s53 + $0x2e8] sm:$0xff] %v2142
  %2383 = vst [vmem:[%s53 + $0x2f0] sm:$0xff] %v2143
  %2384 = vst [vmem:[%s53 + $0x2f8] sm:$0xff] %v2144
  %2385 = vst [vmem:[%s53 + $0x300] sm:$0xff] %v2145
  %2386 = vst [vmem:[%s53 + $0x308] sm:$0xff] %v2146
  %2387 = vst [vmem:[%s53 + $0x310] sm:$0xff] %v2147
  %2388 = vst [vmem:[%s53 + $0x318] sm:$0xff] %v2148
  %2389 = vst [vmem:[%s53 + $0x320] sm:$0xff] %v2149
  %2390 = vst [vmem:[%s53 + $0x328] sm:$0xff] %v2150
  %2391 = vst [vmem:[%s53 + $0x330] sm:$0xff] %v2151
  %2392 = vst [vmem:[%s53 + $0x338] sm:$0xff] %v2152
  %2393 = vst [vmem:[%s53 + $0x340] sm:$0xff] %v2153
  %2394 = vst [vmem:[%s53 + $0x348] sm:$0xff] %v2154
  %2395 = vst [vmem:[%s53 + $0x350] sm:$0xff] %v2155
  %2396 = vst [vmem:[%s53 + $0x358] sm:$0xff] %v2156
  %2397 = vst [vmem:[%s53 + $0x360] sm:$0xff] %v2157
  %2398 = vst [vmem:[%s53 + $0x368] sm:$0xff] %v2158
  %2399 = vst [vmem:[%s53 + $0x370] sm:$0xff] %v2159
  %2400 = vst [vmem:[%s53 + $0x378] sm:$0xff] %v2160
  %2401 = vst [vmem:[%s53 + $0x380] sm:$0xff] %v2161
  %2402 = vst [vmem:[%s53 + $0x388] sm:$0xff] %v2162
  %2403 = vst [vmem:[%s53 + $0x390] sm:$0xff] %v2163
  %2404 = vst [vmem:[%s53 + $0x398] sm:$0xff] %v2164
  %2405 = vst [vmem:[%s53 + $0x3a0] sm:$0xff] %v2165
  %2406 = vst [vmem:[%s53 + $0x3a8] sm:$0xff] %v2166
  %2407 = vst [vmem:[%s53 + $0x3b0] sm:$0xff] %v2167
  %2408 = vst [vmem:[%s53 + $0x3b8] sm:$0xff] %v2168
  %2409 = vst [vmem:[%s53 + $0x3c0] sm:$0xff] %v2169
  %2410 = vst [vmem:[%s53 + $0x3c8] sm:$0xff] %v2170
  %2411 = vst [vmem:[%s53 + $0x3d0] sm:$0xff] %v2171
  %2412 = vst [vmem:[%s53 + $0x3d8] sm:$0xff] %v2172
  %2413 = vst [vmem:[%s53 + $0x3e0] sm:$0xff] %v2173
  %2414 = vst [vmem:[%s53 + $0x3e8] sm:$0xff] %v2174
  %2415 = vst [vmem:[%s53 + $0x3f0] sm:$0xff] %v2175
  %2416 = vst [vmem:[%s53 + $0x3f8] sm:$0xff] %v2176
  %2417 = vst [vmem:[%s53 + $0x400] sm:$0xff] %v2177
  %2418 = vst [vmem:[%s53 + $0x408] sm:$0xff] %v2178
  %2419 = vst [vmem:[%s53 + $0x410] sm:$0xff] %v2179
  %2420 = vst [vmem:[%s53 + $0x418] sm:$0xff] %v2180
  %2421 = vst [vmem:[%s53 + $0x420] sm:$0xff] %v2181
  %2422 = vst [vmem:[%s53 + $0x428] sm:$0xff] %v2182
  %2423 = vst [vmem:[%s53 + $0x430] sm:$0xff] %v2183
  %2424 = vst [vmem:[%s53 + $0x438] sm:$0xff] %v2184
  %2425 = vst [vmem:[%s53 + $0x440] sm:$0xff] %v2185
  %2426 = vst [vmem:[%s53 + $0x448] sm:$0xff] %v2186
  %2427 = vst [vmem:[%s53 + $0x450] sm:$0xff] %v2187
  %2428 = vst [vmem:[%s53 + $0x458] sm:$0xff] %v2188
  %2429 = vst [vmem:[%s53 + $0x460] sm:$0xff] %v2189
  %2430 = vst [vmem:[%s53 + $0x468] sm:$0xff] %v2190
  %2431 = vst [vmem:[%s53 + $0x470] sm:$0xff] %v2191
  %2432 = vst [vmem:[%s53 + $0x478] sm:$0xff] %v2192
  %2433 = vst [vmem:[%s53 + $0x480] sm:$0xff] %v2193
  %2434 = vst [vmem:[%s53 + $0x488] sm:$0xff] %v2194
  %2435 = vst [vmem:[%s53 + $0x490] sm:$0xff] %v2195
  %2436 = vst [vmem:[%s53 + $0x498] sm:$0xff] %v2196
  %2437 = vst [vmem:[%s53 + $0x4a0] sm:$0xff] %v2197
  %2438 = vst [vmem:[%s53 + $0x4a8] sm:$0xff] %v2198
  %2439 = vst [vmem:[%s53 + $0x4b0] sm:$0xff] %v2199
  %2440 = vst [vmem:[%s53 + $0x4b8] sm:$0xff] %v2200
  %2441 = vst [vmem:[%s53 + $0x4c0] sm:$0xff] %v2201
  %2442 = vst [vmem:[%s53 + $0x4c8] sm:$0xff] %v2202
  %2443 = vst [vmem:[%s53 + $0x4d0] sm:$0xff] %v2203
  %2444 = vst [vmem:[%s53 + $0x4d8] sm:$0xff] %v2204
  %2445 = vst [vmem:[%s53 + $0x4e0] sm:$0xff] %v2205
  %2446 = vst [vmem:[%s53 + $0x4e8] sm:$0xff] %v2206
  %2447 = vst [vmem:[%s53 + $0x4f0] sm:$0xff] %v2207
  %2448 = vst [vmem:[%s53 + $0x4f8] sm:$0xff] %v2208
  %2449 = vst [vmem:[%s53 + $0x500] sm:$0xff] %v2209
  %2450 = vst [vmem:[%s53 + $0x508] sm:$0xff] %v2210
  %2451 = vst [vmem:[%s53 + $0x510] sm:$0xff] %v2211
  %2452 = vst [vmem:[%s53 + $0x518] sm:$0xff] %v2212
  %2453 = vst [vmem:[%s53 + $0x520] sm:$0xff] %v2213
  %2454 = vst [vmem:[%s53 + $0x528] sm:$0xff] %v2214
  %2455 = vst [vmem:[%s53 + $0x530] sm:$0xff] %v2215
  %2456 = vst [vmem:[%s53 + $0x538] sm:$0xff] %v2216
  %2457 = vst [vmem:[%s53 + $0x540] sm:$0xff] %v2217
  %2458 = vst [vmem:[%s53 + $0x548] sm:$0xff] %v2218
  %2459 = vst [vmem:[%s53 + $0x550] sm:$0xff] %v2219
  %2460 = vst [vmem:[%s53 + $0x558] sm:$0xff] %v2220
  %2461 = vst [vmem:[%s53 + $0x560] sm:$0xff] %v2221
  %2462 = vst [vmem:[%s53 + $0x568] sm:$0xff] %v2222
  %2463 = vst [vmem:[%s53 + $0x570] sm:$0xff] %v2223
  %2464 = vst [vmem:[%s53 + $0x578] sm:$0xff] %v2224
  %2465 = vst [vmem:[%s53 + $0x580] sm:$0xff] %v2225
  %2466 = vst [vmem:[%s53 + $0x588] sm:$0xff] %v2226
  %2467 = vst [vmem:[%s53 + $0x590] sm:$0xff] %v2227
  %2468 = vst [vmem:[%s53 + $0x598] sm:$0xff] %v2228
  %2469 = vst [vmem:[%s53 + $0x5a0] sm:$0xff] %v2229
  %2470 = vst [vmem:[%s53 + $0x5a8] sm:$0xff] %v2230
  %2471 = vst [vmem:[%s53 + $0x5b0] sm:$0xff] %v2231
  %2472 = vst [vmem:[%s53 + $0x5b8] sm:$0xff] %v2232
  %2473 = vst [vmem:[%s53 + $0x5c0] sm:$0xff] %v2233
  %2474 = vst [vmem:[%s53 + $0x5c8] sm:$0xff] %v2234
  %2475 = vst [vmem:[%s53 + $0x5d0] sm:$0xff] %v2235
  %2476 = vst [vmem:[%s53 + $0x5d8] sm:$0xff] %v2236
  %2477 = vst [vmem:[%s53 + $0x5e0] sm:$0xff] %v2237
  %2478 = vst [vmem:[%s53 + $0x5e8] sm:$0xff] %v2238
  %2479 = vst [vmem:[%s53 + $0x5f0] sm:$0xff] %v2239
  %2480 = vst [vmem:[%s53 + $0x5f8] sm:$0xff] %v2240
  %2481 = vst [vmem:[%s53 + $0x600] sm:$0xff] %v2241
  %2482 = vst [vmem:[%s53 + $0x608] sm:$0xff] %v2242
  %2483 = vst [vmem:[%s53 + $0x610] sm:$0xff] %v2243
  %2484 = vst [vmem:[%s53 + $0x618] sm:$0xff] %v2244
  %2485 = vst [vmem:[%s53 + $0x620] sm:$0xff] %v2245
  %2486 = vst [vmem:[%s53 + $0x628] sm:$0xff] %v2246
  %2487 = vst [vmem:[%s53 + $0x630] sm:$0xff] %v2247
  %2488 = vst [vmem:[%s53 + $0x638] sm:$0xff] %v2248
  %2489 = vst [vmem:[%s53 + $0x640] sm:$0xff] %v2249
  %2490 = vst [vmem:[%s53 + $0x648] sm:$0xff] %v2250
  %2491 = vst [vmem:[%s53 + $0x650] sm:$0xff] %v2251
  %2492 = vst [vmem:[%s53 + $0x658] sm:$0xff] %v2252
  %2493 = vst [vmem:[%s53 + $0x660] sm:$0xff] %v2253
  %2494 = vst [vmem:[%s53 + $0x668] sm:$0xff] %v2254
  %2495 = vst [vmem:[%s53 + $0x670] sm:$0xff] %v2255
  %2496 = vst [vmem:[%s53 + $0x678] sm:$0xff] %v2256
  %2497 = vst [vmem:[%s53 + $0x680] sm:$0xff] %v2257
  %2498 = vst [vmem:[%s53 + $0x688] sm:$0xff] %v2258
  %2499 = vst [vmem:[%s53 + $0x690] sm:$0xff] %v2259
  %2500 = vst [vmem:[%s53 + $0x698] sm:$0xff] %v2260
  %2501 = vst [vmem:[%s53 + $0x6a0] sm:$0xff] %v2261
  %2502 = vst [vmem:[%s53 + $0x6a8] sm:$0xff] %v2262
  %2503 = vst [vmem:[%s53 + $0x6b0] sm:$0xff] %v2263
  %2504 = vst [vmem:[%s53 + $0x6b8] sm:$0xff] %v2264
  %2505 = vst [vmem:[%s53 + $0x6c0] sm:$0xff] %v2265
  %2506 = vst [vmem:[%s53 + $0x6c8] sm:$0xff] %v2266
  %2507 = vst [vmem:[%s53 + $0x6d0] sm:$0xff] %v2267
  %2508 = vst [vmem:[%s53 + $0x6d8] sm:$0xff] %v2268
  %2509 = vst [vmem:[%s53 + $0x6e0] sm:$0xff] %v2269
  %2510 = vst [vmem:[%s53 + $0x6e8] sm:$0xff] %v2270
  %2511 = vst [vmem:[%s53 + $0x6f0] sm:$0xff] %v2271
  %2512 = vst [vmem:[%s53 + $0x6f8] sm:$0xff] %v2272
  %2513 = vst [vmem:[%s53 + $0x700] sm:$0xff] %v2273
  %2514 = vst [vmem:[%s53 + $0x708] sm:$0xff] %v2274
  %2515 = vst [vmem:[%s53 + $0x710] sm:$0xff] %v2275
  %2516 = vst [vmem:[%s53 + $0x718] sm:$0xff] %v2276
  %2517 = vst [vmem:[%s53 + $0x720] sm:$0xff] %v2277
  %2518 = vst [vmem:[%s53 + $0x728] sm:$0xff] %v2278
  %2519 = vst [vmem:[%s53 + $0x730] sm:$0xff] %v2279
  %2520 = vst [vmem:[%s53 + $0x738] sm:$0xff] %v2280
  %2521 = vst [vmem:[%s53 + $0x740] sm:$0xff] %v2281
  %2522 = vst [vmem:[%s53 + $0x748] sm:$0xff] %v2282
  %2523 = vst [vmem:[%s53 + $0x750] sm:$0xff] %v2283
  %2524 = vst [vmem:[%s53 + $0x758] sm:$0xff] %v2284
  %2525 = vst [vmem:[%s53 + $0x760] sm:$0xff] %v2285
  %2526 = vst [vmem:[%s53 + $0x768] sm:$0xff] %v2286
  %2527 = vst [vmem:[%s53 + $0x770] sm:$0xff] %v2287
  %2528 = vst [vmem:[%s53 + $0x778] sm:$0xff] %v2288
  %v2529 = vld [vmem:[%s19] sm:$0x3]
  %v2530 = vld [vmem:[%s21] sm:$0x3]
  %v2531 = vmul.f32 %v2530, 1.442695
  %v2532 = vpow.pop %v2531
  %v2533 = vld [vmem:[%s23] sm:$0x3]
  %v2534 = vmul.f32 %v2532, %v2533
  %v2535 = vadd.f32 %v2529, %v2534
  %vm2536 = vcmp.lt.s32.totalorder %v604, 256
  %vm2537 = vmand %vm605, %vm2536
  %2538 = vst.msk [vmem:[%s55] sm:$0x3] %vm2537, %v2535
  %v2539 = vld [vmem:[%s25] sm:$0xff]
  %v2540 = vld [vmem:[%s25 + $0x8] sm:$0xff]
  %v2541 = vld [vmem:[%s25 + $0x10] sm:$0xff]
  %v2542 = vld [vmem:[%s25 + $0x18] sm:$0xff]
  %v2543 = vld [vmem:[%s25 + $0x20] sm:$0xff]
  %v2544 = vld [vmem:[%s25 + $0x28] sm:$0xff]
  %v2545 = vld [vmem:[%s25 + $0x30] sm:$0xff]
  %v2546 = vld [vmem:[%s25 + $0x38] sm:$0xff]
  %v2547 = vld [vmem:[%s25 + $0x40] sm:$0xff]
  %v2548 = vld [vmem:[%s25 + $0x48] sm:$0xff]
  %v2549 = vld [vmem:[%s25 + $0x50] sm:$0xff]
  %v2550 = vld [vmem:[%s25 + $0x58] sm:$0xff]
  %v2551 = vld [vmem:[%s25 + $0x60] sm:$0xff]
  %v2552 = vld [vmem:[%s25 + $0x68] sm:$0xff]
  %v2553 = vld [vmem:[%s25 + $0x70] sm:$0xff]
  %v2554 = vld [vmem:[%s25 + $0x78] sm:$0xff]
  %v2555 = vld [vmem:[%s25 + $0x80] sm:$0xff]
  %v2556 = vld [vmem:[%s25 + $0x88] sm:$0xff]
  %v2557 = vld [vmem:[%s25 + $0x90] sm:$0xff]
  %v2558 = vld [vmem:[%s25 + $0x98] sm:$0xff]
  %v2559 = vld [vmem:[%s25 + $0xa0] sm:$0xff]
  %v2560 = vld [vmem:[%s25 + $0xa8] sm:$0xff]
  %v2561 = vld [vmem:[%s25 + $0xb0] sm:$0xff]
  %v2562 = vld [vmem:[%s25 + $0xb8] sm:$0xff]
  %v2563 = vld [vmem:[%s25 + $0xc0] sm:$0xff]
  %v2564 = vld [vmem:[%s25 + $0xc8] sm:$0xff]
  %v2565 = vld [vmem:[%s25 + $0xd0] sm:$0xff]
  %v2566 = vld [vmem:[%s25 + $0xd8] sm:$0xff]
  %v2567 = vld [vmem:[%s25 + $0xe0] sm:$0xff]
  %v2568 = vld [vmem:[%s25 + $0xe8] sm:$0xff]
  %v2569 = vld [vmem:[%s25 + $0xf0] sm:$0xff]
  %v2570 = vld [vmem:[%s25 + $0xf8] sm:$0xff]
  %v2571 = vld [vmem:[%s25 + $0x100] sm:$0xff]
  %v2572 = vld [vmem:[%s25 + $0x108] sm:$0xff]
  %v2573 = vld [vmem:[%s25 + $0x110] sm:$0xff]
  %v2574 = vld [vmem:[%s25 + $0x118] sm:$0xff]
  %v2575 = vld [vmem:[%s25 + $0x120] sm:$0xff]
  %v2576 = vld [vmem:[%s25 + $0x128] sm:$0xff]
  %v2577 = vld [vmem:[%s25 + $0x130] sm:$0xff]
  %v2578 = vld [vmem:[%s25 + $0x138] sm:$0xff]
  %v2579 = vld [vmem:[%s25 + $0x140] sm:$0xff]
  %v2580 = vld [vmem:[%s25 + $0x148] sm:$0xff]
  %v2581 = vld [vmem:[%s25 + $0x150] sm:$0xff]
  %v2582 = vld [vmem:[%s25 + $0x158] sm:$0xff]
  %v2583 = vld [vmem:[%s25 + $0x160] sm:$0xff]
  %v2584 = vld [vmem:[%s25 + $0x168] sm:$0xff]
  %v2585 = vld [vmem:[%s25 + $0x170] sm:$0xff]
  %v2586 = vld [vmem:[%s25 + $0x178] sm:$0xff]
  %v2587 = vld [vmem:[%s25 + $0x180] sm:$0xff]
  %v2588 = vld [vmem:[%s25 + $0x188] sm:$0xff]
  %v2589 = vld [vmem:[%s25 + $0x190] sm:$0xff]
  %v2590 = vld [vmem:[%s25 + $0x198] sm:$0xff]
  %v2591 = vld [vmem:[%s25 + $0x1a0] sm:$0xff]
  %v2592 = vld [vmem:[%s25 + $0x1a8] sm:$0xff]
  %v2593 = vld [vmem:[%s25 + $0x1b0] sm:$0xff]
  %v2594 = vld [vmem:[%s25 + $0x1b8] sm:$0xff]
  %v2595 = vld [vmem:[%s25 + $0x1c0] sm:$0xff]
  %v2596 = vld [vmem:[%s25 + $0x1c8] sm:$0xff]
  %v2597 = vld [vmem:[%s25 + $0x1d0] sm:$0xff]
  %v2598 = vld [vmem:[%s25 + $0x1d8] sm:$0xff]
  %v2599 = vld [vmem:[%s25 + $0x1e0] sm:$0xff]
  %v2600 = vld [vmem:[%s25 + $0x1e8] sm:$0xff]
  %v2601 = vld [vmem:[%s25 + $0x1f0] sm:$0xff]
  %v2602 = vld [vmem:[%s25 + $0x1f8] sm:$0xff]
  %v2603 = vld [vmem:[%s27] sm:$0xff]
  %v2604 = vld [vmem:[%s27 + $0x8] sm:$0xff]
  %v2605 = vld [vmem:[%s27 + $0x10] sm:$0xff]
  %v2606 = vld [vmem:[%s27 + $0x18] sm:$0xff]
  %v2607 = vld [vmem:[%s27 + $0x20] sm:$0xff]
  %v2608 = vld [vmem:[%s27 + $0x28] sm:$0xff]
  %v2609 = vld [vmem:[%s27 + $0x30] sm:$0xff]
  %v2610 = vld [vmem:[%s27 + $0x38] sm:$0xff]
  %v2611 = vld [vmem:[%s27 + $0x40] sm:$0xff]
  %v2612 = vld [vmem:[%s27 + $0x48] sm:$0xff]
  %v2613 = vld [vmem:[%s27 + $0x50] sm:$0xff]
  %v2614 = vld [vmem:[%s27 + $0x58] sm:$0xff]
  %v2615 = vld [vmem:[%s27 + $0x60] sm:$0xff]
  %v2616 = vld [vmem:[%s27 + $0x68] sm:$0xff]
  %v2617 = vld [vmem:[%s27 + $0x70] sm:$0xff]
  %v2618 = vld [vmem:[%s27 + $0x78] sm:$0xff]
  %v2619 = vld [vmem:[%s27 + $0x80] sm:$0xff]
  %v2620 = vld [vmem:[%s27 + $0x88] sm:$0xff]
  %v2621 = vld [vmem:[%s27 + $0x90] sm:$0xff]
  %v2622 = vld [vmem:[%s27 + $0x98] sm:$0xff]
  %v2623 = vld [vmem:[%s27 + $0xa0] sm:$0xff]
  %v2624 = vld [vmem:[%s27 + $0xa8] sm:$0xff]
  %v2625 = vld [vmem:[%s27 + $0xb0] sm:$0xff]
  %v2626 = vld [vmem:[%s27 + $0xb8] sm:$0xff]
  %v2627 = vld [vmem:[%s27 + $0xc0] sm:$0xff]
  %v2628 = vld [vmem:[%s27 + $0xc8] sm:$0xff]
  %v2629 = vld [vmem:[%s27 + $0xd0] sm:$0xff]
  %v2630 = vld [vmem:[%s27 + $0xd8] sm:$0xff]
  %v2631 = vld [vmem:[%s27 + $0xe0] sm:$0xff]
  %v2632 = vld [vmem:[%s27 + $0xe8] sm:$0xff]
  %v2633 = vld [vmem:[%s27 + $0xf0] sm:$0xff]
  %v2634 = vld [vmem:[%s27 + $0xf8] sm:$0xff]
  %v2635 = vld [vmem:[%s27 + $0x100] sm:$0xff]
  %v2636 = vld [vmem:[%s27 + $0x108] sm:$0xff]
  %v2637 = vld [vmem:[%s27 + $0x110] sm:$0xff]
  %v2638 = vld [vmem:[%s27 + $0x118] sm:$0xff]
  %v2639 = vld [vmem:[%s27 + $0x120] sm:$0xff]
  %v2640 = vld [vmem:[%s27 + $0x128] sm:$0xff]
  %v2641 = vld [vmem:[%s27 + $0x130] sm:$0xff]
  %v2642 = vld [vmem:[%s27 + $0x138] sm:$0xff]
  %v2643 = vld [vmem:[%s27 + $0x140] sm:$0xff]
  %v2644 = vld [vmem:[%s27 + $0x148] sm:$0xff]
  %v2645 = vld [vmem:[%s27 + $0x150] sm:$0xff]
  %v2646 = vld [vmem:[%s27 + $0x158] sm:$0xff]
  %v2647 = vld [vmem:[%s27 + $0x160] sm:$0xff]
  %v2648 = vld [vmem:[%s27 + $0x168] sm:$0xff]
  %v2649 = vld [vmem:[%s27 + $0x170] sm:$0xff]
  %v2650 = vld [vmem:[%s27 + $0x178] sm:$0xff]
  %v2651 = vld [vmem:[%s27 + $0x180] sm:$0xff]
  %v2652 = vld [vmem:[%s27 + $0x188] sm:$0xff]
  %v2653 = vld [vmem:[%s27 + $0x190] sm:$0xff]
  %v2654 = vld [vmem:[%s27 + $0x198] sm:$0xff]
  %v2655 = vld [vmem:[%s27 + $0x1a0] sm:$0xff]
  %v2656 = vld [vmem:[%s27 + $0x1a8] sm:$0xff]
  %v2657 = vld [vmem:[%s27 + $0x1b0] sm:$0xff]
  %v2658 = vld [vmem:[%s27 + $0x1b8] sm:$0xff]
  %v2659 = vld [vmem:[%s27 + $0x1c0] sm:$0xff]
  %v2660 = vld [vmem:[%s27 + $0x1c8] sm:$0xff]
  %v2661 = vld [vmem:[%s27 + $0x1d0] sm:$0xff]
  %v2662 = vld [vmem:[%s27 + $0x1d8] sm:$0xff]
  %v2663 = vld [vmem:[%s27 + $0x1e0] sm:$0xff]
  %v2664 = vld [vmem:[%s27 + $0x1e8] sm:$0xff]
  %v2665 = vld [vmem:[%s27 + $0x1f0] sm:$0xff]
  %v2666 = vld [vmem:[%s27 + $0x1f8] sm:$0xff]
  %v2667 = vmul.f32 %v2603, 1.442695
  %v2668 = vpow.pop %v2667
  %v2669 = vmul.f32 %v2604, 1.442695
  %v2670 = vpow.pop %v2669
  %v2671 = vmul.f32 %v2605, 1.442695
  %v2672 = vpow.pop %v2671
  %v2673 = vmul.f32 %v2606, 1.442695
  %v2674 = vpow.pop %v2673
  %v2675 = vmul.f32 %v2607, 1.442695
  %v2676 = vpow.pop %v2675
  %v2677 = vmul.f32 %v2608, 1.442695
  %v2678 = vpow.pop %v2677
  %v2679 = vmul.f32 %v2609, 1.442695
  %v2680 = vpow.pop %v2679
  %v2681 = vmul.f32 %v2610, 1.442695
  %v2682 = vpow.pop %v2681
  %v2683 = vmul.f32 %v2611, 1.442695
  %v2684 = vpow.pop %v2683
  %v2685 = vmul.f32 %v2612, 1.442695
  %v2686 = vpow.pop %v2685
  %v2687 = vmul.f32 %v2613, 1.442695
  %v2688 = vpow.pop %v2687
  %v2689 = vmul.f32 %v2614, 1.442695
  %v2690 = vpow.pop %v2689
  %v2691 = vmul.f32 %v2615, 1.442695
  %v2692 = vpow.pop %v2691
  %v2693 = vmul.f32 %v2616, 1.442695
  %v2694 = vpow.pop %v2693
  %v2695 = vmul.f32 %v2617, 1.442695
  %v2696 = vpow.pop %v2695
  %v2697 = vmul.f32 %v2618, 1.442695
  %v2698 = vpow.pop %v2697
  %v2699 = vmul.f32 %v2619, 1.442695
  %v2700 = vpow.pop %v2699
  %v2701 = vmul.f32 %v2620, 1.442695
  %v2702 = vpow.pop %v2701
  %v2703 = vmul.f32 %v2621, 1.442695
  %v2704 = vpow.pop %v2703
  %v2705 = vmul.f32 %v2622, 1.442695
  %v2706 = vpow.pop %v2705
  %v2707 = vmul.f32 %v2623, 1.442695
  %v2708 = vpow.pop %v2707
  %v2709 = vmul.f32 %v2624, 1.442695
  %v2710 = vpow.pop %v2709
  %v2711 = vmul.f32 %v2625, 1.442695
  %v2712 = vpow.pop %v2711
  %v2713 = vmul.f32 %v2626, 1.442695
  %v2714 = vpow.pop %v2713
  %v2715 = vmul.f32 %v2627, 1.442695
  %v2716 = vpow.pop %v2715
  %v2717 = vmul.f32 %v2628, 1.442695
  %v2718 = vpow.pop %v2717
  %v2719 = vmul.f32 %v2629, 1.442695
  %v2720 = vpow.pop %v2719
  %v2721 = vmul.f32 %v2630, 1.442695
  %v2722 = vpow.pop %v2721
  %v2723 = vmul.f32 %v2631, 1.442695
  %v2724 = vpow.pop %v2723
  %v2725 = vmul.f32 %v2632, 1.442695
  %v2726 = vpow.pop %v2725
  %v2727 = vmul.f32 %v2633, 1.442695
  %v2728 = vpow.pop %v2727
  %v2729 = vmul.f32 %v2634, 1.442695
  %v2730 = vpow.pop %v2729
  %v2731 = vmul.f32 %v2635, 1.442695
  %v2732 = vpow.pop %v2731
  %v2733 = vmul.f32 %v2636, 1.442695
  %v2734 = vpow.pop %v2733
  %v2735 = vmul.f32 %v2637, 1.442695
  %v2736 = vpow.pop %v2735
  %v2737 = vmul.f32 %v2638, 1.442695
  %v2738 = vpow.pop %v2737
  %v2739 = vmul.f32 %v2639, 1.442695
  %v2740 = vpow.pop %v2739
  %v2741 = vmul.f32 %v2640, 1.442695
  %v2742 = vpow.pop %v2741
  %v2743 = vmul.f32 %v2641, 1.442695
  %v2744 = vpow.pop %v2743
  %v2745 = vmul.f32 %v2642, 1.442695
  %v2746 = vpow.pop %v2745
  %v2747 = vmul.f32 %v2643, 1.442695
  %v2748 = vpow.pop %v2747
  %v2749 = vmul.f32 %v2644, 1.442695
  %v2750 = vpow.pop %v2749
  %v2751 = vmul.f32 %v2645, 1.442695
  %v2752 = vpow.pop %v2751
  %v2753 = vmul.f32 %v2646, 1.442695
  %v2754 = vpow.pop %v2753
  %v2755 = vmul.f32 %v2647, 1.442695
  %v2756 = vpow.pop %v2755
  %v2757 = vmul.f32 %v2648, 1.442695
  %v2758 = vpow.pop %v2757
  %v2759 = vmul.f32 %v2649, 1.442695
  %v2760 = vpow.pop %v2759
  %v2761 = vmul.f32 %v2650, 1.442695
  %v2762 = vpow.pop %v2761
  %v2763 = vmul.f32 %v2651, 1.442695
  %v2764 = vpow.pop %v2763
  %v2765 = vmul.f32 %v2652, 1.442695
  %v2766 = vpow.pop %v2765
  %v2767 = vmul.f32 %v2653, 1.442695
  %v2768 = vpow.pop %v2767
  %v2769 = vmul.f32 %v2654, 1.442695
  %v2770 = vpow.pop %v2769
  %v2771 = vmul.f32 %v2655, 1.442695
  %v2772 = vpow.pop %v2771
  %v2773 = vmul.f32 %v2656, 1.442695
  %v2774 = vpow.pop %v2773
  %v2775 = vmul.f32 %v2657, 1.442695
  %v2776 = vpow.pop %v2775
  %v2777 = vmul.f32 %v2658, 1.442695
  %v2778 = vpow.pop %v2777
  %v2779 = vmul.f32 %v2659, 1.442695
  %v2780 = vpow.pop %v2779
  %v2781 = vmul.f32 %v2660, 1.442695
  %v2782 = vpow.pop %v2781
  %v2783 = vmul.f32 %v2661, 1.442695
  %v2784 = vpow.pop %v2783
  %v2785 = vmul.f32 %v2662, 1.442695
  %v2786 = vpow.pop %v2785
  %v2787 = vmul.f32 %v2663, 1.442695
  %v2788 = vpow.pop %v2787
  %v2789 = vmul.f32 %v2664, 1.442695
  %v2790 = vpow.pop %v2789
  %v2791 = vmul.f32 %v2665, 1.442695
  %v2792 = vpow.pop %v2791
  %v2793 = vmul.f32 %v2666, 1.442695
  %v2794 = vpow.pop %v2793
  %v2795 = vld [vmem:[%s29] sm:$0xff]
  %v2796 = vld [vmem:[%s29 + $0x8] sm:$0xff]
  %v2797 = vld [vmem:[%s29 + $0x10] sm:$0xff]
  %v2798 = vld [vmem:[%s29 + $0x18] sm:$0xff]
  %v2799 = vld [vmem:[%s29 + $0x20] sm:$0xff]
  %v2800 = vld [vmem:[%s29 + $0x28] sm:$0xff]
  %v2801 = vld [vmem:[%s29 + $0x30] sm:$0xff]
  %v2802 = vld [vmem:[%s29 + $0x38] sm:$0xff]
  %v2803 = vld [vmem:[%s29 + $0x40] sm:$0xff]
  %v2804 = vld [vmem:[%s29 + $0x48] sm:$0xff]
  %v2805 = vld [vmem:[%s29 + $0x50] sm:$0xff]
  %v2806 = vld [vmem:[%s29 + $0x58] sm:$0xff]
  %v2807 = vld [vmem:[%s29 + $0x60] sm:$0xff]
  %v2808 = vld [vmem:[%s29 + $0x68] sm:$0xff]
  %v2809 = vld [vmem:[%s29 + $0x70] sm:$0xff]
  %v2810 = vld [vmem:[%s29 + $0x78] sm:$0xff]
  %v2811 = vld [vmem:[%s29 + $0x80] sm:$0xff]
  %v2812 = vld [vmem:[%s29 + $0x88] sm:$0xff]
  %v2813 = vld [vmem:[%s29 + $0x90] sm:$0xff]
  %v2814 = vld [vmem:[%s29 + $0x98] sm:$0xff]
  %v2815 = vld [vmem:[%s29 + $0xa0] sm:$0xff]
  %v2816 = vld [vmem:[%s29 + $0xa8] sm:$0xff]
  %v2817 = vld [vmem:[%s29 + $0xb0] sm:$0xff]
  %v2818 = vld [vmem:[%s29 + $0xb8] sm:$0xff]
  %v2819 = vld [vmem:[%s29 + $0xc0] sm:$0xff]
  %v2820 = vld [vmem:[%s29 + $0xc8] sm:$0xff]
  %v2821 = vld [vmem:[%s29 + $0xd0] sm:$0xff]
  %v2822 = vld [vmem:[%s29 + $0xd8] sm:$0xff]
  %v2823 = vld [vmem:[%s29 + $0xe0] sm:$0xff]
  %v2824 = vld [vmem:[%s29 + $0xe8] sm:$0xff]
  %v2825 = vld [vmem:[%s29 + $0xf0] sm:$0xff]
  %v2826 = vld [vmem:[%s29 + $0xf8] sm:$0xff]
  %v2827 = vld [vmem:[%s29 + $0x100] sm:$0xff]
  %v2828 = vld [vmem:[%s29 + $0x108] sm:$0xff]
  %v2829 = vld [vmem:[%s29 + $0x110] sm:$0xff]
  %v2830 = vld [vmem:[%s29 + $0x118] sm:$0xff]
  %v2831 = vld [vmem:[%s29 + $0x120] sm:$0xff]
  %v2832 = vld [vmem:[%s29 + $0x128] sm:$0xff]
  %v2833 = vld [vmem:[%s29 + $0x130] sm:$0xff]
  %v2834 = vld [vmem:[%s29 + $0x138] sm:$0xff]
  %v2835 = vld [vmem:[%s29 + $0x140] sm:$0xff]
  %v2836 = vld [vmem:[%s29 + $0x148] sm:$0xff]
  %v2837 = vld [vmem:[%s29 + $0x150] sm:$0xff]
  %v2838 = vld [vmem:[%s29 + $0x158] sm:$0xff]
  %v2839 = vld [vmem:[%s29 + $0x160] sm:$0xff]
  %v2840 = vld [vmem:[%s29 + $0x168] sm:$0xff]
  %v2841 = vld [vmem:[%s29 + $0x170] sm:$0xff]
  %v2842 = vld [vmem:[%s29 + $0x178] sm:$0xff]
  %v2843 = vld [vmem:[%s29 + $0x180] sm:$0xff]
  %v2844 = vld [vmem:[%s29 + $0x188] sm:$0xff]
  %v2845 = vld [vmem:[%s29 + $0x190] sm:$0xff]
  %v2846 = vld [vmem:[%s29 + $0x198] sm:$0xff]
  %v2847 = vld [vmem:[%s29 + $0x1a0] sm:$0xff]
  %v2848 = vld [vmem:[%s29 + $0x1a8] sm:$0xff]
  %v2849 = vld [vmem:[%s29 + $0x1b0] sm:$0xff]
  %v2850 = vld [vmem:[%s29 + $0x1b8] sm:$0xff]
  %v2851 = vld [vmem:[%s29 + $0x1c0] sm:$0xff]
  %v2852 = vld [vmem:[%s29 + $0x1c8] sm:$0xff]
  %v2853 = vld [vmem:[%s29 + $0x1d0] sm:$0xff]
  %v2854 = vld [vmem:[%s29 + $0x1d8] sm:$0xff]
  %v2855 = vld [vmem:[%s29 + $0x1e0] sm:$0xff]
  %v2856 = vld [vmem:[%s29 + $0x1e8] sm:$0xff]
  %v2857 = vld [vmem:[%s29 + $0x1f0] sm:$0xff]
  %v2858 = vld [vmem:[%s29 + $0x1f8] sm:$0xff]
  %v2859 = vmul.f32 %v2668, %v2795
  %v2860 = vmul.f32 %v2670, %v2796
  %v2861 = vmul.f32 %v2672, %v2797
  %v2862 = vmul.f32 %v2674, %v2798
  %v2863 = vmul.f32 %v2676, %v2799
  %v2864 = vmul.f32 %v2678, %v2800
  %v2865 = vmul.f32 %v2680, %v2801
  %v2866 = vmul.f32 %v2682, %v2802
  %v2867 = vmul.f32 %v2684, %v2803
  %v2868 = vmul.f32 %v2686, %v2804
  %v2869 = vmul.f32 %v2688, %v2805
  %v2870 = vmul.f32 %v2690, %v2806
  %v2871 = vmul.f32 %v2692, %v2807
  %v2872 = vmul.f32 %v2694, %v2808
  %v2873 = vmul.f32 %v2696, %v2809
  %v2874 = vmul.f32 %v2698, %v2810
  %v2875 = vmul.f32 %v2700, %v2811
  %v2876 = vmul.f32 %v2702, %v2812
  %v2877 = vmul.f32 %v2704, %v2813
  %v2878 = vmul.f32 %v2706, %v2814
  %v2879 = vmul.f32 %v2708, %v2815
  %v2880 = vmul.f32 %v2710, %v2816
  %v2881 = vmul.f32 %v2712, %v2817
  %v2882 = vmul.f32 %v2714, %v2818
  %v2883 = vmul.f32 %v2716, %v2819
  %v2884 = vmul.f32 %v2718, %v2820
  %v2885 = vmul.f32 %v2720, %v2821
  %v2886 = vmul.f32 %v2722, %v2822
  %v2887 = vmul.f32 %v2724, %v2823
  %v2888 = vmul.f32 %v2726, %v2824
  %v2889 = vmul.f32 %v2728, %v2825
  %v2890 = vmul.f32 %v2730, %v2826
  %v2891 = vmul.f32 %v2732, %v2827
  %v2892 = vmul.f32 %v2734, %v2828
  %v2893 = vmul.f32 %v2736, %v2829
  %v2894 = vmul.f32 %v2738, %v2830
  %v2895 = vmul.f32 %v2740, %v2831
  %v2896 = vmul.f32 %v2742, %v2832
  %v2897 = vmul.f32 %v2744, %v2833
  %v2898 = vmul.f32 %v2746, %v2834
  %v2899 = vmul.f32 %v2748, %v2835
  %v2900 = vmul.f32 %v2750, %v2836
  %v2901 = vmul.f32 %v2752, %v2837
  %v2902 = vmul.f32 %v2754, %v2838
  %v2903 = vmul.f32 %v2756, %v2839
  %v2904 = vmul.f32 %v2758, %v2840
  %v2905 = vmul.f32 %v2760, %v2841
  %v2906 = vmul.f32 %v2762, %v2842
  %v2907 = vmul.f32 %v2764, %v2843
  %v2908 = vmul.f32 %v2766, %v2844
  %v2909 = vmul.f32 %v2768, %v2845
  %v2910 = vmul.f32 %v2770, %v2846
  %v2911 = vmul.f32 %v2772, %v2847
  %v2912 = vmul.f32 %v2774, %v2848
  %v2913 = vmul.f32 %v2776, %v2849
  %v2914 = vmul.f32 %v2778, %v2850
  %v2915 = vmul.f32 %v2780, %v2851
  %v2916 = vmul.f32 %v2782, %v2852
  %v2917 = vmul.f32 %v2784, %v2853
  %v2918 = vmul.f32 %v2786, %v2854
  %v2919 = vmul.f32 %v2788, %v2855
  %v2920 = vmul.f32 %v2790, %v2856
  %v2921 = vmul.f32 %v2792, %v2857
  %v2922 = vmul.f32 %v2794, %v2858
  %v2923 = vadd.f32 %v2539, %v2859
  %v2924 = vadd.f32 %v2540, %v2860
  %v2925 = vadd.f32 %v2541, %v2861
  %v2926 = vadd.f32 %v2542, %v2862
  %v2927 = vadd.f32 %v2543, %v2863
  %v2928 = vadd.f32 %v2544, %v2864
  %v2929 = vadd.f32 %v2545, %v2865
  %v2930 = vadd.f32 %v2546, %v2866
  %v2931 = vadd.f32 %v2547, %v2867
  %v2932 = vadd.f32 %v2548, %v2868
  %v2933 = vadd.f32 %v2549, %v2869
  %v2934 = vadd.f32 %v2550, %v2870
  %v2935 = vadd.f32 %v2551, %v2871
  %v2936 = vadd.f32 %v2552, %v2872
  %v2937 = vadd.f32 %v2553, %v2873
  %v2938 = vadd.f32 %v2554, %v2874
  %v2939 = vadd.f32 %v2555, %v2875
  %v2940 = vadd.f32 %v2556, %v2876
  %v2941 = vadd.f32 %v2557, %v2877
  %v2942 = vadd.f32 %v2558, %v2878
  %v2943 = vadd.f32 %v2559, %v2879
  %v2944 = vadd.f32 %v2560, %v2880
  %v2945 = vadd.f32 %v2561, %v2881
  %v2946 = vadd.f32 %v2562, %v2882
  %v2947 = vadd.f32 %v2563, %v2883
  %v2948 = vadd.f32 %v2564, %v2884
  %v2949 = vadd.f32 %v2565, %v2885
  %v2950 = vadd.f32 %v2566, %v2886
  %v2951 = vadd.f32 %v2567, %v2887
  %v2952 = vadd.f32 %v2568, %v2888
  %v2953 = vadd.f32 %v2569, %v2889
  %v2954 = vadd.f32 %v2570, %v2890
  %v2955 = vadd.f32 %v2571, %v2891
  %v2956 = vadd.f32 %v2572, %v2892
  %v2957 = vadd.f32 %v2573, %v2893
  %v2958 = vadd.f32 %v2574, %v2894
  %v2959 = vadd.f32 %v2575, %v2895
  %v2960 = vadd.f32 %v2576, %v2896
  %v2961 = vadd.f32 %v2577, %v2897
  %v2962 = vadd.f32 %v2578, %v2898
  %v2963 = vadd.f32 %v2579, %v2899
  %v2964 = vadd.f32 %v2580, %v2900
  %v2965 = vadd.f32 %v2581, %v2901
  %v2966 = vadd.f32 %v2582, %v2902
  %v2967 = vadd.f32 %v2583, %v2903
  %v2968 = vadd.f32 %v2584, %v2904
  %v2969 = vadd.f32 %v2585, %v2905
  %v2970 = vadd.f32 %v2586, %v2906
  %v2971 = vadd.f32 %v2587, %v2907
  %v2972 = vadd.f32 %v2588, %v2908
  %v2973 = vadd.f32 %v2589, %v2909
  %v2974 = vadd.f32 %v2590, %v2910
  %v2975 = vadd.f32 %v2591, %v2911
  %v2976 = vadd.f32 %v2592, %v2912
  %v2977 = vadd.f32 %v2593, %v2913
  %v2978 = vadd.f32 %v2594, %v2914
  %v2979 = vadd.f32 %v2595, %v2915
  %v2980 = vadd.f32 %v2596, %v2916
  %v2981 = vadd.f32 %v2597, %v2917
  %v2982 = vadd.f32 %v2598, %v2918
  %v2983 = vadd.f32 %v2599, %v2919
  %v2984 = vadd.f32 %v2600, %v2920
  %v2985 = vadd.f32 %v2601, %v2921
  %v2986 = vadd.f32 %v2602, %v2922
  %2987 = vst [vmem:[%s57] sm:$0xff] %v2923
  %2988 = vst [vmem:[%s57 + $0x8] sm:$0xff] %v2924
  %2989 = vst [vmem:[%s57 + $0x10] sm:$0xff] %v2925
  %2990 = vst [vmem:[%s57 + $0x18] sm:$0xff] %v2926
  %2991 = vst [vmem:[%s57 + $0x20] sm:$0xff] %v2927
  %2992 = vst [vmem:[%s57 + $0x28] sm:$0xff] %v2928
  %2993 = vst [vmem:[%s57 + $0x30] sm:$0xff] %v2929
  %2994 = vst [vmem:[%s57 + $0x38] sm:$0xff] %v2930
  %2995 = vst [vmem:[%s57 + $0x40] sm:$0xff] %v2931
  %2996 = vst [vmem:[%s57 + $0x48] sm:$0xff] %v2932
  %2997 = vst [vmem:[%s57 + $0x50] sm:$0xff] %v2933
  %2998 = vst [vmem:[%s57 + $0x58] sm:$0xff] %v2934
  %2999 = vst [vmem:[%s57 + $0x60] sm:$0xff] %v2935
  %3000 = vst [vmem:[%s57 + $0x68] sm:$0xff] %v2936
  %3001 = vst [vmem:[%s57 + $0x70] sm:$0xff] %v2937
  %3002 = vst [vmem:[%s57 + $0x78] sm:$0xff] %v2938
  %3003 = vst [vmem:[%s57 + $0x80] sm:$0xff] %v2939
  %3004 = vst [vmem:[%s57 + $0x88] sm:$0xff] %v2940
  %3005 = vst [vmem:[%s57 + $0x90] sm:$0xff] %v2941
  %3006 = vst [vmem:[%s57 + $0x98] sm:$0xff] %v2942
  %3007 = vst [vmem:[%s57 + $0xa0] sm:$0xff] %v2943
  %3008 = vst [vmem:[%s57 + $0xa8] sm:$0xff] %v2944
  %3009 = vst [vmem:[%s57 + $0xb0] sm:$0xff] %v2945
  %3010 = vst [vmem:[%s57 + $0xb8] sm:$0xff] %v2946
  %3011 = vst [vmem:[%s57 + $0xc0] sm:$0xff] %v2947
  %3012 = vst [vmem:[%s57 + $0xc8] sm:$0xff] %v2948
  %3013 = vst [vmem:[%s57 + $0xd0] sm:$0xff] %v2949
  %3014 = vst [vmem:[%s57 + $0xd8] sm:$0xff] %v2950
  %3015 = vst [vmem:[%s57 + $0xe0] sm:$0xff] %v2951
  %3016 = vst [vmem:[%s57 + $0xe8] sm:$0xff] %v2952
  %3017 = vst [vmem:[%s57 + $0xf0] sm:$0xff] %v2953
  %3018 = vst [vmem:[%s57 + $0xf8] sm:$0xff] %v2954
  %3019 = vst [vmem:[%s57 + $0x100] sm:$0xff] %v2955
  %3020 = vst [vmem:[%s57 + $0x108] sm:$0xff] %v2956
  %3021 = vst [vmem:[%s57 + $0x110] sm:$0xff] %v2957
  %3022 = vst [vmem:[%s57 + $0x118] sm:$0xff] %v2958
  %3023 = vst [vmem:[%s57 + $0x120] sm:$0xff] %v2959
  %3024 = vst [vmem:[%s57 + $0x128] sm:$0xff] %v2960
  %3025 = vst [vmem:[%s57 + $0x130] sm:$0xff] %v2961
  %3026 = vst [vmem:[%s57 + $0x138] sm:$0xff] %v2962
  %3027 = vst [vmem:[%s57 + $0x140] sm:$0xff] %v2963
  %3028 = vst [vmem:[%s57 + $0x148] sm:$0xff] %v2964
  %3029 = vst [vmem:[%s57 + $0x150] sm:$0xff] %v2965
  %3030 = vst [vmem:[%s57 + $0x158] sm:$0xff] %v2966
  %3031 = vst [vmem:[%s57 + $0x160] sm:$0xff] %v2967
  %3032 = vst [vmem:[%s57 + $0x168] sm:$0xff] %v2968
  %3033 = vst [vmem:[%s57 + $0x170] sm:$0xff] %v2969
  %3034 = vst [vmem:[%s57 + $0x178] sm:$0xff] %v2970
  %3035 = vst [vmem:[%s57 + $0x180] sm:$0xff] %v2971
  %3036 = vst [vmem:[%s57 + $0x188] sm:$0xff] %v2972
  %3037 = vst [vmem:[%s57 + $0x190] sm:$0xff] %v2973
  %3038 = vst [vmem:[%s57 + $0x198] sm:$0xff] %v2974
  %3039 = vst [vmem:[%s57 + $0x1a0] sm:$0xff] %v2975
  %3040 = vst [vmem:[%s57 + $0x1a8] sm:$0xff] %v2976
  %3041 = vst [vmem:[%s57 + $0x1b0] sm:$0xff] %v2977
  %3042 = vst [vmem:[%s57 + $0x1b8] sm:$0xff] %v2978
  %3043 = vst [vmem:[%s57 + $0x1c0] sm:$0xff] %v2979
  %3044 = vst [vmem:[%s57 + $0x1c8] sm:$0xff] %v2980
  %3045 = vst [vmem:[%s57 + $0x1d0] sm:$0xff] %v2981
  %3046 = vst [vmem:[%s57 + $0x1d8] sm:$0xff] %v2982
  %3047 = vst [vmem:[%s57 + $0x1e0] sm:$0xff] %v2983
  %3048 = vst [vmem:[%s57 + $0x1e8] sm:$0xff] %v2984
  %3049 = vst [vmem:[%s57 + $0x1f0] sm:$0xff] %v2985
  %3050 = vst [vmem:[%s57 + $0x1f8] sm:$0xff] %v2986
  %v3051 = vld [vmem:[%s31] sm:$0x1]
  %v3052 = vld [vmem:[%s33] sm:$0x1]
  %v3053 = vmul.f32 %v3052, 1.442695
  %v3054 = vpow.pop %v3053
  %v3055 = vld [vmem:[%s35] sm:$0x1]
  %v3056 = vmul.f32 %v3054, %v3055
  %v3057 = vadd.f32 %v3051, %v3056
  %3058 = vst [vmem:[%s59] sm:$0x1] %v3057
  %v3059 = vld [vmem:[%s37] sm:$0xff]
  %v3060 = vld [vmem:[%s37 + $0x8] sm:$0xff]
  %v3061 = vld [vmem:[%s37 + $0x10] sm:$0xff]
  %v3062 = vld [vmem:[%s37 + $0x18] sm:$0xff]
  %v3063 = vld [vmem:[%s37 + $0x20] sm:$0xff]
  %v3064 = vld [vmem:[%s37 + $0x28] sm:$0xff]
  %v3065 = vld [vmem:[%s37 + $0x30] sm:$0xff]
  %v3066 = vld [vmem:[%s37 + $0x38] sm:$0xff]
  %v3067 = vld [vmem:[%s37 + $0x40] sm:$0xff]
  %v3068 = vld [vmem:[%s37 + $0x48] sm:$0xff]
  %v3069 = vld [vmem:[%s37 + $0x50] sm:$0xff]
  %v3070 = vld [vmem:[%s37 + $0x58] sm:$0xff]
  %v3071 = vld [vmem:[%s37 + $0x60] sm:$0xff]
  %v3072 = vld [vmem:[%s37 + $0x68] sm:$0xff]
  %v3073 = vld [vmem:[%s37 + $0x70] sm:$0xff]
  %v3074 = vld [vmem:[%s37 + $0x78] sm:$0xff]
  %v3075 = vld [vmem:[%s39] sm:$0xff]
  %v3076 = vld [vmem:[%s39 + $0x8] sm:$0xff]
  %v3077 = vld [vmem:[%s39 + $0x10] sm:$0xff]
  %v3078 = vld [vmem:[%s39 + $0x18] sm:$0xff]
  %v3079 = vld [vmem:[%s39 + $0x20] sm:$0xff]
  %v3080 = vld [vmem:[%s39 + $0x28] sm:$0xff]
  %v3081 = vld [vmem:[%s39 + $0x30] sm:$0xff]
  %v3082 = vld [vmem:[%s39 + $0x38] sm:$0xff]
  %v3083 = vld [vmem:[%s39 + $0x40] sm:$0xff]
  %v3084 = vld [vmem:[%s39 + $0x48] sm:$0xff]
  %v3085 = vld [vmem:[%s39 + $0x50] sm:$0xff]
  %v3086 = vld [vmem:[%s39 + $0x58] sm:$0xff]
  %v3087 = vld [vmem:[%s39 + $0x60] sm:$0xff]
  %v3088 = vld [vmem:[%s39 + $0x68] sm:$0xff]
  %v3089 = vld [vmem:[%s39 + $0x70] sm:$0xff]
  %v3090 = vld [vmem:[%s39 + $0x78] sm:$0xff]
  %v3091 = vmul.f32 %v3075, 1.442695
  %v3092 = vpow.pop %v3091
  %v3093 = vmul.f32 %v3076, 1.442695
  %v3094 = vpow.pop %v3093
  %v3095 = vmul.f32 %v3077, 1.442695
  %v3096 = vpow.pop %v3095
  %v3097 = vmul.f32 %v3078, 1.442695
  %v3098 = vpow.pop %v3097
  %v3099 = vmul.f32 %v3079, 1.442695
  %v3100 = vpow.pop %v3099
  %v3101 = vmul.f32 %v3080, 1.442695
  %v3102 = vpow.pop %v3101
  %v3103 = vmul.f32 %v3081, 1.442695
  %v3104 = vpow.pop %v3103
  %v3105 = vmul.f32 %v3082, 1.442695
  %v3106 = vpow.pop %v3105
  %v3107 = vmul.f32 %v3083, 1.442695
  %v3108 = vpow.pop %v3107
  %v3109 = vmul.f32 %v3084, 1.442695
  %v3110 = vpow.pop %v3109
  %v3111 = vmul.f32 %v3085, 1.442695
  %v3112 = vpow.pop %v3111
  %v3113 = vmul.f32 %v3086, 1.442695
  %v3114 = vpow.pop %v3113
  %v3115 = vmul.f32 %v3087, 1.442695
  %v3116 = vpow.pop %v3115
  %v3117 = vmul.f32 %v3088, 1.442695
  %v3118 = vpow.pop %v3117
  %v3119 = vmul.f32 %v3089, 1.442695
  %v3120 = vpow.pop %v3119
  %v3121 = vmul.f32 %v3090, 1.442695
  %v3122 = vpow.pop %v3121
  %v3123 = vld [vmem:[%s41] sm:$0xff]
  %v3124 = vld [vmem:[%s41 + $0x8] sm:$0xff]
  %v3125 = vld [vmem:[%s41 + $0x10] sm:$0xff]
  %v3126 = vld [vmem:[%s41 + $0x18] sm:$0xff]
  %v3127 = vld [vmem:[%s41 + $0x20] sm:$0xff]
  %v3128 = vld [vmem:[%s41 + $0x28] sm:$0xff]
  %v3129 = vld [vmem:[%s41 + $0x30] sm:$0xff]
  %v3130 = vld [vmem:[%s41 + $0x38] sm:$0xff]
  %v3131 = vld [vmem:[%s41 + $0x40] sm:$0xff]
  %v3132 = vld [vmem:[%s41 + $0x48] sm:$0xff]
  %v3133 = vld [vmem:[%s41 + $0x50] sm:$0xff]
  %v3134 = vld [vmem:[%s41 + $0x58] sm:$0xff]
  %v3135 = vld [vmem:[%s41 + $0x60] sm:$0xff]
  %v3136 = vld [vmem:[%s41 + $0x68] sm:$0xff]
  %v3137 = vld [vmem:[%s41 + $0x70] sm:$0xff]
  %v3138 = vld [vmem:[%s41 + $0x78] sm:$0xff]
  %v3139 = vmul.f32 %v3092, %v3123
  %v3140 = vmul.f32 %v3094, %v3124
  %v3141 = vmul.f32 %v3096, %v3125
  %v3142 = vmul.f32 %v3098, %v3126
  %v3143 = vmul.f32 %v3100, %v3127
  %v3144 = vmul.f32 %v3102, %v3128
  %v3145 = vmul.f32 %v3104, %v3129
  %v3146 = vmul.f32 %v3106, %v3130
  %v3147 = vmul.f32 %v3108, %v3131
  %v3148 = vmul.f32 %v3110, %v3132
  %v3149 = vmul.f32 %v3112, %v3133
  %v3150 = vmul.f32 %v3114, %v3134
  %v3151 = vmul.f32 %v3116, %v3135
  %v3152 = vmul.f32 %v3118, %v3136
  %v3153 = vmul.f32 %v3120, %v3137
  %v3154 = vmul.f32 %v3122, %v3138
  %v3155 = vadd.f32 %v3059, %v3139
  %v3156 = vadd.f32 %v3060, %v3140
  %v3157 = vadd.f32 %v3061, %v3141
  %v3158 = vadd.f32 %v3062, %v3142
  %v3159 = vadd.f32 %v3063, %v3143
  %v3160 = vadd.f32 %v3064, %v3144
  %v3161 = vadd.f32 %v3065, %v3145
  %v3162 = vadd.f32 %v3066, %v3146
  %v3163 = vadd.f32 %v3067, %v3147
  %v3164 = vadd.f32 %v3068, %v3148
  %v3165 = vadd.f32 %v3069, %v3149
  %v3166 = vadd.f32 %v3070, %v3150
  %v3167 = vadd.f32 %v3071, %v3151
  %v3168 = vadd.f32 %v3072, %v3152
  %v3169 = vadd.f32 %v3073, %v3153
  %v3170 = vadd.f32 %v3074, %v3154
  %3171 = vst [vmem:[%s61] sm:$0xff] %v3155
  %3172 = vst [vmem:[%s61 + $0x8] sm:$0xff] %v3156
  %3173 = vst [vmem:[%s61 + $0x10] sm:$0xff] %v3157
  %3174 = vst [vmem:[%s61 + $0x18] sm:$0xff] %v3158
  %3175 = vst [vmem:[%s61 + $0x20] sm:$0xff] %v3159
  %3176 = vst [vmem:[%s61 + $0x28] sm:$0xff] %v3160
  %3177 = vst [vmem:[%s61 + $0x30] sm:$0xff] %v3161
  %3178 = vst [vmem:[%s61 + $0x38] sm:$0xff] %v3162
  %3179 = vst [vmem:[%s61 + $0x40] sm:$0xff] %v3163
  %3180 = vst [vmem:[%s61 + $0x48] sm:$0xff] %v3164
  %3181 = vst [vmem:[%s61 + $0x50] sm:$0xff] %v3165
  %3182 = vst [vmem:[%s61 + $0x58] sm:$0xff] %v3166
  %3183 = vst [vmem:[%s61 + $0x60] sm:$0xff] %v3167
  %3184 = vst [vmem:[%s61 + $0x68] sm:$0xff] %v3168
  %3185 = vst [vmem:[%s61 + $0x70] sm:$0xff] %v3169
  %3186 = vst [vmem:[%s61 + $0x78] sm:$0xff] %v3170
  %v3187 = vld [vmem:[%s43] sm:$0x1]
  %v3188 = vld [vmem:[%s45] sm:$0x1]
  %v3189 = vmul.f32 %v3188, 1.442695
  %v3190 = vpow.pop %v3189
  %v3191 = vld [vmem:[%s47] sm:$0x1]
  %v3192 = vmul.f32 %v3190, %v3191
  %v3193 = vadd.f32 %v3187, %v3192
  %3194 = vst [vmem:[%s63] sm:$0x1] %v3193
  // Predicated region
  $region98: #{vicnn_forward_pallas.2} parent=0 // pred_check
    _
  $region99: #{vicnn_forward_pallas.2} parent=0 // pred_check_branch
    %3196 = sbr.rel (0) target = $region101
  $region100: #{vicnn_forward_pallas.2} parent=0 // pred_region
    _
  $region101: #{vicnn_forward_pallas.2} parent=0 // pred_fallthru
    _
  // Predicated region
  $region102: #{vicnn_forward_pallas.2} parent=0 // pred_check
    _
  $region103: #{vicnn_forward_pallas.2} parent=0 // pred_check_branch
    %3198 = sbr.rel (0) target = $region105
  $region104: #{vicnn_forward_pallas.2} parent=0 // pred_region
    _
  $region105: #{vicnn_forward_pallas.2} parent=0 // pred_fallthru
    _
  // Predicated region
  $region106: #{vicnn_forward_pallas.2} parent=0 // pred_check
    _
  $region107: #{vicnn_forward_pallas.2} parent=0 // pred_check_branch
    %3200 = sbr.rel (0) target = $region109
  $region108: #{vicnn_forward_pallas.2} parent=0 // pred_region
    _
  $region109: #{vicnn_forward_pallas.2} parent=0 // pred_fallthru
    _
  // Predicated region
  $region110: #{vicnn_forward_pallas.2} parent=0 // pred_check
    _
  $region111: #{vicnn_forward_pallas.2} parent=0 // pred_check_branch
    %3202 = sbr.rel (0) target = $region113
  $region112: #{vicnn_forward_pallas.2} parent=0 // pred_region
    _
  $region113: #{vicnn_forward_pallas.2} parent=0 // pred_fallthru
    _
  // Predicated region
  $region114: #{vicnn_forward_pallas.2} parent=0 // pred_check
    _
  $region115: #{vicnn_forward_pallas.2} parent=0 // pred_check_branch
    %3204 = sbr.rel (0) target = $region117
  $region116: #{vicnn_forward_pallas.2} parent=0 // pred_region
    _
  $region117: #{vicnn_forward_pallas.2} parent=0 // pred_fallthru
    _
  // Predicated region
  $region118: #{vicnn_forward_pallas.2} parent=0 // pred_check
    _
  $region119: #{vicnn_forward_pallas.2} parent=0 // pred_check_branch
    %3206 = sbr.rel (0) target = $region121
  $region120: #{vicnn_forward_pallas.2} parent=0 // pred_region
    _
  $region121: #{vicnn_forward_pallas.2} parent=0 // pred_fallthru
    _
  // Predicated region
  $region122: #{vicnn_forward_pallas.2} parent=0 // pred_check
    _
  $region123: #{vicnn_forward_pallas.2} parent=0 // pred_check_branch
    %3208 = sbr.rel (0) target = $region125
  $region124: #{vicnn_forward_pallas.2} parent=0 // pred_region
    _
  $region125: #{vicnn_forward_pallas.2} parent=0 // pred_fallthru
    _
  // Predicated region
  $region126: #{vicnn_forward_pallas.2} parent=0 // pred_check
    _
  $region127: #{vicnn_forward_pallas.2} parent=0 // pred_check_branch
    %3210 = sbr.rel (0) target = $region129
  $region128: #{vicnn_forward_pallas.2} parent=0 // pred_region
    _
  $region129: #{vicnn_forward_pallas.2} parent=0 // pred_fallthru
    _
  // Predicated region
  $region130: #{vicnn_forward_pallas.2} parent=0 // pred_check
    _
  $region131: #{vicnn_forward_pallas.2} parent=0 // pred_check_branch
    %3212 = sbr.rel (0) target = $region133
  $region132: #{vicnn_forward_pallas.2} parent=0 // pred_region
    _
  $region133: #{vicnn_forward_pallas.2} parent=0 // pred_fallthru
    _
  // Predicated region
  $region134: #{vicnn_forward_pallas.2} parent=0 // pred_check
    _
  $region135: #{vicnn_forward_pallas.2} parent=0 // pred_check_branch
    %3214 = sbr.rel (0) target = $region137
  $region136: #{vicnn_forward_pallas.2} parent=0 // pred_region
    _
  $region137: #{vicnn_forward_pallas.2} parent=0 // pred_fallthru
    _
  // Predicated region
  $region138: #{vicnn_forward_pallas.2} parent=0 // pred_check
    _
  $region139: #{vicnn_forward_pallas.2} parent=0 // pred_check_branch
    %3216 = sbr.rel (0) target = $region141
  $region140: #{vicnn_forward_pallas.2} parent=0 // pred_region
    _
  $region141: #{vicnn_forward_pallas.2} parent=0 // pred_fallthru
    _
  // Predicated region
  $region142: #{vicnn_forward_pallas.2} parent=0 // pred_check
    _
  $region143: #{vicnn_forward_pallas.2} parent=0 // pred_check_branch
    %3218 = sbr.rel (0) target = $region145
  $region144: #{vicnn_forward_pallas.2} parent=0 // pred_region
    _
  $region145: #{vicnn_forward_pallas.2} parent=0 // pred_fallthru
    _
  // Predicated region
  $region146: #{vicnn_forward_pallas.2} parent=0 // pred_check
    _
  $region147: #{vicnn_forward_pallas.2} parent=0 // pred_check_branch
    %3220 = sbr.rel (0) target = $region149
  $region148: #{vicnn_forward_pallas.2} parent=0 // pred_region
    _
  $region149: #{vicnn_forward_pallas.2} parent=0 // pred_fallthru
    _
  // Predicated region
  $region150: #{vicnn_forward_pallas.2} parent=0 // pred_check
    _
  $region151: #{vicnn_forward_pallas.2} parent=0 // pred_check_branch
    %3222 = sbr.rel (0) target = $region153
  $region152: #{vicnn_forward_pallas.2} parent=0 // pred_region
    _
  $region153: #{vicnn_forward_pallas.2} parent=0 // pred_fallthru
    _
  // Predicated region
  $region154: #{vicnn_forward_pallas.2} parent=0 // pred_check
    _
  $region155: #{vicnn_forward_pallas.2} parent=0 // pred_check_branch
    %3224 = sbr.rel (0) target = $region157
  $region156: #{vicnn_forward_pallas.2} parent=0 // pred_region
    _
  $region157: #{vicnn_forward_pallas.2} parent=0 // pred_fallthru
    _
  // Predicated region
  $region158: #{vicnn_forward_pallas.2} parent=0 // pred_check
    _
  $region159: #{vicnn_forward_pallas.2} parent=0 // pred_check_branch
    %3226 = sbr.rel (0) target = $region161
  $region160: #{vicnn_forward_pallas.2} parent=0 // pred_region
    _
  $region161: #{vicnn_forward_pallas.2} parent=0 // pred_fallthru
    _

// kernel: vicnn_forward_pallas.3
$region0: #{vicnn_forward_pallas.3}
  #allocation0 [shape = 'u32[]', space=smem, size = 0x4, offset = 0x4, fixed_abs, tag = 'smem constant byte address 0x4 - core index']
  #allocation1 [shape = 'u32[144,128]{1,0:T(1,128)}', space=vmem, size = 0x12000, scoped, tag = 'internal scratch']
  %s0 = inlined_call_operand.vmem [shape: f32[28,8,28], index: 0, kind: input, shape index: {}]
  %s1 = inlined_call_operand.vmem [shape: f32[5,28,384], index: 1, kind: input, shape index: {}]
  %s2 = inlined_call_operand.vmem [shape: f32[1,384], index: 2, kind: input, shape index: {}]
  %s3 = inlined_call_operand.vmem [shape: f32[5,192,256], index: 3, kind: input, shape index: {}]
  %s4 = inlined_call_operand.vmem [shape: f32[1,256], index: 4, kind: input, shape index: {}]
  %s5 = inlined_call_operand.vmem [shape: f32[4,128,128], index: 5, kind: input, shape index: {}]
  %s6 = inlined_call_operand.vmem [shape: f32[1,128], index: 6, kind: input, shape index: {}]
  %s7 = inlined_call_operand.vmem [shape: f32[128,128], index: 7, kind: input, shape index: {}]
  %s8 = inlined_call_operand.vmem [shape: f32[1,128], index: 8, kind: input, shape index: {}]
  %s9 = inlined_call_operand.vmem [shape: f32[8,128], index: 9, kind: output, shape index: {}]
  %s10 = sld [smem:[#allocation0]]
  $region46: #{vicnn_forward_pallas.3} parent=0
    _
  %s12 = ssub.s32 1, %s10
  %s13 = scalar_select 0, %s12, %s10
  // Predicated region
  $region2: #{vicnn_forward_pallas.3} parent=0 // pred_check
    _
  $region3: #{vicnn_forward_pallas.3} parent=0 // pred_check_branch
    %15 = sbr.rel (0) target = $region5
  $region4: #{vicnn_forward_pallas.3} parent=0 // pred_region
    _
  $region5: #{vicnn_forward_pallas.3} parent=0 // pred_fallthru
    _
  // Predicated region
  $region6: #{vicnn_forward_pallas.3} parent=0 // pred_check
    _
  $region7: #{vicnn_forward_pallas.3} parent=0 // pred_check_branch
    %17 = sbr.rel (0) target = $region9
  $region8: #{vicnn_forward_pallas.3} parent=0 // pred_region
    _
  $region9: #{vicnn_forward_pallas.3} parent=0 // pred_fallthru
    _
  // Predicated region
  $region10: #{vicnn_forward_pallas.3} parent=0 // pred_check
    _
  $region11: #{vicnn_forward_pallas.3} parent=0 // pred_check_branch
    %19 = sbr.rel (0) target = $region13
  $region12: #{vicnn_forward_pallas.3} parent=0 // pred_region
    _
  $region13: #{vicnn_forward_pallas.3} parent=0 // pred_fallthru
    _
  // Predicated region
  $region14: #{vicnn_forward_pallas.3} parent=0 // pred_check
    _
  $region15: #{vicnn_forward_pallas.3} parent=0 // pred_check_branch
    %21 = sbr.rel (0) target = $region17
  $region16: #{vicnn_forward_pallas.3} parent=0 // pred_region
    _
  $region17: #{vicnn_forward_pallas.3} parent=0 // pred_fallthru
    _
  // Predicated region
  $region18: #{vicnn_forward_pallas.3} parent=0 // pred_check
    _
  $region19: #{vicnn_forward_pallas.3} parent=0 // pred_check_branch
    %23 = sbr.rel (0) target = $region21
  $region20: #{vicnn_forward_pallas.3} parent=0 // pred_region
    _
  $region21: #{vicnn_forward_pallas.3} parent=0 // pred_fallthru
    _
  // Predicated region
  $region22: #{vicnn_forward_pallas.3} parent=0 // pred_check
    _
  $region23: #{vicnn_forward_pallas.3} parent=0 // pred_check_branch
    %25 = sbr.rel (0) target = $region25
  $region24: #{vicnn_forward_pallas.3} parent=0 // pred_region
    _
  $region25: #{vicnn_forward_pallas.3} parent=0 // pred_fallthru
    _
  // Predicated region
  $region26: #{vicnn_forward_pallas.3} parent=0 // pred_check
    _
  $region27: #{vicnn_forward_pallas.3} parent=0 // pred_check_branch
    %27 = sbr.rel (0) target = $region29
  $region28: #{vicnn_forward_pallas.3} parent=0 // pred_region
    _
  $region29: #{vicnn_forward_pallas.3} parent=0 // pred_fallthru
    _
  // Predicated region
  $region30: #{vicnn_forward_pallas.3} parent=0 // pred_check
    _
  $region31: #{vicnn_forward_pallas.3} parent=0 // pred_check_branch
    %29 = sbr.rel (0) target = $region33
  $region32: #{vicnn_forward_pallas.3} parent=0 // pred_region
    _
  $region33: #{vicnn_forward_pallas.3} parent=0 // pred_fallthru
    _
  // Predicated region
  $region34: #{vicnn_forward_pallas.3} parent=0 // pred_check
    _
  $region35: #{vicnn_forward_pallas.3} parent=0 // pred_check_branch
    %31 = sbr.rel (0) target = $region37
  $region36: #{vicnn_forward_pallas.3} parent=0 // pred_region
    _
  $region37: #{vicnn_forward_pallas.3} parent=0 // pred_fallthru
    _
  %v32 = vld [vmem:[%s0] sm:$0xff]
  %v33 = vld [vmem:[%s0 + $0x8] sm:$0xff]
  %v34 = vld [vmem:[%s0 + $0x10] sm:$0xff]
  %v35 = vld [vmem:[%s0 + $0x18] sm:$0xff]
  %v36 = vld [vmem:[%s0 + $0x20] sm:$0xff]
  %v37 = vld [vmem:[%s0 + $0x28] sm:$0xff]
  %v38 = vld [vmem:[%s0 + $0x30] sm:$0xff]
  %v39 = vld [vmem:[%s0 + $0x38] sm:$0xff]
  %v40 = vld [vmem:[%s0 + $0x40] sm:$0xff]
  %v41 = vld [vmem:[%s0 + $0x48] sm:$0xff]
  %v42 = vld [vmem:[%s0 + $0x50] sm:$0xff]
  %v43 = vld [vmem:[%s0 + $0x58] sm:$0xff]
  %v44 = vld [vmem:[%s0 + $0x60] sm:$0xff]
  %v45 = vld [vmem:[%s0 + $0x68] sm:$0xff]
  %v46 = vld [vmem:[%s0 + $0x70] sm:$0xff]
  %v47 = vld [vmem:[%s0 + $0x78] sm:$0xff]
  %v48 = vld [vmem:[%s0 + $0x80] sm:$0xff]
  %v49 = vld [vmem:[%s0 + $0x88] sm:$0xff]
  %v50 = vld [vmem:[%s0 + $0x90] sm:$0xff]
  %v51 = vld [vmem:[%s0 + $0x98] sm:$0xff]
  %v52 = vld [vmem:[%s0 + $0xa0] sm:$0xff]
  %v53 = vld [vmem:[%s0 + $0xa8] sm:$0xff]
  %v54 = vld [vmem:[%s0 + $0xb0] sm:$0xff]
  %v55 = vld [vmem:[%s0 + $0xb8] sm:$0xff]
  %v56 = vld [vmem:[%s0 + $0xc0] sm:$0xff]
  %v57 = vld [vmem:[%s0 + $0xc8] sm:$0xff]
  %v58 = vld [vmem:[%s0 + $0xd0] sm:$0xff]
  %v59 = vld [vmem:[%s0 + $0xd8] sm:$0xff]
  %v60 = vld [vmem:[%s1] sm:$0xff]
  %v61 = vld [vmem:[%s1 + $0x8] sm:$0xff]
  %v62 = vld [vmem:[%s1 + $0x10] sm:$0xff]
  %v63 = vld [vmem:[%s1 + $0x18] sm:$0xff]
  %v64 = vld [vmem:[%s1 + $0x20] sm:$0xff]
  %v65 = vld [vmem:[%s1 + $0x28] sm:$0xff]
  %v66 = vld [vmem:[%s1 + $0x30] sm:$0xff]
  %v67 = vld [vmem:[%s1 + $0x38] sm:$0xff]
  %v68 = vld [vmem:[%s1 + $0x40] sm:$0xff]
  %v69 = vld [vmem:[%s1 + $0x48] sm:$0xf]
  %v70 = vld [vmem:[%s1 + $0x50] sm:$0xf]
  %v71 = vld [vmem:[%s1 + $0x58] sm:$0xf]
  %s72 = scalar_lea.vmem %s1, 96
  %v73 = vld [vmem:[%s72] sm:$0xff]
  %v74 = vld [vmem:[%s72 + $0x8] sm:$0xff]
  %v75 = vld [vmem:[%s72 + $0x10] sm:$0xff]
  %v76 = vld [vmem:[%s72 + $0x18] sm:$0xff]
  %v77 = vld [vmem:[%s72 + $0x20] sm:$0xff]
  %v78 = vld [vmem:[%s72 + $0x28] sm:$0xff]
  %v79 = vld [vmem:[%s72 + $0x30] sm:$0xff]
  %v80 = vld [vmem:[%s72 + $0x38] sm:$0xff]
  %v81 = vld [vmem:[%s72 + $0x40] sm:$0xff]
  %v82 = vld [vmem:[%s72 + $0x48] sm:$0xf]
  %v83 = vld [vmem:[%s72 + $0x50] sm:$0xf]
  %v84 = vld [vmem:[%s72 + $0x58] sm:$0xf]
  %vm85 = vcmask 228352
  %v87 = vsel %vm85, %v33, 0
  %v90 = vsel %vm85, %v34, 0
  %v93 = vsel %vm85, %v35, 0
  %v96 = vsel %vm85, %v36, 0
  %v99 = vsel %vm85, %v37, 0
  %v102 = vsel %vm85, %v38, 0
  %v105 = vsel %vm85, %v39, 0
  %v108 = vsel %vm85, %v40, 0
  %v111 = vsel %vm85, %v41, 0
  %v114 = vsel %vm85, %v42, 0
  %v117 = vsel %vm85, %v43, 0
  %v120 = vsel %vm85, %v44, 0
  %v123 = vsel %vm85, %v45, 0
  %v126 = vsel %vm85, %v46, 0
  %v129 = vsel %vm85, %v47, 0
  %v132 = vsel %vm85, %v48, 0
  %v135 = vsel %vm85, %v49, 0
  %v138 = vsel %vm85, %v50, 0
  %v141 = vsel %vm85, %v51, 0
  %v144 = vsel %vm85, %v52, 0
  %v147 = vsel %vm85, %v53, 0
  %v150 = vsel %vm85, %v54, 0
  %v153 = vsel %vm85, %v55, 0
  %v156 = vsel %vm85, %v56, 0
  %vm158 = vcmask 1043456
  %v160 = vsel %vm158, %v82, 0
  %v163 = vsel %vm158, %v83, 0
  %v166 = vsel %vm158, %v84, 0
  %168 = vmatprep.subr.mxu0 %v74
  %169 = vmatpush1.msra.mxu0 %v73
  %170 = vmatprep.subr.mxu0 %v77
  %171 = vmatpush1.msra.mxu0 %v76
  %172 = vmatprep.subr.mxu0 %v80
  %173 = vmatpush1.msra.mxu0 %v79
  %174 = vmatprep.subr.mxu0 %v163
  %175 = vmatpush1.msra.mxu0 %v160
  %176 = vmatprep.subr.mxu0 0.0
  %177 = vmatpush1.msra.mxu0 0.0
  %178 = vmatprep.subr.mxu0 0.0
  %179 = vmatpush1.msra.mxu0 0.0
  %180 = vmatprep.subr.mxu0 0.0
  %181 = vmatpush1.msra.mxu0 0.0
  %182 = vmatprep.subr.mxu0 0.0
  %183 = vmatpush1.msra.mxu0 0.0
  %184 = vmatprep.subr.mxu0 0.0
  %185 = vmatpush1.msra.mxu0 0.0
  %186 = vmatprep.subr.mxu0 0.0
  %187 = vmatpush1.msra.mxu0 0.0
  %188 = vmatprep.subr.mxu0 0.0
  %189 = vmatpush1.msra.mxu0 0.0
  %190 = vmatprep.subr.mxu0 0.0
  %191 = vmatpush1.msra.mxu0 0.0
  %192 = vmatprep.subr.mxu0 0.0
  %193 = vmatpush1.msra.mxu0 0.0
  %194 = vmatprep.subr.mxu0 0.0
  %195 = vmatpush1.msra.mxu0 0.0
  %196 = vmatprep.subr.mxu0 0.0
  %197 = vmatpush1.msra.mxu0 0.0
  %198 = vmatprep.subr.mxu0 0.0
  %199 = vmatpush1.msra.mxu0 0.0
  %200 = vmatprep.subr.mxu0 0.0
  %201 = vmatpush1.msra.mxu0 0.0
  %202 = vmatprep.subr.mxu0 0.0
  %203 = vmatpush1.msra.mxu0 0.0
  %204 = vmatprep.subr.mxu0 0.0
  %205 = vmatpush1.msra.mxu0 0.0
  %206 = vmatprep.subr.mxu0 0.0
  %207 = vmatpush1.msra.mxu0 0.0
  %208 = vmatprep.subr.mxu0 0.0
  %209 = vmatpush1.msra.mxu0 0.0
  %210 = vmatprep.subr.mxu0 0.0
  %211 = vmatpush1.msra.mxu0 0.0
  %212 = vmatprep.subr.mxu0 0.0
  %213 = vmatpush1.msra.mxu0 0.0
  %214 = vmatprep.subr.mxu0 0.0
  %215 = vmatpush1.msra.mxu0 0.0
  %216 = vmatprep.subr.mxu0 0.0
  %217 = vmatpush1.msra.mxu0 0.0
  %218 = vmatprep.subr.mxu0 0.0
  %219 = vmatpush1.msra.mxu0 0.0
  %220 = vmatprep.subr.mxu0 0.0
  %221 = vmatpush1.msra.mxu0 0.0
  %222 = vmatprep.subr.mxu0 0.0
  %223 = vmatpush1.msra.mxu0 0.0
  %224 = vmatprep.subr.mxu0 0.0
  %225 = vmatpush1.msra.mxu0 0.0
  %226 = vmatprep.subr.mxu0 0.0
  %227 = vmatpush1.msra.mxu0 0.0
  %228 = vmatprep.subr.mxu0 0.0
  %229 = vmatpush1.msra.mxu0 0.0
  %230 = vmatprep.subr.mxu0 0.0
  %231 = vmatpush1.msra.mxu0 0.0
  %232 = vmatprep.mubr.f32.mxu0 0.0
  %233 = vmatmul.mubr.f32.gmra.mrb[0].mxu0 %v87
  %v234 = vpop.f32.mrb[0].mxu0
  %v235 = vadd.f32 0.0, %v234
  %v236 = vpop.f32.mrb[0].mxu0
  %v237 = vadd.f32 0.0, %v236
  %238 = vmatprep.mubr.f32.mxu0 0.0
  %239 = vmatmul.mubr.f32.gmra.mrb[0].mxu0 %v90
  %v240 = vpop.f32.mrb[0].mxu0
  %v241 = vadd.f32 0.0, %v240
  %v242 = vpop.f32.mrb[0].mxu0
  %v243 = vadd.f32 0.0, %v242
  %244 = vmatprep.mubr.f32.mxu0 0.0
  %245 = vmatmul.mubr.f32.gmra.mrb[0].mxu0 %v93
  %v246 = vpop.f32.mrb[0].mxu0
  %v247 = vadd.f32 0.0, %v246
  %v248 = vpop.f32.mrb[0].mxu0
  %v249 = vadd.f32 0.0, %v248
  %250 = vmatprep.mubr.f32.mxu0 0.0
  %251 = vmatmul.mubr.f32.gmra.mrb[0].mxu0 %v96
  %v252 = vpop.f32.mrb[0].mxu0
  %v253 = vadd.f32 0.0, %v252
  %v254 = vpop.f32.mrb[0].mxu0
  %v255 = vadd.f32 0.0, %v254
  %256 = vmatprep.mubr.f32.mxu0 0.0
  %257 = vmatmul.mubr.f32.gmra.mrb[0].mxu0 %v99
  %v258 = vpop.f32.mrb[0].mxu0
  %v259 = vadd.f32 0.0, %v258
  %v260 = vpop.f32.mrb[0].mxu0
  %v261 = vadd.f32 0.0, %v260
  %262 = vmatprep.mubr.f32.mxu0 0.0
  %263 = vmatmul.mubr.f32.gmra.mrb[0].mxu0 %v102
  %v264 = vpop.f32.mrb[0].mxu0
  %v265 = vadd.f32 0.0, %v264
  %v266 = vpop.f32.mrb[0].mxu0
  %v267 = vadd.f32 0.0, %v266
  %268 = vmatprep.mubr.f32.mxu0 0.0
  %269 = vmatmul.mubr.f32.gmra.mrb[0].mxu0 %v105
  %v270 = vpop.f32.mrb[0].mxu0
  %v271 = vadd.f32 0.0, %v270
  %v272 = vpop.f32.mrb[0].mxu0
  %v273 = vadd.f32 0.0, %v272
  %274 = vmatprep.mubr.f32.mxu0 0.0
  %275 = vmatmul.mubr.f32.gmra.mrb[0].mxu0 %v108
  %v276 = vpop.f32.mrb[0].mxu0
  %v277 = vadd.f32 0.0, %v276
  %v278 = vpop.f32.mrb[0].mxu0
  %v279 = vadd.f32 0.0, %v278
  %280 = vmatprep.mubr.f32.mxu0 0.0
  %281 = vmatmul.mubr.f32.gmra.mrb[0].mxu0 %v111
  %v282 = vpop.f32.mrb[0].mxu0
  %v283 = vadd.f32 0.0, %v282
  %v284 = vpop.f32.mrb[0].mxu0
  %v285 = vadd.f32 0.0, %v284
  %286 = vmatprep.mubr.f32.mxu0 0.0
  %287 = vmatmul.mubr.f32.gmra.mrb[0].mxu0 %v114
  %v288 = vpop.f32.mrb[0].mxu0
  %v289 = vadd.f32 0.0, %v288
  %v290 = vpop.f32.mrb[0].mxu0
  %v291 = vadd.f32 0.0, %v290
  %292 = vmatprep.mubr.f32.mxu0 0.0
  %293 = vmatmul.mubr.f32.gmra.mrb[0].mxu0 %v117
  %v294 = vpop.f32.mrb[0].mxu0
  %v295 = vadd.f32 0.0, %v294
  %v296 = vpop.f32.mrb[0].mxu0
  %v297 = vadd.f32 0.0, %v296
  %298 = vmatprep.mubr.f32.mxu0 0.0
  %299 = vmatmul.mubr.f32.gmra.mrb[0].mxu0 %v120
  %v300 = vpop.f32.mrb[0].mxu0
  %v301 = vadd.f32 0.0, %v300
  %v302 = vpop.f32.mrb[0].mxu0
  %v303 = vadd.f32 0.0, %v302
  %304 = vmatprep.mubr.f32.mxu0 0.0
  %305 = vmatmul.mubr.f32.gmra.mrb[0].mxu0 %v123
  %v306 = vpop.f32.mrb[0].mxu0
  %v307 = vadd.f32 0.0, %v306
  %v308 = vpop.f32.mrb[0].mxu0
  %v309 = vadd.f32 0.0, %v308
  %310 = vmatprep.mubr.f32.mxu0 0.0
  %311 = vmatmul.mubr.f32.gmra.mrb[0].mxu0 %v126
  %v312 = vpop.f32.mrb[0].mxu0
  %v313 = vadd.f32 0.0, %v312
  %v314 = vpop.f32.mrb[0].mxu0
  %v315 = vadd.f32 0.0, %v314
  %316 = vmatprep.mubr.f32.mxu0 0.0
  %317 = vmatmul.mubr.f32.gmra.mrb[0].mxu0 %v129
  %v318 = vpop.f32.mrb[0].mxu0
  %v319 = vadd.f32 0.0, %v318
  %v320 = vpop.f32.mrb[0].mxu0
  %v321 = vadd.f32 0.0, %v320
  %322 = vmatprep.mubr.f32.mxu0 0.0
  %323 = vmatmul.mubr.f32.gmra.mrb[0].mxu0 %v132
  %v324 = vpop.f32.mrb[0].mxu0
  %v325 = vadd.f32 0.0, %v324
  %v326 = vpop.f32.mrb[0].mxu0
  %v327 = vadd.f32 0.0, %v326
  %328 = vmatprep.mubr.f32.mxu0 0.0
  %329 = vmatmul.mubr.f32.gmra.mrb[0].mxu0 %v135
  %v330 = vpop.f32.mrb[0].mxu0
  %v331 = vadd.f32 0.0, %v330
  %v332 = vpop.f32.mrb[0].mxu0
  %v333 = vadd.f32 0.0, %v332
  %334 = vmatprep.mubr.f32.mxu0 0.0
  %335 = vmatmul.mubr.f32.gmra.mrb[0].mxu0 %v138
  %v336 = vpop.f32.mrb[0].mxu0
  %v337 = vadd.f32 0.0, %v336
  %v338 = vpop.f32.mrb[0].mxu0
  %v339 = vadd.f32 0.0, %v338
  %340 = vmatprep.mubr.f32.mxu0 0.0
  %341 = vmatmul.mubr.f32.gmra.mrb[0].mxu0 %v141
  %v342 = vpop.f32.mrb[0].mxu0
  %v343 = vadd.f32 0.0, %v342
  %v344 = vpop.f32.mrb[0].mxu0
  %v345 = vadd.f32 0.0, %v344
  %346 = vmatprep.mubr.f32.mxu0 0.0
  %347 = vmatmul.mubr.f32.gmra.mrb[0].mxu0 %v144
  %v348 = vpop.f32.mrb[0].mxu0
  %v349 = vadd.f32 0.0, %v348
  %v350 = vpop.f32.mrb[0].mxu0
  %v351 = vadd.f32 0.0, %v350
  %352 = vmatprep.mubr.f32.mxu0 0.0
  %353 = vmatmul.mubr.f32.gmra.mrb[0].mxu0 %v147
  %v354 = vpop.f32.mrb[0].mxu0
  %v355 = vadd.f32 0.0, %v354
  %v356 = vpop.f32.mrb[0].mxu0
  %v357 = vadd.f32 0.0, %v356
  %358 = vmatprep.mubr.f32.mxu0 0.0
  %359 = vmatmul.mubr.f32.gmra.mrb[0].mxu0 %v150
  %v360 = vpop.f32.mrb[0].mxu0
  %v361 = vadd.f32 0.0, %v360
  %v362 = vpop.f32.mrb[0].mxu0
  %v363 = vadd.f32 0.0, %v362
  %364 = vmatprep.mubr.f32.mxu0 0.0
  %365 = vmatmul.mubr.f32.gmra.mrb[0].mxu0 %v153
  %v366 = vpop.f32.mrb[0].mxu0
  %v367 = vadd.f32 0.0, %v366
  %v368 = vpop.f32.mrb[0].mxu0
  %v369 = vadd.f32 0.0, %v368
  %370 = vmatprep.mubr.f32.mxu0 0.0
  %371 = vmatmul.mubr.f32.gmra.mrb[0].mxu0 %v156
  %v372 = vpop.f32.mrb[0].mxu0
  %v373 = vadd.f32 0.0, %v372
  %v374 = vpop.f32.mrb[0].mxu0
  %v375 = vadd.f32 0.0, %v374
  %376 = vdwg.mxu0
  %377 = vmatprep.subr.mxu0 0.0
  %378 = vmatpush1.msra.mxu0 %v75
  %379 = vmatprep.subr.mxu0 0.0
  %380 = vmatpush1.msra.mxu0 %v78
  %381 = vmatprep.subr.mxu0 0.0
  %382 = vmatpush1.msra.mxu0 %v81
  %383 = vmatprep.subr.mxu0 0.0
  %384 = vmatpush1.msra.mxu0 %v166
  %385 = vmatprep.subr.mxu0 0.0
  %386 = vmatpush1.msra.mxu0 0.0
  %387 = vmatprep.subr.mxu0 0.0
  %388 = vmatpush1.msra.mxu0 0.0
  %389 = vmatprep.subr.mxu0 0.0
  %390 = vmatpush1.msra.mxu0 0.0
  %391 = vmatprep.subr.mxu0 0.0
  %392 = vmatpush1.msra.mxu0 0.0
  %393 = vmatprep.subr.mxu0 0.0
  %394 = vmatpush1.msra.mxu0 0.0
  %395 = vmatprep.subr.mxu0 0.0
  %396 = vmatpush1.msra.mxu0 0.0
  %397 = vmatprep.subr.mxu0 0.0
  %398 = vmatpush1.msra.mxu0 0.0
  %399 = vmatprep.subr.mxu0 0.0
  %400 = vmatpush1.msra.mxu0 0.0
  %401 = vmatprep.subr.mxu0 0.0
  %402 = vmatpush1.msra.mxu0 0.0
  %403 = vmatprep.subr.mxu0 0.0
  %404 = vmatpush1.msra.mxu0 0.0
  %405 = vmatprep.subr.mxu0 0.0
  %406 = vmatpush1.msra.mxu0 0.0
  %407 = vmatprep.subr.mxu0 0.0
  %408 = vmatpush1.msra.mxu0 0.0
  %409 = vmatprep.subr.mxu0 0.0
  %410 = vmatpush1.msra.mxu0 0.0
  %411 = vmatprep.subr.mxu0 0.0
  %412 = vmatpush1.msra.mxu0 0.0
  %413 = vmatprep.subr.mxu0 0.0
  %414 = vmatpush1.msra.mxu0 0.0
  %415 = vmatprep.subr.mxu0 0.0
  %416 = vmatpush1.msra.mxu0 0.0
  %417 = vmatprep.subr.mxu0 0.0
  %418 = vmatpush1.msra.mxu0 0.0
  %419 = vmatprep.subr.mxu0 0.0
  %420 = vmatpush1.msra.mxu0 0.0
  %421 = vmatprep.subr.mxu0 0.0
  %422 = vmatpush1.msra.mxu0 0.0
  %423 = vmatprep.subr.mxu0 0.0
  %424 = vmatpush1.msra.mxu0 0.0
  %425 = vmatprep.subr.mxu0 0.0
  %426 = vmatpush1.msra.mxu0 0.0
  %427 = vmatprep.subr.mxu0 0.0
  %428 = vmatpush1.msra.mxu0 0.0
  %429 = vmatprep.subr.mxu0 0.0
  %430 = vmatpush1.msra.mxu0 0.0
  %431 = vmatprep.subr.mxu0 0.0
  %432 = vmatpush1.msra.mxu0 0.0
  %433 = vmatprep.subr.mxu0 0.0
  %434 = vmatpush1.msra.mxu0 0.0
  %435 = vmatprep.subr.mxu0 0.0
  %436 = vmatpush1.msra.mxu0 0.0
  %437 = vmatprep.subr.mxu0 0.0
  %438 = vmatpush1.msra.mxu0 0.0
  %439 = vmatprep.subr.mxu0 0.0
  %440 = vmatpush1.msra.mxu0 0.0
  %441 = vmatprep.mubr.f32.mxu0 0.0
  %442 = vmatmul.mubr.f32.gmra.mrb[0].mxu0 %v87
  %v443 = vpop.f32.mrb[0].mxu0
  %v444 = vadd.f32 0.0, %v443
  %v445 = vpop.f32.mrb[0].mxu0
  %446 = vmatprep.mubr.f32.mxu0 0.0
  %447 = vmatmul.mubr.f32.gmra.mrb[0].mxu0 %v90
  %v448 = vpop.f32.mrb[0].mxu0
  %v449 = vadd.f32 0.0, %v448
  %v450 = vpop.f32.mrb[0].mxu0
  %451 = vmatprep.mubr.f32.mxu0 0.0
  %452 = vmatmul.mubr.f32.gmra.mrb[0].mxu0 %v93
  %v453 = vpop.f32.mrb[0].mxu0
  %v454 = vadd.f32 0.0, %v453
  %v455 = vpop.f32.mrb[0].mxu0
  %456 = vmatprep.mubr.f32.mxu0 0.0
  %457 = vmatmul.mubr.f32.gmra.mrb[0].mxu0 %v96
  %v458 = vpop.f32.mrb[0].mxu0
  %v459 = vadd.f32 0.0, %v458
  %v460 = vpop.f32.mrb[0].mxu0
  %461 = vmatprep.mubr.f32.mxu0 0.0
  %462 = vmatmul.mubr.f32.gmra.mrb[0].mxu0 %v99
  %v463 = vpop.f32.mrb[0].mxu0
  %v464 = vadd.f32 0.0, %v463
  %v465 = vpop.f32.mrb[0].mxu0
  %466 = vmatprep.mubr.f32.mxu0 0.0
  %467 = vmatmul.mubr.f32.gmra.mrb[0].mxu0 %v102
  %v468 = vpop.f32.mrb[0].mxu0
  %v469 = vadd.f32 0.0, %v468
  %v470 = vpop.f32.mrb[0].mxu0
  %471 = vmatprep.mubr.f32.mxu0 0.0
  %472 = vmatmul.mubr.f32.gmra.mrb[0].mxu0 %v105
  %v473 = vpop.f32.mrb[0].mxu0
  %v474 = vadd.f32 0.0, %v473
  %v475 = vpop.f32.mrb[0].mxu0
  %476 = vmatprep.mubr.f32.mxu0 0.0
  %477 = vmatmul.mubr.f32.gmra.mrb[0].mxu0 %v108
  %v478 = vpop.f32.mrb[0].mxu0
  %v479 = vadd.f32 0.0, %v478
  %v480 = vpop.f32.mrb[0].mxu0
  %481 = vmatprep.mubr.f32.mxu0 0.0
  %482 = vmatmul.mubr.f32.gmra.mrb[0].mxu0 %v111
  %v483 = vpop.f32.mrb[0].mxu0
  %v484 = vadd.f32 0.0, %v483
  %v485 = vpop.f32.mrb[0].mxu0
  %486 = vmatprep.mubr.f32.mxu0 0.0
  %487 = vmatmul.mubr.f32.gmra.mrb[0].mxu0 %v114
  %v488 = vpop.f32.mrb[0].mxu0
  %v489 = vadd.f32 0.0, %v488
  %v490 = vpop.f32.mrb[0].mxu0
  %491 = vmatprep.mubr.f32.mxu0 0.0
  %492 = vmatmul.mubr.f32.gmra.mrb[0].mxu0 %v117
  %v493 = vpop.f32.mrb[0].mxu0
  %v494 = vadd.f32 0.0, %v493
  %v495 = vpop.f32.mrb[0].mxu0
  %496 = vmatprep.mubr.f32.mxu0 0.0
  %497 = vmatmul.mubr.f32.gmra.mrb[0].mxu0 %v120
  %v498 = vpop.f32.mrb[0].mxu0
  %v499 = vadd.f32 0.0, %v498
  %v500 = vpop.f32.mrb[0].mxu0
  %501 = vmatprep.mubr.f32.mxu0 0.0
  %502 = vmatmul.mubr.f32.gmra.mrb[0].mxu0 %v123
  %v503 = vpop.f32.mrb[0].mxu0
  %v504 = vadd.f32 0.0, %v503
  %v505 = vpop.f32.mrb[0].mxu0
  %506 = vmatprep.mubr.f32.mxu0 0.0
  %507 = vmatmul.mubr.f32.gmra.mrb[0].mxu0 %v126
  %v508 = vpop.f32.mrb[0].mxu0
  %v509 = vadd.f32 0.0, %v508
  %v510 = vpop.f32.mrb[0].mxu0
  %511 = vmatprep.mubr.f32.mxu0 0.0
  %512 = vmatmul.mubr.f32.gmra.mrb[0].mxu0 %v129
  %v513 = vpop.f32.mrb[0].mxu0
  %v514 = vadd.f32 0.0, %v513
  %v515 = vpop.f32.mrb[0].mxu0
  %516 = vmatprep.mubr.f32.mxu0 0.0
  %517 = vmatmul.mubr.f32.gmra.mrb[0].mxu0 %v132
  %v518 = vpop.f32.mrb[0].mxu0
  %v519 = vadd.f32 0.0, %v518
  %v520 = vpop.f32.mrb[0].mxu0
  %521 = vmatprep.mubr.f32.mxu0 0.0
  %522 = vmatmul.mubr.f32.gmra.mrb[0].mxu0 %v135
  %v523 = vpop.f32.mrb[0].mxu0
  %v524 = vadd.f32 0.0, %v523
  %v525 = vpop.f32.mrb[0].mxu0
  %526 = vmatprep.mubr.f32.mxu0 0.0
  %527 = vmatmul.mubr.f32.gmra.mrb[0].mxu0 %v138
  %v528 = vpop.f32.mrb[0].mxu0
  %v529 = vadd.f32 0.0, %v528
  %v530 = vpop.f32.mrb[0].mxu0
  %531 = vmatprep.mubr.f32.mxu0 0.0
  %532 = vmatmul.mubr.f32.gmra.mrb[0].mxu0 %v141
  %v533 = vpop.f32.mrb[0].mxu0
  %v534 = vadd.f32 0.0, %v533
  %v535 = vpop.f32.mrb[0].mxu0
  %536 = vmatprep.mubr.f32.mxu0 0.0
  %537 = vmatmul.mubr.f32.gmra.mrb[0].mxu0 %v144
  %v538 = vpop.f32.mrb[0].mxu0
  %v539 = vadd.f32 0.0, %v538
  %v540 = vpop.f32.mrb[0].mxu0
  %541 = vmatprep.mubr.f32.mxu0 0.0
  %542 = vmatmul.mubr.f32.gmra.mrb[0].mxu0 %v147
  %v543 = vpop.f32.mrb[0].mxu0
  %v544 = vadd.f32 0.0, %v543
  %v545 = vpop.f32.mrb[0].mxu0
  %546 = vmatprep.mubr.f32.mxu0 0.0
  %547 = vmatmul.mubr.f32.gmra.mrb[0].mxu0 %v150
  %v548 = vpop.f32.mrb[0].mxu0
  %v549 = vadd.f32 0.0, %v548
  %v550 = vpop.f32.mrb[0].mxu0
  %551 = vmatprep.mubr.f32.mxu0 0.0
  %552 = vmatmul.mubr.f32.gmra.mrb[0].mxu0 %v153
  %v553 = vpop.f32.mrb[0].mxu0
  %v554 = vadd.f32 0.0, %v553
  %v555 = vpop.f32.mrb[0].mxu0
  %556 = vmatprep.mubr.f32.mxu0 0.0
  %557 = vmatmul.mubr.f32.gmra.mrb[0].mxu0 %v156
  %v558 = vpop.f32.mrb[0].mxu0
  %v559 = vadd.f32 0.0, %v558
  %v560 = vpop.f32.mrb[0].mxu0
  %561 = vdwg.mxu0
  %v563 = vsel %vm85, %v32, 0
  %v566 = vsel %vm158, %v69, 0
  %v569 = vsel %vm158, %v70, 0
  %v572 = vsel %vm158, %v71, 0
  %574 = vmatprep.subr.mxu0 %v61
  %575 = vmatpush1.msra.mxu0 %v60
  %576 = vmatprep.subr.mxu0 %v64
  %577 = vmatpush1.msra.mxu0 %v63
  %578 = vmatprep.subr.mxu0 %v67
  %579 = vmatpush1.msra.mxu0 %v66
  %580 = vmatprep.subr.mxu0 %v569
  %581 = vmatpush1.msra.mxu0 %v566
  %582 = vmatprep.subr.mxu0 0.0
  %583 = vmatpush1.msra.mxu0 0.0
  %584 = vmatprep.subr.mxu0 0.0
  %585 = vmatpush1.msra.mxu0 0.0
  %586 = vmatprep.subr.mxu0 0.0
  %587 = vmatpush1.msra.mxu0 0.0
  %588 = vmatprep.subr.mxu0 0.0
  %589 = vmatpush1.msra.mxu0 0.0
  %590 = vmatprep.subr.mxu0 0.0
  %591 = vmatpush1.msra.mxu0 0.0
  %592 = vmatprep.subr.mxu0 0.0
  %593 = vmatpush1.msra.mxu0 0.0
  %594 = vmatprep.subr.mxu0 0.0
  %595 = vmatpush1.msra.mxu0 0.0
  %596 = vmatprep.subr.mxu0 0.0
  %597 = vmatpush1.msra.mxu0 0.0
  %598 = vmatprep.subr.mxu0 0.0
  %599 = vmatpush1.msra.mxu0 0.0
  %600 = vmatprep.subr.mxu0 0.0
  %601 = vmatpush1.msra.mxu0 0.0
  %602 = vmatprep.subr.mxu0 0.0
  %603 = vmatpush1.msra.mxu0 0.0
  %604 = vmatprep.subr.mxu0 0.0
  %605 = vmatpush1.msra.mxu0 0.0
  %606 = vmatprep.subr.mxu0 0.0
  %607 = vmatpush1.msra.mxu0 0.0
  %608 = vmatprep.subr.mxu0 0.0
  %609 = vmatpush1.msra.mxu0 0.0
  %610 = vmatprep.subr.mxu0 0.0
  %611 = vmatpush1.msra.mxu0 0.0
  %612 = vmatprep.subr.mxu0 0.0
  %613 = vmatpush1.msra.mxu0 0.0
  %614 = vmatprep.subr.mxu0 0.0
  %615 = vmatpush1.msra.mxu0 0.0
  %616 = vmatprep.subr.mxu0 0.0
  %617 = vmatpush1.msra.mxu0 0.0
  %618 = vmatprep.subr.mxu0 0.0
  %619 = vmatpush1.msra.mxu0 0.0
  %620 = vmatprep.subr.mxu0 0.0
  %621 = vmatpush1.msra.mxu0 0.0
  %622 = vmatprep.subr.mxu0 0.0
  %623 = vmatpush1.msra.mxu0 0.0
  %624 = vmatprep.subr.mxu0 0.0
  %625 = vmatpush1.msra.mxu0 0.0
  %626 = vmatprep.subr.mxu0 0.0
  %627 = vmatpush1.msra.mxu0 0.0
  %628 = vmatprep.subr.mxu0 0.0
  %629 = vmatpush1.msra.mxu0 0.0
  %630 = vmatprep.subr.mxu0 0.0
  %631 = vmatpush1.msra.mxu0 0.0
  %632 = vmatprep.subr.mxu0 0.0
  %633 = vmatpush1.msra.mxu0 0.0
  %634 = vmatprep.subr.mxu0 0.0
  %635 = vmatpush1.msra.mxu0 0.0
  %636 = vmatprep.subr.mxu0 0.0
  %637 = vmatpush1.msra.mxu0 0.0
  %638 = vmatprep.mubr.f32.mxu0 0.0
  %639 = vmatmul.mubr.f32.gmra.mrb[0].mxu0 %v563
  %v640 = vpop.f32.mrb[0].mxu0
  %v641 = vadd.f32 %v235, %v640
  %v642 = vpop.f32.mrb[0].mxu0
  %v643 = vadd.f32 %v237, %v642
  %644 = vmatprep.mubr.f32.mxu0 0.0
  %645 = vmatmul.mubr.f32.gmra.mrb[0].mxu0 %v87
  %v646 = vpop.f32.mrb[0].mxu0
  %v647 = vadd.f32 %v241, %v646
  %v648 = vpop.f32.mrb[0].mxu0
  %v649 = vadd.f32 %v243, %v648
  %650 = vmatprep.mubr.f32.mxu0 0.0
  %651 = vmatmul.mubr.f32.gmra.mrb[0].mxu0 %v90
  %v652 = vpop.f32.mrb[0].mxu0
  %v653 = vadd.f32 %v247, %v652
  %v654 = vpop.f32.mrb[0].mxu0
  %v655 = vadd.f32 %v249, %v654
  %656 = vmatprep.mubr.f32.mxu0 0.0
  %657 = vmatmul.mubr.f32.gmra.mrb[0].mxu0 %v93
  %v658 = vpop.f32.mrb[0].mxu0
  %v659 = vadd.f32 %v253, %v658
  %v660 = vpop.f32.mrb[0].mxu0
  %v661 = vadd.f32 %v255, %v660
  %662 = vmatprep.mubr.f32.mxu0 0.0
  %663 = vmatmul.mubr.f32.gmra.mrb[0].mxu0 %v96
  %v664 = vpop.f32.mrb[0].mxu0
  %v665 = vadd.f32 %v259, %v664
  %v666 = vpop.f32.mrb[0].mxu0
  %v667 = vadd.f32 %v261, %v666
  %668 = vmatprep.mubr.f32.mxu0 0.0
  %669 = vmatmul.mubr.f32.gmra.mrb[0].mxu0 %v99
  %v670 = vpop.f32.mrb[0].mxu0
  %v671 = vadd.f32 %v265, %v670
  %v672 = vpop.f32.mrb[0].mxu0
  %v673 = vadd.f32 %v267, %v672
  %674 = vmatprep.mubr.f32.mxu0 0.0
  %675 = vmatmul.mubr.f32.gmra.mrb[0].mxu0 %v102
  %v676 = vpop.f32.mrb[0].mxu0
  %v677 = vadd.f32 %v271, %v676
  %v678 = vpop.f32.mrb[0].mxu0
  %v679 = vadd.f32 %v273, %v678
  %680 = vmatprep.mubr.f32.mxu0 0.0
  %681 = vmatmul.mubr.f32.gmra.mrb[0].mxu0 %v105
  %v682 = vpop.f32.mrb[0].mxu0
  %v683 = vadd.f32 %v277, %v682
  %v684 = vpop.f32.mrb[0].mxu0
  %v685 = vadd.f32 %v279, %v684
  %686 = vmatprep.mubr.f32.mxu0 0.0
  %687 = vmatmul.mubr.f32.gmra.mrb[0].mxu0 %v108
  %v688 = vpop.f32.mrb[0].mxu0
  %v689 = vadd.f32 %v283, %v688
  %v690 = vpop.f32.mrb[0].mxu0
  %v691 = vadd.f32 %v285, %v690
  %692 = vmatprep.mubr.f32.mxu0 0.0
  %693 = vmatmul.mubr.f32.gmra.mrb[0].mxu0 %v111
  %v694 = vpop.f32.mrb[0].mxu0
  %v695 = vadd.f32 %v289, %v694
  %v696 = vpop.f32.mrb[0].mxu0
  %v697 = vadd.f32 %v291, %v696
  %698 = vmatprep.mubr.f32.mxu0 0.0
  %699 = vmatmul.mubr.f32.gmra.mrb[0].mxu0 %v114
  %v700 = vpop.f32.mrb[0].mxu0
  %v701 = vadd.f32 %v295, %v700
  %v702 = vpop.f32.mrb[0].mxu0
  %v703 = vadd.f32 %v297, %v702
  %704 = vmatprep.mubr.f32.mxu0 0.0
  %705 = vmatmul.mubr.f32.gmra.mrb[0].mxu0 %v117
  %v706 = vpop.f32.mrb[0].mxu0
  %v707 = vadd.f32 %v301, %v706
  %v708 = vpop.f32.mrb[0].mxu0
  %v709 = vadd.f32 %v303, %v708
  %710 = vmatprep.mubr.f32.mxu0 0.0
  %711 = vmatmul.mubr.f32.gmra.mrb[0].mxu0 %v120
  %v712 = vpop.f32.mrb[0].mxu0
  %v713 = vadd.f32 %v307, %v712
  %v714 = vpop.f32.mrb[0].mxu0
  %v715 = vadd.f32 %v309, %v714
  %716 = vmatprep.mubr.f32.mxu0 0.0
  %717 = vmatmul.mubr.f32.gmra.mrb[0].mxu0 %v123
  %v718 = vpop.f32.mrb[0].mxu0
  %v719 = vadd.f32 %v313, %v718
  %v720 = vpop.f32.mrb[0].mxu0
  %v721 = vadd.f32 %v315, %v720
  %722 = vmatprep.mubr.f32.mxu0 0.0
  %723 = vmatmul.mubr.f32.gmra.mrb[0].mxu0 %v126
  %v724 = vpop.f32.mrb[0].mxu0
  %v725 = vadd.f32 %v319, %v724
  %v726 = vpop.f32.mrb[0].mxu0
  %v727 = vadd.f32 %v321, %v726
  %728 = vmatprep.mubr.f32.mxu0 0.0
  %729 = vmatmul.mubr.f32.gmra.mrb[0].mxu0 %v129
  %v730 = vpop.f32.mrb[0].mxu0
  %v731 = vadd.f32 %v325, %v730
  %v732 = vpop.f32.mrb[0].mxu0
  %v733 = vadd.f32 %v327, %v732
  %734 = vmatprep.mubr.f32.mxu0 0.0
  %735 = vmatmul.mubr.f32.gmra.mrb[0].mxu0 %v132
  %v736 = vpop.f32.mrb[0].mxu0
  %v737 = vadd.f32 %v331, %v736
  %v738 = vpop.f32.mrb[0].mxu0
  %v739 = vadd.f32 %v333, %v738
  %740 = vmatprep.mubr.f32.mxu0 0.0
  %741 = vmatmul.mubr.f32.gmra.mrb[0].mxu0 %v135
  %v742 = vpop.f32.mrb[0].mxu0
  %v743 = vadd.f32 %v337, %v742
  %v744 = vpop.f32.mrb[0].mxu0
  %v745 = vadd.f32 %v339, %v744
  %746 = vmatprep.mubr.f32.mxu0 0.0
  %747 = vmatmul.mubr.f32.gmra.mrb[0].mxu0 %v138
  %v748 = vpop.f32.mrb[0].mxu0
  %v749 = vadd.f32 %v343, %v748
  %v750 = vpop.f32.mrb[0].mxu0
  %v751 = vadd.f32 %v345, %v750
  %752 = vmatprep.mubr.f32.mxu0 0.0
  %753 = vmatmul.mubr.f32.gmra.mrb[0].mxu0 %v141
  %v754 = vpop.f32.mrb[0].mxu0
  %v755 = vadd.f32 %v349, %v754
  %v756 = vpop.f32.mrb[0].mxu0
  %v757 = vadd.f32 %v351, %v756
  %758 = vmatprep.mubr.f32.mxu0 0.0
  %759 = vmatmul.mubr.f32.gmra.mrb[0].mxu0 %v144
  %v760 = vpop.f32.mrb[0].mxu0
  %v761 = vadd.f32 %v355, %v760
  %v762 = vpop.f32.mrb[0].mxu0
  %v763 = vadd.f32 %v357, %v762
  %764 = vmatprep.mubr.f32.mxu0 0.0
  %765 = vmatmul.mubr.f32.gmra.mrb[0].mxu0 %v147
  %v766 = vpop.f32.mrb[0].mxu0
  %v767 = vadd.f32 %v361, %v766
  %v768 = vpop.f32.mrb[0].mxu0
  %v769 = vadd.f32 %v363, %v768
  %770 = vmatprep.mubr.f32.mxu0 0.0
  %771 = vmatmul.mubr.f32.gmra.mrb[0].mxu0 %v150
  %v772 = vpop.f32.mrb[0].mxu0
  %v773 = vadd.f32 %v367, %v772
  %v774 = vpop.f32.mrb[0].mxu0
  %v775 = vadd.f32 %v369, %v774
  %776 = vmatprep.mubr.f32.mxu0 0.0
  %777 = vmatmul.mubr.f32.gmra.mrb[0].mxu0 %v153
  %v778 = vpop.f32.mrb[0].mxu0
  %v779 = vadd.f32 %v373, %v778
  %v780 = vpop.f32.mrb[0].mxu0
  %v781 = vadd.f32 %v375, %v780
  %782 = vdwg.mxu0
  %783 = vmatprep.subr.mxu0 0.0
  %784 = vmatpush1.msra.mxu0 %v62
  %785 = vmatprep.subr.mxu0 0.0
  %786 = vmatpush1.msra.mxu0 %v65
  %787 = vmatprep.subr.mxu0 0.0
  %788 = vmatpush1.msra.mxu0 %v68
  %789 = vmatprep.subr.mxu0 0.0
  %790 = vmatpush1.msra.mxu0 %v572
  %791 = vmatprep.subr.mxu0 0.0
  %792 = vmatpush1.msra.mxu0 0.0
  %793 = vmatprep.subr.mxu0 0.0
  %794 = vmatpush1.msra.mxu0 0.0
  %795 = vmatprep.subr.mxu0 0.0
  %796 = vmatpush1.msra.mxu0 0.0
  %797 = vmatprep.subr.mxu0 0.0
  %798 = vmatpush1.msra.mxu0 0.0
  %799 = vmatprep.subr.mxu0 0.0
  %800 = vmatpush1.msra.mxu0 0.0
  %801 = vmatprep.subr.mxu0 0.0
  %802 = vmatpush1.msra.mxu0 0.0
  %803 = vmatprep.subr.mxu0 0.0
  %804 = vmatpush1.msra.mxu0 0.0
  %805 = vmatprep.subr.mxu0 0.0
  %806 = vmatpush1.msra.mxu0 0.0
  %807 = vmatprep.subr.mxu0 0.0
  %808 = vmatpush1.msra.mxu0 0.0
  %809 = vmatprep.subr.mxu0 0.0
  %810 = vmatpush1.msra.mxu0 0.0
  %811 = vmatprep.subr.mxu0 0.0
  %812 = vmatpush1.msra.mxu0 0.0
  %813 = vmatprep.subr.mxu0 0.0
  %814 = vmatpush1.msra.mxu0 0.0
  %815 = vmatprep.subr.mxu0 0.0
  %816 = vmatpush1.msra.mxu0 0.0
  %817 = vmatprep.subr.mxu0 0.0
  %818 = vmatpush1.msra.mxu0 0.0
  %819 = vmatprep.subr.mxu0 0.0
  %820 = vmatpush1.msra.mxu0 0.0
  %821 = vmatprep.subr.mxu0 0.0
  %822 = vmatpush1.msra.mxu0 0.0
  %823 = vmatprep.subr.mxu0 0.0
  %824 = vmatpush1.msra.mxu0 0.0
  %825 = vmatprep.subr.mxu0 0.0
  %826 = vmatpush1.msra.mxu0 0.0
  %827 = vmatprep.subr.mxu0 0.0
  %828 = vmatpush1.msra.mxu0 0.0
  %829 = vmatprep.subr.mxu0 0.0
  %830 = vmatpush1.msra.mxu0 0.0
  %831 = vmatprep.subr.mxu0 0.0
  %832 = vmatpush1.msra.mxu0 0.0
  %833 = vmatprep.subr.mxu0 0.0
  %834 = vmatpush1.msra.mxu0 0.0
  %835 = vmatprep.subr.mxu0 0.0
  %836 = vmatpush1.msra.mxu0 0.0
  %837 = vmatprep.subr.mxu0 0.0
  %838 = vmatpush1.msra.mxu0 0.0
  %839 = vmatprep.subr.mxu0 0.0
  %840 = vmatpush1.msra.mxu0 0.0
  %841 = vmatprep.subr.mxu0 0.0
  %842 = vmatpush1.msra.mxu0 0.0
  %843 = vmatprep.subr.mxu0 0.0
  %844 = vmatpush1.msra.mxu0 0.0
  %845 = vmatprep.subr.mxu0 0.0
  %846 = vmatpush1.msra.mxu0 0.0
  %847 = vmatprep.mubr.f32.mxu0 0.0
  %848 = vmatmul.mubr.f32.gmra.mrb[0].mxu0 %v563
  %v849 = vpop.f32.mrb[0].mxu0
  %v850 = vadd.f32 %v444, %v849
  %v851 = vpop.f32.mrb[0].mxu0
  %852 = vmatprep.mubr.f32.mxu0 0.0
  %853 = vmatmul.mubr.f32.gmra.mrb[0].mxu0 %v87
  %v854 = vpop.f32.mrb[0].mxu0
  %v855 = vadd.f32 %v449, %v854
  %v856 = vpop.f32.mrb[0].mxu0
  %857 = vmatprep.mubr.f32.mxu0 0.0
  %858 = vmatmul.mubr.f32.gmra.mrb[0].mxu0 %v90
  %v859 = vpop.f32.mrb[0].mxu0
  %v860 = vadd.f32 %v454, %v859
  %v861 = vpop.f32.mrb[0].mxu0
  %862 = vmatprep.mubr.f32.mxu0 0.0
  %863 = vmatmul.mubr.f32.gmra.mrb[0].mxu0 %v93
  %v864 = vpop.f32.mrb[0].mxu0
  %v865 = vadd.f32 %v459, %v864
  %v866 = vpop.f32.mrb[0].mxu0
  %867 = vmatprep.mubr.f32.mxu0 0.0
  %868 = vmatmul.mubr.f32.gmra.mrb[0].mxu0 %v96
  %v869 = vpop.f32.mrb[0].mxu0
  %v870 = vadd.f32 %v464, %v869
  %v871 = vpop.f32.mrb[0].mxu0
  %872 = vmatprep.mubr.f32.mxu0 0.0
  %873 = vmatmul.mubr.f32.gmra.mrb[0].mxu0 %v99
  %v874 = vpop.f32.mrb[0].mxu0
  %v875 = vadd.f32 %v469, %v874
  %v876 = vpop.f32.mrb[0].mxu0
  %877 = vmatprep.mubr.f32.mxu0 0.0
  %878 = vmatmul.mubr.f32.gmra.mrb[0].mxu0 %v102
  %v879 = vpop.f32.mrb[0].mxu0
  %v880 = vadd.f32 %v474, %v879
  %v881 = vpop.f32.mrb[0].mxu0
  %882 = vmatprep.mubr.f32.mxu0 0.0
  %883 = vmatmul.mubr.f32.gmra.mrb[0].mxu0 %v105
  %v884 = vpop.f32.mrb[0].mxu0
  %v885 = vadd.f32 %v479, %v884
  %v886 = vpop.f32.mrb[0].mxu0
  %887 = vmatprep.mubr.f32.mxu0 0.0
  %888 = vmatmul.mubr.f32.gmra.mrb[0].mxu0 %v108
  %v889 = vpop.f32.mrb[0].mxu0
  %v890 = vadd.f32 %v484, %v889
  %v891 = vpop.f32.mrb[0].mxu0
  %892 = vmatprep.mubr.f32.mxu0 0.0
  %893 = vmatmul.mubr.f32.gmra.mrb[0].mxu0 %v111
  %v894 = vpop.f32.mrb[0].mxu0
  %v895 = vadd.f32 %v489, %v894
  %v896 = vpop.f32.mrb[0].mxu0
  %897 = vmatprep.mubr.f32.mxu0 0.0
  %898 = vmatmul.mubr.f32.gmra.mrb[0].mxu0 %v114
  %v899 = vpop.f32.mrb[0].mxu0
  %v900 = vadd.f32 %v494, %v899
  %v901 = vpop.f32.mrb[0].mxu0
  %902 = vmatprep.mubr.f32.mxu0 0.0
  %903 = vmatmul.mubr.f32.gmra.mrb[0].mxu0 %v117
  %v904 = vpop.f32.mrb[0].mxu0
  %v905 = vadd.f32 %v499, %v904
  %v906 = vpop.f32.mrb[0].mxu0
  %907 = vmatprep.mubr.f32.mxu0 0.0
  %908 = vmatmul.mubr.f32.gmra.mrb[0].mxu0 %v120
  %v909 = vpop.f32.mrb[0].mxu0
  %v910 = vadd.f32 %v504, %v909
  %v911 = vpop.f32.mrb[0].mxu0
  %912 = vmatprep.mubr.f32.mxu0 0.0
  %913 = vmatmul.mubr.f32.gmra.mrb[0].mxu0 %v123
  %v914 = vpop.f32.mrb[0].mxu0
  %v915 = vadd.f32 %v509, %v914
  %v916 = vpop.f32.mrb[0].mxu0
  %917 = vmatprep.mubr.f32.mxu0 0.0
  %918 = vmatmul.mubr.f32.gmra.mrb[0].mxu0 %v126
  %v919 = vpop.f32.mrb[0].mxu0
  %v920 = vadd.f32 %v514, %v919
  %v921 = vpop.f32.mrb[0].mxu0
  %922 = vmatprep.mubr.f32.mxu0 0.0
  %923 = vmatmul.mubr.f32.gmra.mrb[0].mxu0 %v129
  %v924 = vpop.f32.mrb[0].mxu0
  %v925 = vadd.f32 %v519, %v924
  %v926 = vpop.f32.mrb[0].mxu0
  %927 = vmatprep.mubr.f32.mxu0 0.0
  %928 = vmatmul.mubr.f32.gmra.mrb[0].mxu0 %v132
  %v929 = vpop.f32.mrb[0].mxu0
  %v930 = vadd.f32 %v524, %v929
  %v931 = vpop.f32.mrb[0].mxu0
  %932 = vmatprep.mubr.f32.mxu0 0.0
  %933 = vmatmul.mubr.f32.gmra.mrb[0].mxu0 %v135
  %v934 = vpop.f32.mrb[0].mxu0
  %v935 = vadd.f32 %v529, %v934
  %v936 = vpop.f32.mrb[0].mxu0
  %937 = vmatprep.mubr.f32.mxu0 0.0
  %938 = vmatmul.mubr.f32.gmra.mrb[0].mxu0 %v138
  %v939 = vpop.f32.mrb[0].mxu0
  %v940 = vadd.f32 %v534, %v939
  %v941 = vpop.f32.mrb[0].mxu0
  %942 = vmatprep.mubr.f32.mxu0 0.0
  %943 = vmatmul.mubr.f32.gmra.mrb[0].mxu0 %v141
  %v944 = vpop.f32.mrb[0].mxu0
  %v945 = vadd.f32 %v539, %v944
  %v946 = vpop.f32.mrb[0].mxu0
  %947 = vmatprep.mubr.f32.mxu0 0.0
  %948 = vmatmul.mubr.f32.gmra.mrb[0].mxu0 %v144
  %v949 = vpop.f32.mrb[0].mxu0
  %v950 = vadd.f32 %v544, %v949
  %v951 = vpop.f32.mrb[0].mxu0
  %952 = vmatprep.mubr.f32.mxu0 0.0
  %953 = vmatmul.mubr.f32.gmra.mrb[0].mxu0 %v147
  %v954 = vpop.f32.mrb[0].mxu0
  %v955 = vadd.f32 %v549, %v954
  %v956 = vpop.f32.mrb[0].mxu0
  %957 = vmatprep.mubr.f32.mxu0 0.0
  %958 = vmatmul.mubr.f32.gmra.mrb[0].mxu0 %v150
  %v959 = vpop.f32.mrb[0].mxu0
  %v960 = vadd.f32 %v554, %v959
  %v961 = vpop.f32.mrb[0].mxu0
  %962 = vmatprep.mubr.f32.mxu0 0.0
  %963 = vmatmul.mubr.f32.gmra.mrb[0].mxu0 %v153
  %v964 = vpop.f32.mrb[0].mxu0
  %v965 = vadd.f32 %v559, %v964
  %v966 = vpop.f32.mrb[0].mxu0
  %967 = vdwg.mxu0
  %s968 = scalar_lea.vmem %s1, 192
  %v969 = vld [vmem:[%s968] sm:$0xff]
  %v970 = vld [vmem:[%s968 + $0x8] sm:$0xff]
  %v971 = vld [vmem:[%s968 + $0x10] sm:$0xff]
  %v972 = vld [vmem:[%s968 + $0x18] sm:$0xff]
  %v973 = vld [vmem:[%s968 + $0x20] sm:$0xff]
  %v974 = vld [vmem:[%s968 + $0x28] sm:$0xff]
  %v975 = vld [vmem:[%s968 + $0x30] sm:$0xff]
  %v976 = vld [vmem:[%s968 + $0x38] sm:$0xff]
  %v977 = vld [vmem:[%s968 + $0x40] sm:$0xff]
  %v978 = vld [vmem:[%s968 + $0x48] sm:$0xf]
  %v979 = vld [vmem:[%s968 + $0x50] sm:$0xf]
  %v980 = vld [vmem:[%s968 + $0x58] sm:$0xf]
  %v982 = vsel %vm85, %v57, 0
  %v985 = vsel %vm158, %v978, 0
  %v988 = vsel %vm158, %v979, 0
  %v991 = vsel %vm158, %v980, 0
  %993 = vmatprep.subr.mxu0 %v970
  %994 = vmatpush1.msra.mxu0 %v969
  %995 = vmatprep.subr.mxu0 %v973
  %996 = vmatpush1.msra.mxu0 %v972
  %997 = vmatprep.subr.mxu0 %v976
  %998 = vmatpush1.msra.mxu0 %v975
  %999 = vmatprep.subr.mxu0 %v988
  %1000 = vmatpush1.msra.mxu0 %v985
  %1001 = vmatprep.subr.mxu0 0.0
  %1002 = vmatpush1.msra.mxu0 0.0
  %1003 = vmatprep.subr.mxu0 0.0
  %1004 = vmatpush1.msra.mxu0 0.0
  %1005 = vmatprep.subr.mxu0 0.0
  %1006 = vmatpush1.msra.mxu0 0.0
  %1007 = vmatprep.subr.mxu0 0.0
  %1008 = vmatpush1.msra.mxu0 0.0
  %1009 = vmatprep.subr.mxu0 0.0
  %1010 = vmatpush1.msra.mxu0 0.0
  %1011 = vmatprep.subr.mxu0 0.0
  %1012 = vmatpush1.msra.mxu0 0.0
  %1013 = vmatprep.subr.mxu0 0.0
  %1014 = vmatpush1.msra.mxu0 0.0
  %1015 = vmatprep.subr.mxu0 0.0
  %1016 = vmatpush1.msra.mxu0 0.0
  %1017 = vmatprep.subr.mxu0 0.0
  %1018 = vmatpush1.msra.mxu0 0.0
  %1019 = vmatprep.subr.mxu0 0.0
  %1020 = vmatpush1.msra.mxu0 0.0
  %1021 = vmatprep.subr.mxu0 0.0
  %1022 = vmatpush1.msra.mxu0 0.0
  %1023 = vmatprep.subr.mxu0 0.0
  %1024 = vmatpush1.msra.mxu0 0.0
  %1025 = vmatprep.subr.mxu0 0.0
  %1026 = vmatpush1.msra.mxu0 0.0
  %1027 = vmatprep.subr.mxu0 0.0
  %1028 = vmatpush1.msra.mxu0 0.0
  %1029 = vmatprep.subr.mxu0 0.0
  %1030 = vmatpush1.msra.mxu0 0.0
  %1031 = vmatprep.subr.mxu0 0.0
  %1032 = vmatpush1.msra.mxu0 0.0
  %1033 = vmatprep.subr.mxu0 0.0
  %1034 = vmatpush1.msra.mxu0 0.0
  %1035 = vmatprep.subr.mxu0 0.0
  %1036 = vmatpush1.msra.mxu0 0.0
  %1037 = vmatprep.subr.mxu0 0.0
  %1038 = vmatpush1.msra.mxu0 0.0
  %1039 = vmatprep.subr.mxu0 0.0
  %1040 = vmatpush1.msra.mxu0 0.0
  %1041 = vmatprep.subr.mxu0 0.0
  %1042 = vmatpush1.msra.mxu0 0.0
  %1043 = vmatprep.subr.mxu0 0.0
  %1044 = vmatpush1.msra.mxu0 0.0
  %1045 = vmatprep.subr.mxu0 0.0
  %1046 = vmatpush1.msra.mxu0 0.0
  %1047 = vmatprep.subr.mxu0 0.0
  %1048 = vmatpush1.msra.mxu0 0.0
  %1049 = vmatprep.subr.mxu0 0.0
  %1050 = vmatpush1.msra.mxu0 0.0
  %1051 = vmatprep.subr.mxu0 0.0
  %1052 = vmatpush1.msra.mxu0 0.0
  %1053 = vmatprep.subr.mxu0 0.0
  %1054 = vmatpush1.msra.mxu0 0.0
  %1055 = vmatprep.subr.mxu0 0.0
  %1056 = vmatpush1.msra.mxu0 0.0
  %1057 = vmatprep.mubr.f32.mxu0 0.0
  %1058 = vmatmul.mubr.f32.gmra.mrb[0].mxu0 %v90
  %v1059 = vpop.f32.mrb[0].mxu0
  %v1060 = vadd.f32 0.0, %v1059
  %v1061 = vpop.f32.mrb[0].mxu0
  %v1062 = vadd.f32 0.0, %v1061
  %1063 = vmatprep.mubr.f32.mxu0 0.0
  %1064 = vmatmul.mubr.f32.gmra.mrb[0].mxu0 %v93
  %v1065 = vpop.f32.mrb[0].mxu0
  %v1066 = vadd.f32 0.0, %v1065
  %v1067 = vpop.f32.mrb[0].mxu0
  %v1068 = vadd.f32 0.0, %v1067
  %1069 = vmatprep.mubr.f32.mxu0 0.0
  %1070 = vmatmul.mubr.f32.gmra.mrb[0].mxu0 %v96
  %v1071 = vpop.f32.mrb[0].mxu0
  %v1072 = vadd.f32 0.0, %v1071
  %v1073 = vpop.f32.mrb[0].mxu0
  %v1074 = vadd.f32 0.0, %v1073
  %1075 = vmatprep.mubr.f32.mxu0 0.0
  %1076 = vmatmul.mubr.f32.gmra.mrb[0].mxu0 %v99
  %v1077 = vpop.f32.mrb[0].mxu0
  %v1078 = vadd.f32 0.0, %v1077
  %v1079 = vpop.f32.mrb[0].mxu0
  %v1080 = vadd.f32 0.0, %v1079
  %1081 = vmatprep.mubr.f32.mxu0 0.0
  %1082 = vmatmul.mubr.f32.gmra.mrb[0].mxu0 %v102
  %v1083 = vpop.f32.mrb[0].mxu0
  %v1084 = vadd.f32 0.0, %v1083
  %v1085 = vpop.f32.mrb[0].mxu0
  %v1086 = vadd.f32 0.0, %v1085
  %1087 = vmatprep.mubr.f32.mxu0 0.0
  %1088 = vmatmul.mubr.f32.gmra.mrb[0].mxu0 %v105
  %v1089 = vpop.f32.mrb[0].mxu0
  %v1090 = vadd.f32 0.0, %v1089
  %v1091 = vpop.f32.mrb[0].mxu0
  %v1092 = vadd.f32 0.0, %v1091
  %1093 = vmatprep.mubr.f32.mxu0 0.0
  %1094 = vmatmul.mubr.f32.gmra.mrb[0].mxu0 %v108
  %v1095 = vpop.f32.mrb[0].mxu0
  %v1096 = vadd.f32 0.0, %v1095
  %v1097 = vpop.f32.mrb[0].mxu0
  %v1098 = vadd.f32 0.0, %v1097
  %1099 = vmatprep.mubr.f32.mxu0 0.0
  %1100 = vmatmul.mubr.f32.gmra.mrb[0].mxu0 %v111
  %v1101 = vpop.f32.mrb[0].mxu0
  %v1102 = vadd.f32 0.0, %v1101
  %v1103 = vpop.f32.mrb[0].mxu0
  %v1104 = vadd.f32 0.0, %v1103
  %1105 = vmatprep.mubr.f32.mxu0 0.0
  %1106 = vmatmul.mubr.f32.gmra.mrb[0].mxu0 %v114
  %v1107 = vpop.f32.mrb[0].mxu0
  %v1108 = vadd.f32 0.0, %v1107
  %v1109 = vpop.f32.mrb[0].mxu0
  %v1110 = vadd.f32 0.0, %v1109
  %1111 = vmatprep.mubr.f32.mxu0 0.0
  %1112 = vmatmul.mubr.f32.gmra.mrb[0].mxu0 %v117
  %v1113 = vpop.f32.mrb[0].mxu0
  %v1114 = vadd.f32 0.0, %v1113
  %v1115 = vpop.f32.mrb[0].mxu0
  %v1116 = vadd.f32 0.0, %v1115
  %1117 = vmatprep.mubr.f32.mxu0 0.0
  %1118 = vmatmul.mubr.f32.gmra.mrb[0].mxu0 %v120
  %v1119 = vpop.f32.mrb[0].mxu0
  %v1120 = vadd.f32 0.0, %v1119
  %v1121 = vpop.f32.mrb[0].mxu0
  %v1122 = vadd.f32 0.0, %v1121
  %1123 = vmatprep.mubr.f32.mxu0 0.0
  %1124 = vmatmul.mubr.f32.gmra.mrb[0].mxu0 %v123
  %v1125 = vpop.f32.mrb[0].mxu0
  %v1126 = vadd.f32 0.0, %v1125
  %v1127 = vpop.f32.mrb[0].mxu0
  %v1128 = vadd.f32 0.0, %v1127
  %1129 = vmatprep.mubr.f32.mxu0 0.0
  %1130 = vmatmul.mubr.f32.gmra.mrb[0].mxu0 %v126
  %v1131 = vpop.f32.mrb[0].mxu0
  %v1132 = vadd.f32 0.0, %v1131
  %v1133 = vpop.f32.mrb[0].mxu0
  %v1134 = vadd.f32 0.0, %v1133
  %1135 = vmatprep.mubr.f32.mxu0 0.0
  %1136 = vmatmul.mubr.f32.gmra.mrb[0].mxu0 %v129
  %v1137 = vpop.f32.mrb[0].mxu0
  %v1138 = vadd.f32 0.0, %v1137
  %v1139 = vpop.f32.mrb[0].mxu0
  %v1140 = vadd.f32 0.0, %v1139
  %1141 = vmatprep.mubr.f32.mxu0 0.0
  %1142 = vmatmul.mubr.f32.gmra.mrb[0].mxu0 %v132
  %v1143 = vpop.f32.mrb[0].mxu0
  %v1144 = vadd.f32 0.0, %v1143
  %v1145 = vpop.f32.mrb[0].mxu0
  %v1146 = vadd.f32 0.0, %v1145
  %1147 = vmatprep.mubr.f32.mxu0 0.0
  %1148 = vmatmul.mubr.f32.gmra.mrb[0].mxu0 %v135
  %v1149 = vpop.f32.mrb[0].mxu0
  %v1150 = vadd.f32 0.0, %v1149
  %v1151 = vpop.f32.mrb[0].mxu0
  %v1152 = vadd.f32 0.0, %v1151
  %1153 = vmatprep.mubr.f32.mxu0 0.0
  %1154 = vmatmul.mubr.f32.gmra.mrb[0].mxu0 %v138
  %v1155 = vpop.f32.mrb[0].mxu0
  %v1156 = vadd.f32 0.0, %v1155
  %v1157 = vpop.f32.mrb[0].mxu0
  %v1158 = vadd.f32 0.0, %v1157
  %1159 = vmatprep.mubr.f32.mxu0 0.0
  %1160 = vmatmul.mubr.f32.gmra.mrb[0].mxu0 %v141
  %v1161 = vpop.f32.mrb[0].mxu0
  %v1162 = vadd.f32 0.0, %v1161
  %v1163 = vpop.f32.mrb[0].mxu0
  %v1164 = vadd.f32 0.0, %v1163
  %1165 = vmatprep.mubr.f32.mxu0 0.0
  %1166 = vmatmul.mubr.f32.gmra.mrb[0].mxu0 %v144
  %v1167 = vpop.f32.mrb[0].mxu0
  %v1168 = vadd.f32 0.0, %v1167
  %v1169 = vpop.f32.mrb[0].mxu0
  %v1170 = vadd.f32 0.0, %v1169
  %1171 = vmatprep.mubr.f32.mxu0 0.0
  %1172 = vmatmul.mubr.f32.gmra.mrb[0].mxu0 %v147
  %v1173 = vpop.f32.mrb[0].mxu0
  %v1174 = vadd.f32 0.0, %v1173
  %v1175 = vpop.f32.mrb[0].mxu0
  %v1176 = vadd.f32 0.0, %v1175
  %1177 = vmatprep.mubr.f32.mxu0 0.0
  %1178 = vmatmul.mubr.f32.gmra.mrb[0].mxu0 %v150
  %v1179 = vpop.f32.mrb[0].mxu0
  %v1180 = vadd.f32 0.0, %v1179
  %v1181 = vpop.f32.mrb[0].mxu0
  %v1182 = vadd.f32 0.0, %v1181
  %1183 = vmatprep.mubr.f32.mxu0 0.0
  %1184 = vmatmul.mubr.f32.gmra.mrb[0].mxu0 %v153
  %v1185 = vpop.f32.mrb[0].mxu0
  %v1186 = vadd.f32 0.0, %v1185
  %v1187 = vpop.f32.mrb[0].mxu0
  %v1188 = vadd.f32 0.0, %v1187
  %1189 = vmatprep.mubr.f32.mxu0 0.0
  %1190 = vmatmul.mubr.f32.gmra.mrb[0].mxu0 %v156
  %v1191 = vpop.f32.mrb[0].mxu0
  %v1192 = vadd.f32 0.0, %v1191
  %v1193 = vpop.f32.mrb[0].mxu0
  %v1194 = vadd.f32 0.0, %v1193
  %1195 = vmatprep.mubr.f32.mxu0 0.0
  %1196 = vmatmul.mubr.f32.gmra.mrb[0].mxu0 %v982
  %v1197 = vpop.f32.mrb[0].mxu0
  %v1198 = vadd.f32 0.0, %v1197
  %v1199 = vpop.f32.mrb[0].mxu0
  %v1200 = vadd.f32 0.0, %v1199
  %1201 = vdwg.mxu0
  %1202 = vmatprep.subr.mxu0 0.0
  %1203 = vmatpush1.msra.mxu0 %v971
  %1204 = vmatprep.subr.mxu0 0.0
  %1205 = vmatpush1.msra.mxu0 %v974
  %1206 = vmatprep.subr.mxu0 0.0
  %1207 = vmatpush1.msra.mxu0 %v977
  %1208 = vmatprep.subr.mxu0 0.0
  %1209 = vmatpush1.msra.mxu0 %v991
  %1210 = vmatprep.subr.mxu0 0.0
  %1211 = vmatpush1.msra.mxu0 0.0
  %1212 = vmatprep.subr.mxu0 0.0
  %1213 = vmatpush1.msra.mxu0 0.0
  %1214 = vmatprep.subr.mxu0 0.0
  %1215 = vmatpush1.msra.mxu0 0.0
  %1216 = vmatprep.subr.mxu0 0.0
  %1217 = vmatpush1.msra.mxu0 0.0
  %1218 = vmatprep.subr.mxu0 0.0
  %1219 = vmatpush1.msra.mxu0 0.0
  %1220 = vmatprep.subr.mxu0 0.0
  %1221 = vmatpush1.msra.mxu0 0.0
  %1222 = vmatprep.subr.mxu0 0.0
  %1223 = vmatpush1.msra.mxu0 0.0
  %1224 = vmatprep.subr.mxu0 0.0
  %1225 = vmatpush1.msra.mxu0 0.0
  %1226 = vmatprep.subr.mxu0 0.0
  %1227 = vmatpush1.msra.mxu0 0.0
  %1228 = vmatprep.subr.mxu0 0.0
  %1229 = vmatpush1.msra.mxu0 0.0
  %1230 = vmatprep.subr.mxu0 0.0
  %1231 = vmatpush1.msra.mxu0 0.0
  %1232 = vmatprep.subr.mxu0 0.0
  %1233 = vmatpush1.msra.mxu0 0.0
  %1234 = vmatprep.subr.mxu0 0.0
  %1235 = vmatpush1.msra.mxu0 0.0
  %1236 = vmatprep.subr.mxu0 0.0
  %1237 = vmatpush1.msra.mxu0 0.0
  %1238 = vmatprep.subr.mxu0 0.0
  %1239 = vmatpush1.msra.mxu0 0.0
  %1240 = vmatprep.subr.mxu0 0.0
  %1241 = vmatpush1.msra.mxu0 0.0
  %1242 = vmatprep.subr.mxu0 0.0
  %1243 = vmatpush1.msra.mxu0 0.0
  %1244 = vmatprep.subr.mxu0 0.0
  %1245 = vmatpush1.msra.mxu0 0.0
  %1246 = vmatprep.subr.mxu0 0.0
  %1247 = vmatpush1.msra.mxu0 0.0
  %1248 = vmatprep.subr.mxu0 0.0
  %1249 = vmatpush1.msra.mxu0 0.0
  %1250 = vmatprep.subr.mxu0 0.0
  %1251 = vmatpush1.msra.mxu0 0.0
  %1252 = vmatprep.subr.mxu0 0.0
  %1253 = vmatpush1.msra.mxu0 0.0
  %1254 = vmatprep.subr.mxu0 0.0
  %1255 = vmatpush1.msra.mxu0 0.0
  %1256 = vmatprep.subr.mxu0 0.0
  %1257 = vmatpush1.msra.mxu0 0.0
  %1258 = vmatprep.subr.mxu0 0.0
  %1259 = vmatpush1.msra.mxu0 0.0
  %1260 = vmatprep.subr.mxu0 0.0
  %1261 = vmatpush1.msra.mxu0 0.0
  %1262 = vmatprep.subr.mxu0 0.0
  %1263 = vmatpush1.msra.mxu0 0.0
  %1264 = vmatprep.subr.mxu0 0.0
  %1265 = vmatpush1.msra.mxu0 0.0
  %1266 = vmatprep.mubr.f32.mxu0 0.0
  %1267 = vmatmul.mubr.f32.gmra.mrb[0].mxu0 %v90
  %v1268 = vpop.f32.mrb[0].mxu0
  %v1269 = vadd.f32 0.0, %v1268
  %v1270 = vpop.f32.mrb[0].mxu0
  %1271 = vmatprep.mubr.f32.mxu0 0.0
  %1272 = vmatmul.mubr.f32.gmra.mrb[0].mxu0 %v93
  %v1273 = vpop.f32.mrb[0].mxu0
  %v1274 = vadd.f32 0.0, %v1273
  %v1275 = vpop.f32.mrb[0].mxu0
  %1276 = vmatprep.mubr.f32.mxu0 0.0
  %1277 = vmatmul.mubr.f32.gmra.mrb[0].mxu0 %v96
  %v1278 = vpop.f32.mrb[0].mxu0
  %v1279 = vadd.f32 0.0, %v1278
  %v1280 = vpop.f32.mrb[0].mxu0
  %1281 = vmatprep.mubr.f32.mxu0 0.0
  %1282 = vmatmul.mubr.f32.gmra.mrb[0].mxu0 %v99
  %v1283 = vpop.f32.mrb[0].mxu0
  %v1284 = vadd.f32 0.0, %v1283
  %v1285 = vpop.f32.mrb[0].mxu0
  %1286 = vmatprep.mubr.f32.mxu0 0.0
  %1287 = vmatmul.mubr.f32.gmra.mrb[0].mxu0 %v102
  %v1288 = vpop.f32.mrb[0].mxu0
  %v1289 = vadd.f32 0.0, %v1288
  %v1290 = vpop.f32.mrb[0].mxu0
  %1291 = vmatprep.mubr.f32.mxu0 0.0
  %1292 = vmatmul.mubr.f32.gmra.mrb[0].mxu0 %v105
  %v1293 = vpop.f32.mrb[0].mxu0
  %v1294 = vadd.f32 0.0, %v1293
  %v1295 = vpop.f32.mrb[0].mxu0
  %1296 = vmatprep.mubr.f32.mxu0 0.0
  %1297 = vmatmul.mubr.f32.gmra.mrb[0].mxu0 %v108
  %v1298 = vpop.f32.mrb[0].mxu0
  %v1299 = vadd.f32 0.0, %v1298
  %v1300 = vpop.f32.mrb[0].mxu0
  %1301 = vmatprep.mubr.f32.mxu0 0.0
  %1302 = vmatmul.mubr.f32.gmra.mrb[0].mxu0 %v111
  %v1303 = vpop.f32.mrb[0].mxu0
  %v1304 = vadd.f32 0.0, %v1303
  %v1305 = vpop.f32.mrb[0].mxu0
  %1306 = vmatprep.mubr.f32.mxu0 0.0
  %1307 = vmatmul.mubr.f32.gmra.mrb[0].mxu0 %v114
  %v1308 = vpop.f32.mrb[0].mxu0
  %v1309 = vadd.f32 0.0, %v1308
  %v1310 = vpop.f32.mrb[0].mxu0
  %1311 = vmatprep.mubr.f32.mxu0 0.0
  %1312 = vmatmul.mubr.f32.gmra.mrb[0].mxu0 %v117
  %v1313 = vpop.f32.mrb[0].mxu0
  %v1314 = vadd.f32 0.0, %v1313
  %v1315 = vpop.f32.mrb[0].mxu0
  %1316 = vmatprep.mubr.f32.mxu0 0.0
  %1317 = vmatmul.mubr.f32.gmra.mrb[0].mxu0 %v120
  %v1318 = vpop.f32.mrb[0].mxu0
  %v1319 = vadd.f32 0.0, %v1318
  %v1320 = vpop.f32.mrb[0].mxu0
  %1321 = vmatprep.mubr.f32.mxu0 0.0
  %1322 = vmatmul.mubr.f32.gmra.mrb[0].mxu0 %v123
  %v1323 = vpop.f32.mrb[0].mxu0
  %v1324 = vadd.f32 0.0, %v1323
  %v1325 = vpop.f32.mrb[0].mxu0
  %1326 = vmatprep.mubr.f32.mxu0 0.0
  %1327 = vmatmul.mubr.f32.gmra.mrb[0].mxu0 %v126
  %v1328 = vpop.f32.mrb[0].mxu0
  %v1329 = vadd.f32 0.0, %v1328
  %v1330 = vpop.f32.mrb[0].mxu0
  %1331 = vmatprep.mubr.f32.mxu0 0.0
  %1332 = vmatmul.mubr.f32.gmra.mrb[0].mxu0 %v129
  %v1333 = vpop.f32.mrb[0].mxu0
  %v1334 = vadd.f32 0.0, %v1333
  %v1335 = vpop.f32.mrb[0].mxu0
  %1336 = vmatprep.mubr.f32.mxu0 0.0
  %1337 = vmatmul.mubr.f32.gmra.mrb[0].mxu0 %v132
  %v1338 = vpop.f32.mrb[0].mxu0
  %v1339 = vadd.f32 0.0, %v1338
  %v1340 = vpop.f32.mrb[0].mxu0
  %1341 = vmatprep.mubr.f32.mxu0 0.0
  %1342 = vmatmul.mubr.f32.gmra.mrb[0].mxu0 %v135
  %v1343 = vpop.f32.mrb[0].mxu0
  %v1344 = vadd.f32 0.0, %v1343
  %v1345 = vpop.f32.mrb[0].mxu0
  %1346 = vmatprep.mubr.f32.mxu0 0.0
  %1347 = vmatmul.mubr.f32.gmra.mrb[0].mxu0 %v138
  %v1348 = vpop.f32.mrb[0].mxu0
  %v1349 = vadd.f32 0.0, %v1348
  %v1350 = vpop.f32.mrb[0].mxu0
  %1351 = vmatprep.mubr.f32.mxu0 0.0
  %1352 = vmatmul.mubr.f32.gmra.mrb[0].mxu0 %v141
  %v1353 = vpop.f32.mrb[0].mxu0
  %v1354 = vadd.f32 0.0, %v1353
  %v1355 = vpop.f32.mrb[0].mxu0
  %1356 = vmatprep.mubr.f32.mxu0 0.0
  %1357 = vmatmul.mubr.f32.gmra.mrb[0].mxu0 %v144
  %v1358 = vpop.f32.mrb[0].mxu0
  %v1359 = vadd.f32 0.0, %v1358
  %v1360 = vpop.f32.mrb[0].mxu0
  %1361 = vmatprep.mubr.f32.mxu0 0.0
  %1362 = vmatmul.mubr.f32.gmra.mrb[0].mxu0 %v147
  %v1363 = vpop.f32.mrb[0].mxu0
  %v1364 = vadd.f32 0.0, %v1363
  %v1365 = vpop.f32.mrb[0].mxu0
  %1366 = vmatprep.mubr.f32.mxu0 0.0
  %1367 = vmatmul.mubr.f32.gmra.mrb[0].mxu0 %v150
  %v1368 = vpop.f32.mrb[0].mxu0
  %v1369 = vadd.f32 0.0, %v1368
  %v1370 = vpop.f32.mrb[0].mxu0
  %1371 = vmatprep.mubr.f32.mxu0 0.0
  %1372 = vmatmul.mubr.f32.gmra.mrb[0].mxu0 %v153
  %v1373 = vpop.f32.mrb[0].mxu0
  %v1374 = vadd.f32 0.0, %v1373
  %v1375 = vpop.f32.mrb[0].mxu0
  %1376 = vmatprep.mubr.f32.mxu0 0.0
  %1377 = vmatmul.mubr.f32.gmra.mrb[0].mxu0 %v156
  %v1378 = vpop.f32.mrb[0].mxu0
  %v1379 = vadd.f32 0.0, %v1378
  %v1380 = vpop.f32.mrb[0].mxu0
  %1381 = vmatprep.mubr.f32.mxu0 0.0
  %1382 = vmatmul.mubr.f32.gmra.mrb[0].mxu0 %v982
  %v1383 = vpop.f32.mrb[0].mxu0
  %v1384 = vadd.f32 0.0, %v1383
  %v1385 = vpop.f32.mrb[0].mxu0
  %1386 = vdwg.mxu0
  %v1387 = vadd.f32 %v641, %v1060
  %v1388 = vadd.f32 %v643, %v1062
  %v1389 = vadd.f32 %v850, %v1269
  %v1390 = vadd.f32 %v647, %v1066
  %v1391 = vadd.f32 %v649, %v1068
  %v1392 = vadd.f32 %v855, %v1274
  %v1393 = vadd.f32 %v653, %v1072
  %v1394 = vadd.f32 %v655, %v1074
  %v1395 = vadd.f32 %v860, %v1279
  %v1396 = vadd.f32 %v659, %v1078
  %v1397 = vadd.f32 %v661, %v1080
  %v1398 = vadd.f32 %v865, %v1284
  %v1399 = vadd.f32 %v665, %v1084
  %v1400 = vadd.f32 %v667, %v1086
  %v1401 = vadd.f32 %v870, %v1289
  %v1402 = vadd.f32 %v671, %v1090
  %v1403 = vadd.f32 %v673, %v1092
  %v1404 = vadd.f32 %v875, %v1294
  %v1405 = vadd.f32 %v677, %v1096
  %v1406 = vadd.f32 %v679, %v1098
  %v1407 = vadd.f32 %v880, %v1299
  %v1408 = vadd.f32 %v683, %v1102
  %v1409 = vadd.f32 %v685, %v1104
  %v1410 = vadd.f32 %v885, %v1304
  %v1411 = vadd.f32 %v689, %v1108
  %v1412 = vadd.f32 %v691, %v1110
  %v1413 = vadd.f32 %v890, %v1309
  %v1414 = vadd.f32 %v695, %v1114
  %v1415 = vadd.f32 %v697, %v1116
  %v1416 = vadd.f32 %v895, %v1314
  %v1417 = vadd.f32 %v701, %v1120
  %v1418 = vadd.f32 %v703, %v1122
  %v1419 = vadd.f32 %v900, %v1319
  %v1420 = vadd.f32 %v707, %v1126
  %v1421 = vadd.f32 %v709, %v1128
  %v1422 = vadd.f32 %v905, %v1324
  %v1423 = vadd.f32 %v713, %v1132
  %v1424 = vadd.f32 %v715, %v1134
  %v1425 = vadd.f32 %v910, %v1329
  %v1426 = vadd.f32 %v719, %v1138
  %v1427 = vadd.f32 %v721, %v1140
  %v1428 = vadd.f32 %v915, %v1334
  %v1429 = vadd.f32 %v725, %v1144
  %v1430 = vadd.f32 %v727, %v1146
  %v1431 = vadd.f32 %v920, %v1339
  %v1432 = vadd.f32 %v731, %v1150
  %v1433 = vadd.f32 %v733, %v1152
  %v1434 = vadd.f32 %v925, %v1344
  %v1435 = vadd.f32 %v737, %v1156
  %v1436 = vadd.f32 %v739, %v1158
  %v1437 = vadd.f32 %v930, %v1349
  %v1438 = vadd.f32 %v743, %v1162
  %v1439 = vadd.f32 %v745, %v1164
  %v1440 = vadd.f32 %v935, %v1354
  %v1441 = vadd.f32 %v749, %v1168
  %v1442 = vadd.f32 %v751, %v1170
  %v1443 = vadd.f32 %v940, %v1359
  %v1444 = vadd.f32 %v755, %v1174
  %v1445 = vadd.f32 %v757, %v1176
  %v1446 = vadd.f32 %v945, %v1364
  %v1447 = vadd.f32 %v761, %v1180
  %v1448 = vadd.f32 %v763, %v1182
  %v1449 = vadd.f32 %v950, %v1369
  %v1450 = vadd.f32 %v767, %v1186
  %v1451 = vadd.f32 %v769, %v1188
  %v1452 = vadd.f32 %v955, %v1374
  %v1453 = vadd.f32 %v773, %v1192
  %v1454 = vadd.f32 %v775, %v1194
  %v1455 = vadd.f32 %v960, %v1379
  %v1456 = vadd.f32 %v779, %v1198
  %v1457 = vadd.f32 %v781, %v1200
  %v1458 = vadd.f32 %v965, %v1384
  %s1459 = scalar_lea.vmem %s1, 288
  %v1460 = vld [vmem:[%s1459] sm:$0xff]
  %v1461 = vld [vmem:[%s1459 + $0x8] sm:$0xff]
  %v1462 = vld [vmem:[%s1459 + $0x10] sm:$0xff]
  %v1463 = vld [vmem:[%s1459 + $0x18] sm:$0xff]
  %v1464 = vld [vmem:[%s1459 + $0x20] sm:$0xff]
  %v1465 = vld [vmem:[%s1459 + $0x28] sm:$0xff]
  %v1466 = vld [vmem:[%s1459 + $0x30] sm:$0xff]
  %v1467 = vld [vmem:[%s1459 + $0x38] sm:$0xff]
  %v1468 = vld [vmem:[%s1459 + $0x40] sm:$0xff]
  %v1469 = vld [vmem:[%s1459 + $0x48] sm:$0xf]
  %v1470 = vld [vmem:[%s1459 + $0x50] sm:$0xf]
  %v1471 = vld [vmem:[%s1459 + $0x58] sm:$0xf]
  %v1473 = vsel %vm85, %v58, 0
  %v1476 = vsel %vm158, %v1469, 0
  %v1479 = vsel %vm158, %v1470, 0
  %v1482 = vsel %vm158, %v1471, 0
  %1484 = vmatprep.subr.mxu0 %v1461
  %1485 = vmatpush1.msra.mxu0 %v1460
  %1486 = vmatprep.subr.mxu0 %v1464
  %1487 = vmatpush1.msra.mxu0 %v1463
  %1488 = vmatprep.subr.mxu0 %v1467
  %1489 = vmatpush1.msra.mxu0 %v1466
  %1490 = vmatprep.subr.mxu0 %v1479
  %1491 = vmatpush1.msra.mxu0 %v1476
  %1492 = vmatprep.subr.mxu0 0.0
  %1493 = vmatpush1.msra.mxu0 0.0
  %1494 = vmatprep.subr.mxu0 0.0
  %1495 = vmatpush1.msra.mxu0 0.0
  %1496 = vmatprep.subr.mxu0 0.0
  %1497 = vmatpush1.msra.mxu0 0.0
  %1498 = vmatprep.subr.mxu0 0.0
  %1499 = vmatpush1.msra.mxu0 0.0
  %1500 = vmatprep.subr.mxu0 0.0
  %1501 = vmatpush1.msra.mxu0 0.0
  %1502 = vmatprep.subr.mxu0 0.0
  %1503 = vmatpush1.msra.mxu0 0.0
  %1504 = vmatprep.subr.mxu0 0.0
  %1505 = vmatpush1.msra.mxu0 0.0
  %1506 = vmatprep.subr.mxu0 0.0
  %1507 = vmatpush1.msra.mxu0 0.0
  %1508 = vmatprep.subr.mxu0 0.0
  %1509 = vmatpush1.msra.mxu0 0.0
  %1510 = vmatprep.subr.mxu0 0.0
  %1511 = vmatpush1.msra.mxu0 0.0
  %1512 = vmatprep.subr.mxu0 0.0
  %1513 = vmatpush1.msra.mxu0 0.0
  %1514 = vmatprep.subr.mxu0 0.0
  %1515 = vmatpush1.msra.mxu0 0.0
  %1516 = vmatprep.subr.mxu0 0.0
  %1517 = vmatpush1.msra.mxu0 0.0
  %1518 = vmatprep.subr.mxu0 0.0
  %1519 = vmatpush1.msra.mxu0 0.0
  %1520 = vmatprep.subr.mxu0 0.0
  %1521 = vmatpush1.msra.mxu0 0.0
  %1522 = vmatprep.subr.mxu0 0.0
  %1523 = vmatpush1.msra.mxu0 0.0
  %1524 = vmatprep.subr.mxu0 0.0
  %1525 = vmatpush1.msra.mxu0 0.0
  %1526 = vmatprep.subr.mxu0 0.0
  %1527 = vmatpush1.msra.mxu0 0.0
  %1528 = vmatprep.subr.mxu0 0.0
  %1529 = vmatpush1.msra.mxu0 0.0
  %1530 = vmatprep.subr.mxu0 0.0
  %1531 = vmatpush1.msra.mxu0 0.0
  %1532 = vmatprep.subr.mxu0 0.0
  %1533 = vmatpush1.msra.mxu0 0.0
  %1534 = vmatprep.subr.mxu0 0.0
  %1535 = vmatpush1.msra.mxu0 0.0
  %1536 = vmatprep.subr.mxu0 0.0
  %1537 = vmatpush1.msra.mxu0 0.0
  %1538 = vmatprep.subr.mxu0 0.0
  %1539 = vmatpush1.msra.mxu0 0.0
  %1540 = vmatprep.subr.mxu0 0.0
  %1541 = vmatpush1.msra.mxu0 0.0
  %1542 = vmatprep.subr.mxu0 0.0
  %1543 = vmatpush1.msra.mxu0 0.0
  %1544 = vmatprep.subr.mxu0 0.0
  %1545 = vmatpush1.msra.mxu0 0.0
  %1546 = vmatprep.subr.mxu0 0.0
  %1547 = vmatpush1.msra.mxu0 0.0
  %1548 = vmatprep.mubr.f32.mxu0 0.0
  %1549 = vmatmul.mubr.f32.gmra.mrb[0].mxu0 %v93
  %v1550 = vpop.f32.mrb[0].mxu0
  %v1551 = vadd.f32 0.0, %v1550
  %v1552 = vpop.f32.mrb[0].mxu0
  %v1553 = vadd.f32 0.0, %v1552
  %1554 = vmatprep.mubr.f32.mxu0 0.0
  %1555 = vmatmul.mubr.f32.gmra.mrb[0].mxu0 %v96
  %v1556 = vpop.f32.mrb[0].mxu0
  %v1557 = vadd.f32 0.0, %v1556
  %v1558 = vpop.f32.mrb[0].mxu0
  %v1559 = vadd.f32 0.0, %v1558
  %1560 = vmatprep.mubr.f32.mxu0 0.0
  %1561 = vmatmul.mubr.f32.gmra.mrb[0].mxu0 %v99
  %v1562 = vpop.f32.mrb[0].mxu0
  %v1563 = vadd.f32 0.0, %v1562
  %v1564 = vpop.f32.mrb[0].mxu0
  %v1565 = vadd.f32 0.0, %v1564
  %1566 = vmatprep.mubr.f32.mxu0 0.0
  %1567 = vmatmul.mubr.f32.gmra.mrb[0].mxu0 %v102
  %v1568 = vpop.f32.mrb[0].mxu0
  %v1569 = vadd.f32 0.0, %v1568
  %v1570 = vpop.f32.mrb[0].mxu0
  %v1571 = vadd.f32 0.0, %v1570
  %1572 = vmatprep.mubr.f32.mxu0 0.0
  %1573 = vmatmul.mubr.f32.gmra.mrb[0].mxu0 %v105
  %v1574 = vpop.f32.mrb[0].mxu0
  %v1575 = vadd.f32 0.0, %v1574
  %v1576 = vpop.f32.mrb[0].mxu0
  %v1577 = vadd.f32 0.0, %v1576
  %1578 = vmatprep.mubr.f32.mxu0 0.0
  %1579 = vmatmul.mubr.f32.gmra.mrb[0].mxu0 %v108
  %v1580 = vpop.f32.mrb[0].mxu0
  %v1581 = vadd.f32 0.0, %v1580
  %v1582 = vpop.f32.mrb[0].mxu0
  %v1583 = vadd.f32 0.0, %v1582
  %1584 = vmatprep.mubr.f32.mxu0 0.0
  %1585 = vmatmul.mubr.f32.gmra.mrb[0].mxu0 %v111
  %v1586 = vpop.f32.mrb[0].mxu0
  %v1587 = vadd.f32 0.0, %v1586
  %v1588 = vpop.f32.mrb[0].mxu0
  %v1589 = vadd.f32 0.0, %v1588
  %1590 = vmatprep.mubr.f32.mxu0 0.0
  %1591 = vmatmul.mubr.f32.gmra.mrb[0].mxu0 %v114
  %v1592 = vpop.f32.mrb[0].mxu0
  %v1593 = vadd.f32 0.0, %v1592
  %v1594 = vpop.f32.mrb[0].mxu0
  %v1595 = vadd.f32 0.0, %v1594
  %1596 = vmatprep.mubr.f32.mxu0 0.0
  %1597 = vmatmul.mubr.f32.gmra.mrb[0].mxu0 %v117
  %v1598 = vpop.f32.mrb[0].mxu0
  %v1599 = vadd.f32 0.0, %v1598
  %v1600 = vpop.f32.mrb[0].mxu0
  %v1601 = vadd.f32 0.0, %v1600
  %1602 = vmatprep.mubr.f32.mxu0 0.0
  %1603 = vmatmul.mubr.f32.gmra.mrb[0].mxu0 %v120
  %v1604 = vpop.f32.mrb[0].mxu0
  %v1605 = vadd.f32 0.0, %v1604
  %v1606 = vpop.f32.mrb[0].mxu0
  %v1607 = vadd.f32 0.0, %v1606
  %1608 = vmatprep.mubr.f32.mxu0 0.0
  %1609 = vmatmul.mubr.f32.gmra.mrb[0].mxu0 %v123
  %v1610 = vpop.f32.mrb[0].mxu0
  %v1611 = vadd.f32 0.0, %v1610
  %v1612 = vpop.f32.mrb[0].mxu0
  %v1613 = vadd.f32 0.0, %v1612
  %1614 = vmatprep.mubr.f32.mxu0 0.0
  %1615 = vmatmul.mubr.f32.gmra.mrb[0].mxu0 %v126
  %v1616 = vpop.f32.mrb[0].mxu0
  %v1617 = vadd.f32 0.0, %v1616
  %v1618 = vpop.f32.mrb[0].mxu0
  %v1619 = vadd.f32 0.0, %v1618
  %1620 = vmatprep.mubr.f32.mxu0 0.0
  %1621 = vmatmul.mubr.f32.gmra.mrb[0].mxu0 %v129
  %v1622 = vpop.f32.mrb[0].mxu0
  %v1623 = vadd.f32 0.0, %v1622
  %v1624 = vpop.f32.mrb[0].mxu0
  %v1625 = vadd.f32 0.0, %v1624
  %1626 = vmatprep.mubr.f32.mxu0 0.0
  %1627 = vmatmul.mubr.f32.gmra.mrb[0].mxu0 %v132
  %v1628 = vpop.f32.mrb[0].mxu0
  %v1629 = vadd.f32 0.0, %v1628
  %v1630 = vpop.f32.mrb[0].mxu0
  %v1631 = vadd.f32 0.0, %v1630
  %1632 = vmatprep.mubr.f32.mxu0 0.0
  %1633 = vmatmul.mubr.f32.gmra.mrb[0].mxu0 %v135
  %v1634 = vpop.f32.mrb[0].mxu0
  %v1635 = vadd.f32 0.0, %v1634
  %v1636 = vpop.f32.mrb[0].mxu0
  %v1637 = vadd.f32 0.0, %v1636
  %1638 = vmatprep.mubr.f32.mxu0 0.0
  %1639 = vmatmul.mubr.f32.gmra.mrb[0].mxu0 %v138
  %v1640 = vpop.f32.mrb[0].mxu0
  %v1641 = vadd.f32 0.0, %v1640
  %v1642 = vpop.f32.mrb[0].mxu0
  %v1643 = vadd.f32 0.0, %v1642
  %1644 = vmatprep.mubr.f32.mxu0 0.0
  %1645 = vmatmul.mubr.f32.gmra.mrb[0].mxu0 %v141
  %v1646 = vpop.f32.mrb[0].mxu0
  %v1647 = vadd.f32 0.0, %v1646
  %v1648 = vpop.f32.mrb[0].mxu0
  %v1649 = vadd.f32 0.0, %v1648
  %1650 = vmatprep.mubr.f32.mxu0 0.0
  %1651 = vmatmul.mubr.f32.gmra.mrb[0].mxu0 %v144
  %v1652 = vpop.f32.mrb[0].mxu0
  %v1653 = vadd.f32 0.0, %v1652
  %v1654 = vpop.f32.mrb[0].mxu0
  %v1655 = vadd.f32 0.0, %v1654
  %1656 = vmatprep.mubr.f32.mxu0 0.0
  %1657 = vmatmul.mubr.f32.gmra.mrb[0].mxu0 %v147
  %v1658 = vpop.f32.mrb[0].mxu0
  %v1659 = vadd.f32 0.0, %v1658
  %v1660 = vpop.f32.mrb[0].mxu0
  %v1661 = vadd.f32 0.0, %v1660
  %1662 = vmatprep.mubr.f32.mxu0 0.0
  %1663 = vmatmul.mubr.f32.gmra.mrb[0].mxu0 %v150
  %v1664 = vpop.f32.mrb[0].mxu0
  %v1665 = vadd.f32 0.0, %v1664
  %v1666 = vpop.f32.mrb[0].mxu0
  %v1667 = vadd.f32 0.0, %v1666
  %1668 = vmatprep.mubr.f32.mxu0 0.0
  %1669 = vmatmul.mubr.f32.gmra.mrb[0].mxu0 %v153
  %v1670 = vpop.f32.mrb[0].mxu0
  %v1671 = vadd.f32 0.0, %v1670
  %v1672 = vpop.f32.mrb[0].mxu0
  %v1673 = vadd.f32 0.0, %v1672
  %1674 = vmatprep.mubr.f32.mxu0 0.0
  %1675 = vmatmul.mubr.f32.gmra.mrb[0].mxu0 %v156
  %v1676 = vpop.f32.mrb[0].mxu0
  %v1677 = vadd.f32 0.0, %v1676
  %v1678 = vpop.f32.mrb[0].mxu0
  %v1679 = vadd.f32 0.0, %v1678
  %1680 = vmatprep.mubr.f32.mxu0 0.0
  %1681 = vmatmul.mubr.f32.gmra.mrb[0].mxu0 %v982
  %v1682 = vpop.f32.mrb[0].mxu0
  %v1683 = vadd.f32 0.0, %v1682
  %v1684 = vpop.f32.mrb[0].mxu0
  %v1685 = vadd.f32 0.0, %v1684
  %1686 = vmatprep.mubr.f32.mxu0 0.0
  %1687 = vmatmul.mubr.f32.gmra.mrb[0].mxu0 %v1473
  %v1688 = vpop.f32.mrb[0].mxu0
  %v1689 = vadd.f32 0.0, %v1688
  %v1690 = vpop.f32.mrb[0].mxu0
  %v1691 = vadd.f32 0.0, %v1690
  %1692 = vdwg.mxu0
  %1693 = vmatprep.subr.mxu0 0.0
  %1694 = vmatpush1.msra.mxu0 %v1462
  %1695 = vmatprep.subr.mxu0 0.0
  %1696 = vmatpush1.msra.mxu0 %v1465
  %1697 = vmatprep.subr.mxu0 0.0
  %1698 = vmatpush1.msra.mxu0 %v1468
  %1699 = vmatprep.subr.mxu0 0.0
  %1700 = vmatpush1.msra.mxu0 %v1482
  %1701 = vmatprep.subr.mxu0 0.0
  %1702 = vmatpush1.msra.mxu0 0.0
  %1703 = vmatprep.subr.mxu0 0.0
  %1704 = vmatpush1.msra.mxu0 0.0
  %1705 = vmatprep.subr.mxu0 0.0
  %1706 = vmatpush1.msra.mxu0 0.0
  %1707 = vmatprep.subr.mxu0 0.0
  %1708 = vmatpush1.msra.mxu0 0.0
  %1709 = vmatprep.subr.mxu0 0.0
  %1710 = vmatpush1.msra.mxu0 0.0
  %1711 = vmatprep.subr.mxu0 0.0
  %1712 = vmatpush1.msra.mxu0 0.0
  %1713 = vmatprep.subr.mxu0 0.0
  %1714 = vmatpush1.msra.mxu0 0.0
  %1715 = vmatprep.subr.mxu0 0.0
  %1716 = vmatpush1.msra.mxu0 0.0
  %1717 = vmatprep.subr.mxu0 0.0
  %1718 = vmatpush1.msra.mxu0 0.0
  %1719 = vmatprep.subr.mxu0 0.0
  %1720 = vmatpush1.msra.mxu0 0.0
  %1721 = vmatprep.subr.mxu0 0.0
  %1722 = vmatpush1.msra.mxu0 0.0
  %1723 = vmatprep.subr.mxu0 0.0
  %1724 = vmatpush1.msra.mxu0 0.0
  %1725 = vmatprep.subr.mxu0 0.0
  %1726 = vmatpush1.msra.mxu0 0.0
  %1727 = vmatprep.subr.mxu0 0.0
  %1728 = vmatpush1.msra.mxu0 0.0
  %1729 = vmatprep.subr.mxu0 0.0
  %1730 = vmatpush1.msra.mxu0 0.0
  %1731 = vmatprep.subr.mxu0 0.0
  %1732 = vmatpush1.msra.mxu0 0.0
  %1733 = vmatprep.subr.mxu0 0.0
  %1734 = vmatpush1.msra.mxu0 0.0
  %1735 = vmatprep.subr.mxu0 0.0
  %1736 = vmatpush1.msra.mxu0 0.0
  %1737 = vmatprep.subr.mxu0 0.0
  %1738 = vmatpush1.msra.mxu0 0.0
  %1739 = vmatprep.subr.mxu0 0.0
  %1740 = vmatpush1.msra.mxu0 0.0
  %1741 = vmatprep.subr.mxu0 0.0
  %1742 = vmatpush1.msra.mxu0 0.0
  %1743 = vmatprep.subr.mxu0 0.0
  %1744 = vmatpush1.msra.mxu0 0.0
  %1745 = vmatprep.subr.mxu0 0.0
  %1746 = vmatpush1.msra.mxu0 0.0
  %1747 = vmatprep.subr.mxu0 0.0
  %1748 = vmatpush1.msra.mxu0 0.0
  %1749 = vmatprep.subr.mxu0 0.0
  %1750 = vmatpush1.msra.mxu0 0.0
  %1751 = vmatprep.subr.mxu0 0.0
  %1752 = vmatpush1.msra.mxu0 0.0
  %1753 = vmatprep.subr.mxu0 0.0
  %1754 = vmatpush1.msra.mxu0 0.0
  %1755 = vmatprep.subr.mxu0 0.0
  %1756 = vmatpush1.msra.mxu0 0.0
  %1757 = vmatprep.mubr.f32.mxu0 0.0
  %1758 = vmatmul.mubr.f32.gmra.mrb[0].mxu0 %v93
  %v1759 = vpop.f32.mrb[0].mxu0
  %v1760 = vadd.f32 0.0, %v1759
  %v1761 = vpop.f32.mrb[0].mxu0
  %1762 = vmatprep.mubr.f32.mxu0 0.0
  %1763 = vmatmul.mubr.f32.gmra.mrb[0].mxu0 %v96
  %v1764 = vpop.f32.mrb[0].mxu0
  %v1765 = vadd.f32 0.0, %v1764
  %v1766 = vpop.f32.mrb[0].mxu0
  %1767 = vmatprep.mubr.f32.mxu0 0.0
  %1768 = vmatmul.mubr.f32.gmra.mrb[0].mxu0 %v99
  %v1769 = vpop.f32.mrb[0].mxu0
  %v1770 = vadd.f32 0.0, %v1769
  %v1771 = vpop.f32.mrb[0].mxu0
  %1772 = vmatprep.mubr.f32.mxu0 0.0
  %1773 = vmatmul.mubr.f32.gmra.mrb[0].mxu0 %v102
  %v1774 = vpop.f32.mrb[0].mxu0
  %v1775 = vadd.f32 0.0, %v1774
  %v1776 = vpop.f32.mrb[0].mxu0
  %1777 = vmatprep.mubr.f32.mxu0 0.0
  %1778 = vmatmul.mubr.f32.gmra.mrb[0].mxu0 %v105
  %v1779 = vpop.f32.mrb[0].mxu0
  %v1780 = vadd.f32 0.0, %v1779
  %v1781 = vpop.f32.mrb[0].mxu0
  %1782 = vmatprep.mubr.f32.mxu0 0.0
  %1783 = vmatmul.mubr.f32.gmra.mrb[0].mxu0 %v108
  %v1784 = vpop.f32.mrb[0].mxu0
  %v1785 = vadd.f32 0.0, %v1784
  %v1786 = vpop.f32.mrb[0].mxu0
  %1787 = vmatprep.mubr.f32.mxu0 0.0
  %1788 = vmatmul.mubr.f32.gmra.mrb[0].mxu0 %v111
  %v1789 = vpop.f32.mrb[0].mxu0
  %v1790 = vadd.f32 0.0, %v1789
  %v1791 = vpop.f32.mrb[0].mxu0
  %1792 = vmatprep.mubr.f32.mxu0 0.0
  %1793 = vmatmul.mubr.f32.gmra.mrb[0].mxu0 %v114
  %v1794 = vpop.f32.mrb[0].mxu0
  %v1795 = vadd.f32 0.0, %v1794
  %v1796 = vpop.f32.mrb[0].mxu0
  %1797 = vmatprep.mubr.f32.mxu0 0.0
  %1798 = vmatmul.mubr.f32.gmra.mrb[0].mxu0 %v117
  %v1799 = vpop.f32.mrb[0].mxu0
  %v1800 = vadd.f32 0.0, %v1799
  %v1801 = vpop.f32.mrb[0].mxu0
  %1802 = vmatprep.mubr.f32.mxu0 0.0
  %1803 = vmatmul.mubr.f32.gmra.mrb[0].mxu0 %v120
  %v1804 = vpop.f32.mrb[0].mxu0
  %v1805 = vadd.f32 0.0, %v1804
  %v1806 = vpop.f32.mrb[0].mxu0
  %1807 = vmatprep.mubr.f32.mxu0 0.0
  %1808 = vmatmul.mubr.f32.gmra.mrb[0].mxu0 %v123
  %v1809 = vpop.f32.mrb[0].mxu0
  %v1810 = vadd.f32 0.0, %v1809
  %v1811 = vpop.f32.mrb[0].mxu0
  %1812 = vmatprep.mubr.f32.mxu0 0.0
  %1813 = vmatmul.mubr.f32.gmra.mrb[0].mxu0 %v126
  %v1814 = vpop.f32.mrb[0].mxu0
  %v1815 = vadd.f32 0.0, %v1814
  %v1816 = vpop.f32.mrb[0].mxu0
  %1817 = vmatprep.mubr.f32.mxu0 0.0
  %1818 = vmatmul.mubr.f32.gmra.mrb[0].mxu0 %v129
  %v1819 = vpop.f32.mrb[0].mxu0
  %v1820 = vadd.f32 0.0, %v1819
  %v1821 = vpop.f32.mrb[0].mxu0
  %1822 = vmatprep.mubr.f32.mxu0 0.0
  %1823 = vmatmul.mubr.f32.gmra.mrb[0].mxu0 %v132
  %v1824 = vpop.f32.mrb[0].mxu0
  %v1825 = vadd.f32 0.0, %v1824
  %v1826 = vpop.f32.mrb[0].mxu0
  %1827 = vmatprep.mubr.f32.mxu0 0.0
  %1828 = vmatmul.mubr.f32.gmra.mrb[0].mxu0 %v135
  %v1829 = vpop.f32.mrb[0].mxu0
  %v1830 = vadd.f32 0.0, %v1829
  %v1831 = vpop.f32.mrb[0].mxu0
  %1832 = vmatprep.mubr.f32.mxu0 0.0
  %1833 = vmatmul.mubr.f32.gmra.mrb[0].mxu0 %v138
  %v1834 = vpop.f32.mrb[0].mxu0
  %v1835 = vadd.f32 0.0, %v1834
  %v1836 = vpop.f32.mrb[0].mxu0
  %1837 = vmatprep.mubr.f32.mxu0 0.0
  %1838 = vmatmul.mubr.f32.gmra.mrb[0].mxu0 %v141
  %v1839 = vpop.f32.mrb[0].mxu0
  %v1840 = vadd.f32 0.0, %v1839
  %v1841 = vpop.f32.mrb[0].mxu0
  %1842 = vmatprep.mubr.f32.mxu0 0.0
  %1843 = vmatmul.mubr.f32.gmra.mrb[0].mxu0 %v144
  %v1844 = vpop.f32.mrb[0].mxu0
  %v1845 = vadd.f32 0.0, %v1844
  %v1846 = vpop.f32.mrb[0].mxu0
  %1847 = vmatprep.mubr.f32.mxu0 0.0
  %1848 = vmatmul.mubr.f32.gmra.mrb[0].mxu0 %v147
  %v1849 = vpop.f32.mrb[0].mxu0
  %v1850 = vadd.f32 0.0, %v1849
  %v1851 = vpop.f32.mrb[0].mxu0
  %1852 = vmatprep.mubr.f32.mxu0 0.0
  %1853 = vmatmul.mubr.f32.gmra.mrb[0].mxu0 %v150
  %v1854 = vpop.f32.mrb[0].mxu0
  %v1855 = vadd.f32 0.0, %v1854
  %v1856 = vpop.f32.mrb[0].mxu0
  %1857 = vmatprep.mubr.f32.mxu0 0.0
  %1858 = vmatmul.mubr.f32.gmra.mrb[0].mxu0 %v153
  %v1859 = vpop.f32.mrb[0].mxu0
  %v1860 = vadd.f32 0.0, %v1859
  %v1861 = vpop.f32.mrb[0].mxu0
  %1862 = vmatprep.mubr.f32.mxu0 0.0
  %1863 = vmatmul.mubr.f32.gmra.mrb[0].mxu0 %v156
  %v1864 = vpop.f32.mrb[0].mxu0
  %v1865 = vadd.f32 0.0, %v1864
  %v1866 = vpop.f32.mrb[0].mxu0
  %1867 = vmatprep.mubr.f32.mxu0 0.0
  %1868 = vmatmul.mubr.f32.gmra.mrb[0].mxu0 %v982
  %v1869 = vpop.f32.mrb[0].mxu0
  %v1870 = vadd.f32 0.0, %v1869
  %v1871 = vpop.f32.mrb[0].mxu0
  %1872 = vmatprep.mubr.f32.mxu0 0.0
  %1873 = vmatmul.mubr.f32.gmra.mrb[0].mxu0 %v1473
  %v1874 = vpop.f32.mrb[0].mxu0
  %v1875 = vadd.f32 0.0, %v1874
  %v1876 = vpop.f32.mrb[0].mxu0
  %1877 = vdwg.mxu0
  %v1878 = vadd.f32 %v1387, %v1551
  %v1879 = vadd.f32 %v1388, %v1553
  %v1880 = vadd.f32 %v1389, %v1760
  %v1881 = vadd.f32 %v1390, %v1557
  %v1882 = vadd.f32 %v1391, %v1559
  %v1883 = vadd.f32 %v1392, %v1765
  %v1884 = vadd.f32 %v1393, %v1563
  %v1885 = vadd.f32 %v1394, %v1565
  %v1886 = vadd.f32 %v1395, %v1770
  %v1887 = vadd.f32 %v1396, %v1569
  %v1888 = vadd.f32 %v1397, %v1571
  %v1889 = vadd.f32 %v1398, %v1775
  %v1890 = vadd.f32 %v1399, %v1575
  %v1891 = vadd.f32 %v1400, %v1577
  %v1892 = vadd.f32 %v1401, %v1780
  %v1893 = vadd.f32 %v1402, %v1581
  %v1894 = vadd.f32 %v1403, %v1583
  %v1895 = vadd.f32 %v1404, %v1785
  %v1896 = vadd.f32 %v1405, %v1587
  %v1897 = vadd.f32 %v1406, %v1589
  %v1898 = vadd.f32 %v1407, %v1790
  %v1899 = vadd.f32 %v1408, %v1593
  %v1900 = vadd.f32 %v1409, %v1595
  %v1901 = vadd.f32 %v1410, %v1795
  %v1902 = vadd.f32 %v1411, %v1599
  %v1903 = vadd.f32 %v1412, %v1601
  %v1904 = vadd.f32 %v1413, %v1800
  %v1905 = vadd.f32 %v1414, %v1605
  %v1906 = vadd.f32 %v1415, %v1607
  %v1907 = vadd.f32 %v1416, %v1805
  %v1908 = vadd.f32 %v1417, %v1611
  %v1909 = vadd.f32 %v1418, %v1613
  %v1910 = vadd.f32 %v1419, %v1810
  %v1911 = vadd.f32 %v1420, %v1617
  %v1912 = vadd.f32 %v1421, %v1619
  %v1913 = vadd.f32 %v1422, %v1815
  %v1914 = vadd.f32 %v1423, %v1623
  %v1915 = vadd.f32 %v1424, %v1625
  %v1916 = vadd.f32 %v1425, %v1820
  %v1917 = vadd.f32 %v1426, %v1629
  %v1918 = vadd.f32 %v1427, %v1631
  %v1919 = vadd.f32 %v1428, %v1825
  %v1920 = vadd.f32 %v1429, %v1635
  %v1921 = vadd.f32 %v1430, %v1637
  %v1922 = vadd.f32 %v1431, %v1830
  %v1923 = vadd.f32 %v1432, %v1641
  %v1924 = vadd.f32 %v1433, %v1643
  %v1925 = vadd.f32 %v1434, %v1835
  %v1926 = vadd.f32 %v1435, %v1647
  %v1927 = vadd.f32 %v1436, %v1649
  %v1928 = vadd.f32 %v1437, %v1840
  %v1929 = vadd.f32 %v1438, %v1653
  %v1930 = vadd.f32 %v1439, %v1655
  %v1931 = vadd.f32 %v1440, %v1845
  %v1932 = vadd.f32 %v1441, %v1659
  %v1933 = vadd.f32 %v1442, %v1661
  %v1934 = vadd.f32 %v1443, %v1850
  %v1935 = vadd.f32 %v1444, %v1665
  %v1936 = vadd.f32 %v1445, %v1667
  %v1937 = vadd.f32 %v1446, %v1855
  %v1938 = vadd.f32 %v1447, %v1671
  %v1939 = vadd.f32 %v1448, %v1673
  %v1940 = vadd.f32 %v1449, %v1860
  %v1941 = vadd.f32 %v1450, %v1677
  %v1942 = vadd.f32 %v1451, %v1679
  %v1943 = vadd.f32 %v1452, %v1865
  %v1944 = vadd.f32 %v1453, %v1683
  %v1945 = vadd.f32 %v1454, %v1685
  %v1946 = vadd.f32 %v1455, %v1870
  %v1947 = vadd.f32 %v1456, %v1689
  %v1948 = vadd.f32 %v1457, %v1691
  %v1949 = vadd.f32 %v1458, %v1875
  %s1950 = scalar_lea.vmem %s1, 384
  %v1951 = vld [vmem:[%s1950] sm:$0xff]
  %v1952 = vld [vmem:[%s1950 + $0x8] sm:$0xff]
  %v1953 = vld [vmem:[%s1950 + $0x10] sm:$0xff]
  %v1954 = vld [vmem:[%s1950 + $0x18] sm:$0xff]
  %v1955 = vld [vmem:[%s1950 + $0x20] sm:$0xff]
  %v1956 = vld [vmem:[%s1950 + $0x28] sm:$0xff]
  %v1957 = vld [vmem:[%s1950 + $0x30] sm:$0xff]
  %v1958 = vld [vmem:[%s1950 + $0x38] sm:$0xff]
  %v1959 = vld [vmem:[%s1950 + $0x40] sm:$0xff]
  %v1960 = vld [vmem:[%s1950 + $0x48] sm:$0xf]
  %v1961 = vld [vmem:[%s1950 + $0x50] sm:$0xf]
  %v1962 = vld [vmem:[%s1950 + $0x58] sm:$0xf]
  %v1964 = vsel %vm85, %v59, 0
  %v1967 = vsel %vm158, %v1960, 0
  %v1970 = vsel %vm158, %v1961, 0
  %v1973 = vsel %vm158, %v1962, 0
  %1975 = vmatprep.subr.mxu0 %v1952
  %1976 = vmatpush1.msra.mxu0 %v1951
  %1977 = vmatprep.subr.mxu0 %v1955
  %1978 = vmatpush1.msra.mxu0 %v1954
  %1979 = vmatprep.subr.mxu0 %v1958
  %1980 = vmatpush1.msra.mxu0 %v1957
  %1981 = vmatprep.subr.mxu0 %v1970
  %1982 = vmatpush1.msra.mxu0 %v1967
  %1983 = vmatprep.subr.mxu0 0.0
  %1984 = vmatpush1.msra.mxu0 0.0
  %1985 = vmatprep.subr.mxu0 0.0
  %1986 = vmatpush1.msra.mxu0 0.0
  %1987 = vmatprep.subr.mxu0 0.0
  %1988 = vmatpush1.msra.mxu0 0.0
  %1989 = vmatprep.subr.mxu0 0.0
  %1990 = vmatpush1.msra.mxu0 0.0
  %1991 = vmatprep.subr.mxu0 0.0
  %1992 = vmatpush1.msra.mxu0 0.0
  %1993 = vmatprep.subr.mxu0 0.0
  %1994 = vmatpush1.msra.mxu0 0.0
  %1995 = vmatprep.subr.mxu0 0.0
  %1996 = vmatpush1.msra.mxu0 0.0
  %1997 = vmatprep.subr.mxu0 0.0
  %1998 = vmatpush1.msra.mxu0 0.0
  %1999 = vmatprep.subr.mxu0 0.0
  %2000 = vmatpush1.msra.mxu0 0.0
  %2001 = vmatprep.subr.mxu0 0.0
  %2002 = vmatpush1.msra.mxu0 0.0
  %2003 = vmatprep.subr.mxu0 0.0
  %2004 = vmatpush1.msra.mxu0 0.0
  %2005 = vmatprep.subr.mxu0 0.0
  %2006 = vmatpush1.msra.mxu0 0.0
  %2007 = vmatprep.subr.mxu0 0.0
  %2008 = vmatpush1.msra.mxu0 0.0
  %2009 = vmatprep.subr.mxu0 0.0
  %2010 = vmatpush1.msra.mxu0 0.0
  %2011 = vmatprep.subr.mxu0 0.0
  %2012 = vmatpush1.msra.mxu0 0.0
  %2013 = vmatprep.subr.mxu0 0.0
  %2014 = vmatpush1.msra.mxu0 0.0
  %2015 = vmatprep.subr.mxu0 0.0
  %2016 = vmatpush1.msra.mxu0 0.0
  %2017 = vmatprep.subr.mxu0 0.0
  %2018 = vmatpush1.msra.mxu0 0.0
  %2019 = vmatprep.subr.mxu0 0.0
  %2020 = vmatpush1.msra.mxu0 0.0
  %2021 = vmatprep.subr.mxu0 0.0
  %2022 = vmatpush1.msra.mxu0 0.0
  %2023 = vmatprep.subr.mxu0 0.0
  %2024 = vmatpush1.msra.mxu0 0.0
  %2025 = vmatprep.subr.mxu0 0.0
  %2026 = vmatpush1.msra.mxu0 0.0
  %2027 = vmatprep.subr.mxu0 0.0
  %2028 = vmatpush1.msra.mxu0 0.0
  %2029 = vmatprep.subr.mxu0 0.0
  %2030 = vmatpush1.msra.mxu0 0.0
  %2031 = vmatprep.subr.mxu0 0.0
  %2032 = vmatpush1.msra.mxu0 0.0
  %2033 = vmatprep.subr.mxu0 0.0
  %2034 = vmatpush1.msra.mxu0 0.0
  %2035 = vmatprep.subr.mxu0 0.0
  %2036 = vmatpush1.msra.mxu0 0.0
  %2037 = vmatprep.subr.mxu0 0.0
  %2038 = vmatpush1.msra.mxu0 0.0
  %2039 = vmatprep.mubr.f32.mxu0 0.0
  %2040 = vmatmul.mubr.f32.gmra.mrb[0].mxu0 %v96
  %v2041 = vpop.f32.mrb[0].mxu0
  %v2042 = vadd.f32 0.0, %v2041
  %v2043 = vpop.f32.mrb[0].mxu0
  %v2044 = vadd.f32 0.0, %v2043
  %2045 = vmatprep.mubr.f32.mxu0 0.0
  %2046 = vmatmul.mubr.f32.gmra.mrb[0].mxu0 %v99
  %v2047 = vpop.f32.mrb[0].mxu0
  %v2048 = vadd.f32 0.0, %v2047
  %v2049 = vpop.f32.mrb[0].mxu0
  %v2050 = vadd.f32 0.0, %v2049
  %2051 = vmatprep.mubr.f32.mxu0 0.0
  %2052 = vmatmul.mubr.f32.gmra.mrb[0].mxu0 %v102
  %v2053 = vpop.f32.mrb[0].mxu0
  %v2054 = vadd.f32 0.0, %v2053
  %v2055 = vpop.f32.mrb[0].mxu0
  %v2056 = vadd.f32 0.0, %v2055
  %2057 = vmatprep.mubr.f32.mxu0 0.0
  %2058 = vmatmul.mubr.f32.gmra.mrb[0].mxu0 %v105
  %v2059 = vpop.f32.mrb[0].mxu0
  %v2060 = vadd.f32 0.0, %v2059
  %v2061 = vpop.f32.mrb[0].mxu0
  %v2062 = vadd.f32 0.0, %v2061
  %2063 = vmatprep.mubr.f32.mxu0 0.0
  %2064 = vmatmul.mubr.f32.gmra.mrb[0].mxu0 %v108
  %v2065 = vpop.f32.mrb[0].mxu0
  %v2066 = vadd.f32 0.0, %v2065
  %v2067 = vpop.f32.mrb[0].mxu0
  %v2068 = vadd.f32 0.0, %v2067
  %2069 = vmatprep.mubr.f32.mxu0 0.0
  %2070 = vmatmul.mubr.f32.gmra.mrb[0].mxu0 %v111
  %v2071 = vpop.f32.mrb[0].mxu0
  %v2072 = vadd.f32 0.0, %v2071
  %v2073 = vpop.f32.mrb[0].mxu0
  %v2074 = vadd.f32 0.0, %v2073
  %2075 = vmatprep.mubr.f32.mxu0 0.0
  %2076 = vmatmul.mubr.f32.gmra.mrb[0].mxu0 %v114
  %v2077 = vpop.f32.mrb[0].mxu0
  %v2078 = vadd.f32 0.0, %v2077
  %v2079 = vpop.f32.mrb[0].mxu0
  %v2080 = vadd.f32 0.0, %v2079
  %2081 = vmatprep.mubr.f32.mxu0 0.0
  %2082 = vmatmul.mubr.f32.gmra.mrb[0].mxu0 %v117
  %v2083 = vpop.f32.mrb[0].mxu0
  %v2084 = vadd.f32 0.0, %v2083
  %v2085 = vpop.f32.mrb[0].mxu0
  %v2086 = vadd.f32 0.0, %v2085
  %2087 = vmatprep.mubr.f32.mxu0 0.0
  %2088 = vmatmul.mubr.f32.gmra.mrb[0].mxu0 %v120
  %v2089 = vpop.f32.mrb[0].mxu0
  %v2090 = vadd.f32 0.0, %v2089
  %v2091 = vpop.f32.mrb[0].mxu0
  %v2092 = vadd.f32 0.0, %v2091
  %2093 = vmatprep.mubr.f32.mxu0 0.0
  %2094 = vmatmul.mubr.f32.gmra.mrb[0].mxu0 %v123
  %v2095 = vpop.f32.mrb[0].mxu0
  %v2096 = vadd.f32 0.0, %v2095
  %v2097 = vpop.f32.mrb[0].mxu0
  %v2098 = vadd.f32 0.0, %v2097
  %2099 = vmatprep.mubr.f32.mxu0 0.0
  %2100 = vmatmul.mubr.f32.gmra.mrb[0].mxu0 %v126
  %v2101 = vpop.f32.mrb[0].mxu0
  %v2102 = vadd.f32 0.0, %v2101
  %v2103 = vpop.f32.mrb[0].mxu0
  %v2104 = vadd.f32 0.0, %v2103
  %2105 = vmatprep.mubr.f32.mxu0 0.0
  %2106 = vmatmul.mubr.f32.gmra.mrb[0].mxu0 %v129
  %v2107 = vpop.f32.mrb[0].mxu0
  %v2108 = vadd.f32 0.0, %v2107
  %v2109 = vpop.f32.mrb[0].mxu0
  %v2110 = vadd.f32 0.0, %v2109
  %2111 = vmatprep.mubr.f32.mxu0 0.0
  %2112 = vmatmul.mubr.f32.gmra.mrb[0].mxu0 %v132
  %v2113 = vpop.f32.mrb[0].mxu0
  %v2114 = vadd.f32 0.0, %v2113
  %v2115 = vpop.f32.mrb[0].mxu0
  %v2116 = vadd.f32 0.0, %v2115
  %2117 = vmatprep.mubr.f32.mxu0 0.0
  %2118 = vmatmul.mubr.f32.gmra.mrb[0].mxu0 %v135
  %v2119 = vpop.f32.mrb[0].mxu0
  %v2120 = vadd.f32 0.0, %v2119
  %v2121 = vpop.f32.mrb[0].mxu0
  %v2122 = vadd.f32 0.0, %v2121
  %2123 = vmatprep.mubr.f32.mxu0 0.0
  %2124 = vmatmul.mubr.f32.gmra.mrb[0].mxu0 %v138
  %v2125 = vpop.f32.mrb[0].mxu0
  %v2126 = vadd.f32 0.0, %v2125
  %v2127 = vpop.f32.mrb[0].mxu0
  %v2128 = vadd.f32 0.0, %v2127
  %2129 = vmatprep.mubr.f32.mxu0 0.0
  %2130 = vmatmul.mubr.f32.gmra.mrb[0].mxu0 %v141
  %v2131 = vpop.f32.mrb[0].mxu0
  %v2132 = vadd.f32 0.0, %v2131
  %v2133 = vpop.f32.mrb[0].mxu0
  %v2134 = vadd.f32 0.0, %v2133
  %2135 = vmatprep.mubr.f32.mxu0 0.0
  %2136 = vmatmul.mubr.f32.gmra.mrb[0].mxu0 %v144
  %v2137 = vpop.f32.mrb[0].mxu0
  %v2138 = vadd.f32 0.0, %v2137
  %v2139 = vpop.f32.mrb[0].mxu0
  %v2140 = vadd.f32 0.0, %v2139
  %2141 = vmatprep.mubr.f32.mxu0 0.0
  %2142 = vmatmul.mubr.f32.gmra.mrb[0].mxu0 %v147
  %v2143 = vpop.f32.mrb[0].mxu0
  %v2144 = vadd.f32 0.0, %v2143
  %v2145 = vpop.f32.mrb[0].mxu0
  %v2146 = vadd.f32 0.0, %v2145
  %2147 = vmatprep.mubr.f32.mxu0 0.0
  %2148 = vmatmul.mubr.f32.gmra.mrb[0].mxu0 %v150
  %v2149 = vpop.f32.mrb[0].mxu0
  %v2150 = vadd.f32 0.0, %v2149
  %v2151 = vpop.f32.mrb[0].mxu0
  %v2152 = vadd.f32 0.0, %v2151
  %2153 = vmatprep.mubr.f32.mxu0 0.0
  %2154 = vmatmul.mubr.f32.gmra.mrb[0].mxu0 %v153
  %v2155 = vpop.f32.mrb[0].mxu0
  %v2156 = vadd.f32 0.0, %v2155
  %v2157 = vpop.f32.mrb[0].mxu0
  %v2158 = vadd.f32 0.0, %v2157
  %2159 = vmatprep.mubr.f32.mxu0 0.0
  %2160 = vmatmul.mubr.f32.gmra.mrb[0].mxu0 %v156
  %v2161 = vpop.f32.mrb[0].mxu0
  %v2162 = vadd.f32 0.0, %v2161
  %v2163 = vpop.f32.mrb[0].mxu0
  %v2164 = vadd.f32 0.0, %v2163
  %2165 = vmatprep.mubr.f32.mxu0 0.0
  %2166 = vmatmul.mubr.f32.gmra.mrb[0].mxu0 %v982
  %v2167 = vpop.f32.mrb[0].mxu0
  %v2168 = vadd.f32 0.0, %v2167
  %v2169 = vpop.f32.mrb[0].mxu0
  %v2170 = vadd.f32 0.0, %v2169
  %2171 = vmatprep.mubr.f32.mxu0 0.0
  %2172 = vmatmul.mubr.f32.gmra.mrb[0].mxu0 %v1473
  %v2173 = vpop.f32.mrb[0].mxu0
  %v2174 = vadd.f32 0.0, %v2173
  %v2175 = vpop.f32.mrb[0].mxu0
  %v2176 = vadd.f32 0.0, %v2175
  %2177 = vmatprep.mubr.f32.mxu0 0.0
  %2178 = vmatmul.mubr.f32.gmra.mrb[0].mxu0 %v1964
  %v2179 = vpop.f32.mrb[0].mxu0
  %v2180 = vadd.f32 0.0, %v2179
  %v2181 = vpop.f32.mrb[0].mxu0
  %v2182 = vadd.f32 0.0, %v2181
  %2183 = vdwg.mxu0
  %2184 = vmatprep.subr.mxu0 0.0
  %2185 = vmatpush1.msra.mxu0 %v1953
  %2186 = vmatprep.subr.mxu0 0.0
  %2187 = vmatpush1.msra.mxu0 %v1956
  %2188 = vmatprep.subr.mxu0 0.0
  %2189 = vmatpush1.msra.mxu0 %v1959
  %2190 = vmatprep.subr.mxu0 0.0
  %2191 = vmatpush1.msra.mxu0 %v1973
  %2192 = vmatprep.subr.mxu0 0.0
  %2193 = vmatpush1.msra.mxu0 0.0
  %2194 = vmatprep.subr.mxu0 0.0
  %2195 = vmatpush1.msra.mxu0 0.0
  %2196 = vmatprep.subr.mxu0 0.0
  %2197 = vmatpush1.msra.mxu0 0.0
  %2198 = vmatprep.subr.mxu0 0.0
  %2199 = vmatpush1.msra.mxu0 0.0
  %2200 = vmatprep.subr.mxu0 0.0
  %2201 = vmatpush1.msra.mxu0 0.0
  %2202 = vmatprep.subr.mxu0 0.0
  %2203 = vmatpush1.msra.mxu0 0.0
  %2204 = vmatprep.subr.mxu0 0.0
  %2205 = vmatpush1.msra.mxu0 0.0
  %2206 = vmatprep.subr.mxu0 0.0
  %2207 = vmatpush1.msra.mxu0 0.0
  %2208 = vmatprep.subr.mxu0 0.0
  %2209 = vmatpush1.msra.mxu0 0.0
  %2210 = vmatprep.subr.mxu0 0.0
  %2211 = vmatpush1.msra.mxu0 0.0
  %2212 = vmatprep.subr.mxu0 0.0
  %2213 = vmatpush1.msra.mxu0 0.0
  %2214 = vmatprep.subr.mxu0 0.0
  %2215 = vmatpush1.msra.mxu0 0.0
  %2216 = vmatprep.subr.mxu0 0.0
  %2217 = vmatpush1.msra.mxu0 0.0
  %2218 = vmatprep.subr.mxu0 0.0
  %2219 = vmatpush1.msra.mxu0 0.0
  %2220 = vmatprep.subr.mxu0 0.0
  %2221 = vmatpush1.msra.mxu0 0.0
  %2222 = vmatprep.subr.mxu0 0.0
  %2223 = vmatpush1.msra.mxu0 0.0
  %2224 = vmatprep.subr.mxu0 0.0
  %2225 = vmatpush1.msra.mxu0 0.0
  %2226 = vmatprep.subr.mxu0 0.0
  %2227 = vmatpush1.msra.mxu0 0.0
  %2228 = vmatprep.subr.mxu0 0.0
  %2229 = vmatpush1.msra.mxu0 0.0
  %2230 = vmatprep.subr.mxu0 0.0
  %2231 = vmatpush1.msra.mxu0 0.0
  %2232 = vmatprep.subr.mxu0 0.0
  %2233 = vmatpush1.msra.mxu0 0.0
  %2234 = vmatprep.subr.mxu0 0.0
  %2235 = vmatpush1.msra.mxu0 0.0
  %2236 = vmatprep.subr.mxu0 0.0
  %2237 = vmatpush1.msra.mxu0 0.0
  %2238 = vmatprep.subr.mxu0 0.0
  %2239 = vmatpush1.msra.mxu0 0.0
  %2240 = vmatprep.subr.mxu0 0.0
  %2241 = vmatpush1.msra.mxu0 0.0
  %2242 = vmatprep.subr.mxu0 0.0
  %2243 = vmatpush1.msra.mxu0 0.0
  %2244 = vmatprep.subr.mxu0 0.0
  %2245 = vmatpush1.msra.mxu0 0.0
  %2246 = vmatprep.subr.mxu0 0.0
  %2247 = vmatpush1.msra.mxu0 0.0
  %2248 = vmatprep.mubr.f32.mxu0 0.0
  %2249 = vmatmul.mubr.f32.gmra.mrb[0].mxu0 %v96
  %v2250 = vpop.f32.mrb[0].mxu0
  %v2251 = vadd.f32 0.0, %v2250
  %v2252 = vpop.f32.mrb[0].mxu0
  %2253 = vmatprep.mubr.f32.mxu0 0.0
  %2254 = vmatmul.mubr.f32.gmra.mrb[0].mxu0 %v99
  %v2255 = vpop.f32.mrb[0].mxu0
  %v2256 = vadd.f32 0.0, %v2255
  %v2257 = vpop.f32.mrb[0].mxu0
  %2258 = vmatprep.mubr.f32.mxu0 0.0
  %2259 = vmatmul.mubr.f32.gmra.mrb[0].mxu0 %v102
  %v2260 = vpop.f32.mrb[0].mxu0
  %v2261 = vadd.f32 0.0, %v2260
  %v2262 = vpop.f32.mrb[0].mxu0
  %2263 = vmatprep.mubr.f32.mxu0 0.0
  %2264 = vmatmul.mubr.f32.gmra.mrb[0].mxu0 %v105
  %v2265 = vpop.f32.mrb[0].mxu0
  %v2266 = vadd.f32 0.0, %v2265
  %v2267 = vpop.f32.mrb[0].mxu0
  %2268 = vmatprep.mubr.f32.mxu0 0.0
  %2269 = vmatmul.mubr.f32.gmra.mrb[0].mxu0 %v108
  %v2270 = vpop.f32.mrb[0].mxu0
  %v2271 = vadd.f32 0.0, %v2270
  %v2272 = vpop.f32.mrb[0].mxu0
  %2273 = vmatprep.mubr.f32.mxu0 0.0
  %2274 = vmatmul.mubr.f32.gmra.mrb[0].mxu0 %v111
  %v2275 = vpop.f32.mrb[0].mxu0
  %v2276 = vadd.f32 0.0, %v2275
  %v2277 = vpop.f32.mrb[0].mxu0
  %2278 = vmatprep.mubr.f32.mxu0 0.0
  %2279 = vmatmul.mubr.f32.gmra.mrb[0].mxu0 %v114
  %v2280 = vpop.f32.mrb[0].mxu0
  %v2281 = vadd.f32 0.0, %v2280
  %v2282 = vpop.f32.mrb[0].mxu0
  %2283 = vmatprep.mubr.f32.mxu0 0.0
  %2284 = vmatmul.mubr.f32.gmra.mrb[0].mxu0 %v117
  %v2285 = vpop.f32.mrb[0].mxu0
  %v2286 = vadd.f32 0.0, %v2285
  %v2287 = vpop.f32.mrb[0].mxu0
  %2288 = vmatprep.mubr.f32.mxu0 0.0
  %2289 = vmatmul.mubr.f32.gmra.mrb[0].mxu0 %v120
  %v2290 = vpop.f32.mrb[0].mxu0
  %v2291 = vadd.f32 0.0, %v2290
  %v2292 = vpop.f32.mrb[0].mxu0
  %2293 = vmatprep.mubr.f32.mxu0 0.0
  %2294 = vmatmul.mubr.f32.gmra.mrb[0].mxu0 %v123
  %v2295 = vpop.f32.mrb[0].mxu0
  %v2296 = vadd.f32 0.0, %v2295
  %v2297 = vpop.f32.mrb[0].mxu0
  %2298 = vmatprep.mubr.f32.mxu0 0.0
  %2299 = vmatmul.mubr.f32.gmra.mrb[0].mxu0 %v126
  %v2300 = vpop.f32.mrb[0].mxu0
  %v2301 = vadd.f32 0.0, %v2300
  %v2302 = vpop.f32.mrb[0].mxu0
  %2303 = vmatprep.mubr.f32.mxu0 0.0
  %2304 = vmatmul.mubr.f32.gmra.mrb[0].mxu0 %v129
  %v2305 = vpop.f32.mrb[0].mxu0
  %v2306 = vadd.f32 0.0, %v2305
  %v2307 = vpop.f32.mrb[0].mxu0
  %2308 = vmatprep.mubr.f32.mxu0 0.0
  %2309 = vmatmul.mubr.f32.gmra.mrb[0].mxu0 %v132
  %v2310 = vpop.f32.mrb[0].mxu0
  %v2311 = vadd.f32 0.0, %v2310
  %v2312 = vpop.f32.mrb[0].mxu0
  %2313 = vmatprep.mubr.f32.mxu0 0.0
  %2314 = vmatmul.mubr.f32.gmra.mrb[0].mxu0 %v135
  %v2315 = vpop.f32.mrb[0].mxu0
  %v2316 = vadd.f32 0.0, %v2315
  %v2317 = vpop.f32.mrb[0].mxu0
  %2318 = vmatprep.mubr.f32.mxu0 0.0
  %2319 = vmatmul.mubr.f32.gmra.mrb[0].mxu0 %v138
  %v2320 = vpop.f32.mrb[0].mxu0
  %v2321 = vadd.f32 0.0, %v2320
  %v2322 = vpop.f32.mrb[0].mxu0
  %2323 = vmatprep.mubr.f32.mxu0 0.0
  %2324 = vmatmul.mubr.f32.gmra.mrb[0].mxu0 %v141
  %v2325 = vpop.f32.mrb[0].mxu0
  %v2326 = vadd.f32 0.0, %v2325
  %v2327 = vpop.f32.mrb[0].mxu0
  %2328 = vmatprep.mubr.f32.mxu0 0.0
  %2329 = vmatmul.mubr.f32.gmra.mrb[0].mxu0 %v144
  %v2330 = vpop.f32.mrb[0].mxu0
  %v2331 = vadd.f32 0.0, %v2330
  %v2332 = vpop.f32.mrb[0].mxu0
  %2333 = vmatprep.mubr.f32.mxu0 0.0
  %2334 = vmatmul.mubr.f32.gmra.mrb[0].mxu0 %v147
  %v2335 = vpop.f32.mrb[0].mxu0
  %v2336 = vadd.f32 0.0, %v2335
  %v2337 = vpop.f32.mrb[0].mxu0
  %2338 = vmatprep.mubr.f32.mxu0 0.0
  %2339 = vmatmul.mubr.f32.gmra.mrb[0].mxu0 %v150
  %v2340 = vpop.f32.mrb[0].mxu0
  %v2341 = vadd.f32 0.0, %v2340
  %v2342 = vpop.f32.mrb[0].mxu0
  %2343 = vmatprep.mubr.f32.mxu0 0.0
  %2344 = vmatmul.mubr.f32.gmra.mrb[0].mxu0 %v153
  %v2345 = vpop.f32.mrb[0].mxu0
  %v2346 = vadd.f32 0.0, %v2345
  %v2347 = vpop.f32.mrb[0].mxu0
  %2348 = vmatprep.mubr.f32.mxu0 0.0
  %2349 = vmatmul.mubr.f32.gmra.mrb[0].mxu0 %v156
  %v2350 = vpop.f32.mrb[0].mxu0
  %v2351 = vadd.f32 0.0, %v2350
  %v2352 = vpop.f32.mrb[0].mxu0
  %2353 = vmatprep.mubr.f32.mxu0 0.0
  %2354 = vmatmul.mubr.f32.gmra.mrb[0].mxu0 %v982
  %v2355 = vpop.f32.mrb[0].mxu0
  %v2356 = vadd.f32 0.0, %v2355
  %v2357 = vpop.f32.mrb[0].mxu0
  %2358 = vmatprep.mubr.f32.mxu0 0.0
  %2359 = vmatmul.mubr.f32.gmra.mrb[0].mxu0 %v1473
  %v2360 = vpop.f32.mrb[0].mxu0
  %v2361 = vadd.f32 0.0, %v2360
  %v2362 = vpop.f32.mrb[0].mxu0
  %2363 = vmatprep.mubr.f32.mxu0 0.0
  %2364 = vmatmul.mubr.f32.gmra.mrb[0].mxu0 %v1964
  %v2365 = vpop.f32.mrb[0].mxu0
  %v2366 = vadd.f32 0.0, %v2365
  %v2367 = vpop.f32.mrb[0].mxu0
  %2368 = vdwg.mxu0
  %v2369 = vadd.f32 %v1878, %v2042
  %v2370 = vadd.f32 %v1879, %v2044
  %v2371 = vadd.f32 %v1880, %v2251
  %v2372 = vadd.f32 %v1881, %v2048
  %v2373 = vadd.f32 %v1882, %v2050
  %v2374 = vadd.f32 %v1883, %v2256
  %v2375 = vadd.f32 %v1884, %v2054
  %v2376 = vadd.f32 %v1885, %v2056
  %v2377 = vadd.f32 %v1886, %v2261
  %v2378 = vadd.f32 %v1887, %v2060
  %v2379 = vadd.f32 %v1888, %v2062
  %v2380 = vadd.f32 %v1889, %v2266
  %v2381 = vadd.f32 %v1890, %v2066
  %v2382 = vadd.f32 %v1891, %v2068
  %v2383 = vadd.f32 %v1892, %v2271
  %v2384 = vadd.f32 %v1893, %v2072
  %v2385 = vadd.f32 %v1894, %v2074
  %v2386 = vadd.f32 %v1895, %v2276
  %v2387 = vadd.f32 %v1896, %v2078
  %v2388 = vadd.f32 %v1897, %v2080
  %v2389 = vadd.f32 %v1898, %v2281
  %v2390 = vadd.f32 %v1899, %v2084
  %v2391 = vadd.f32 %v1900, %v2086
  %v2392 = vadd.f32 %v1901, %v2286
  %v2393 = vadd.f32 %v1902, %v2090
  %v2394 = vadd.f32 %v1903, %v2092
  %v2395 = vadd.f32 %v1904, %v2291
  %v2396 = vadd.f32 %v1905, %v2096
  %v2397 = vadd.f32 %v1906, %v2098
  %v2398 = vadd.f32 %v1907, %v2296
  %v2399 = vadd.f32 %v1908, %v2102
  %v2400 = vadd.f32 %v1909, %v2104
  %v2401 = vadd.f32 %v1910, %v2301
  %v2402 = vadd.f32 %v1911, %v2108
  %v2403 = vadd.f32 %v1912, %v2110
  %v2404 = vadd.f32 %v1913, %v2306
  %v2405 = vadd.f32 %v1914, %v2114
  %v2406 = vadd.f32 %v1915, %v2116
  %v2407 = vadd.f32 %v1916, %v2311
  %v2408 = vadd.f32 %v1917, %v2120
  %v2409 = vadd.f32 %v1918, %v2122
  %v2410 = vadd.f32 %v1919, %v2316
  %v2411 = vadd.f32 %v1920, %v2126
  %v2412 = vadd.f32 %v1921, %v2128
  %v2413 = vadd.f32 %v1922, %v2321
  %v2414 = vadd.f32 %v1923, %v2132
  %v2415 = vadd.f32 %v1924, %v2134
  %v2416 = vadd.f32 %v1925, %v2326
  %v2417 = vadd.f32 %v1926, %v2138
  %v2418 = vadd.f32 %v1927, %v2140
  %v2419 = vadd.f32 %v1928, %v2331
  %v2420 = vadd.f32 %v1929, %v2144
  %v2421 = vadd.f32 %v1930, %v2146
  %v2422 = vadd.f32 %v1931, %v2336
  %v2423 = vadd.f32 %v1932, %v2150
  %v2424 = vadd.f32 %v1933, %v2152
  %v2425 = vadd.f32 %v1934, %v2341
  %v2426 = vadd.f32 %v1935, %v2156
  %v2427 = vadd.f32 %v1936, %v2158
  %v2428 = vadd.f32 %v1937, %v2346
  %v2429 = vadd.f32 %v1938, %v2162
  %v2430 = vadd.f32 %v1939, %v2164
  %v2431 = vadd.f32 %v1940, %v2351
  %v2432 = vadd.f32 %v1941, %v2168
  %v2433 = vadd.f32 %v1942, %v2170
  %v2434 = vadd.f32 %v1943, %v2356
  %v2435 = vadd.f32 %v1944, %v2174
  %v2436 = vadd.f32 %v1945, %v2176
  %v2437 = vadd.f32 %v1946, %v2361
  %v2438 = vadd.f32 %v1947, %v2180
  %v2439 = vadd.f32 %v1948, %v2182
  %v2440 = vadd.f32 %v1949, %v2366
  %v2441 = vld [vmem:[%s2] sm:$0x7]
  %v2443 = vlaneseq
  %v2444 = vshrl.u32 %v2443, 7
  %v2445 = vsub.s32 0, %v2444
  %v2446 = vrot.slane %v2441, %v2445
  %v2447 = vlaneseq
  %v2448 = vshrl.u32 %v2447, 7
  %v2449 = vsub.s32 1, %v2448
  %v2450 = vrot.slane %v2441, %v2449
  %v2451 = vlaneseq
  %v2452 = vshrl.u32 %v2451, 7
  %v2453 = vsub.s32 2, %v2452
  %v2454 = vrot.slane %v2441, %v2453
  %v2458 = vadd.f32 %v2369, %v2446
  %v2459 = vadd.f32 %v2370, %v2450
  %v2460 = vadd.f32 %v2371, %v2454
  %v2461 = vadd.f32 %v2372, %v2446
  %v2462 = vadd.f32 %v2373, %v2450
  %v2463 = vadd.f32 %v2374, %v2454
  %v2464 = vadd.f32 %v2375, %v2446
  %v2465 = vadd.f32 %v2376, %v2450
  %v2466 = vadd.f32 %v2377, %v2454
  %v2467 = vadd.f32 %v2378, %v2446
  %v2468 = vadd.f32 %v2379, %v2450
  %v2469 = vadd.f32 %v2380, %v2454
  %v2470 = vadd.f32 %v2381, %v2446
  %v2471 = vadd.f32 %v2382, %v2450
  %v2472 = vadd.f32 %v2383, %v2454
  %v2473 = vadd.f32 %v2384, %v2446
  %v2474 = vadd.f32 %v2385, %v2450
  %v2475 = vadd.f32 %v2386, %v2454
  %v2476 = vadd.f32 %v2387, %v2446
  %v2477 = vadd.f32 %v2388, %v2450
  %v2478 = vadd.f32 %v2389, %v2454
  %v2479 = vadd.f32 %v2390, %v2446
  %v2480 = vadd.f32 %v2391, %v2450
  %v2481 = vadd.f32 %v2392, %v2454
  %v2482 = vadd.f32 %v2393, %v2446
  %v2483 = vadd.f32 %v2394, %v2450
  %v2484 = vadd.f32 %v2395, %v2454
  %v2485 = vadd.f32 %v2396, %v2446
  %v2486 = vadd.f32 %v2397, %v2450
  %v2487 = vadd.f32 %v2398, %v2454
  %v2488 = vadd.f32 %v2399, %v2446
  %v2489 = vadd.f32 %v2400, %v2450
  %v2490 = vadd.f32 %v2401, %v2454
  %v2491 = vadd.f32 %v2402, %v2446
  %v2492 = vadd.f32 %v2403, %v2450
  %v2493 = vadd.f32 %v2404, %v2454
  %v2494 = vadd.f32 %v2405, %v2446
  %v2495 = vadd.f32 %v2406, %v2450
  %v2496 = vadd.f32 %v2407, %v2454
  %v2497 = vadd.f32 %v2408, %v2446
  %v2498 = vadd.f32 %v2409, %v2450
  %v2499 = vadd.f32 %v2410, %v2454
  %v2500 = vadd.f32 %v2411, %v2446
  %v2501 = vadd.f32 %v2412, %v2450
  %v2502 = vadd.f32 %v2413, %v2454
  %v2503 = vadd.f32 %v2414, %v2446
  %v2504 = vadd.f32 %v2415, %v2450
  %v2505 = vadd.f32 %v2416, %v2454
  %v2506 = vadd.f32 %v2417, %v2446
  %v2507 = vadd.f32 %v2418, %v2450
  %v2508 = vadd.f32 %v2419, %v2454
  %v2509 = vadd.f32 %v2420, %v2446
  %v2510 = vadd.f32 %v2421, %v2450
  %v2511 = vadd.f32 %v2422, %v2454
  %v2512 = vadd.f32 %v2423, %v2446
  %v2513 = vadd.f32 %v2424, %v2450
  %v2514 = vadd.f32 %v2425, %v2454
  %v2515 = vadd.f32 %v2426, %v2446
  %v2516 = vadd.f32 %v2427, %v2450
  %v2517 = vadd.f32 %v2428, %v2454
  %v2518 = vadd.f32 %v2429, %v2446
  %v2519 = vadd.f32 %v2430, %v2450
  %v2520 = vadd.f32 %v2431, %v2454
  %v2521 = vadd.f32 %v2432, %v2446
  %v2522 = vadd.f32 %v2433, %v2450
  %v2523 = vadd.f32 %v2434, %v2454
  %v2524 = vadd.f32 %v2435, %v2446
  %v2525 = vadd.f32 %v2436, %v2450
  %v2526 = vadd.f32 %v2437, %v2454
  %v2527 = vadd.f32 %v2438, %v2446
  %v2528 = vadd.f32 %v2439, %v2450
  %v2529 = vadd.f32 %v2440, %v2454
  %2554 = vrot.lane.b32.xlu0 %v2458, 112
  %v2555 = vpop.permute.xlu0 %2554
  %2556 = vrot.lane.b32.xlu0 %v2461, 112
  %v2557 = vpop.permute.xlu0 %2556
  %2558 = vrot.lane.b32.xlu0 %v2464, 112
  %v2559 = vpop.permute.xlu0 %2558
  %2560 = vrot.lane.b32.xlu0 %v2467, 112
  %v2561 = vpop.permute.xlu0 %2560
  %2562 = vrot.lane.b32.xlu0 %v2470, 112
  %v2563 = vpop.permute.xlu0 %2562
  %2564 = vrot.lane.b32.xlu0 %v2473, 112
  %v2565 = vpop.permute.xlu0 %2564
  %2566 = vrot.lane.b32.xlu0 %v2476, 112
  %v2567 = vpop.permute.xlu0 %2566
  %2568 = vrot.lane.b32.xlu0 %v2479, 112
  %v2569 = vpop.permute.xlu0 %2568
  %2570 = vrot.lane.b32.xlu0 %v2482, 112
  %v2571 = vpop.permute.xlu0 %2570
  %2572 = vrot.lane.b32.xlu0 %v2485, 112
  %v2573 = vpop.permute.xlu0 %2572
  %2574 = vrot.lane.b32.xlu0 %v2488, 112
  %v2575 = vpop.permute.xlu0 %2574
  %2576 = vrot.lane.b32.xlu0 %v2491, 112
  %v2577 = vpop.permute.xlu0 %2576
  %2578 = vrot.lane.b32.xlu0 %v2494, 112
  %v2579 = vpop.permute.xlu0 %2578
  %2580 = vrot.lane.b32.xlu0 %v2497, 112
  %v2581 = vpop.permute.xlu0 %2580
  %2582 = vrot.lane.b32.xlu0 %v2500, 112
  %v2583 = vpop.permute.xlu0 %2582
  %2584 = vrot.lane.b32.xlu0 %v2503, 112
  %v2585 = vpop.permute.xlu0 %2584
  %2586 = vrot.lane.b32.xlu0 %v2506, 112
  %v2587 = vpop.permute.xlu0 %2586
  %2588 = vrot.lane.b32.xlu0 %v2509, 112
  %v2589 = vpop.permute.xlu0 %2588
  %2590 = vrot.lane.b32.xlu0 %v2512, 112
  %v2591 = vpop.permute.xlu0 %2590
  %2592 = vrot.lane.b32.xlu0 %v2515, 112
  %v2593 = vpop.permute.xlu0 %2592
  %2594 = vrot.lane.b32.xlu0 %v2518, 112
  %v2595 = vpop.permute.xlu0 %2594
  %2596 = vrot.lane.b32.xlu0 %v2521, 112
  %v2597 = vpop.permute.xlu0 %2596
  %2598 = vrot.lane.b32.xlu0 %v2524, 112
  %v2599 = vpop.permute.xlu0 %2598
  %2600 = vrot.lane.b32.xlu0 %v2527, 112
  %v2601 = vpop.permute.xlu0 %2600
  %v2626 = vmax.f32 %v2458, %v2555
  %v2627 = vmax.f32 %v2461, %v2557
  %v2628 = vmax.f32 %v2464, %v2559
  %v2629 = vmax.f32 %v2467, %v2561
  %v2630 = vmax.f32 %v2470, %v2563
  %v2631 = vmax.f32 %v2473, %v2565
  %v2632 = vmax.f32 %v2476, %v2567
  %v2633 = vmax.f32 %v2479, %v2569
  %v2634 = vmax.f32 %v2482, %v2571
  %v2635 = vmax.f32 %v2485, %v2573
  %v2636 = vmax.f32 %v2488, %v2575
  %v2637 = vmax.f32 %v2491, %v2577
  %v2638 = vmax.f32 %v2494, %v2579
  %v2639 = vmax.f32 %v2497, %v2581
  %v2640 = vmax.f32 %v2500, %v2583
  %v2641 = vmax.f32 %v2503, %v2585
  %v2642 = vmax.f32 %v2506, %v2587
  %v2643 = vmax.f32 %v2509, %v2589
  %v2644 = vmax.f32 %v2512, %v2591
  %v2645 = vmax.f32 %v2515, %v2593
  %v2646 = vmax.f32 %v2518, %v2595
  %v2647 = vmax.f32 %v2521, %v2597
  %v2648 = vmax.f32 %v2524, %v2599
  %v2649 = vmax.f32 %v2527, %v2601
  %2674 = vrot.lane.b32.xlu0 %v2459, 112
  %v2675 = vpop.permute.xlu0 %2674
  %2676 = vrot.lane.b32.xlu0 %v2462, 112
  %v2677 = vpop.permute.xlu0 %2676
  %2678 = vrot.lane.b32.xlu0 %v2465, 112
  %v2679 = vpop.permute.xlu0 %2678
  %2680 = vrot.lane.b32.xlu0 %v2468, 112
  %v2681 = vpop.permute.xlu0 %2680
  %2682 = vrot.lane.b32.xlu0 %v2471, 112
  %v2683 = vpop.permute.xlu0 %2682
  %2684 = vrot.lane.b32.xlu0 %v2474, 112
  %v2685 = vpop.permute.xlu0 %2684
  %2686 = vrot.lane.b32.xlu0 %v2477, 112
  %v2687 = vpop.permute.xlu0 %2686
  %2688 = vrot.lane.b32.xlu0 %v2480, 112
  %v2689 = vpop.permute.xlu0 %2688
  %2690 = vrot.lane.b32.xlu0 %v2483, 112
  %v2691 = vpop.permute.xlu0 %2690
  %2692 = vrot.lane.b32.xlu0 %v2486, 112
  %v2693 = vpop.permute.xlu0 %2692
  %2694 = vrot.lane.b32.xlu0 %v2489, 112
  %v2695 = vpop.permute.xlu0 %2694
  %2696 = vrot.lane.b32.xlu0 %v2492, 112
  %v2697 = vpop.permute.xlu0 %2696
  %2698 = vrot.lane.b32.xlu0 %v2495, 112
  %v2699 = vpop.permute.xlu0 %2698
  %2700 = vrot.lane.b32.xlu0 %v2498, 112
  %v2701 = vpop.permute.xlu0 %2700
  %2702 = vrot.lane.b32.xlu0 %v2501, 112
  %v2703 = vpop.permute.xlu0 %2702
  %2704 = vrot.lane.b32.xlu0 %v2504, 112
  %v2705 = vpop.permute.xlu0 %2704
  %2706 = vrot.lane.b32.xlu0 %v2507, 112
  %v2707 = vpop.permute.xlu0 %2706
  %2708 = vrot.lane.b32.xlu0 %v2510, 112
  %v2709 = vpop.permute.xlu0 %2708
  %2710 = vrot.lane.b32.xlu0 %v2513, 112
  %v2711 = vpop.permute.xlu0 %2710
  %2712 = vrot.lane.b32.xlu0 %v2516, 112
  %v2713 = vpop.permute.xlu0 %2712
  %2714 = vrot.lane.b32.xlu0 %v2519, 112
  %v2715 = vpop.permute.xlu0 %2714
  %2716 = vrot.lane.b32.xlu0 %v2522, 112
  %v2717 = vpop.permute.xlu0 %2716
  %2718 = vrot.lane.b32.xlu0 %v2525, 112
  %v2719 = vpop.permute.xlu0 %2718
  %2720 = vrot.lane.b32.xlu0 %v2528, 112
  %v2721 = vpop.permute.xlu0 %2720
  %v2746 = vmax.f32 %v2459, %v2675
  %v2747 = vmax.f32 %v2462, %v2677
  %v2748 = vmax.f32 %v2465, %v2679
  %v2749 = vmax.f32 %v2468, %v2681
  %v2750 = vmax.f32 %v2471, %v2683
  %v2751 = vmax.f32 %v2474, %v2685
  %v2752 = vmax.f32 %v2477, %v2687
  %v2753 = vmax.f32 %v2480, %v2689
  %v2754 = vmax.f32 %v2483, %v2691
  %v2755 = vmax.f32 %v2486, %v2693
  %v2756 = vmax.f32 %v2489, %v2695
  %v2757 = vmax.f32 %v2492, %v2697
  %v2758 = vmax.f32 %v2495, %v2699
  %v2759 = vmax.f32 %v2498, %v2701
  %v2760 = vmax.f32 %v2501, %v2703
  %v2761 = vmax.f32 %v2504, %v2705
  %v2762 = vmax.f32 %v2507, %v2707
  %v2763 = vmax.f32 %v2510, %v2709
  %v2764 = vmax.f32 %v2513, %v2711
  %v2765 = vmax.f32 %v2516, %v2713
  %v2766 = vmax.f32 %v2519, %v2715
  %v2767 = vmax.f32 %v2522, %v2717
  %v2768 = vmax.f32 %v2525, %v2719
  %v2769 = vmax.f32 %v2528, %v2721
  %2794 = vrot.lane.b32.xlu0 %v2460, 112
  %v2795 = vpop.permute.xlu0 %2794
  %2796 = vrot.lane.b32.xlu0 %v2463, 112
  %v2797 = vpop.permute.xlu0 %2796
  %2798 = vrot.lane.b32.xlu0 %v2466, 112
  %v2799 = vpop.permute.xlu0 %2798
  %2800 = vrot.lane.b32.xlu0 %v2469, 112
  %v2801 = vpop.permute.xlu0 %2800
  %2802 = vrot.lane.b32.xlu0 %v2472, 112
  %v2803 = vpop.permute.xlu0 %2802
  %2804 = vrot.lane.b32.xlu0 %v2475, 112
  %v2805 = vpop.permute.xlu0 %2804
  %2806 = vrot.lane.b32.xlu0 %v2478, 112
  %v2807 = vpop.permute.xlu0 %2806
  %2808 = vrot.lane.b32.xlu0 %v2481, 112
  %v2809 = vpop.permute.xlu0 %2808
  %2810 = vrot.lane.b32.xlu0 %v2484, 112
  %v2811 = vpop.permute.xlu0 %2810
  %2812 = vrot.lane.b32.xlu0 %v2487, 112
  %v2813 = vpop.permute.xlu0 %2812
  %2814 = vrot.lane.b32.xlu0 %v2490, 112
  %v2815 = vpop.permute.xlu0 %2814
  %2816 = vrot.lane.b32.xlu0 %v2493, 112
  %v2817 = vpop.permute.xlu0 %2816
  %2818 = vrot.lane.b32.xlu0 %v2496, 112
  %v2819 = vpop.permute.xlu0 %2818
  %2820 = vrot.lane.b32.xlu0 %v2499, 112
  %v2821 = vpop.permute.xlu0 %2820
  %2822 = vrot.lane.b32.xlu0 %v2502, 112
  %v2823 = vpop.permute.xlu0 %2822
  %2824 = vrot.lane.b32.xlu0 %v2505, 112
  %v2825 = vpop.permute.xlu0 %2824
  %2826 = vrot.lane.b32.xlu0 %v2508, 112
  %v2827 = vpop.permute.xlu0 %2826
  %2828 = vrot.lane.b32.xlu0 %v2511, 112
  %v2829 = vpop.permute.xlu0 %2828
  %2830 = vrot.lane.b32.xlu0 %v2514, 112
  %v2831 = vpop.permute.xlu0 %2830
  %2832 = vrot.lane.b32.xlu0 %v2517, 112
  %v2833 = vpop.permute.xlu0 %2832
  %2834 = vrot.lane.b32.xlu0 %v2520, 112
  %v2835 = vpop.permute.xlu0 %2834
  %2836 = vrot.lane.b32.xlu0 %v2523, 112
  %v2837 = vpop.permute.xlu0 %2836
  %2838 = vrot.lane.b32.xlu0 %v2526, 112
  %v2839 = vpop.permute.xlu0 %2838
  %2840 = vrot.lane.b32.xlu0 %v2529, 112
  %v2841 = vpop.permute.xlu0 %2840
  %v2866 = vmax.f32 %v2460, %v2795
  %v2867 = vmax.f32 %v2463, %v2797
  %v2868 = vmax.f32 %v2466, %v2799
  %v2869 = vmax.f32 %v2469, %v2801
  %v2870 = vmax.f32 %v2472, %v2803
  %v2871 = vmax.f32 %v2475, %v2805
  %v2872 = vmax.f32 %v2478, %v2807
  %v2873 = vmax.f32 %v2481, %v2809
  %v2874 = vmax.f32 %v2484, %v2811
  %v2875 = vmax.f32 %v2487, %v2813
  %v2876 = vmax.f32 %v2490, %v2815
  %v2877 = vmax.f32 %v2493, %v2817
  %v2878 = vmax.f32 %v2496, %v2819
  %v2879 = vmax.f32 %v2499, %v2821
  %v2880 = vmax.f32 %v2502, %v2823
  %v2881 = vmax.f32 %v2505, %v2825
  %v2882 = vmax.f32 %v2508, %v2827
  %v2883 = vmax.f32 %v2511, %v2829
  %v2884 = vmax.f32 %v2514, %v2831
  %v2885 = vmax.f32 %v2517, %v2833
  %v2886 = vmax.f32 %v2520, %v2835
  %v2887 = vmax.f32 %v2523, %v2837
  %v2888 = vmax.f32 %v2526, %v2839
  %v2889 = vmax.f32 %v2529, %v2841
  %2914 = vrot.lane.b32.xlu0 %v2626, 112
  %v2915 = vpop.permute.xlu0 %2914
  %2916 = vrot.lane.b32.xlu0 %v2627, 112
  %v2917 = vpop.permute.xlu0 %2916
  %2918 = vrot.lane.b32.xlu0 %v2628, 112
  %v2919 = vpop.permute.xlu0 %2918
  %2920 = vrot.lane.b32.xlu0 %v2629, 112
  %v2921 = vpop.permute.xlu0 %2920
  %2922 = vrot.lane.b32.xlu0 %v2630, 112
  %v2923 = vpop.permute.xlu0 %2922
  %2924 = vrot.lane.b32.xlu0 %v2631, 112
  %v2925 = vpop.permute.xlu0 %2924
  %2926 = vrot.lane.b32.xlu0 %v2632, 112
  %v2927 = vpop.permute.xlu0 %2926
  %2928 = vrot.lane.b32.xlu0 %v2633, 112
  %v2929 = vpop.permute.xlu0 %2928
  %2930 = vrot.lane.b32.xlu0 %v2634, 112
  %v2931 = vpop.permute.xlu0 %2930
  %2932 = vrot.lane.b32.xlu0 %v2635, 112
  %v2933 = vpop.permute.xlu0 %2932
  %2934 = vrot.lane.b32.xlu0 %v2636, 112
  %v2935 = vpop.permute.xlu0 %2934
  %2936 = vrot.lane.b32.xlu0 %v2637, 112
  %v2937 = vpop.permute.xlu0 %2936
  %2938 = vrot.lane.b32.xlu0 %v2638, 112
  %v2939 = vpop.permute.xlu0 %2938
  %2940 = vrot.lane.b32.xlu0 %v2639, 112
  %v2941 = vpop.permute.xlu0 %2940
  %2942 = vrot.lane.b32.xlu0 %v2640, 112
  %v2943 = vpop.permute.xlu0 %2942
  %2944 = vrot.lane.b32.xlu0 %v2641, 112
  %v2945 = vpop.permute.xlu0 %2944
  %2946 = vrot.lane.b32.xlu0 %v2642, 112
  %v2947 = vpop.permute.xlu0 %2946
  %2948 = vrot.lane.b32.xlu0 %v2643, 112
  %v2949 = vpop.permute.xlu0 %2948
  %2950 = vrot.lane.b32.xlu0 %v2644, 112
  %v2951 = vpop.permute.xlu0 %2950
  %2952 = vrot.lane.b32.xlu0 %v2645, 112
  %v2953 = vpop.permute.xlu0 %2952
  %2954 = vrot.lane.b32.xlu0 %v2646, 112
  %v2955 = vpop.permute.xlu0 %2954
  %2956 = vrot.lane.b32.xlu0 %v2647, 112
  %v2957 = vpop.permute.xlu0 %2956
  %2958 = vrot.lane.b32.xlu0 %v2648, 112
  %v2959 = vpop.permute.xlu0 %2958
  %2960 = vrot.lane.b32.xlu0 %v2649, 112
  %v2961 = vpop.permute.xlu0 %2960
  %2986 = vrot.lane.b32.xlu0 %v2626, 96
  %v2987 = vpop.permute.xlu0 %2986
  %2988 = vrot.lane.b32.xlu0 %v2627, 96
  %v2989 = vpop.permute.xlu0 %2988
  %2990 = vrot.lane.b32.xlu0 %v2628, 96
  %v2991 = vpop.permute.xlu0 %2990
  %2992 = vrot.lane.b32.xlu0 %v2629, 96
  %v2993 = vpop.permute.xlu0 %2992
  %2994 = vrot.lane.b32.xlu0 %v2630, 96
  %v2995 = vpop.permute.xlu0 %2994
  %2996 = vrot.lane.b32.xlu0 %v2631, 96
  %v2997 = vpop.permute.xlu0 %2996
  %2998 = vrot.lane.b32.xlu0 %v2632, 96
  %v2999 = vpop.permute.xlu0 %2998
  %3000 = vrot.lane.b32.xlu0 %v2633, 96
  %v3001 = vpop.permute.xlu0 %3000
  %3002 = vrot.lane.b32.xlu0 %v2634, 96
  %v3003 = vpop.permute.xlu0 %3002
  %3004 = vrot.lane.b32.xlu0 %v2635, 96
  %v3005 = vpop.permute.xlu0 %3004
  %3006 = vrot.lane.b32.xlu0 %v2636, 96
  %v3007 = vpop.permute.xlu0 %3006
  %3008 = vrot.lane.b32.xlu0 %v2637, 96
  %v3009 = vpop.permute.xlu0 %3008
  %3010 = vrot.lane.b32.xlu0 %v2638, 96
  %v3011 = vpop.permute.xlu0 %3010
  %3012 = vrot.lane.b32.xlu0 %v2639, 96
  %v3013 = vpop.permute.xlu0 %3012
  %3014 = vrot.lane.b32.xlu0 %v2640, 96
  %v3015 = vpop.permute.xlu0 %3014
  %3016 = vrot.lane.b32.xlu0 %v2641, 96
  %v3017 = vpop.permute.xlu0 %3016
  %3018 = vrot.lane.b32.xlu0 %v2642, 96
  %v3019 = vpop.permute.xlu0 %3018
  %3020 = vrot.lane.b32.xlu0 %v2643, 96
  %v3021 = vpop.permute.xlu0 %3020
  %3022 = vrot.lane.b32.xlu0 %v2644, 96
  %v3023 = vpop.permute.xlu0 %3022
  %3024 = vrot.lane.b32.xlu0 %v2645, 96
  %v3025 = vpop.permute.xlu0 %3024
  %3026 = vrot.lane.b32.xlu0 %v2646, 96
  %v3027 = vpop.permute.xlu0 %3026
  %3028 = vrot.lane.b32.xlu0 %v2647, 96
  %v3029 = vpop.permute.xlu0 %3028
  %3030 = vrot.lane.b32.xlu0 %v2648, 96
  %v3031 = vpop.permute.xlu0 %3030
  %3032 = vrot.lane.b32.xlu0 %v2649, 96
  %v3033 = vpop.permute.xlu0 %3032
  %3058 = vrot.lane.b32.xlu0 %v2626, 80
  %v3059 = vpop.permute.xlu0 %3058
  %3060 = vrot.lane.b32.xlu0 %v2627, 80
  %v3061 = vpop.permute.xlu0 %3060
  %3062 = vrot.lane.b32.xlu0 %v2628, 80
  %v3063 = vpop.permute.xlu0 %3062
  %3064 = vrot.lane.b32.xlu0 %v2629, 80
  %v3065 = vpop.permute.xlu0 %3064
  %3066 = vrot.lane.b32.xlu0 %v2630, 80
  %v3067 = vpop.permute.xlu0 %3066
  %3068 = vrot.lane.b32.xlu0 %v2631, 80
  %v3069 = vpop.permute.xlu0 %3068
  %3070 = vrot.lane.b32.xlu0 %v2632, 80
  %v3071 = vpop.permute.xlu0 %3070
  %3072 = vrot.lane.b32.xlu0 %v2633, 80
  %v3073 = vpop.permute.xlu0 %3072
  %3074 = vrot.lane.b32.xlu0 %v2634, 80
  %v3075 = vpop.permute.xlu0 %3074
  %3076 = vrot.lane.b32.xlu0 %v2635, 80
  %v3077 = vpop.permute.xlu0 %3076
  %3078 = vrot.lane.b32.xlu0 %v2636, 80
  %v3079 = vpop.permute.xlu0 %3078
  %3080 = vrot.lane.b32.xlu0 %v2637, 80
  %v3081 = vpop.permute.xlu0 %3080
  %3082 = vrot.lane.b32.xlu0 %v2638, 80
  %v3083 = vpop.permute.xlu0 %3082
  %3084 = vrot.lane.b32.xlu0 %v2639, 80
  %v3085 = vpop.permute.xlu0 %3084
  %3086 = vrot.lane.b32.xlu0 %v2640, 80
  %v3087 = vpop.permute.xlu0 %3086
  %3088 = vrot.lane.b32.xlu0 %v2641, 80
  %v3089 = vpop.permute.xlu0 %3088
  %3090 = vrot.lane.b32.xlu0 %v2642, 80
  %v3091 = vpop.permute.xlu0 %3090
  %3092 = vrot.lane.b32.xlu0 %v2643, 80
  %v3093 = vpop.permute.xlu0 %3092
  %3094 = vrot.lane.b32.xlu0 %v2644, 80
  %v3095 = vpop.permute.xlu0 %3094
  %3096 = vrot.lane.b32.xlu0 %v2645, 80
  %v3097 = vpop.permute.xlu0 %3096
  %3098 = vrot.lane.b32.xlu0 %v2646, 80
  %v3099 = vpop.permute.xlu0 %3098
  %3100 = vrot.lane.b32.xlu0 %v2647, 80
  %v3101 = vpop.permute.xlu0 %3100
  %3102 = vrot.lane.b32.xlu0 %v2648, 80
  %v3103 = vpop.permute.xlu0 %3102
  %3104 = vrot.lane.b32.xlu0 %v2649, 80
  %v3105 = vpop.permute.xlu0 %3104
  %3154 = vrot.lane.b32.xlu0 %v2746, 64
  %v3155 = vpop.permute.xlu0 %3154
  %3156 = vrot.lane.b32.xlu0 %v2747, 64
  %v3157 = vpop.permute.xlu0 %3156
  %3158 = vrot.lane.b32.xlu0 %v2748, 64
  %v3159 = vpop.permute.xlu0 %3158
  %3160 = vrot.lane.b32.xlu0 %v2749, 64
  %v3161 = vpop.permute.xlu0 %3160
  %3162 = vrot.lane.b32.xlu0 %v2750, 64
  %v3163 = vpop.permute.xlu0 %3162
  %3164 = vrot.lane.b32.xlu0 %v2751, 64
  %v3165 = vpop.permute.xlu0 %3164
  %3166 = vrot.lane.b32.xlu0 %v2752, 64
  %v3167 = vpop.permute.xlu0 %3166
  %3168 = vrot.lane.b32.xlu0 %v2753, 64
  %v3169 = vpop.permute.xlu0 %3168
  %3170 = vrot.lane.b32.xlu0 %v2754, 64
  %v3171 = vpop.permute.xlu0 %3170
  %3172 = vrot.lane.b32.xlu0 %v2755, 64
  %v3173 = vpop.permute.xlu0 %3172
  %3174 = vrot.lane.b32.xlu0 %v2756, 64
  %v3175 = vpop.permute.xlu0 %3174
  %3176 = vrot.lane.b32.xlu0 %v2757, 64
  %v3177 = vpop.permute.xlu0 %3176
  %3178 = vrot.lane.b32.xlu0 %v2758, 64
  %v3179 = vpop.permute.xlu0 %3178
  %3180 = vrot.lane.b32.xlu0 %v2759, 64
  %v3181 = vpop.permute.xlu0 %3180
  %3182 = vrot.lane.b32.xlu0 %v2760, 64
  %v3183 = vpop.permute.xlu0 %3182
  %3184 = vrot.lane.b32.xlu0 %v2761, 64
  %v3185 = vpop.permute.xlu0 %3184
  %3186 = vrot.lane.b32.xlu0 %v2762, 64
  %v3187 = vpop.permute.xlu0 %3186
  %3188 = vrot.lane.b32.xlu0 %v2763, 64
  %v3189 = vpop.permute.xlu0 %3188
  %3190 = vrot.lane.b32.xlu0 %v2764, 64
  %v3191 = vpop.permute.xlu0 %3190
  %3192 = vrot.lane.b32.xlu0 %v2765, 64
  %v3193 = vpop.permute.xlu0 %3192
  %3194 = vrot.lane.b32.xlu0 %v2766, 64
  %v3195 = vpop.permute.xlu0 %3194
  %3196 = vrot.lane.b32.xlu0 %v2767, 64
  %v3197 = vpop.permute.xlu0 %3196
  %3198 = vrot.lane.b32.xlu0 %v2768, 64
  %v3199 = vpop.permute.xlu0 %3198
  %3200 = vrot.lane.b32.xlu0 %v2769, 64
  %v3201 = vpop.permute.xlu0 %3200
  %3226 = vrot.lane.b32.xlu0 %v2746, 48
  %v3227 = vpop.permute.xlu0 %3226
  %3228 = vrot.lane.b32.xlu0 %v2747, 48
  %v3229 = vpop.permute.xlu0 %3228
  %3230 = vrot.lane.b32.xlu0 %v2748, 48
  %v3231 = vpop.permute.xlu0 %3230
  %3232 = vrot.lane.b32.xlu0 %v2749, 48
  %v3233 = vpop.permute.xlu0 %3232
  %3234 = vrot.lane.b32.xlu0 %v2750, 48
  %v3235 = vpop.permute.xlu0 %3234
  %3236 = vrot.lane.b32.xlu0 %v2751, 48
  %v3237 = vpop.permute.xlu0 %3236
  %3238 = vrot.lane.b32.xlu0 %v2752, 48
  %v3239 = vpop.permute.xlu0 %3238
  %3240 = vrot.lane.b32.xlu0 %v2753, 48
  %v3241 = vpop.permute.xlu0 %3240
  %3242 = vrot.lane.b32.xlu0 %v2754, 48
  %v3243 = vpop.permute.xlu0 %3242
  %3244 = vrot.lane.b32.xlu0 %v2755, 48
  %v3245 = vpop.permute.xlu0 %3244
  %3246 = vrot.lane.b32.xlu0 %v2756, 48
  %v3247 = vpop.permute.xlu0 %3246
  %3248 = vrot.lane.b32.xlu0 %v2757, 48
  %v3249 = vpop.permute.xlu0 %3248
  %3250 = vrot.lane.b32.xlu0 %v2758, 48
  %v3251 = vpop.permute.xlu0 %3250
  %3252 = vrot.lane.b32.xlu0 %v2759, 48
  %v3253 = vpop.permute.xlu0 %3252
  %3254 = vrot.lane.b32.xlu0 %v2760, 48
  %v3255 = vpop.permute.xlu0 %3254
  %3256 = vrot.lane.b32.xlu0 %v2761, 48
  %v3257 = vpop.permute.xlu0 %3256
  %3258 = vrot.lane.b32.xlu0 %v2762, 48
  %v3259 = vpop.permute.xlu0 %3258
  %3260 = vrot.lane.b32.xlu0 %v2763, 48
  %v3261 = vpop.permute.xlu0 %3260
  %3262 = vrot.lane.b32.xlu0 %v2764, 48
  %v3263 = vpop.permute.xlu0 %3262
  %3264 = vrot.lane.b32.xlu0 %v2765, 48
  %v3265 = vpop.permute.xlu0 %3264
  %3266 = vrot.lane.b32.xlu0 %v2766, 48
  %v3267 = vpop.permute.xlu0 %3266
  %3268 = vrot.lane.b32.xlu0 %v2767, 48
  %v3269 = vpop.permute.xlu0 %3268
  %3270 = vrot.lane.b32.xlu0 %v2768, 48
  %v3271 = vpop.permute.xlu0 %3270
  %3272 = vrot.lane.b32.xlu0 %v2769, 48
  %v3273 = vpop.permute.xlu0 %3272
  %3298 = vrot.lane.b32.xlu0 %v2746, 32
  %v3299 = vpop.permute.xlu0 %3298
  %3300 = vrot.lane.b32.xlu0 %v2747, 32
  %v3301 = vpop.permute.xlu0 %3300
  %3302 = vrot.lane.b32.xlu0 %v2748, 32
  %v3303 = vpop.permute.xlu0 %3302
  %3304 = vrot.lane.b32.xlu0 %v2749, 32
  %v3305 = vpop.permute.xlu0 %3304
  %3306 = vrot.lane.b32.xlu0 %v2750, 32
  %v3307 = vpop.permute.xlu0 %3306
  %3308 = vrot.lane.b32.xlu0 %v2751, 32
  %v3309 = vpop.permute.xlu0 %3308
  %3310 = vrot.lane.b32.xlu0 %v2752, 32
  %v3311 = vpop.permute.xlu0 %3310
  %3312 = vrot.lane.b32.xlu0 %v2753, 32
  %v3313 = vpop.permute.xlu0 %3312
  %3314 = vrot.lane.b32.xlu0 %v2754, 32
  %v3315 = vpop.permute.xlu0 %3314
  %3316 = vrot.lane.b32.xlu0 %v2755, 32
  %v3317 = vpop.permute.xlu0 %3316
  %3318 = vrot.lane.b32.xlu0 %v2756, 32
  %v3319 = vpop.permute.xlu0 %3318
  %3320 = vrot.lane.b32.xlu0 %v2757, 32
  %v3321 = vpop.permute.xlu0 %3320
  %3322 = vrot.lane.b32.xlu0 %v2758, 32
  %v3323 = vpop.permute.xlu0 %3322
  %3324 = vrot.lane.b32.xlu0 %v2759, 32
  %v3325 = vpop.permute.xlu0 %3324
  %3326 = vrot.lane.b32.xlu0 %v2760, 32
  %v3327 = vpop.permute.xlu0 %3326
  %3328 = vrot.lane.b32.xlu0 %v2761, 32
  %v3329 = vpop.permute.xlu0 %3328
  %3330 = vrot.lane.b32.xlu0 %v2762, 32
  %v3331 = vpop.permute.xlu0 %3330
  %3332 = vrot.lane.b32.xlu0 %v2763, 32
  %v3333 = vpop.permute.xlu0 %3332
  %3334 = vrot.lane.b32.xlu0 %v2764, 32
  %v3335 = vpop.permute.xlu0 %3334
  %3336 = vrot.lane.b32.xlu0 %v2765, 32
  %v3337 = vpop.permute.xlu0 %3336
  %3338 = vrot.lane.b32.xlu0 %v2766, 32
  %v3339 = vpop.permute.xlu0 %3338
  %3340 = vrot.lane.b32.xlu0 %v2767, 32
  %v3341 = vpop.permute.xlu0 %3340
  %3342 = vrot.lane.b32.xlu0 %v2768, 32
  %v3343 = vpop.permute.xlu0 %3342
  %3344 = vrot.lane.b32.xlu0 %v2769, 32
  %v3345 = vpop.permute.xlu0 %3344
  %3370 = vrot.lane.b32.xlu0 %v2746, 16
  %v3371 = vpop.permute.xlu0 %3370
  %3372 = vrot.lane.b32.xlu0 %v2747, 16
  %v3373 = vpop.permute.xlu0 %3372
  %3374 = vrot.lane.b32.xlu0 %v2748, 16
  %v3375 = vpop.permute.xlu0 %3374
  %3376 = vrot.lane.b32.xlu0 %v2749, 16
  %v3377 = vpop.permute.xlu0 %3376
  %3378 = vrot.lane.b32.xlu0 %v2750, 16
  %v3379 = vpop.permute.xlu0 %3378
  %3380 = vrot.lane.b32.xlu0 %v2751, 16
  %v3381 = vpop.permute.xlu0 %3380
  %3382 = vrot.lane.b32.xlu0 %v2752, 16
  %v3383 = vpop.permute.xlu0 %3382
  %3384 = vrot.lane.b32.xlu0 %v2753, 16
  %v3385 = vpop.permute.xlu0 %3384
  %3386 = vrot.lane.b32.xlu0 %v2754, 16
  %v3387 = vpop.permute.xlu0 %3386
  %3388 = vrot.lane.b32.xlu0 %v2755, 16
  %v3389 = vpop.permute.xlu0 %3388
  %3390 = vrot.lane.b32.xlu0 %v2756, 16
  %v3391 = vpop.permute.xlu0 %3390
  %3392 = vrot.lane.b32.xlu0 %v2757, 16
  %v3393 = vpop.permute.xlu0 %3392
  %3394 = vrot.lane.b32.xlu0 %v2758, 16
  %v3395 = vpop.permute.xlu0 %3394
  %3396 = vrot.lane.b32.xlu0 %v2759, 16
  %v3397 = vpop.permute.xlu0 %3396
  %3398 = vrot.lane.b32.xlu0 %v2760, 16
  %v3399 = vpop.permute.xlu0 %3398
  %3400 = vrot.lane.b32.xlu0 %v2761, 16
  %v3401 = vpop.permute.xlu0 %3400
  %3402 = vrot.lane.b32.xlu0 %v2762, 16
  %v3403 = vpop.permute.xlu0 %3402
  %3404 = vrot.lane.b32.xlu0 %v2763, 16
  %v3405 = vpop.permute.xlu0 %3404
  %3406 = vrot.lane.b32.xlu0 %v2764, 16
  %v3407 = vpop.permute.xlu0 %3406
  %3408 = vrot.lane.b32.xlu0 %v2765, 16
  %v3409 = vpop.permute.xlu0 %3408
  %3410 = vrot.lane.b32.xlu0 %v2766, 16
  %v3411 = vpop.permute.xlu0 %3410
  %3412 = vrot.lane.b32.xlu0 %v2767, 16
  %v3413 = vpop.permute.xlu0 %3412
  %3414 = vrot.lane.b32.xlu0 %v2768, 16
  %v3415 = vpop.permute.xlu0 %3414
  %3416 = vrot.lane.b32.xlu0 %v2769, 16
  %v3417 = vpop.permute.xlu0 %3416
  %3466 = vrot.lane.b32.xlu0 %v2866, 112
  %v3467 = vpop.permute.xlu0 %3466
  %3468 = vrot.lane.b32.xlu0 %v2867, 112
  %v3469 = vpop.permute.xlu0 %3468
  %3470 = vrot.lane.b32.xlu0 %v2868, 112
  %v3471 = vpop.permute.xlu0 %3470
  %3472 = vrot.lane.b32.xlu0 %v2869, 112
  %v3473 = vpop.permute.xlu0 %3472
  %3474 = vrot.lane.b32.xlu0 %v2870, 112
  %v3475 = vpop.permute.xlu0 %3474
  %3476 = vrot.lane.b32.xlu0 %v2871, 112
  %v3477 = vpop.permute.xlu0 %3476
  %3478 = vrot.lane.b32.xlu0 %v2872, 112
  %v3479 = vpop.permute.xlu0 %3478
  %3480 = vrot.lane.b32.xlu0 %v2873, 112
  %v3481 = vpop.permute.xlu0 %3480
  %3482 = vrot.lane.b32.xlu0 %v2874, 112
  %v3483 = vpop.permute.xlu0 %3482
  %3484 = vrot.lane.b32.xlu0 %v2875, 112
  %v3485 = vpop.permute.xlu0 %3484
  %3486 = vrot.lane.b32.xlu0 %v2876, 112
  %v3487 = vpop.permute.xlu0 %3486
  %3488 = vrot.lane.b32.xlu0 %v2877, 112
  %v3489 = vpop.permute.xlu0 %3488
  %3490 = vrot.lane.b32.xlu0 %v2878, 112
  %v3491 = vpop.permute.xlu0 %3490
  %3492 = vrot.lane.b32.xlu0 %v2879, 112
  %v3493 = vpop.permute.xlu0 %3492
  %3494 = vrot.lane.b32.xlu0 %v2880, 112
  %v3495 = vpop.permute.xlu0 %3494
  %3496 = vrot.lane.b32.xlu0 %v2881, 112
  %v3497 = vpop.permute.xlu0 %3496
  %3498 = vrot.lane.b32.xlu0 %v2882, 112
  %v3499 = vpop.permute.xlu0 %3498
  %3500 = vrot.lane.b32.xlu0 %v2883, 112
  %v3501 = vpop.permute.xlu0 %3500
  %3502 = vrot.lane.b32.xlu0 %v2884, 112
  %v3503 = vpop.permute.xlu0 %3502
  %3504 = vrot.lane.b32.xlu0 %v2885, 112
  %v3505 = vpop.permute.xlu0 %3504
  %3506 = vrot.lane.b32.xlu0 %v2886, 112
  %v3507 = vpop.permute.xlu0 %3506
  %3508 = vrot.lane.b32.xlu0 %v2887, 112
  %v3509 = vpop.permute.xlu0 %3508
  %3510 = vrot.lane.b32.xlu0 %v2888, 112
  %v3511 = vpop.permute.xlu0 %3510
  %3512 = vrot.lane.b32.xlu0 %v2889, 112
  %v3513 = vpop.permute.xlu0 %3512
  %3538 = vrot.lane.b32.xlu0 %v2866, 96
  %v3539 = vpop.permute.xlu0 %3538
  %3540 = vrot.lane.b32.xlu0 %v2867, 96
  %v3541 = vpop.permute.xlu0 %3540
  %3542 = vrot.lane.b32.xlu0 %v2868, 96
  %v3543 = vpop.permute.xlu0 %3542
  %3544 = vrot.lane.b32.xlu0 %v2869, 96
  %v3545 = vpop.permute.xlu0 %3544
  %3546 = vrot.lane.b32.xlu0 %v2870, 96
  %v3547 = vpop.permute.xlu0 %3546
  %3548 = vrot.lane.b32.xlu0 %v2871, 96
  %v3549 = vpop.permute.xlu0 %3548
  %3550 = vrot.lane.b32.xlu0 %v2872, 96
  %v3551 = vpop.permute.xlu0 %3550
  %3552 = vrot.lane.b32.xlu0 %v2873, 96
  %v3553 = vpop.permute.xlu0 %3552
  %3554 = vrot.lane.b32.xlu0 %v2874, 96
  %v3555 = vpop.permute.xlu0 %3554
  %3556 = vrot.lane.b32.xlu0 %v2875, 96
  %v3557 = vpop.permute.xlu0 %3556
  %3558 = vrot.lane.b32.xlu0 %v2876, 96
  %v3559 = vpop.permute.xlu0 %3558
  %3560 = vrot.lane.b32.xlu0 %v2877, 96
  %v3561 = vpop.permute.xlu0 %3560
  %3562 = vrot.lane.b32.xlu0 %v2878, 96
  %v3563 = vpop.permute.xlu0 %3562
  %3564 = vrot.lane.b32.xlu0 %v2879, 96
  %v3565 = vpop.permute.xlu0 %3564
  %3566 = vrot.lane.b32.xlu0 %v2880, 96
  %v3567 = vpop.permute.xlu0 %3566
  %3568 = vrot.lane.b32.xlu0 %v2881, 96
  %v3569 = vpop.permute.xlu0 %3568
  %3570 = vrot.lane.b32.xlu0 %v2882, 96
  %v3571 = vpop.permute.xlu0 %3570
  %3572 = vrot.lane.b32.xlu0 %v2883, 96
  %v3573 = vpop.permute.xlu0 %3572
  %3574 = vrot.lane.b32.xlu0 %v2884, 96
  %v3575 = vpop.permute.xlu0 %3574
  %3576 = vrot.lane.b32.xlu0 %v2885, 96
  %v3577 = vpop.permute.xlu0 %3576
  %3578 = vrot.lane.b32.xlu0 %v2886, 96
  %v3579 = vpop.permute.xlu0 %3578
  %3580 = vrot.lane.b32.xlu0 %v2887, 96
  %v3581 = vpop.permute.xlu0 %3580
  %3582 = vrot.lane.b32.xlu0 %v2888, 96
  %v3583 = vpop.permute.xlu0 %3582
  %3584 = vrot.lane.b32.xlu0 %v2889, 96
  %v3585 = vpop.permute.xlu0 %3584
  %3610 = vrot.lane.b32.xlu0 %v2866, 80
  %v3611 = vpop.permute.xlu0 %3610
  %3612 = vrot.lane.b32.xlu0 %v2867, 80
  %v3613 = vpop.permute.xlu0 %3612
  %3614 = vrot.lane.b32.xlu0 %v2868, 80
  %v3615 = vpop.permute.xlu0 %3614
  %3616 = vrot.lane.b32.xlu0 %v2869, 80
  %v3617 = vpop.permute.xlu0 %3616
  %3618 = vrot.lane.b32.xlu0 %v2870, 80
  %v3619 = vpop.permute.xlu0 %3618
  %3620 = vrot.lane.b32.xlu0 %v2871, 80
  %v3621 = vpop.permute.xlu0 %3620
  %3622 = vrot.lane.b32.xlu0 %v2872, 80
  %v3623 = vpop.permute.xlu0 %3622
  %3624 = vrot.lane.b32.xlu0 %v2873, 80
  %v3625 = vpop.permute.xlu0 %3624
  %3626 = vrot.lane.b32.xlu0 %v2874, 80
  %v3627 = vpop.permute.xlu0 %3626
  %3628 = vrot.lane.b32.xlu0 %v2875, 80
  %v3629 = vpop.permute.xlu0 %3628
  %3630 = vrot.lane.b32.xlu0 %v2876, 80
  %v3631 = vpop.permute.xlu0 %3630
  %3632 = vrot.lane.b32.xlu0 %v2877, 80
  %v3633 = vpop.permute.xlu0 %3632
  %3634 = vrot.lane.b32.xlu0 %v2878, 80
  %v3635 = vpop.permute.xlu0 %3634
  %3636 = vrot.lane.b32.xlu0 %v2879, 80
  %v3637 = vpop.permute.xlu0 %3636
  %3638 = vrot.lane.b32.xlu0 %v2880, 80
  %v3639 = vpop.permute.xlu0 %3638
  %3640 = vrot.lane.b32.xlu0 %v2881, 80
  %v3641 = vpop.permute.xlu0 %3640
  %3642 = vrot.lane.b32.xlu0 %v2882, 80
  %v3643 = vpop.permute.xlu0 %3642
  %3644 = vrot.lane.b32.xlu0 %v2883, 80
  %v3645 = vpop.permute.xlu0 %3644
  %3646 = vrot.lane.b32.xlu0 %v2884, 80
  %v3647 = vpop.permute.xlu0 %3646
  %3648 = vrot.lane.b32.xlu0 %v2885, 80
  %v3649 = vpop.permute.xlu0 %3648
  %3650 = vrot.lane.b32.xlu0 %v2886, 80
  %v3651 = vpop.permute.xlu0 %3650
  %3652 = vrot.lane.b32.xlu0 %v2887, 80
  %v3653 = vpop.permute.xlu0 %3652
  %3654 = vrot.lane.b32.xlu0 %v2888, 80
  %v3655 = vpop.permute.xlu0 %3654
  %3656 = vrot.lane.b32.xlu0 %v2889, 80
  %v3657 = vpop.permute.xlu0 %3656
  %vm3682 = vcmask 130048
  %v3683 = vsel %vm3682, %v2626, %v2915
  %v3684 = vsel %vm3682, %v2627, %v2917
  %v3685 = vsel %vm3682, %v2628, %v2919
  %v3686 = vsel %vm3682, %v2629, %v2921
  %v3687 = vsel %vm3682, %v2630, %v2923
  %v3688 = vsel %vm3682, %v2631, %v2925
  %v3689 = vsel %vm3682, %v2632, %v2927
  %v3690 = vsel %vm3682, %v2633, %v2929
  %v3691 = vsel %vm3682, %v2634, %v2931
  %v3692 = vsel %vm3682, %v2635, %v2933
  %v3693 = vsel %vm3682, %v2636, %v2935
  %v3694 = vsel %vm3682, %v2637, %v2937
  %v3695 = vsel %vm3682, %v2638, %v2939
  %v3696 = vsel %vm3682, %v2639, %v2941
  %v3697 = vsel %vm3682, %v2640, %v2943
  %v3698 = vsel %vm3682, %v2641, %v2945
  %v3699 = vsel %vm3682, %v2642, %v2947
  %v3700 = vsel %vm3682, %v2643, %v2949
  %v3701 = vsel %vm3682, %v2644, %v2951
  %v3702 = vsel %vm3682, %v2645, %v2953
  %v3703 = vsel %vm3682, %v2646, %v2955
  %v3704 = vsel %vm3682, %v2647, %v2957
  %v3705 = vsel %vm3682, %v2648, %v2959
  %v3706 = vsel %vm3682, %v2649, %v2961
  %vm3707 = vcmask 261120
  %v3708 = vsel %vm3707, %v3683, %v2987
  %v3709 = vsel %vm3707, %v3684, %v2989
  %v3710 = vsel %vm3707, %v3685, %v2991
  %v3711 = vsel %vm3707, %v3686, %v2993
  %v3712 = vsel %vm3707, %v3687, %v2995
  %v3713 = vsel %vm3707, %v3688, %v2997
  %v3714 = vsel %vm3707, %v3689, %v2999
  %v3715 = vsel %vm3707, %v3690, %v3001
  %v3716 = vsel %vm3707, %v3691, %v3003
  %v3717 = vsel %vm3707, %v3692, %v3005
  %v3718 = vsel %vm3707, %v3693, %v3007
  %v3719 = vsel %vm3707, %v3694, %v3009
  %v3720 = vsel %vm3707, %v3695, %v3011
  %v3721 = vsel %vm3707, %v3696, %v3013
  %v3722 = vsel %vm3707, %v3697, %v3015
  %v3723 = vsel %vm3707, %v3698, %v3017
  %v3724 = vsel %vm3707, %v3699, %v3019
  %v3725 = vsel %vm3707, %v3700, %v3021
  %v3726 = vsel %vm3707, %v3701, %v3023
  %v3727 = vsel %vm3707, %v3702, %v3025
  %v3728 = vsel %vm3707, %v3703, %v3027
  %v3729 = vsel %vm3707, %v3704, %v3029
  %v3730 = vsel %vm3707, %v3705, %v3031
  %v3731 = vsel %vm3707, %v3706, %v3033
  %vm3732 = vcmask 392192
  %v3733 = vsel %vm3732, %v3708, %v3059
  %v3734 = vsel %vm3732, %v3709, %v3061
  %v3735 = vsel %vm3732, %v3710, %v3063
  %v3736 = vsel %vm3732, %v3711, %v3065
  %v3737 = vsel %vm3732, %v3712, %v3067
  %v3738 = vsel %vm3732, %v3713, %v3069
  %v3739 = vsel %vm3732, %v3714, %v3071
  %v3740 = vsel %vm3732, %v3715, %v3073
  %v3741 = vsel %vm3732, %v3716, %v3075
  %v3742 = vsel %vm3732, %v3717, %v3077
  %v3743 = vsel %vm3732, %v3718, %v3079
  %v3744 = vsel %vm3732, %v3719, %v3081
  %v3745 = vsel %vm3732, %v3720, %v3083
  %v3746 = vsel %vm3732, %v3721, %v3085
  %v3747 = vsel %vm3732, %v3722, %v3087
  %v3748 = vsel %vm3732, %v3723, %v3089
  %v3749 = vsel %vm3732, %v3724, %v3091
  %v3750 = vsel %vm3732, %v3725, %v3093
  %v3751 = vsel %vm3732, %v3726, %v3095
  %v3752 = vsel %vm3732, %v3727, %v3097
  %v3753 = vsel %vm3732, %v3728, %v3099
  %v3754 = vsel %vm3732, %v3729, %v3101
  %v3755 = vsel %vm3732, %v3730, %v3103
  %v3756 = vsel %vm3732, %v3731, %v3105
  %vm3757 = vcmask 523264
  %v3758 = vsel %vm3757, %v3733, %v3155
  %v3759 = vsel %vm3757, %v3734, %v3157
  %v3760 = vsel %vm3757, %v3735, %v3159
  %v3761 = vsel %vm3757, %v3736, %v3161
  %v3762 = vsel %vm3757, %v3737, %v3163
  %v3763 = vsel %vm3757, %v3738, %v3165
  %v3764 = vsel %vm3757, %v3739, %v3167
  %v3765 = vsel %vm3757, %v3740, %v3169
  %v3766 = vsel %vm3757, %v3741, %v3171
  %v3767 = vsel %vm3757, %v3742, %v3173
  %v3768 = vsel %vm3757, %v3743, %v3175
  %v3769 = vsel %vm3757, %v3744, %v3177
  %v3770 = vsel %vm3757, %v3745, %v3179
  %v3771 = vsel %vm3757, %v3746, %v3181
  %v3772 = vsel %vm3757, %v3747, %v3183
  %v3773 = vsel %vm3757, %v3748, %v3185
  %v3774 = vsel %vm3757, %v3749, %v3187
  %v3775 = vsel %vm3757, %v3750, %v3189
  %v3776 = vsel %vm3757, %v3751, %v3191
  %v3777 = vsel %vm3757, %v3752, %v3193
  %v3778 = vsel %vm3757, %v3753, %v3195
  %v3779 = vsel %vm3757, %v3754, %v3197
  %v3780 = vsel %vm3757, %v3755, %v3199
  %v3781 = vsel %vm3757, %v3756, %v3201
  %vm3782 = vcmask 654336
  %v3783 = vsel %vm3782, %v3758, %v3227
  %v3784 = vsel %vm3782, %v3759, %v3229
  %v3785 = vsel %vm3782, %v3760, %v3231
  %v3786 = vsel %vm3782, %v3761, %v3233
  %v3787 = vsel %vm3782, %v3762, %v3235
  %v3788 = vsel %vm3782, %v3763, %v3237
  %v3789 = vsel %vm3782, %v3764, %v3239
  %v3790 = vsel %vm3782, %v3765, %v3241
  %v3791 = vsel %vm3782, %v3766, %v3243
  %v3792 = vsel %vm3782, %v3767, %v3245
  %v3793 = vsel %vm3782, %v3768, %v3247
  %v3794 = vsel %vm3782, %v3769, %v3249
  %v3795 = vsel %vm3782, %v3770, %v3251
  %v3796 = vsel %vm3782, %v3771, %v3253
  %v3797 = vsel %vm3782, %v3772, %v3255
  %v3798 = vsel %vm3782, %v3773, %v3257
  %v3799 = vsel %vm3782, %v3774, %v3259
  %v3800 = vsel %vm3782, %v3775, %v3261
  %v3801 = vsel %vm3782, %v3776, %v3263
  %v3802 = vsel %vm3782, %v3777, %v3265
  %v3803 = vsel %vm3782, %v3778, %v3267
  %v3804 = vsel %vm3782, %v3779, %v3269
  %v3805 = vsel %vm3782, %v3780, %v3271
  %v3806 = vsel %vm3782, %v3781, %v3273
  %vm3807 = vcmask 785408
  %v3808 = vsel %vm3807, %v3783, %v3299
  %v3809 = vsel %vm3807, %v3784, %v3301
  %v3810 = vsel %vm3807, %v3785, %v3303
  %v3811 = vsel %vm3807, %v3786, %v3305
  %v3812 = vsel %vm3807, %v3787, %v3307
  %v3813 = vsel %vm3807, %v3788, %v3309
  %v3814 = vsel %vm3807, %v3789, %v3311
  %v3815 = vsel %vm3807, %v3790, %v3313
  %v3816 = vsel %vm3807, %v3791, %v3315
  %v3817 = vsel %vm3807, %v3792, %v3317
  %v3818 = vsel %vm3807, %v3793, %v3319
  %v3819 = vsel %vm3807, %v3794, %v3321
  %v3820 = vsel %vm3807, %v3795, %v3323
  %v3821 = vsel %vm3807, %v3796, %v3325
  %v3822 = vsel %vm3807, %v3797, %v3327
  %v3823 = vsel %vm3807, %v3798, %v3329
  %v3824 = vsel %vm3807, %v3799, %v3331
  %v3825 = vsel %vm3807, %v3800, %v3333
  %v3826 = vsel %vm3807, %v3801, %v3335
  %v3827 = vsel %vm3807, %v3802, %v3337
  %v3828 = vsel %vm3807, %v3803, %v3339
  %v3829 = vsel %vm3807, %v3804, %v3341
  %v3830 = vsel %vm3807, %v3805, %v3343
  %v3831 = vsel %vm3807, %v3806, %v3345
  %vm3832 = vcmask 916480
  %v3833 = vsel %vm3832, %v3808, %v3371
  %v3834 = vsel %vm3832, %v3809, %v3373
  %v3835 = vsel %vm3832, %v3810, %v3375
  %v3836 = vsel %vm3832, %v3811, %v3377
  %v3837 = vsel %vm3832, %v3812, %v3379
  %v3838 = vsel %vm3832, %v3813, %v3381
  %v3839 = vsel %vm3832, %v3814, %v3383
  %v3840 = vsel %vm3832, %v3815, %v3385
  %v3841 = vsel %vm3832, %v3816, %v3387
  %v3842 = vsel %vm3832, %v3817, %v3389
  %v3843 = vsel %vm3832, %v3818, %v3391
  %v3844 = vsel %vm3832, %v3819, %v3393
  %v3845 = vsel %vm3832, %v3820, %v3395
  %v3846 = vsel %vm3832, %v3821, %v3397
  %v3847 = vsel %vm3832, %v3822, %v3399
  %v3848 = vsel %vm3832, %v3823, %v3401
  %v3849 = vsel %vm3832, %v3824, %v3403
  %v3850 = vsel %vm3832, %v3825, %v3405
  %v3851 = vsel %vm3832, %v3826, %v3407
  %v3852 = vsel %vm3832, %v3827, %v3409
  %v3853 = vsel %vm3832, %v3828, %v3411
  %v3854 = vsel %vm3832, %v3829, %v3413
  %v3855 = vsel %vm3832, %v3830, %v3415
  %v3856 = vsel %vm3832, %v3831, %v3417
  %v3857 = vsel %vm3682, %v2866, %v3467
  %v3858 = vsel %vm3682, %v2867, %v3469
  %v3859 = vsel %vm3682, %v2868, %v3471
  %v3860 = vsel %vm3682, %v2869, %v3473
  %v3861 = vsel %vm3682, %v2870, %v3475
  %v3862 = vsel %vm3682, %v2871, %v3477
  %v3863 = vsel %vm3682, %v2872, %v3479
  %v3864 = vsel %vm3682, %v2873, %v3481
  %v3865 = vsel %vm3682, %v2874, %v3483
  %v3866 = vsel %vm3682, %v2875, %v3485
  %v3867 = vsel %vm3682, %v2876, %v3487
  %v3868 = vsel %vm3682, %v2877, %v3489
  %v3869 = vsel %vm3682, %v2878, %v3491
  %v3870 = vsel %vm3682, %v2879, %v3493
  %v3871 = vsel %vm3682, %v2880, %v3495
  %v3872 = vsel %vm3682, %v2881, %v3497
  %v3873 = vsel %vm3682, %v2882, %v3499
  %v3874 = vsel %vm3682, %v2883, %v3501
  %v3875 = vsel %vm3682, %v2884, %v3503
  %v3876 = vsel %vm3682, %v2885, %v3505
  %v3877 = vsel %vm3682, %v2886, %v3507
  %v3878 = vsel %vm3682, %v2887, %v3509
  %v3879 = vsel %vm3682, %v2888, %v3511
  %v3880 = vsel %vm3682, %v2889, %v3513
  %v3881 = vsel %vm3707, %v3857, %v3539
  %v3882 = vsel %vm3707, %v3858, %v3541
  %v3883 = vsel %vm3707, %v3859, %v3543
  %v3884 = vsel %vm3707, %v3860, %v3545
  %v3885 = vsel %vm3707, %v3861, %v3547
  %v3886 = vsel %vm3707, %v3862, %v3549
  %v3887 = vsel %vm3707, %v3863, %v3551
  %v3888 = vsel %vm3707, %v3864, %v3553
  %v3889 = vsel %vm3707, %v3865, %v3555
  %v3890 = vsel %vm3707, %v3866, %v3557
  %v3891 = vsel %vm3707, %v3867, %v3559
  %v3892 = vsel %vm3707, %v3868, %v3561
  %v3893 = vsel %vm3707, %v3869, %v3563
  %v3894 = vsel %vm3707, %v3870, %v3565
  %v3895 = vsel %vm3707, %v3871, %v3567
  %v3896 = vsel %vm3707, %v3872, %v3569
  %v3897 = vsel %vm3707, %v3873, %v3571
  %v3898 = vsel %vm3707, %v3874, %v3573
  %v3899 = vsel %vm3707, %v3875, %v3575
  %v3900 = vsel %vm3707, %v3876, %v3577
  %v3901 = vsel %vm3707, %v3877, %v3579
  %v3902 = vsel %vm3707, %v3878, %v3581
  %v3903 = vsel %vm3707, %v3879, %v3583
  %v3904 = vsel %vm3707, %v3880, %v3585
  %v3905 = vsel %vm3732, %v3881, %v3611
  %v3906 = vsel %vm3732, %v3882, %v3613
  %v3907 = vsel %vm3732, %v3883, %v3615
  %v3908 = vsel %vm3732, %v3884, %v3617
  %v3909 = vsel %vm3732, %v3885, %v3619
  %v3910 = vsel %vm3732, %v3886, %v3621
  %v3911 = vsel %vm3732, %v3887, %v3623
  %v3912 = vsel %vm3732, %v3888, %v3625
  %v3913 = vsel %vm3732, %v3889, %v3627
  %v3914 = vsel %vm3732, %v3890, %v3629
  %v3915 = vsel %vm3732, %v3891, %v3631
  %v3916 = vsel %vm3732, %v3892, %v3633
  %v3917 = vsel %vm3732, %v3893, %v3635
  %v3918 = vsel %vm3732, %v3894, %v3637
  %v3919 = vsel %vm3732, %v3895, %v3639
  %v3920 = vsel %vm3732, %v3896, %v3641
  %v3921 = vsel %vm3732, %v3897, %v3643
  %v3922 = vsel %vm3732, %v3898, %v3645
  %v3923 = vsel %vm3732, %v3899, %v3647
  %v3924 = vsel %vm3732, %v3900, %v3649
  %v3925 = vsel %vm3732, %v3901, %v3651
  %v3926 = vsel %vm3732, %v3902, %v3653
  %v3927 = vsel %vm3732, %v3903, %v3655
  %v3928 = vsel %vm3732, %v3904, %v3657
  %v3929 = vmax.f32 %v3833, %v3834
  %v3930 = vmax.f32 %v3905, %v3906
  %v3931 = vmax.f32 %v3835, %v3836
  %v3932 = vmax.f32 %v3907, %v3908
  %v3933 = vmax.f32 %v3837, %v3838
  %v3934 = vmax.f32 %v3909, %v3910
  %v3935 = vmax.f32 %v3839, %v3840
  %v3936 = vmax.f32 %v3911, %v3912
  %v3937 = vmax.f32 %v3841, %v3842
  %v3938 = vmax.f32 %v3913, %v3914
  %v3939 = vmax.f32 %v3843, %v3844
  %v3940 = vmax.f32 %v3915, %v3916
  %v3941 = vmax.f32 %v3845, %v3846
  %v3942 = vmax.f32 %v3917, %v3918
  %v3943 = vmax.f32 %v3847, %v3848
  %v3944 = vmax.f32 %v3919, %v3920
  %v3945 = vmax.f32 %v3849, %v3850
  %v3946 = vmax.f32 %v3921, %v3922
  %v3947 = vmax.f32 %v3851, %v3852
  %v3948 = vmax.f32 %v3923, %v3924
  %v3949 = vmax.f32 %v3853, %v3854
  %v3950 = vmax.f32 %v3925, %v3926
  %v3951 = vmax.f32 %v3855, %v3856
  %v3952 = vmax.f32 %v3927, %v3928
  %v3953 = vmax.f32 %v3929, 0.0
  %v3954 = vmax.f32 %v3930, 0.0
  %v3955 = vmax.f32 %v3931, 0.0
  %v3956 = vmax.f32 %v3932, 0.0
  %v3957 = vmax.f32 %v3933, 0.0
  %v3958 = vmax.f32 %v3934, 0.0
  %v3959 = vmax.f32 %v3935, 0.0
  %v3960 = vmax.f32 %v3936, 0.0
  %v3961 = vmax.f32 %v3937, 0.0
  %v3962 = vmax.f32 %v3938, 0.0
  %v3963 = vmax.f32 %v3939, 0.0
  %v3964 = vmax.f32 %v3940, 0.0
  %v3965 = vmax.f32 %v3941, 0.0
  %v3966 = vmax.f32 %v3942, 0.0
  %v3967 = vmax.f32 %v3943, 0.0
  %v3968 = vmax.f32 %v3944, 0.0
  %v3969 = vmax.f32 %v3945, 0.0
  %v3970 = vmax.f32 %v3946, 0.0
  %v3971 = vmax.f32 %v3947, 0.0
  %v3972 = vmax.f32 %v3948, 0.0
  %v3973 = vmax.f32 %v3949, 0.0
  %v3974 = vmax.f32 %v3950, 0.0
  %v3975 = vmax.f32 %v3951, 0.0
  %v3976 = vmax.f32 %v3952, 0.0
  %v3977 = vld [vmem:[%s3] sm:$0xff]
  %v3978 = vld [vmem:[%s3 + $0x8] sm:$0xff]
  %v3979 = vld [vmem:[%s3 + $0x10] sm:$0xff]
  %v3980 = vld [vmem:[%s3 + $0x18] sm:$0xff]
  %v3981 = vld [vmem:[%s3 + $0x20] sm:$0xff]
  %v3982 = vld [vmem:[%s3 + $0x28] sm:$0xff]
  %v3983 = vld [vmem:[%s3 + $0x30] sm:$0xff]
  %v3984 = vld [vmem:[%s3 + $0x38] sm:$0xff]
  %v3985 = vld [vmem:[%s3 + $0x40] sm:$0xff]
  %v3986 = vld [vmem:[%s3 + $0x48] sm:$0xff]
  %v3987 = vld [vmem:[%s3 + $0x50] sm:$0xff]
  %v3988 = vld [vmem:[%s3 + $0x58] sm:$0xff]
  %v3989 = vld [vmem:[%s3 + $0x60] sm:$0xff]
  %v3990 = vld [vmem:[%s3 + $0x68] sm:$0xff]
  %v3991 = vld [vmem:[%s3 + $0x70] sm:$0xff]
  %v3992 = vld [vmem:[%s3 + $0x78] sm:$0xff]
  %v3993 = vld [vmem:[%s3 + $0x80] sm:$0xff]
  %v3994 = vld [vmem:[%s3 + $0x88] sm:$0xff]
  %v3995 = vld [vmem:[%s3 + $0x90] sm:$0xff]
  %v3996 = vld [vmem:[%s3 + $0x98] sm:$0xff]
  %v3997 = vld [vmem:[%s3 + $0xa0] sm:$0xff]
  %v3998 = vld [vmem:[%s3 + $0xa8] sm:$0xff]
  %v3999 = vld [vmem:[%s3 + $0xb0] sm:$0xff]
  %v4000 = vld [vmem:[%s3 + $0xb8] sm:$0xff]
  %v4001 = vld [vmem:[%s3 + $0xc0] sm:$0xff]
  %v4002 = vld [vmem:[%s3 + $0xc8] sm:$0xff]
  %v4003 = vld [vmem:[%s3 + $0xd0] sm:$0xff]
  %v4004 = vld [vmem:[%s3 + $0xd8] sm:$0xff]
  %v4005 = vld [vmem:[%s3 + $0xe0] sm:$0xff]
  %v4006 = vld [vmem:[%s3 + $0xe8] sm:$0xff]
  %v4007 = vld [vmem:[%s3 + $0xf0] sm:$0xff]
  %v4008 = vld [vmem:[%s3 + $0xf8] sm:$0xff]
  %v4009 = vld [vmem:[%s3 + $0x100] sm:$0xff]
  %v4010 = vld [vmem:[%s3 + $0x108] sm:$0xff]
  %v4011 = vld [vmem:[%s3 + $0x110] sm:$0xff]
  %v4012 = vld [vmem:[%s3 + $0x118] sm:$0xff]
  %v4013 = vld [vmem:[%s3 + $0x120] sm:$0xff]
  %v4014 = vld [vmem:[%s3 + $0x128] sm:$0xff]
  %v4015 = vld [vmem:[%s3 + $0x130] sm:$0xff]
  %v4016 = vld [vmem:[%s3 + $0x138] sm:$0xff]
  %v4017 = vld [vmem:[%s3 + $0x140] sm:$0xff]
  %v4018 = vld [vmem:[%s3 + $0x148] sm:$0xff]
  %v4019 = vld [vmem:[%s3 + $0x150] sm:$0xff]
  %v4020 = vld [vmem:[%s3 + $0x158] sm:$0xff]
  %v4021 = vld [vmem:[%s3 + $0x160] sm:$0xff]
  %v4022 = vld [vmem:[%s3 + $0x168] sm:$0xff]
  %v4023 = vld [vmem:[%s3 + $0x170] sm:$0xff]
  %v4024 = vld [vmem:[%s3 + $0x178] sm:$0xff]
  %s4025 = scalar_lea.vmem %s3, 384
  %v4026 = vld [vmem:[%s4025] sm:$0xff]
  %v4027 = vld [vmem:[%s4025 + $0x8] sm:$0xff]
  %v4028 = vld [vmem:[%s4025 + $0x10] sm:$0xff]
  %v4029 = vld [vmem:[%s4025 + $0x18] sm:$0xff]
  %v4030 = vld [vmem:[%s4025 + $0x20] sm:$0xff]
  %v4031 = vld [vmem:[%s4025 + $0x28] sm:$0xff]
  %v4032 = vld [vmem:[%s4025 + $0x30] sm:$0xff]
  %v4033 = vld [vmem:[%s4025 + $0x38] sm:$0xff]
  %v4034 = vld [vmem:[%s4025 + $0x40] sm:$0xff]
  %v4035 = vld [vmem:[%s4025 + $0x48] sm:$0xff]
  %v4036 = vld [vmem:[%s4025 + $0x50] sm:$0xff]
  %v4037 = vld [vmem:[%s4025 + $0x58] sm:$0xff]
  %v4038 = vld [vmem:[%s4025 + $0x60] sm:$0xff]
  %v4039 = vld [vmem:[%s4025 + $0x68] sm:$0xff]
  %v4040 = vld [vmem:[%s4025 + $0x70] sm:$0xff]
  %v4041 = vld [vmem:[%s4025 + $0x78] sm:$0xff]
  %v4042 = vld [vmem:[%s4025 + $0x80] sm:$0xff]
  %v4043 = vld [vmem:[%s4025 + $0x88] sm:$0xff]
  %v4044 = vld [vmem:[%s4025 + $0x90] sm:$0xff]
  %v4045 = vld [vmem:[%s4025 + $0x98] sm:$0xff]
  %v4046 = vld [vmem:[%s4025 + $0xa0] sm:$0xff]
  %v4047 = vld [vmem:[%s4025 + $0xa8] sm:$0xff]
  %v4048 = vld [vmem:[%s4025 + $0xb0] sm:$0xff]
  %v4049 = vld [vmem:[%s4025 + $0xb8] sm:$0xff]
  %v4050 = vld [vmem:[%s4025 + $0xc0] sm:$0xff]
  %v4051 = vld [vmem:[%s4025 + $0xc8] sm:$0xff]
  %v4052 = vld [vmem:[%s4025 + $0xd0] sm:$0xff]
  %v4053 = vld [vmem:[%s4025 + $0xd8] sm:$0xff]
  %v4054 = vld [vmem:[%s4025 + $0xe0] sm:$0xff]
  %v4055 = vld [vmem:[%s4025 + $0xe8] sm:$0xff]
  %v4056 = vld [vmem:[%s4025 + $0xf0] sm:$0xff]
  %v4057 = vld [vmem:[%s4025 + $0xf8] sm:$0xff]
  %v4058 = vld [vmem:[%s4025 + $0x100] sm:$0xff]
  %v4059 = vld [vmem:[%s4025 + $0x108] sm:$0xff]
  %v4060 = vld [vmem:[%s4025 + $0x110] sm:$0xff]
  %v4061 = vld [vmem:[%s4025 + $0x118] sm:$0xff]
  %v4062 = vld [vmem:[%s4025 + $0x120] sm:$0xff]
  %v4063 = vld [vmem:[%s4025 + $0x128] sm:$0xff]
  %v4064 = vld [vmem:[%s4025 + $0x130] sm:$0xff]
  %v4065 = vld [vmem:[%s4025 + $0x138] sm:$0xff]
  %v4066 = vld [vmem:[%s4025 + $0x140] sm:$0xff]
  %v4067 = vld [vmem:[%s4025 + $0x148] sm:$0xff]
  %v4068 = vld [vmem:[%s4025 + $0x150] sm:$0xff]
  %v4069 = vld [vmem:[%s4025 + $0x158] sm:$0xff]
  %v4070 = vld [vmem:[%s4025 + $0x160] sm:$0xff]
  %v4071 = vld [vmem:[%s4025 + $0x168] sm:$0xff]
  %v4072 = vld [vmem:[%s4025 + $0x170] sm:$0xff]
  %v4073 = vld [vmem:[%s4025 + $0x178] sm:$0xff]
  %v4075 = vsel %vm3757, %v3956, 0
  %v4078 = vsel %vm3757, %v3958, 0
  %v4081 = vsel %vm3757, %v3960, 0
  %v4084 = vsel %vm3757, %v3962, 0
  %v4087 = vsel %vm3757, %v3964, 0
  %v4090 = vsel %vm3757, %v3966, 0
  %v4093 = vsel %vm3757, %v3968, 0
  %v4096 = vsel %vm3757, %v3970, 0
  %4098 = vmatprep.subr.mxu0 %v4027
  %4099 = vmatpush1.msra.mxu0 %v4026
  %4100 = vmatprep.subr.mxu0 %v4029
  %4101 = vmatpush1.msra.mxu0 %v4028
  %4102 = vmatprep.subr.mxu0 %v4031
  %4103 = vmatpush1.msra.mxu0 %v4030
  %4104 = vmatprep.subr.mxu0 %v4033
  %4105 = vmatpush1.msra.mxu0 %v4032
  %4106 = vmatprep.subr.mxu0 %v4035
  %4107 = vmatpush1.msra.mxu0 %v4034
  %4108 = vmatprep.subr.mxu0 %v4037
  %4109 = vmatpush1.msra.mxu0 %v4036
  %4110 = vmatprep.subr.mxu0 %v4039
  %4111 = vmatpush1.msra.mxu0 %v4038
  %4112 = vmatprep.subr.mxu0 %v4041
  %4113 = vmatpush1.msra.mxu0 %v4040
  %4114 = vmatprep.subr.mxu0 %v4043
  %4115 = vmatpush1.msra.mxu0 %v4042
  %4116 = vmatprep.subr.mxu0 %v4045
  %4117 = vmatpush1.msra.mxu0 %v4044
  %4118 = vmatprep.subr.mxu0 %v4047
  %4119 = vmatpush1.msra.mxu0 %v4046
  %4120 = vmatprep.subr.mxu0 %v4049
  %4121 = vmatpush1.msra.mxu0 %v4048
  %4122 = vmatprep.subr.mxu0 %v4051
  %4123 = vmatpush1.msra.mxu0 %v4050
  %4124 = vmatprep.subr.mxu0 %v4053
  %4125 = vmatpush1.msra.mxu0 %v4052
  %4126 = vmatprep.subr.mxu0 %v4055
  %4127 = vmatpush1.msra.mxu0 %v4054
  %4128 = vmatprep.subr.mxu0 %v4057
  %4129 = vmatpush1.msra.mxu0 %v4056
  %4130 = vmatprep.subr.mxu0 %v4059
  %4131 = vmatpush1.msra.mxu0 %v4058
  %4132 = vmatprep.subr.mxu0 %v4061
  %4133 = vmatpush1.msra.mxu0 %v4060
  %4134 = vmatprep.subr.mxu0 %v4063
  %4135 = vmatpush1.msra.mxu0 %v4062
  %4136 = vmatprep.subr.mxu0 %v4065
  %4137 = vmatpush1.msra.mxu0 %v4064
  %4138 = vmatprep.subr.mxu0 %v4067
  %4139 = vmatpush1.msra.mxu0 %v4066
  %4140 = vmatprep.subr.mxu0 %v4069
  %4141 = vmatpush1.msra.mxu0 %v4068
  %4142 = vmatprep.subr.mxu0 %v4071
  %4143 = vmatpush1.msra.mxu0 %v4070
  %4144 = vmatprep.subr.mxu0 %v4073
  %4145 = vmatpush1.msra.mxu0 %v4072
  %4146 = vmatprep.subr.mxu0 0.0
  %4147 = vmatpush1.msra.mxu0 0.0
  %4148 = vmatprep.subr.mxu0 0.0
  %4149 = vmatpush1.msra.mxu0 0.0
  %4150 = vmatprep.subr.mxu0 0.0
  %4151 = vmatpush1.msra.mxu0 0.0
  %4152 = vmatprep.subr.mxu0 0.0
  %4153 = vmatpush1.msra.mxu0 0.0
  %4154 = vmatprep.subr.mxu0 0.0
  %4155 = vmatpush1.msra.mxu0 0.0
  %4156 = vmatprep.subr.mxu0 0.0
  %4157 = vmatpush1.msra.mxu0 0.0
  %4158 = vmatprep.subr.mxu0 0.0
  %4159 = vmatpush1.msra.mxu0 0.0
  %4160 = vmatprep.subr.mxu0 0.0
  %4161 = vmatpush1.msra.mxu0 0.0
  %4162 = vmatprep.mubr.f32.mxu0 %v4075
  %4163 = vmatmul.mubr.f32.gmra.mrb[0].mxu0 %v3955
  %v4164 = vpop.f32.mrb[0].mxu0
  %v4165 = vadd.f32 0.0, %v4164
  %v4166 = vpop.f32.mrb[0].mxu0
  %v4167 = vadd.f32 0.0, %v4166
  %4168 = vmatprep.mubr.f32.mxu0 %v4078
  %4169 = vmatmul.mubr.f32.gmra.mrb[0].mxu0 %v3957
  %v4170 = vpop.f32.mrb[0].mxu0
  %v4171 = vadd.f32 0.0, %v4170
  %v4172 = vpop.f32.mrb[0].mxu0
  %v4173 = vadd.f32 0.0, %v4172
  %4174 = vmatprep.mubr.f32.mxu0 %v4081
  %4175 = vmatmul.mubr.f32.gmra.mrb[0].mxu0 %v3959
  %v4176 = vpop.f32.mrb[0].mxu0
  %v4177 = vadd.f32 0.0, %v4176
  %v4178 = vpop.f32.mrb[0].mxu0
  %v4179 = vadd.f32 0.0, %v4178
  %4180 = vmatprep.mubr.f32.mxu0 %v4084
  %4181 = vmatmul.mubr.f32.gmra.mrb[0].mxu0 %v3961
  %v4182 = vpop.f32.mrb[0].mxu0
  %v4183 = vadd.f32 0.0, %v4182
  %v4184 = vpop.f32.mrb[0].mxu0
  %v4185 = vadd.f32 0.0, %v4184
  %4186 = vmatprep.mubr.f32.mxu0 %v4087
  %4187 = vmatmul.mubr.f32.gmra.mrb[0].mxu0 %v3963
  %v4188 = vpop.f32.mrb[0].mxu0
  %v4189 = vadd.f32 0.0, %v4188
  %v4190 = vpop.f32.mrb[0].mxu0
  %v4191 = vadd.f32 0.0, %v4190
  %4192 = vmatprep.mubr.f32.mxu0 %v4090
  %4193 = vmatmul.mubr.f32.gmra.mrb[0].mxu0 %v3965
  %v4194 = vpop.f32.mrb[0].mxu0
  %v4195 = vadd.f32 0.0, %v4194
  %v4196 = vpop.f32.mrb[0].mxu0
  %v4197 = vadd.f32 0.0, %v4196
  %4198 = vmatprep.mubr.f32.mxu0 %v4093
  %4199 = vmatmul.mubr.f32.gmra.mrb[0].mxu0 %v3967
  %v4200 = vpop.f32.mrb[0].mxu0
  %v4201 = vadd.f32 0.0, %v4200
  %v4202 = vpop.f32.mrb[0].mxu0
  %v4203 = vadd.f32 0.0, %v4202
  %4204 = vmatprep.mubr.f32.mxu0 %v4096
  %4205 = vmatmul.mubr.f32.gmra.mrb[0].mxu0 %v3969
  %v4206 = vpop.f32.mrb[0].mxu0
  %v4207 = vadd.f32 0.0, %v4206
  %v4208 = vpop.f32.mrb[0].mxu0
  %v4209 = vadd.f32 0.0, %v4208
  %4210 = vdwg.mxu0
  %v4212 = vsel %vm3757, %v3954, 0
  %4214 = vmatprep.subr.mxu0 %v3978
  %4215 = vmatpush1.msra.mxu0 %v3977
  %4216 = vmatprep.subr.mxu0 %v3980
  %4217 = vmatpush1.msra.mxu0 %v3979
  %4218 = vmatprep.subr.mxu0 %v3982
  %4219 = vmatpush1.msra.mxu0 %v3981
  %4220 = vmatprep.subr.mxu0 %v3984
  %4221 = vmatpush1.msra.mxu0 %v3983
  %4222 = vmatprep.subr.mxu0 %v3986
  %4223 = vmatpush1.msra.mxu0 %v3985
  %4224 = vmatprep.subr.mxu0 %v3988
  %4225 = vmatpush1.msra.mxu0 %v3987
  %4226 = vmatprep.subr.mxu0 %v3990
  %4227 = vmatpush1.msra.mxu0 %v3989
  %4228 = vmatprep.subr.mxu0 %v3992
  %4229 = vmatpush1.msra.mxu0 %v3991
  %4230 = vmatprep.subr.mxu0 %v3994
  %4231 = vmatpush1.msra.mxu0 %v3993
  %4232 = vmatprep.subr.mxu0 %v3996
  %4233 = vmatpush1.msra.mxu0 %v3995
  %4234 = vmatprep.subr.mxu0 %v3998
  %4235 = vmatpush1.msra.mxu0 %v3997
  %4236 = vmatprep.subr.mxu0 %v4000
  %4237 = vmatpush1.msra.mxu0 %v3999
  %4238 = vmatprep.subr.mxu0 %v4002
  %4239 = vmatpush1.msra.mxu0 %v4001
  %4240 = vmatprep.subr.mxu0 %v4004
  %4241 = vmatpush1.msra.mxu0 %v4003
  %4242 = vmatprep.subr.mxu0 %v4006
  %4243 = vmatpush1.msra.mxu0 %v4005
  %4244 = vmatprep.subr.mxu0 %v4008
  %4245 = vmatpush1.msra.mxu0 %v4007
  %4246 = vmatprep.subr.mxu0 %v4010
  %4247 = vmatpush1.msra.mxu0 %v4009
  %4248 = vmatprep.subr.mxu0 %v4012
  %4249 = vmatpush1.msra.mxu0 %v4011
  %4250 = vmatprep.subr.mxu0 %v4014
  %4251 = vmatpush1.msra.mxu0 %v4013
  %4252 = vmatprep.subr.mxu0 %v4016
  %4253 = vmatpush1.msra.mxu0 %v4015
  %4254 = vmatprep.subr.mxu0 %v4018
  %4255 = vmatpush1.msra.mxu0 %v4017
  %4256 = vmatprep.subr.mxu0 %v4020
  %4257 = vmatpush1.msra.mxu0 %v4019
  %4258 = vmatprep.subr.mxu0 %v4022
  %4259 = vmatpush1.msra.mxu0 %v4021
  %4260 = vmatprep.subr.mxu0 %v4024
  %4261 = vmatpush1.msra.mxu0 %v4023
  %4262 = vmatprep.subr.mxu0 0.0
  %4263 = vmatpush1.msra.mxu0 0.0
  %4264 = vmatprep.subr.mxu0 0.0
  %4265 = vmatpush1.msra.mxu0 0.0
  %4266 = vmatprep.subr.mxu0 0.0
  %4267 = vmatpush1.msra.mxu0 0.0
  %4268 = vmatprep.subr.mxu0 0.0
  %4269 = vmatpush1.msra.mxu0 0.0
  %4270 = vmatprep.subr.mxu0 0.0
  %4271 = vmatpush1.msra.mxu0 0.0
  %4272 = vmatprep.subr.mxu0 0.0
  %4273 = vmatpush1.msra.mxu0 0.0
  %4274 = vmatprep.subr.mxu0 0.0
  %4275 = vmatpush1.msra.mxu0 0.0
  %4276 = vmatprep.subr.mxu0 0.0
  %4277 = vmatpush1.msra.mxu0 0.0
  %4278 = vmatprep.mubr.f32.mxu0 %v4212
  %4279 = vmatmul.mubr.f32.gmra.mrb[0].mxu0 %v3953
  %v4280 = vpop.f32.mrb[0].mxu0
  %v4281 = vadd.f32 %v4165, %v4280
  %v4282 = vpop.f32.mrb[0].mxu0
  %v4283 = vadd.f32 %v4167, %v4282
  %4284 = vmatprep.mubr.f32.mxu0 %v4075
  %4285 = vmatmul.mubr.f32.gmra.mrb[0].mxu0 %v3955
  %v4286 = vpop.f32.mrb[0].mxu0
  %v4287 = vadd.f32 %v4171, %v4286
  %v4288 = vpop.f32.mrb[0].mxu0
  %v4289 = vadd.f32 %v4173, %v4288
  %4290 = vmatprep.mubr.f32.mxu0 %v4078
  %4291 = vmatmul.mubr.f32.gmra.mrb[0].mxu0 %v3957
  %v4292 = vpop.f32.mrb[0].mxu0
  %v4293 = vadd.f32 %v4177, %v4292
  %v4294 = vpop.f32.mrb[0].mxu0
  %v4295 = vadd.f32 %v4179, %v4294
  %4296 = vmatprep.mubr.f32.mxu0 %v4081
  %4297 = vmatmul.mubr.f32.gmra.mrb[0].mxu0 %v3959
  %v4298 = vpop.f32.mrb[0].mxu0
  %v4299 = vadd.f32 %v4183, %v4298
  %v4300 = vpop.f32.mrb[0].mxu0
  %v4301 = vadd.f32 %v4185, %v4300
  %4302 = vmatprep.mubr.f32.mxu0 %v4084
  %4303 = vmatmul.mubr.f32.gmra.mrb[0].mxu0 %v3961
  %v4304 = vpop.f32.mrb[0].mxu0
  %v4305 = vadd.f32 %v4189, %v4304
  %v4306 = vpop.f32.mrb[0].mxu0
  %v4307 = vadd.f32 %v4191, %v4306
  %4308 = vmatprep.mubr.f32.mxu0 %v4087
  %4309 = vmatmul.mubr.f32.gmra.mrb[0].mxu0 %v3963
  %v4310 = vpop.f32.mrb[0].mxu0
  %v4311 = vadd.f32 %v4195, %v4310
  %v4312 = vpop.f32.mrb[0].mxu0
  %v4313 = vadd.f32 %v4197, %v4312
  %4314 = vmatprep.mubr.f32.mxu0 %v4090
  %4315 = vmatmul.mubr.f32.gmra.mrb[0].mxu0 %v3965
  %v4316 = vpop.f32.mrb[0].mxu0
  %v4317 = vadd.f32 %v4201, %v4316
  %v4318 = vpop.f32.mrb[0].mxu0
  %v4319 = vadd.f32 %v4203, %v4318
  %4320 = vmatprep.mubr.f32.mxu0 %v4093
  %4321 = vmatmul.mubr.f32.gmra.mrb[0].mxu0 %v3967
  %v4322 = vpop.f32.mrb[0].mxu0
  %v4323 = vadd.f32 %v4207, %v4322
  %v4324 = vpop.f32.mrb[0].mxu0
  %v4325 = vadd.f32 %v4209, %v4324
  %4326 = vdwg.mxu0
  %s4327 = scalar_lea.vmem %s3, 768
  %v4328 = vld [vmem:[%s4327] sm:$0xff]
  %v4329 = vld [vmem:[%s4327 + $0x8] sm:$0xff]
  %v4330 = vld [vmem:[%s4327 + $0x10] sm:$0xff]
  %v4331 = vld [vmem:[%s4327 + $0x18] sm:$0xff]
  %v4332 = vld [vmem:[%s4327 + $0x20] sm:$0xff]
  %v4333 = vld [vmem:[%s4327 + $0x28] sm:$0xff]
  %v4334 = vld [vmem:[%s4327 + $0x30] sm:$0xff]
  %v4335 = vld [vmem:[%s4327 + $0x38] sm:$0xff]
  %v4336 = vld [vmem:[%s4327 + $0x40] sm:$0xff]
  %v4337 = vld [vmem:[%s4327 + $0x48] sm:$0xff]
  %v4338 = vld [vmem:[%s4327 + $0x50] sm:$0xff]
  %v4339 = vld [vmem:[%s4327 + $0x58] sm:$0xff]
  %v4340 = vld [vmem:[%s4327 + $0x60] sm:$0xff]
  %v4341 = vld [vmem:[%s4327 + $0x68] sm:$0xff]
  %v4342 = vld [vmem:[%s4327 + $0x70] sm:$0xff]
  %v4343 = vld [vmem:[%s4327 + $0x78] sm:$0xff]
  %v4344 = vld [vmem:[%s4327 + $0x80] sm:$0xff]
  %v4345 = vld [vmem:[%s4327 + $0x88] sm:$0xff]
  %v4346 = vld [vmem:[%s4327 + $0x90] sm:$0xff]
  %v4347 = vld [vmem:[%s4327 + $0x98] sm:$0xff]
  %v4348 = vld [vmem:[%s4327 + $0xa0] sm:$0xff]
  %v4349 = vld [vmem:[%s4327 + $0xa8] sm:$0xff]
  %v4350 = vld [vmem:[%s4327 + $0xb0] sm:$0xff]
  %v4351 = vld [vmem:[%s4327 + $0xb8] sm:$0xff]
  %v4352 = vld [vmem:[%s4327 + $0xc0] sm:$0xff]
  %v4353 = vld [vmem:[%s4327 + $0xc8] sm:$0xff]
  %v4354 = vld [vmem:[%s4327 + $0xd0] sm:$0xff]
  %v4355 = vld [vmem:[%s4327 + $0xd8] sm:$0xff]
  %v4356 = vld [vmem:[%s4327 + $0xe0] sm:$0xff]
  %v4357 = vld [vmem:[%s4327 + $0xe8] sm:$0xff]
  %v4358 = vld [vmem:[%s4327 + $0xf0] sm:$0xff]
  %v4359 = vld [vmem:[%s4327 + $0xf8] sm:$0xff]
  %v4360 = vld [vmem:[%s4327 + $0x100] sm:$0xff]
  %v4361 = vld [vmem:[%s4327 + $0x108] sm:$0xff]
  %v4362 = vld [vmem:[%s4327 + $0x110] sm:$0xff]
  %v4363 = vld [vmem:[%s4327 + $0x118] sm:$0xff]
  %v4364 = vld [vmem:[%s4327 + $0x120] sm:$0xff]
  %v4365 = vld [vmem:[%s4327 + $0x128] sm:$0xff]
  %v4366 = vld [vmem:[%s4327 + $0x130] sm:$0xff]
  %v4367 = vld [vmem:[%s4327 + $0x138] sm:$0xff]
  %v4368 = vld [vmem:[%s4327 + $0x140] sm:$0xff]
  %v4369 = vld [vmem:[%s4327 + $0x148] sm:$0xff]
  %v4370 = vld [vmem:[%s4327 + $0x150] sm:$0xff]
  %v4371 = vld [vmem:[%s4327 + $0x158] sm:$0xff]
  %v4372 = vld [vmem:[%s4327 + $0x160] sm:$0xff]
  %v4373 = vld [vmem:[%s4327 + $0x168] sm:$0xff]
  %v4374 = vld [vmem:[%s4327 + $0x170] sm:$0xff]
  %v4375 = vld [vmem:[%s4327 + $0x178] sm:$0xff]
  %v4377 = vsel %vm3757, %v3972, 0
  %4379 = vmatprep.subr.mxu0 %v4329
  %4380 = vmatpush1.msra.mxu0 %v4328
  %4381 = vmatprep.subr.mxu0 %v4331
  %4382 = vmatpush1.msra.mxu0 %v4330
  %4383 = vmatprep.subr.mxu0 %v4333
  %4384 = vmatpush1.msra.mxu0 %v4332
  %4385 = vmatprep.subr.mxu0 %v4335
  %4386 = vmatpush1.msra.mxu0 %v4334
  %4387 = vmatprep.subr.mxu0 %v4337
  %4388 = vmatpush1.msra.mxu0 %v4336
  %4389 = vmatprep.subr.mxu0 %v4339
  %4390 = vmatpush1.msra.mxu0 %v4338
  %4391 = vmatprep.subr.mxu0 %v4341
  %4392 = vmatpush1.msra.mxu0 %v4340
  %4393 = vmatprep.subr.mxu0 %v4343
  %4394 = vmatpush1.msra.mxu0 %v4342
  %4395 = vmatprep.subr.mxu0 %v4345
  %4396 = vmatpush1.msra.mxu0 %v4344
  %4397 = vmatprep.subr.mxu0 %v4347
  %4398 = vmatpush1.msra.mxu0 %v4346
  %4399 = vmatprep.subr.mxu0 %v4349
  %4400 = vmatpush1.msra.mxu0 %v4348
  %4401 = vmatprep.subr.mxu0 %v4351
  %4402 = vmatpush1.msra.mxu0 %v4350
  %4403 = vmatprep.subr.mxu0 %v4353
  %4404 = vmatpush1.msra.mxu0 %v4352
  %4405 = vmatprep.subr.mxu0 %v4355
  %4406 = vmatpush1.msra.mxu0 %v4354
  %4407 = vmatprep.subr.mxu0 %v4357
  %4408 = vmatpush1.msra.mxu0 %v4356
  %4409 = vmatprep.subr.mxu0 %v4359
  %4410 = vmatpush1.msra.mxu0 %v4358
  %4411 = vmatprep.subr.mxu0 %v4361
  %4412 = vmatpush1.msra.mxu0 %v4360
  %4413 = vmatprep.subr.mxu0 %v4363
  %4414 = vmatpush1.msra.mxu0 %v4362
  %4415 = vmatprep.subr.mxu0 %v4365
  %4416 = vmatpush1.msra.mxu0 %v4364
  %4417 = vmatprep.subr.mxu0 %v4367
  %4418 = vmatpush1.msra.mxu0 %v4366
  %4419 = vmatprep.subr.mxu0 %v4369
  %4420 = vmatpush1.msra.mxu0 %v4368
  %4421 = vmatprep.subr.mxu0 %v4371
  %4422 = vmatpush1.msra.mxu0 %v4370
  %4423 = vmatprep.subr.mxu0 %v4373
  %4424 = vmatpush1.msra.mxu0 %v4372
  %4425 = vmatprep.subr.mxu0 %v4375
  %4426 = vmatpush1.msra.mxu0 %v4374
  %4427 = vmatprep.subr.mxu0 0.0
  %4428 = vmatpush1.msra.mxu0 0.0
  %4429 = vmatprep.subr.mxu0 0.0
  %4430 = vmatpush1.msra.mxu0 0.0
  %4431 = vmatprep.subr.mxu0 0.0
  %4432 = vmatpush1.msra.mxu0 0.0
  %4433 = vmatprep.subr.mxu0 0.0
  %4434 = vmatpush1.msra.mxu0 0.0
  %4435 = vmatprep.subr.mxu0 0.0
  %4436 = vmatpush1.msra.mxu0 0.0
  %4437 = vmatprep.subr.mxu0 0.0
  %4438 = vmatpush1.msra.mxu0 0.0
  %4439 = vmatprep.subr.mxu0 0.0
  %4440 = vmatpush1.msra.mxu0 0.0
  %4441 = vmatprep.subr.mxu0 0.0
  %4442 = vmatpush1.msra.mxu0 0.0
  %4443 = vmatprep.mubr.f32.mxu0 %v4078
  %4444 = vmatmul.mubr.f32.gmra.mrb[0].mxu0 %v3957
  %v4445 = vpop.f32.mrb[0].mxu0
  %v4446 = vadd.f32 0.0, %v4445
  %v4447 = vpop.f32.mrb[0].mxu0
  %v4448 = vadd.f32 0.0, %v4447
  %4449 = vmatprep.mubr.f32.mxu0 %v4081
  %4450 = vmatmul.mubr.f32.gmra.mrb[0].mxu0 %v3959
  %v4451 = vpop.f32.mrb[0].mxu0
  %v4452 = vadd.f32 0.0, %v4451
  %v4453 = vpop.f32.mrb[0].mxu0
  %v4454 = vadd.f32 0.0, %v4453
  %4455 = vmatprep.mubr.f32.mxu0 %v4084
  %4456 = vmatmul.mubr.f32.gmra.mrb[0].mxu0 %v3961
  %v4457 = vpop.f32.mrb[0].mxu0
  %v4458 = vadd.f32 0.0, %v4457
  %v4459 = vpop.f32.mrb[0].mxu0
  %v4460 = vadd.f32 0.0, %v4459
  %4461 = vmatprep.mubr.f32.mxu0 %v4087
  %4462 = vmatmul.mubr.f32.gmra.mrb[0].mxu0 %v3963
  %v4463 = vpop.f32.mrb[0].mxu0
  %v4464 = vadd.f32 0.0, %v4463
  %v4465 = vpop.f32.mrb[0].mxu0
  %v4466 = vadd.f32 0.0, %v4465
  %4467 = vmatprep.mubr.f32.mxu0 %v4090
  %4468 = vmatmul.mubr.f32.gmra.mrb[0].mxu0 %v3965
  %v4469 = vpop.f32.mrb[0].mxu0
  %v4470 = vadd.f32 0.0, %v4469
  %v4471 = vpop.f32.mrb[0].mxu0
  %v4472 = vadd.f32 0.0, %v4471
  %4473 = vmatprep.mubr.f32.mxu0 %v4093
  %4474 = vmatmul.mubr.f32.gmra.mrb[0].mxu0 %v3967
  %v4475 = vpop.f32.mrb[0].mxu0
  %v4476 = vadd.f32 0.0, %v4475
  %v4477 = vpop.f32.mrb[0].mxu0
  %v4478 = vadd.f32 0.0, %v4477
  %4479 = vmatprep.mubr.f32.mxu0 %v4096
  %4480 = vmatmul.mubr.f32.gmra.mrb[0].mxu0 %v3969
  %v4481 = vpop.f32.mrb[0].mxu0
  %v4482 = vadd.f32 0.0, %v4481
  %v4483 = vpop.f32.mrb[0].mxu0
  %v4484 = vadd.f32 0.0, %v4483
  %4485 = vmatprep.mubr.f32.mxu0 %v4377
  %4486 = vmatmul.mubr.f32.gmra.mrb[0].mxu0 %v3971
  %v4487 = vpop.f32.mrb[0].mxu0
  %v4488 = vadd.f32 0.0, %v4487
  %v4489 = vpop.f32.mrb[0].mxu0
  %v4490 = vadd.f32 0.0, %v4489
  %4491 = vdwg.mxu0
  %v4492 = vadd.f32 %v4281, %v4446
  %v4493 = vadd.f32 %v4283, %v4448
  %v4494 = vadd.f32 %v4287, %v4452
  %v4495 = vadd.f32 %v4289, %v4454
  %v4496 = vadd.f32 %v4293, %v4458
  %v4497 = vadd.f32 %v4295, %v4460
  %v4498 = vadd.f32 %v4299, %v4464
  %v4499 = vadd.f32 %v4301, %v4466
  %v4500 = vadd.f32 %v4305, %v4470
  %v4501 = vadd.f32 %v4307, %v4472
  %v4502 = vadd.f32 %v4311, %v4476
  %v4503 = vadd.f32 %v4313, %v4478
  %v4504 = vadd.f32 %v4317, %v4482
  %v4505 = vadd.f32 %v4319, %v4484
  %v4506 = vadd.f32 %v4323, %v4488
  %v4507 = vadd.f32 %v4325, %v4490
  %s4508 = scalar_lea.vmem %s3, 1152
  %v4509 = vld [vmem:[%s4508] sm:$0xff]
  %v4510 = vld [vmem:[%s4508 + $0x8] sm:$0xff]
  %v4511 = vld [vmem:[%s4508 + $0x10] sm:$0xff]
  %v4512 = vld [vmem:[%s4508 + $0x18] sm:$0xff]
  %v4513 = vld [vmem:[%s4508 + $0x20] sm:$0xff]
  %v4514 = vld [vmem:[%s4508 + $0x28] sm:$0xff]
  %v4515 = vld [vmem:[%s4508 + $0x30] sm:$0xff]
  %v4516 = vld [vmem:[%s4508 + $0x38] sm:$0xff]
  %v4517 = vld [vmem:[%s4508 + $0x40] sm:$0xff]
  %v4518 = vld [vmem:[%s4508 + $0x48] sm:$0xff]
  %v4519 = vld [vmem:[%s4508 + $0x50] sm:$0xff]
  %v4520 = vld [vmem:[%s4508 + $0x58] sm:$0xff]
  %v4521 = vld [vmem:[%s4508 + $0x60] sm:$0xff]
  %v4522 = vld [vmem:[%s4508 + $0x68] sm:$0xff]
  %v4523 = vld [vmem:[%s4508 + $0x70] sm:$0xff]
  %v4524 = vld [vmem:[%s4508 + $0x78] sm:$0xff]
  %v4525 = vld [vmem:[%s4508 + $0x80] sm:$0xff]
  %v4526 = vld [vmem:[%s4508 + $0x88] sm:$0xff]
  %v4527 = vld [vmem:[%s4508 + $0x90] sm:$0xff]
  %v4528 = vld [vmem:[%s4508 + $0x98] sm:$0xff]
  %v4529 = vld [vmem:[%s4508 + $0xa0] sm:$0xff]
  %v4530 = vld [vmem:[%s4508 + $0xa8] sm:$0xff]
  %v4531 = vld [vmem:[%s4508 + $0xb0] sm:$0xff]
  %v4532 = vld [vmem:[%s4508 + $0xb8] sm:$0xff]
  %v4533 = vld [vmem:[%s4508 + $0xc0] sm:$0xff]
  %v4534 = vld [vmem:[%s4508 + $0xc8] sm:$0xff]
  %v4535 = vld [vmem:[%s4508 + $0xd0] sm:$0xff]
  %v4536 = vld [vmem:[%s4508 + $0xd8] sm:$0xff]
  %v4537 = vld [vmem:[%s4508 + $0xe0] sm:$0xff]
  %v4538 = vld [vmem:[%s4508 + $0xe8] sm:$0xff]
  %v4539 = vld [vmem:[%s4508 + $0xf0] sm:$0xff]
  %v4540 = vld [vmem:[%s4508 + $0xf8] sm:$0xff]
  %v4541 = vld [vmem:[%s4508 + $0x100] sm:$0xff]
  %v4542 = vld [vmem:[%s4508 + $0x108] sm:$0xff]
  %v4543 = vld [vmem:[%s4508 + $0x110] sm:$0xff]
  %v4544 = vld [vmem:[%s4508 + $0x118] sm:$0xff]
  %v4545 = vld [vmem:[%s4508 + $0x120] sm:$0xff]
  %v4546 = vld [vmem:[%s4508 + $0x128] sm:$0xff]
  %v4547 = vld [vmem:[%s4508 + $0x130] sm:$0xff]
  %v4548 = vld [vmem:[%s4508 + $0x138] sm:$0xff]
  %v4549 = vld [vmem:[%s4508 + $0x140] sm:$0xff]
  %v4550 = vld [vmem:[%s4508 + $0x148] sm:$0xff]
  %v4551 = vld [vmem:[%s4508 + $0x150] sm:$0xff]
  %v4552 = vld [vmem:[%s4508 + $0x158] sm:$0xff]
  %v4553 = vld [vmem:[%s4508 + $0x160] sm:$0xff]
  %v4554 = vld [vmem:[%s4508 + $0x168] sm:$0xff]
  %v4555 = vld [vmem:[%s4508 + $0x170] sm:$0xff]
  %v4556 = vld [vmem:[%s4508 + $0x178] sm:$0xff]
  %v4558 = vsel %vm3757, %v3974, 0
  %4560 = vmatprep.subr.mxu0 %v4510
  %4561 = vmatpush1.msra.mxu0 %v4509
  %4562 = vmatprep.subr.mxu0 %v4512
  %4563 = vmatpush1.msra.mxu0 %v4511
  %4564 = vmatprep.subr.mxu0 %v4514
  %4565 = vmatpush1.msra.mxu0 %v4513
  %4566 = vmatprep.subr.mxu0 %v4516
  %4567 = vmatpush1.msra.mxu0 %v4515
  %4568 = vmatprep.subr.mxu0 %v4518
  %4569 = vmatpush1.msra.mxu0 %v4517
  %4570 = vmatprep.subr.mxu0 %v4520
  %4571 = vmatpush1.msra.mxu0 %v4519
  %4572 = vmatprep.subr.mxu0 %v4522
  %4573 = vmatpush1.msra.mxu0 %v4521
  %4574 = vmatprep.subr.mxu0 %v4524
  %4575 = vmatpush1.msra.mxu0 %v4523
  %4576 = vmatprep.subr.mxu0 %v4526
  %4577 = vmatpush1.msra.mxu0 %v4525
  %4578 = vmatprep.subr.mxu0 %v4528
  %4579 = vmatpush1.msra.mxu0 %v4527
  %4580 = vmatprep.subr.mxu0 %v4530
  %4581 = vmatpush1.msra.mxu0 %v4529
  %4582 = vmatprep.subr.mxu0 %v4532
  %4583 = vmatpush1.msra.mxu0 %v4531
  %4584 = vmatprep.subr.mxu0 %v4534
  %4585 = vmatpush1.msra.mxu0 %v4533
  %4586 = vmatprep.subr.mxu0 %v4536
  %4587 = vmatpush1.msra.mxu0 %v4535
  %4588 = vmatprep.subr.mxu0 %v4538
  %4589 = vmatpush1.msra.mxu0 %v4537
  %4590 = vmatprep.subr.mxu0 %v4540
  %4591 = vmatpush1.msra.mxu0 %v4539
  %4592 = vmatprep.subr.mxu0 %v4542
  %4593 = vmatpush1.msra.mxu0 %v4541
  %4594 = vmatprep.subr.mxu0 %v4544
  %4595 = vmatpush1.msra.mxu0 %v4543
  %4596 = vmatprep.subr.mxu0 %v4546
  %4597 = vmatpush1.msra.mxu0 %v4545
  %4598 = vmatprep.subr.mxu0 %v4548
  %4599 = vmatpush1.msra.mxu0 %v4547
  %4600 = vmatprep.subr.mxu0 %v4550
  %4601 = vmatpush1.msra.mxu0 %v4549
  %4602 = vmatprep.subr.mxu0 %v4552
  %4603 = vmatpush1.msra.mxu0 %v4551
  %4604 = vmatprep.subr.mxu0 %v4554
  %4605 = vmatpush1.msra.mxu0 %v4553
  %4606 = vmatprep.subr.mxu0 %v4556
  %4607 = vmatpush1.msra.mxu0 %v4555
  %4608 = vmatprep.subr.mxu0 0.0
  %4609 = vmatpush1.msra.mxu0 0.0
  %4610 = vmatprep.subr.mxu0 0.0
  %4611 = vmatpush1.msra.mxu0 0.0
  %4612 = vmatprep.subr.mxu0 0.0
  %4613 = vmatpush1.msra.mxu0 0.0
  %4614 = vmatprep.subr.mxu0 0.0
  %4615 = vmatpush1.msra.mxu0 0.0
  %4616 = vmatprep.subr.mxu0 0.0
  %4617 = vmatpush1.msra.mxu0 0.0
  %4618 = vmatprep.subr.mxu0 0.0
  %4619 = vmatpush1.msra.mxu0 0.0
  %4620 = vmatprep.subr.mxu0 0.0
  %4621 = vmatpush1.msra.mxu0 0.0
  %4622 = vmatprep.subr.mxu0 0.0
  %4623 = vmatpush1.msra.mxu0 0.0
  %4624 = vmatprep.mubr.f32.mxu0 %v4081
  %4625 = vmatmul.mubr.f32.gmra.mrb[0].mxu0 %v3959
  %v4626 = vpop.f32.mrb[0].mxu0
  %v4627 = vadd.f32 0.0, %v4626
  %v4628 = vpop.f32.mrb[0].mxu0
  %v4629 = vadd.f32 0.0, %v4628
  %4630 = vmatprep.mubr.f32.mxu0 %v4084
  %4631 = vmatmul.mubr.f32.gmra.mrb[0].mxu0 %v3961
  %v4632 = vpop.f32.mrb[0].mxu0
  %v4633 = vadd.f32 0.0, %v4632
  %v4634 = vpop.f32.mrb[0].mxu0
  %v4635 = vadd.f32 0.0, %v4634
  %4636 = vmatprep.mubr.f32.mxu0 %v4087
  %4637 = vmatmul.mubr.f32.gmra.mrb[0].mxu0 %v3963
  %v4638 = vpop.f32.mrb[0].mxu0
  %v4639 = vadd.f32 0.0, %v4638
  %v4640 = vpop.f32.mrb[0].mxu0
  %v4641 = vadd.f32 0.0, %v4640
  %4642 = vmatprep.mubr.f32.mxu0 %v4090
  %4643 = vmatmul.mubr.f32.gmra.mrb[0].mxu0 %v3965
  %v4644 = vpop.f32.mrb[0].mxu0
  %v4645 = vadd.f32 0.0, %v4644
  %v4646 = vpop.f32.mrb[0].mxu0
  %v4647 = vadd.f32 0.0, %v4646
  %4648 = vmatprep.mubr.f32.mxu0 %v4093
  %4649 = vmatmul.mubr.f32.gmra.mrb[0].mxu0 %v3967
  %v4650 = vpop.f32.mrb[0].mxu0
  %v4651 = vadd.f32 0.0, %v4650
  %v4652 = vpop.f32.mrb[0].mxu0
  %v4653 = vadd.f32 0.0, %v4652
  %4654 = vmatprep.mubr.f32.mxu0 %v4096
  %4655 = vmatmul.mubr.f32.gmra.mrb[0].mxu0 %v3969
  %v4656 = vpop.f32.mrb[0].mxu0
  %v4657 = vadd.f32 0.0, %v4656
  %v4658 = vpop.f32.mrb[0].mxu0
  %v4659 = vadd.f32 0.0, %v4658
  %4660 = vmatprep.mubr.f32.mxu0 %v4377
  %4661 = vmatmul.mubr.f32.gmra.mrb[0].mxu0 %v3971
  %v4662 = vpop.f32.mrb[0].mxu0
  %v4663 = vadd.f32 0.0, %v4662
  %v4664 = vpop.f32.mrb[0].mxu0
  %v4665 = vadd.f32 0.0, %v4664
  %4666 = vmatprep.mubr.f32.mxu0 %v4558
  %4667 = vmatmul.mubr.f32.gmra.mrb[0].mxu0 %v3973
  %v4668 = vpop.f32.mrb[0].mxu0
  %v4669 = vadd.f32 0.0, %v4668
  %v4670 = vpop.f32.mrb[0].mxu0
  %v4671 = vadd.f32 0.0, %v4670
  %4672 = vdwg.mxu0
  %v4673 = vadd.f32 %v4492, %v4627
  %v4674 = vadd.f32 %v4493, %v4629
  %v4675 = vadd.f32 %v4494, %v4633
  %v4676 = vadd.f32 %v4495, %v4635
  %v4677 = vadd.f32 %v4496, %v4639
  %v4678 = vadd.f32 %v4497, %v4641
  %v4679 = vadd.f32 %v4498, %v4645
  %v4680 = vadd.f32 %v4499, %v4647
  %v4681 = vadd.f32 %v4500, %v4651
  %v4682 = vadd.f32 %v4501, %v4653
  %v4683 = vadd.f32 %v4502, %v4657
  %v4684 = vadd.f32 %v4503, %v4659
  %v4685 = vadd.f32 %v4504, %v4663
  %v4686 = vadd.f32 %v4505, %v4665
  %v4687 = vadd.f32 %v4506, %v4669
  %v4688 = vadd.f32 %v4507, %v4671
  %s4689 = scalar_lea.vmem %s3, 1536
  %v4690 = vld [vmem:[%s4689] sm:$0xff]
  %v4691 = vld [vmem:[%s4689 + $0x8] sm:$0xff]
  %v4692 = vld [vmem:[%s4689 + $0x10] sm:$0xff]
  %v4693 = vld [vmem:[%s4689 + $0x18] sm:$0xff]
  %v4694 = vld [vmem:[%s4689 + $0x20] sm:$0xff]
  %v4695 = vld [vmem:[%s4689 + $0x28] sm:$0xff]
  %v4696 = vld [vmem:[%s4689 + $0x30] sm:$0xff]
  %v4697 = vld [vmem:[%s4689 + $0x38] sm:$0xff]
  %v4698 = vld [vmem:[%s4689 + $0x40] sm:$0xff]
  %v4699 = vld [vmem:[%s4689 + $0x48] sm:$0xff]
  %v4700 = vld [vmem:[%s4689 + $0x50] sm:$0xff]
  %v4701 = vld [vmem:[%s4689 + $0x58] sm:$0xff]
  %v4702 = vld [vmem:[%s4689 + $0x60] sm:$0xff]
  %v4703 = vld [vmem:[%s4689 + $0x68] sm:$0xff]
  %v4704 = vld [vmem:[%s4689 + $0x70] sm:$0xff]
  %v4705 = vld [vmem:[%s4689 + $0x78] sm:$0xff]
  %v4706 = vld [vmem:[%s4689 + $0x80] sm:$0xff]
  %v4707 = vld [vmem:[%s4689 + $0x88] sm:$0xff]
  %v4708 = vld [vmem:[%s4689 + $0x90] sm:$0xff]
  %v4709 = vld [vmem:[%s4689 + $0x98] sm:$0xff]
  %v4710 = vld [vmem:[%s4689 + $0xa0] sm:$0xff]
  %v4711 = vld [vmem:[%s4689 + $0xa8] sm:$0xff]
  %v4712 = vld [vmem:[%s4689 + $0xb0] sm:$0xff]
  %v4713 = vld [vmem:[%s4689 + $0xb8] sm:$0xff]
  %v4714 = vld [vmem:[%s4689 + $0xc0] sm:$0xff]
  %v4715 = vld [vmem:[%s4689 + $0xc8] sm:$0xff]
  %v4716 = vld [vmem:[%s4689 + $0xd0] sm:$0xff]
  %v4717 = vld [vmem:[%s4689 + $0xd8] sm:$0xff]
  %v4718 = vld [vmem:[%s4689 + $0xe0] sm:$0xff]
  %v4719 = vld [vmem:[%s4689 + $0xe8] sm:$0xff]
  %v4720 = vld [vmem:[%s4689 + $0xf0] sm:$0xff]
  %v4721 = vld [vmem:[%s4689 + $0xf8] sm:$0xff]
  %v4722 = vld [vmem:[%s4689 + $0x100] sm:$0xff]
  %v4723 = vld [vmem:[%s4689 + $0x108] sm:$0xff]
  %v4724 = vld [vmem:[%s4689 + $0x110] sm:$0xff]
  %v4725 = vld [vmem:[%s4689 + $0x118] sm:$0xff]
  %v4726 = vld [vmem:[%s4689 + $0x120] sm:$0xff]
  %v4727 = vld [vmem:[%s4689 + $0x128] sm:$0xff]
  %v4728 = vld [vmem:[%s4689 + $0x130] sm:$0xff]
  %v4729 = vld [vmem:[%s4689 + $0x138] sm:$0xff]
  %v4730 = vld [vmem:[%s4689 + $0x140] sm:$0xff]
  %v4731 = vld [vmem:[%s4689 + $0x148] sm:$0xff]
  %v4732 = vld [vmem:[%s4689 + $0x150] sm:$0xff]
  %v4733 = vld [vmem:[%s4689 + $0x158] sm:$0xff]
  %v4734 = vld [vmem:[%s4689 + $0x160] sm:$0xff]
  %v4735 = vld [vmem:[%s4689 + $0x168] sm:$0xff]
  %v4736 = vld [vmem:[%s4689 + $0x170] sm:$0xff]
  %v4737 = vld [vmem:[%s4689 + $0x178] sm:$0xff]
  %v4739 = vsel %vm3757, %v3976, 0
  %4741 = vmatprep.subr.mxu0 %v4691
  %4742 = vmatpush1.msra.mxu0 %v4690
  %4743 = vmatprep.subr.mxu0 %v4693
  %4744 = vmatpush1.msra.mxu0 %v4692
  %4745 = vmatprep.subr.mxu0 %v4695
  %4746 = vmatpush1.msra.mxu0 %v4694
  %4747 = vmatprep.subr.mxu0 %v4697
  %4748 = vmatpush1.msra.mxu0 %v4696
  %4749 = vmatprep.subr.mxu0 %v4699
  %4750 = vmatpush1.msra.mxu0 %v4698
  %4751 = vmatprep.subr.mxu0 %v4701
  %4752 = vmatpush1.msra.mxu0 %v4700
  %4753 = vmatprep.subr.mxu0 %v4703
  %4754 = vmatpush1.msra.mxu0 %v4702
  %4755 = vmatprep.subr.mxu0 %v4705
  %4756 = vmatpush1.msra.mxu0 %v4704
  %4757 = vmatprep.subr.mxu0 %v4707
  %4758 = vmatpush1.msra.mxu0 %v4706
  %4759 = vmatprep.subr.mxu0 %v4709
  %4760 = vmatpush1.msra.mxu0 %v4708
  %4761 = vmatprep.subr.mxu0 %v4711
  %4762 = vmatpush1.msra.mxu0 %v4710
  %4763 = vmatprep.subr.mxu0 %v4713
  %4764 = vmatpush1.msra.mxu0 %v4712
  %4765 = vmatprep.subr.mxu0 %v4715
  %4766 = vmatpush1.msra.mxu0 %v4714
  %4767 = vmatprep.subr.mxu0 %v4717
  %4768 = vmatpush1.msra.mxu0 %v4716
  %4769 = vmatprep.subr.mxu0 %v4719
  %4770 = vmatpush1.msra.mxu0 %v4718
  %4771 = vmatprep.subr.mxu0 %v4721
  %4772 = vmatpush1.msra.mxu0 %v4720
  %4773 = vmatprep.subr.mxu0 %v4723
  %4774 = vmatpush1.msra.mxu0 %v4722
  %4775 = vmatprep.subr.mxu0 %v4725
  %4776 = vmatpush1.msra.mxu0 %v4724
  %4777 = vmatprep.subr.mxu0 %v4727
  %4778 = vmatpush1.msra.mxu0 %v4726
  %4779 = vmatprep.subr.mxu0 %v4729
  %4780 = vmatpush1.msra.mxu0 %v4728
  %4781 = vmatprep.subr.mxu0 %v4731
  %4782 = vmatpush1.msra.mxu0 %v4730
  %4783 = vmatprep.subr.mxu0 %v4733
  %4784 = vmatpush1.msra.mxu0 %v4732
  %4785 = vmatprep.subr.mxu0 %v4735
  %4786 = vmatpush1.msra.mxu0 %v4734
  %4787 = vmatprep.subr.mxu0 %v4737
  %4788 = vmatpush1.msra.mxu0 %v4736
  %4789 = vmatprep.subr.mxu0 0.0
  %4790 = vmatpush1.msra.mxu0 0.0
  %4791 = vmatprep.subr.mxu0 0.0
  %4792 = vmatpush1.msra.mxu0 0.0
  %4793 = vmatprep.subr.mxu0 0.0
  %4794 = vmatpush1.msra.mxu0 0.0
  %4795 = vmatprep.subr.mxu0 0.0
  %4796 = vmatpush1.msra.mxu0 0.0
  %4797 = vmatprep.subr.mxu0 0.0
  %4798 = vmatpush1.msra.mxu0 0.0
  %4799 = vmatprep.subr.mxu0 0.0
  %4800 = vmatpush1.msra.mxu0 0.0
  %4801 = vmatprep.subr.mxu0 0.0
  %4802 = vmatpush1.msra.mxu0 0.0
  %4803 = vmatprep.subr.mxu0 0.0
  %4804 = vmatpush1.msra.mxu0 0.0
  %4805 = vmatprep.mubr.f32.mxu0 %v4084
  %4806 = vmatmul.mubr.f32.gmra.mrb[0].mxu0 %v3961
  %v4807 = vpop.f32.mrb[0].mxu0
  %v4808 = vadd.f32 0.0, %v4807
  %v4809 = vpop.f32.mrb[0].mxu0
  %v4810 = vadd.f32 0.0, %v4809
  %4811 = vmatprep.mubr.f32.mxu0 %v4087
  %4812 = vmatmul.mubr.f32.gmra.mrb[0].mxu0 %v3963
  %v4813 = vpop.f32.mrb[0].mxu0
  %v4814 = vadd.f32 0.0, %v4813
  %v4815 = vpop.f32.mrb[0].mxu0
  %v4816 = vadd.f32 0.0, %v4815
  %4817 = vmatprep.mubr.f32.mxu0 %v4090
  %4818 = vmatmul.mubr.f32.gmra.mrb[0].mxu0 %v3965
  %v4819 = vpop.f32.mrb[0].mxu0
  %v4820 = vadd.f32 0.0, %v4819
  %v4821 = vpop.f32.mrb[0].mxu0
  %v4822 = vadd.f32 0.0, %v4821
  %4823 = vmatprep.mubr.f32.mxu0 %v4093
  %4824 = vmatmul.mubr.f32.gmra.mrb[0].mxu0 %v3967
  %v4825 = vpop.f32.mrb[0].mxu0
  %v4826 = vadd.f32 0.0, %v4825
  %v4827 = vpop.f32.mrb[0].mxu0
  %v4828 = vadd.f32 0.0, %v4827
  %4829 = vmatprep.mubr.f32.mxu0 %v4096
  %4830 = vmatmul.mubr.f32.gmra.mrb[0].mxu0 %v3969
  %v4831 = vpop.f32.mrb[0].mxu0
  %v4832 = vadd.f32 0.0, %v4831
  %v4833 = vpop.f32.mrb[0].mxu0
  %v4834 = vadd.f32 0.0, %v4833
  %4835 = vmatprep.mubr.f32.mxu0 %v4377
  %4836 = vmatmul.mubr.f32.gmra.mrb[0].mxu0 %v3971
  %v4837 = vpop.f32.mrb[0].mxu0
  %v4838 = vadd.f32 0.0, %v4837
  %v4839 = vpop.f32.mrb[0].mxu0
  %v4840 = vadd.f32 0.0, %v4839
  %4841 = vmatprep.mubr.f32.mxu0 %v4558
  %4842 = vmatmul.mubr.f32.gmra.mrb[0].mxu0 %v3973
  %v4843 = vpop.f32.mrb[0].mxu0
  %v4844 = vadd.f32 0.0, %v4843
  %v4845 = vpop.f32.mrb[0].mxu0
  %v4846 = vadd.f32 0.0, %v4845
  %4847 = vmatprep.mubr.f32.mxu0 %v4739
  %4848 = vmatmul.mubr.f32.gmra.mrb[0].mxu0 %v3975
  %v4849 = vpop.f32.mrb[0].mxu0
  %v4850 = vadd.f32 0.0, %v4849
  %v4851 = vpop.f32.mrb[0].mxu0
  %v4852 = vadd.f32 0.0, %v4851
  %4853 = vdwg.mxu0
  %v4854 = vadd.f32 %v4673, %v4808
  %v4855 = vadd.f32 %v4674, %v4810
  %v4856 = vadd.f32 %v4675, %v4814
  %v4857 = vadd.f32 %v4676, %v4816
  %v4858 = vadd.f32 %v4677, %v4820
  %v4859 = vadd.f32 %v4678, %v4822
  %v4860 = vadd.f32 %v4679, %v4826
  %v4861 = vadd.f32 %v4680, %v4828
  %v4862 = vadd.f32 %v4681, %v4832
  %v4863 = vadd.f32 %v4682, %v4834
  %v4864 = vadd.f32 %v4683, %v4838
  %v4865 = vadd.f32 %v4684, %v4840
  %v4866 = vadd.f32 %v4685, %v4844
  %v4867 = vadd.f32 %v4686, %v4846
  %v4868 = vadd.f32 %v4687, %v4850
  %v4869 = vadd.f32 %v4688, %v4852
  %v4870 = vld [vmem:[%s4] sm:$0x3]
  %v4872 = vlaneseq
  %v4873 = vshrl.u32 %v4872, 7
  %v4874 = vsub.s32 0, %v4873
  %v4875 = vrot.slane %v4870, %v4874
  %v4876 = vlaneseq
  %v4877 = vshrl.u32 %v4876, 7
  %v4878 = vsub.s32 1, %v4877
  %v4879 = vrot.slane %v4870, %v4878
  %v4882 = vadd.f32 %v4854, %v4875
  %v4883 = vadd.f32 %v4855, %v4879
  %v4884 = vadd.f32 %v4856, %v4875
  %v4885 = vadd.f32 %v4857, %v4879
  %v4886 = vadd.f32 %v4858, %v4875
  %v4887 = vadd.f32 %v4859, %v4879
  %v4888 = vadd.f32 %v4860, %v4875
  %v4889 = vadd.f32 %v4861, %v4879
  %v4890 = vadd.f32 %v4862, %v4875
  %v4891 = vadd.f32 %v4863, %v4879
  %v4892 = vadd.f32 %v4864, %v4875
  %v4893 = vadd.f32 %v4865, %v4879
  %v4894 = vadd.f32 %v4866, %v4875
  %v4895 = vadd.f32 %v4867, %v4879
  %v4896 = vadd.f32 %v4868, %v4875
  %v4897 = vadd.f32 %v4869, %v4879
  %4906 = vrot.lane.b32.xlu0 %v4882, 96
  %v4907 = vpop.permute.xlu0 %4906
  %4908 = vrot.lane.b32.xlu0 %v4884, 96
  %v4909 = vpop.permute.xlu0 %4908
  %4910 = vrot.lane.b32.xlu0 %v4886, 96
  %v4911 = vpop.permute.xlu0 %4910
  %4912 = vrot.lane.b32.xlu0 %v4888, 96
  %v4913 = vpop.permute.xlu0 %4912
  %4914 = vrot.lane.b32.xlu0 %v4890, 96
  %v4915 = vpop.permute.xlu0 %4914
  %4916 = vrot.lane.b32.xlu0 %v4892, 96
  %v4917 = vpop.permute.xlu0 %4916
  %4918 = vrot.lane.b32.xlu0 %v4894, 96
  %v4919 = vpop.permute.xlu0 %4918
  %4920 = vrot.lane.b32.xlu0 %v4896, 96
  %v4921 = vpop.permute.xlu0 %4920
  %v4930 = vmax.f32 %v4882, %v4907
  %v4931 = vmax.f32 %v4884, %v4909
  %v4932 = vmax.f32 %v4886, %v4911
  %v4933 = vmax.f32 %v4888, %v4913
  %v4934 = vmax.f32 %v4890, %v4915
  %v4935 = vmax.f32 %v4892, %v4917
  %v4936 = vmax.f32 %v4894, %v4919
  %v4937 = vmax.f32 %v4896, %v4921
  %4946 = vrot.lane.b32.xlu0 %v4883, 96
  %v4947 = vpop.permute.xlu0 %4946
  %4948 = vrot.lane.b32.xlu0 %v4885, 96
  %v4949 = vpop.permute.xlu0 %4948
  %4950 = vrot.lane.b32.xlu0 %v4887, 96
  %v4951 = vpop.permute.xlu0 %4950
  %4952 = vrot.lane.b32.xlu0 %v4889, 96
  %v4953 = vpop.permute.xlu0 %4952
  %4954 = vrot.lane.b32.xlu0 %v4891, 96
  %v4955 = vpop.permute.xlu0 %4954
  %4956 = vrot.lane.b32.xlu0 %v4893, 96
  %v4957 = vpop.permute.xlu0 %4956
  %4958 = vrot.lane.b32.xlu0 %v4895, 96
  %v4959 = vpop.permute.xlu0 %4958
  %4960 = vrot.lane.b32.xlu0 %v4897, 96
  %v4961 = vpop.permute.xlu0 %4960
  %v4970 = vmax.f32 %v4883, %v4947
  %v4971 = vmax.f32 %v4885, %v4949
  %v4972 = vmax.f32 %v4887, %v4951
  %v4973 = vmax.f32 %v4889, %v4953
  %v4974 = vmax.f32 %v4891, %v4955
  %v4975 = vmax.f32 %v4893, %v4957
  %v4976 = vmax.f32 %v4895, %v4959
  %v4977 = vmax.f32 %v4897, %v4961
  %4986 = vrot.lane.b32.xlu0 %v4930, 96
  %v4987 = vpop.permute.xlu0 %4986
  %4988 = vrot.lane.b32.xlu0 %v4931, 96
  %v4989 = vpop.permute.xlu0 %4988
  %4990 = vrot.lane.b32.xlu0 %v4932, 96
  %v4991 = vpop.permute.xlu0 %4990
  %4992 = vrot.lane.b32.xlu0 %v4933, 96
  %v4993 = vpop.permute.xlu0 %4992
  %4994 = vrot.lane.b32.xlu0 %v4934, 96
  %v4995 = vpop.permute.xlu0 %4994
  %4996 = vrot.lane.b32.xlu0 %v4935, 96
  %v4997 = vpop.permute.xlu0 %4996
  %4998 = vrot.lane.b32.xlu0 %v4936, 96
  %v4999 = vpop.permute.xlu0 %4998
  %5000 = vrot.lane.b32.xlu0 %v4937, 96
  %v5001 = vpop.permute.xlu0 %5000
  %5018 = vrot.lane.b32.xlu0 %v4970, 64
  %v5019 = vpop.permute.xlu0 %5018
  %5020 = vrot.lane.b32.xlu0 %v4971, 64
  %v5021 = vpop.permute.xlu0 %5020
  %5022 = vrot.lane.b32.xlu0 %v4972, 64
  %v5023 = vpop.permute.xlu0 %5022
  %5024 = vrot.lane.b32.xlu0 %v4973, 64
  %v5025 = vpop.permute.xlu0 %5024
  %5026 = vrot.lane.b32.xlu0 %v4974, 64
  %v5027 = vpop.permute.xlu0 %5026
  %5028 = vrot.lane.b32.xlu0 %v4975, 64
  %v5029 = vpop.permute.xlu0 %5028
  %5030 = vrot.lane.b32.xlu0 %v4976, 64
  %v5031 = vpop.permute.xlu0 %5030
  %5032 = vrot.lane.b32.xlu0 %v4977, 64
  %v5033 = vpop.permute.xlu0 %5032
  %5042 = vrot.lane.b32.xlu0 %v4970, 32
  %v5043 = vpop.permute.xlu0 %5042
  %5044 = vrot.lane.b32.xlu0 %v4971, 32
  %v5045 = vpop.permute.xlu0 %5044
  %5046 = vrot.lane.b32.xlu0 %v4972, 32
  %v5047 = vpop.permute.xlu0 %5046
  %5048 = vrot.lane.b32.xlu0 %v4973, 32
  %v5049 = vpop.permute.xlu0 %5048
  %5050 = vrot.lane.b32.xlu0 %v4974, 32
  %v5051 = vpop.permute.xlu0 %5050
  %5052 = vrot.lane.b32.xlu0 %v4975, 32
  %v5053 = vpop.permute.xlu0 %5052
  %5054 = vrot.lane.b32.xlu0 %v4976, 32
  %v5055 = vpop.permute.xlu0 %5054
  %5056 = vrot.lane.b32.xlu0 %v4977, 32
  %v5057 = vpop.permute.xlu0 %5056
  %v5066 = vsel %vm3707, %v4930, %v4987
  %v5067 = vsel %vm3707, %v4931, %v4989
  %v5068 = vsel %vm3707, %v4932, %v4991
  %v5069 = vsel %vm3707, %v4933, %v4993
  %v5070 = vsel %vm3707, %v4934, %v4995
  %v5071 = vsel %vm3707, %v4935, %v4997
  %v5072 = vsel %vm3707, %v4936, %v4999
  %v5073 = vsel %vm3707, %v4937, %v5001
  %v5074 = vsel %vm3757, %v5066, %v5019
  %v5075 = vsel %vm3757, %v5067, %v5021
  %v5076 = vsel %vm3757, %v5068, %v5023
  %v5077 = vsel %vm3757, %v5069, %v5025
  %v5078 = vsel %vm3757, %v5070, %v5027
  %v5079 = vsel %vm3757, %v5071, %v5029
  %v5080 = vsel %vm3757, %v5072, %v5031
  %v5081 = vsel %vm3757, %v5073, %v5033
  %v5082 = vsel %vm3807, %v5074, %v5043
  %v5083 = vsel %vm3807, %v5075, %v5045
  %v5084 = vsel %vm3807, %v5076, %v5047
  %v5085 = vsel %vm3807, %v5077, %v5049
  %v5086 = vsel %vm3807, %v5078, %v5051
  %v5087 = vsel %vm3807, %v5079, %v5053
  %v5088 = vsel %vm3807, %v5080, %v5055
  %v5089 = vsel %vm3807, %v5081, %v5057
  %v5090 = vmax.f32 %v5082, %v5083
  %v5091 = vmax.f32 %v5084, %v5085
  %v5092 = vmax.f32 %v5086, %v5087
  %v5093 = vmax.f32 %v5088, %v5089
  %v5094 = vmax.f32 %v5090, 0.0
  %v5095 = vmax.f32 %v5091, 0.0
  %v5096 = vmax.f32 %v5092, 0.0
  %v5097 = vmax.f32 %v5093, 0.0
  %v5098 = vld [vmem:[%s5] sm:$0xff]
  %v5099 = vld [vmem:[%s5 + $0x8] sm:$0xff]
  %v5100 = vld [vmem:[%s5 + $0x10] sm:$0xff]
  %v5101 = vld [vmem:[%s5 + $0x18] sm:$0xff]
  %v5102 = vld [vmem:[%s5 + $0x20] sm:$0xff]
  %v5103 = vld [vmem:[%s5 + $0x28] sm:$0xff]
  %v5104 = vld [vmem:[%s5 + $0x30] sm:$0xff]
  %v5105 = vld [vmem:[%s5 + $0x38] sm:$0xff]
  %v5106 = vld [vmem:[%s5 + $0x40] sm:$0xff]
  %v5107 = vld [vmem:[%s5 + $0x48] sm:$0xff]
  %v5108 = vld [vmem:[%s5 + $0x50] sm:$0xff]
  %v5109 = vld [vmem:[%s5 + $0x58] sm:$0xff]
  %v5110 = vld [vmem:[%s5 + $0x60] sm:$0xff]
  %v5111 = vld [vmem:[%s5 + $0x68] sm:$0xff]
  %v5112 = vld [vmem:[%s5 + $0x70] sm:$0xff]
  %v5113 = vld [vmem:[%s5 + $0x78] sm:$0xff]
  %s5114 = scalar_lea.vmem %s5, 128
  %v5115 = vld [vmem:[%s5114] sm:$0xff]
  %v5116 = vld [vmem:[%s5114 + $0x8] sm:$0xff]
  %v5117 = vld [vmem:[%s5114 + $0x10] sm:$0xff]
  %v5118 = vld [vmem:[%s5114 + $0x18] sm:$0xff]
  %v5119 = vld [vmem:[%s5114 + $0x20] sm:$0xff]
  %v5120 = vld [vmem:[%s5114 + $0x28] sm:$0xff]
  %v5121 = vld [vmem:[%s5114 + $0x30] sm:$0xff]
  %v5122 = vld [vmem:[%s5114 + $0x38] sm:$0xff]
  %v5123 = vld [vmem:[%s5114 + $0x40] sm:$0xff]
  %v5124 = vld [vmem:[%s5114 + $0x48] sm:$0xff]
  %v5125 = vld [vmem:[%s5114 + $0x50] sm:$0xff]
  %v5126 = vld [vmem:[%s5114 + $0x58] sm:$0xff]
  %v5127 = vld [vmem:[%s5114 + $0x60] sm:$0xff]
  %v5128 = vld [vmem:[%s5114 + $0x68] sm:$0xff]
  %v5129 = vld [vmem:[%s5114 + $0x70] sm:$0xff]
  %v5130 = vld [vmem:[%s5114 + $0x78] sm:$0xff]
  %5131 = vmatprep.subr.mxu0 0.0
  %5132 = vmatpush1.msra.mxu0 %v5115
  %5133 = vmatprep.subr.mxu0 0.0
  %5134 = vmatpush1.msra.mxu0 %v5116
  %5135 = vmatprep.subr.mxu0 0.0
  %5136 = vmatpush1.msra.mxu0 %v5117
  %5137 = vmatprep.subr.mxu0 0.0
  %5138 = vmatpush1.msra.mxu0 %v5118
  %5139 = vmatprep.subr.mxu0 0.0
  %5140 = vmatpush1.msra.mxu0 %v5119
  %5141 = vmatprep.subr.mxu0 0.0
  %5142 = vmatpush1.msra.mxu0 %v5120
  %5143 = vmatprep.subr.mxu0 0.0
  %5144 = vmatpush1.msra.mxu0 %v5121
  %5145 = vmatprep.subr.mxu0 0.0
  %5146 = vmatpush1.msra.mxu0 %v5122
  %5147 = vmatprep.subr.mxu0 0.0
  %5148 = vmatpush1.msra.mxu0 %v5123
  %5149 = vmatprep.subr.mxu0 0.0
  %5150 = vmatpush1.msra.mxu0 %v5124
  %5151 = vmatprep.subr.mxu0 0.0
  %5152 = vmatpush1.msra.mxu0 %v5125
  %5153 = vmatprep.subr.mxu0 0.0
  %5154 = vmatpush1.msra.mxu0 %v5126
  %5155 = vmatprep.subr.mxu0 0.0
  %5156 = vmatpush1.msra.mxu0 %v5127
  %5157 = vmatprep.subr.mxu0 0.0
  %5158 = vmatpush1.msra.mxu0 %v5128
  %5159 = vmatprep.subr.mxu0 0.0
  %5160 = vmatpush1.msra.mxu0 %v5129
  %5161 = vmatprep.subr.mxu0 0.0
  %5162 = vmatpush1.msra.mxu0 %v5130
  %5163 = vmatprep.subr.mxu0 0.0
  %5164 = vmatpush1.msra.mxu0 0.0
  %5165 = vmatprep.subr.mxu0 0.0
  %5166 = vmatpush1.msra.mxu0 0.0
  %5167 = vmatprep.subr.mxu0 0.0
  %5168 = vmatpush1.msra.mxu0 0.0
  %5169 = vmatprep.subr.mxu0 0.0
  %5170 = vmatpush1.msra.mxu0 0.0
  %5171 = vmatprep.subr.mxu0 0.0
  %5172 = vmatpush1.msra.mxu0 0.0
  %5173 = vmatprep.subr.mxu0 0.0
  %5174 = vmatpush1.msra.mxu0 0.0
  %5175 = vmatprep.subr.mxu0 0.0
  %5176 = vmatpush1.msra.mxu0 0.0
  %5177 = vmatprep.subr.mxu0 0.0
  %5178 = vmatpush1.msra.mxu0 0.0
  %5179 = vmatprep.subr.mxu0 0.0
  %5180 = vmatpush1.msra.mxu0 0.0
  %5181 = vmatprep.subr.mxu0 0.0
  %5182 = vmatpush1.msra.mxu0 0.0
  %5183 = vmatprep.subr.mxu0 0.0
  %5184 = vmatpush1.msra.mxu0 0.0
  %5185 = vmatprep.subr.mxu0 0.0
  %5186 = vmatpush1.msra.mxu0 0.0
  %5187 = vmatprep.subr.mxu0 0.0
  %5188 = vmatpush1.msra.mxu0 0.0
  %5189 = vmatprep.subr.mxu0 0.0
  %5190 = vmatpush1.msra.mxu0 0.0
  %5191 = vmatprep.subr.mxu0 0.0
  %5192 = vmatpush1.msra.mxu0 0.0
  %5193 = vmatprep.subr.mxu0 0.0
  %5194 = vmatpush1.msra.mxu0 0.0
  %5195 = vmatprep.mubr.f32.mxu0 0.0
  %5196 = vmatmul.mubr.f32.gmra.mrb[0].mxu0 %v5095
  %v5197 = vpop.f32.mrb[0].mxu0
  %v5198 = vadd.f32 0.0, %v5197
  %v5199 = vpop.f32.mrb[0].mxu0
  %5200 = vdwg.mxu0
  %5201 = vmatprep.subr.mxu0 0.0
  %5202 = vmatpush1.msra.mxu0 %v5098
  %5203 = vmatprep.subr.mxu0 0.0
  %5204 = vmatpush1.msra.mxu0 %v5099
  %5205 = vmatprep.subr.mxu0 0.0
  %5206 = vmatpush1.msra.mxu0 %v5100
  %5207 = vmatprep.subr.mxu0 0.0
  %5208 = vmatpush1.msra.mxu0 %v5101
  %5209 = vmatprep.subr.mxu0 0.0
  %5210 = vmatpush1.msra.mxu0 %v5102
  %5211 = vmatprep.subr.mxu0 0.0
  %5212 = vmatpush1.msra.mxu0 %v5103
  %5213 = vmatprep.subr.mxu0 0.0
  %5214 = vmatpush1.msra.mxu0 %v5104
  %5215 = vmatprep.subr.mxu0 0.0
  %5216 = vmatpush1.msra.mxu0 %v5105
  %5217 = vmatprep.subr.mxu0 0.0
  %5218 = vmatpush1.msra.mxu0 %v5106
  %5219 = vmatprep.subr.mxu0 0.0
  %5220 = vmatpush1.msra.mxu0 %v5107
  %5221 = vmatprep.subr.mxu0 0.0
  %5222 = vmatpush1.msra.mxu0 %v5108
  %5223 = vmatprep.subr.mxu0 0.0
  %5224 = vmatpush1.msra.mxu0 %v5109
  %5225 = vmatprep.subr.mxu0 0.0
  %5226 = vmatpush1.msra.mxu0 %v5110
  %5227 = vmatprep.subr.mxu0 0.0
  %5228 = vmatpush1.msra.mxu0 %v5111
  %5229 = vmatprep.subr.mxu0 0.0
  %5230 = vmatpush1.msra.mxu0 %v5112
  %5231 = vmatprep.subr.mxu0 0.0
  %5232 = vmatpush1.msra.mxu0 %v5113
  %5233 = vmatprep.subr.mxu0 0.0
  %5234 = vmatpush1.msra.mxu0 0.0
  %5235 = vmatprep.subr.mxu0 0.0
  %5236 = vmatpush1.msra.mxu0 0.0
  %5237 = vmatprep.subr.mxu0 0.0
  %5238 = vmatpush1.msra.mxu0 0.0
  %5239 = vmatprep.subr.mxu0 0.0
  %5240 = vmatpush1.msra.mxu0 0.0
  %5241 = vmatprep.subr.mxu0 0.0
  %5242 = vmatpush1.msra.mxu0 0.0
  %5243 = vmatprep.subr.mxu0 0.0
  %5244 = vmatpush1.msra.mxu0 0.0
  %5245 = vmatprep.subr.mxu0 0.0
  %5246 = vmatpush1.msra.mxu0 0.0
  %5247 = vmatprep.subr.mxu0 0.0
  %5248 = vmatpush1.msra.mxu0 0.0
  %5249 = vmatprep.subr.mxu0 0.0
  %5250 = vmatpush1.msra.mxu0 0.0
  %5251 = vmatprep.subr.mxu0 0.0
  %5252 = vmatpush1.msra.mxu0 0.0
  %5253 = vmatprep.subr.mxu0 0.0
  %5254 = vmatpush1.msra.mxu0 0.0
  %5255 = vmatprep.subr.mxu0 0.0
  %5256 = vmatpush1.msra.mxu0 0.0
  %5257 = vmatprep.subr.mxu0 0.0
  %5258 = vmatpush1.msra.mxu0 0.0
  %5259 = vmatprep.subr.mxu0 0.0
  %5260 = vmatpush1.msra.mxu0 0.0
  %5261 = vmatprep.subr.mxu0 0.0
  %5262 = vmatpush1.msra.mxu0 0.0
  %5263 = vmatprep.subr.mxu0 0.0
  %5264 = vmatpush1.msra.mxu0 0.0
  %5265 = vmatprep.mubr.f32.mxu0 0.0
  %5266 = vmatmul.mubr.f32.gmra.mrb[0].mxu0 %v5094
  %v5267 = vpop.f32.mrb[0].mxu0
  %v5268 = vadd.f32 %v5198, %v5267
  %v5269 = vpop.f32.mrb[0].mxu0
  %5270 = vdwg.mxu0
  %s5271 = scalar_lea.vmem %s5, 256
  %v5272 = vld [vmem:[%s5271] sm:$0xff]
  %v5273 = vld [vmem:[%s5271 + $0x8] sm:$0xff]
  %v5274 = vld [vmem:[%s5271 + $0x10] sm:$0xff]
  %v5275 = vld [vmem:[%s5271 + $0x18] sm:$0xff]
  %v5276 = vld [vmem:[%s5271 + $0x20] sm:$0xff]
  %v5277 = vld [vmem:[%s5271 + $0x28] sm:$0xff]
  %v5278 = vld [vmem:[%s5271 + $0x30] sm:$0xff]
  %v5279 = vld [vmem:[%s5271 + $0x38] sm:$0xff]
  %v5280 = vld [vmem:[%s5271 + $0x40] sm:$0xff]
  %v5281 = vld [vmem:[%s5271 + $0x48] sm:$0xff]
  %v5282 = vld [vmem:[%s5271 + $0x50] sm:$0xff]
  %v5283 = vld [vmem:[%s5271 + $0x58] sm:$0xff]
  %v5284 = vld [vmem:[%s5271 + $0x60] sm:$0xff]
  %v5285 = vld [vmem:[%s5271 + $0x68] sm:$0xff]
  %v5286 = vld [vmem:[%s5271 + $0x70] sm:$0xff]
  %v5287 = vld [vmem:[%s5271 + $0x78] sm:$0xff]
  %5288 = vmatprep.subr.mxu0 0.0
  %5289 = vmatpush1.msra.mxu0 %v5272
  %5290 = vmatprep.subr.mxu0 0.0
  %5291 = vmatpush1.msra.mxu0 %v5273
  %5292 = vmatprep.subr.mxu0 0.0
  %5293 = vmatpush1.msra.mxu0 %v5274
  %5294 = vmatprep.subr.mxu0 0.0
  %5295 = vmatpush1.msra.mxu0 %v5275
  %5296 = vmatprep.subr.mxu0 0.0
  %5297 = vmatpush1.msra.mxu0 %v5276
  %5298 = vmatprep.subr.mxu0 0.0
  %5299 = vmatpush1.msra.mxu0 %v5277
  %5300 = vmatprep.subr.mxu0 0.0
  %5301 = vmatpush1.msra.mxu0 %v5278
  %5302 = vmatprep.subr.mxu0 0.0
  %5303 = vmatpush1.msra.mxu0 %v5279
  %5304 = vmatprep.subr.mxu0 0.0
  %5305 = vmatpush1.msra.mxu0 %v5280
  %5306 = vmatprep.subr.mxu0 0.0
  %5307 = vmatpush1.msra.mxu0 %v5281
  %5308 = vmatprep.subr.mxu0 0.0
  %5309 = vmatpush1.msra.mxu0 %v5282
  %5310 = vmatprep.subr.mxu0 0.0
  %5311 = vmatpush1.msra.mxu0 %v5283
  %5312 = vmatprep.subr.mxu0 0.0
  %5313 = vmatpush1.msra.mxu0 %v5284
  %5314 = vmatprep.subr.mxu0 0.0
  %5315 = vmatpush1.msra.mxu0 %v5285
  %5316 = vmatprep.subr.mxu0 0.0
  %5317 = vmatpush1.msra.mxu0 %v5286
  %5318 = vmatprep.subr.mxu0 0.0
  %5319 = vmatpush1.msra.mxu0 %v5287
  %5320 = vmatprep.subr.mxu0 0.0
  %5321 = vmatpush1.msra.mxu0 0.0
  %5322 = vmatprep.subr.mxu0 0.0
  %5323 = vmatpush1.msra.mxu0 0.0
  %5324 = vmatprep.subr.mxu0 0.0
  %5325 = vmatpush1.msra.mxu0 0.0
  %5326 = vmatprep.subr.mxu0 0.0
  %5327 = vmatpush1.msra.mxu0 0.0
  %5328 = vmatprep.subr.mxu0 0.0
  %5329 = vmatpush1.msra.mxu0 0.0
  %5330 = vmatprep.subr.mxu0 0.0
  %5331 = vmatpush1.msra.mxu0 0.0
  %5332 = vmatprep.subr.mxu0 0.0
  %5333 = vmatpush1.msra.mxu0 0.0
  %5334 = vmatprep.subr.mxu0 0.0
  %5335 = vmatpush1.msra.mxu0 0.0
  %5336 = vmatprep.subr.mxu0 0.0
  %5337 = vmatpush1.msra.mxu0 0.0
  %5338 = vmatprep.subr.mxu0 0.0
  %5339 = vmatpush1.msra.mxu0 0.0
  %5340 = vmatprep.subr.mxu0 0.0
  %5341 = vmatpush1.msra.mxu0 0.0
  %5342 = vmatprep.subr.mxu0 0.0
  %5343 = vmatpush1.msra.mxu0 0.0
  %5344 = vmatprep.subr.mxu0 0.0
  %5345 = vmatpush1.msra.mxu0 0.0
  %5346 = vmatprep.subr.mxu0 0.0
  %5347 = vmatpush1.msra.mxu0 0.0
  %5348 = vmatprep.subr.mxu0 0.0
  %5349 = vmatpush1.msra.mxu0 0.0
  %5350 = vmatprep.subr.mxu0 0.0
  %5351 = vmatpush1.msra.mxu0 0.0
  %5352 = vmatprep.mubr.f32.mxu0 0.0
  %5353 = vmatmul.mubr.f32.gmra.mrb[0].mxu0 %v5096
  %v5354 = vpop.f32.mrb[0].mxu0
  %v5355 = vadd.f32 0.0, %v5354
  %v5356 = vpop.f32.mrb[0].mxu0
  %5357 = vdwg.mxu0
  %v5358 = vadd.f32 %v5268, %v5355
  %s5359 = scalar_lea.vmem %s5, 384
  %v5360 = vld [vmem:[%s5359] sm:$0xff]
  %v5361 = vld [vmem:[%s5359 + $0x8] sm:$0xff]
  %v5362 = vld [vmem:[%s5359 + $0x10] sm:$0xff]
  %v5363 = vld [vmem:[%s5359 + $0x18] sm:$0xff]
  %v5364 = vld [vmem:[%s5359 + $0x20] sm:$0xff]
  %v5365 = vld [vmem:[%s5359 + $0x28] sm:$0xff]
  %v5366 = vld [vmem:[%s5359 + $0x30] sm:$0xff]
  %v5367 = vld [vmem:[%s5359 + $0x38] sm:$0xff]
  %v5368 = vld [vmem:[%s5359 + $0x40] sm:$0xff]
  %v5369 = vld [vmem:[%s5359 + $0x48] sm:$0xff]
  %v5370 = vld [vmem:[%s5359 + $0x50] sm:$0xff]
  %v5371 = vld [vmem:[%s5359 + $0x58] sm:$0xff]
  %v5372 = vld [vmem:[%s5359 + $0x60] sm:$0xff]
  %v5373 = vld [vmem:[%s5359 + $0x68] sm:$0xff]
  %v5374 = vld [vmem:[%s5359 + $0x70] sm:$0xff]
  %v5375 = vld [vmem:[%s5359 + $0x78] sm:$0xff]
  %5376 = vmatprep.subr.mxu0 0.0
  %5377 = vmatpush1.msra.mxu0 %v5360
  %5378 = vmatprep.subr.mxu0 0.0
  %5379 = vmatpush1.msra.mxu0 %v5361
  %5380 = vmatprep.subr.mxu0 0.0
  %5381 = vmatpush1.msra.mxu0 %v5362
  %5382 = vmatprep.subr.mxu0 0.0
  %5383 = vmatpush1.msra.mxu0 %v5363
  %5384 = vmatprep.subr.mxu0 0.0
  %5385 = vmatpush1.msra.mxu0 %v5364
  %5386 = vmatprep.subr.mxu0 0.0
  %5387 = vmatpush1.msra.mxu0 %v5365
  %5388 = vmatprep.subr.mxu0 0.0
  %5389 = vmatpush1.msra.mxu0 %v5366
  %5390 = vmatprep.subr.mxu0 0.0
  %5391 = vmatpush1.msra.mxu0 %v5367
  %5392 = vmatprep.subr.mxu0 0.0
  %5393 = vmatpush1.msra.mxu0 %v5368
  %5394 = vmatprep.subr.mxu0 0.0
  %5395 = vmatpush1.msra.mxu0 %v5369
  %5396 = vmatprep.subr.mxu0 0.0
  %5397 = vmatpush1.msra.mxu0 %v5370
  %5398 = vmatprep.subr.mxu0 0.0
  %5399 = vmatpush1.msra.mxu0 %v5371
  %5400 = vmatprep.subr.mxu0 0.0
  %5401 = vmatpush1.msra.mxu0 %v5372
  %5402 = vmatprep.subr.mxu0 0.0
  %5403 = vmatpush1.msra.mxu0 %v5373
  %5404 = vmatprep.subr.mxu0 0.0
  %5405 = vmatpush1.msra.mxu0 %v5374
  %5406 = vmatprep.subr.mxu0 0.0
  %5407 = vmatpush1.msra.mxu0 %v5375
  %5408 = vmatprep.subr.mxu0 0.0
  %5409 = vmatpush1.msra.mxu0 0.0
  %5410 = vmatprep.subr.mxu0 0.0
  %5411 = vmatpush1.msra.mxu0 0.0
  %5412 = vmatprep.subr.mxu0 0.0
  %5413 = vmatpush1.msra.mxu0 0.0
  %5414 = vmatprep.subr.mxu0 0.0
  %5415 = vmatpush1.msra.mxu0 0.0
  %5416 = vmatprep.subr.mxu0 0.0
  %5417 = vmatpush1.msra.mxu0 0.0
  %5418 = vmatprep.subr.mxu0 0.0
  %5419 = vmatpush1.msra.mxu0 0.0
  %5420 = vmatprep.subr.mxu0 0.0
  %5421 = vmatpush1.msra.mxu0 0.0
  %5422 = vmatprep.subr.mxu0 0.0
  %5423 = vmatpush1.msra.mxu0 0.0
  %5424 = vmatprep.subr.mxu0 0.0
  %5425 = vmatpush1.msra.mxu0 0.0
  %5426 = vmatprep.subr.mxu0 0.0
  %5427 = vmatpush1.msra.mxu0 0.0
  %5428 = vmatprep.subr.mxu0 0.0
  %5429 = vmatpush1.msra.mxu0 0.0
  %5430 = vmatprep.subr.mxu0 0.0
  %5431 = vmatpush1.msra.mxu0 0.0
  %5432 = vmatprep.subr.mxu0 0.0
  %5433 = vmatpush1.msra.mxu0 0.0
  %5434 = vmatprep.subr.mxu0 0.0
  %5435 = vmatpush1.msra.mxu0 0.0
  %5436 = vmatprep.subr.mxu0 0.0
  %5437 = vmatpush1.msra.mxu0 0.0
  %5438 = vmatprep.subr.mxu0 0.0
  %5439 = vmatpush1.msra.mxu0 0.0
  %5440 = vmatprep.mubr.f32.mxu0 0.0
  %5441 = vmatmul.mubr.f32.gmra.mrb[0].mxu0 %v5097
  %v5442 = vpop.f32.mrb[0].mxu0
  %v5443 = vadd.f32 0.0, %v5442
  %v5444 = vpop.f32.mrb[0].mxu0
  %5445 = vdwg.mxu0
  %v5446 = vadd.f32 %v5358, %v5443
  %v5447 = vld [vmem:[%s6] sm:$0x1]
  %v5449 = vlaneseq
  %v5450 = vshrl.u32 %v5449, 7
  %v5451 = vsub.s32 0, %v5450
  %v5452 = vrot.slane %v5447, %v5451
  %v5454 = vadd.f32 %v5446, %v5452
  %v5455 = vmax.f32 %v5454, 0.0
  %v5456 = vld [vmem:[%s7] sm:$0xff]
  %v5457 = vld [vmem:[%s7 + $0x8] sm:$0xff]
  %v5458 = vld [vmem:[%s7 + $0x10] sm:$0xff]
  %v5459 = vld [vmem:[%s7 + $0x18] sm:$0xff]
  %v5460 = vld [vmem:[%s7 + $0x20] sm:$0xff]
  %v5461 = vld [vmem:[%s7 + $0x28] sm:$0xff]
  %v5462 = vld [vmem:[%s7 + $0x30] sm:$0xff]
  %v5463 = vld [vmem:[%s7 + $0x38] sm:$0xff]
  %v5464 = vld [vmem:[%s7 + $0x40] sm:$0xff]
  %v5465 = vld [vmem:[%s7 + $0x48] sm:$0xff]
  %v5466 = vld [vmem:[%s7 + $0x50] sm:$0xff]
  %v5467 = vld [vmem:[%s7 + $0x58] sm:$0xff]
  %v5468 = vld [vmem:[%s7 + $0x60] sm:$0xff]
  %v5469 = vld [vmem:[%s7 + $0x68] sm:$0xff]
  %v5470 = vld [vmem:[%s7 + $0x70] sm:$0xff]
  %v5471 = vld [vmem:[%s7 + $0x78] sm:$0xff]
  %v5472 = vld [vmem:[%s8] sm:$0x1]
  %v5474 = vlaneseq
  %v5475 = vshrl.u32 %v5474, 7
  %v5476 = vsub.s32 0, %v5475
  %v5477 = vrot.slane %v5472, %v5476
  %5479 = vmatprep.subr.mxu0 0.0
  %5480 = vmatpush1.msra.mxu0 %v5456
  %5481 = vmatprep.subr.mxu0 0.0
  %5482 = vmatpush1.msra.mxu0 %v5457
  %5483 = vmatprep.subr.mxu0 0.0
  %5484 = vmatpush1.msra.mxu0 %v5458
  %5485 = vmatprep.subr.mxu0 0.0
  %5486 = vmatpush1.msra.mxu0 %v5459
  %5487 = vmatprep.subr.mxu0 0.0
  %5488 = vmatpush1.msra.mxu0 %v5460
  %5489 = vmatprep.subr.mxu0 0.0
  %5490 = vmatpush1.msra.mxu0 %v5461
  %5491 = vmatprep.subr.mxu0 0.0
  %5492 = vmatpush1.msra.mxu0 %v5462
  %5493 = vmatprep.subr.mxu0 0.0
  %5494 = vmatpush1.msra.mxu0 %v5463
  %5495 = vmatprep.subr.mxu0 0.0
  %5496 = vmatpush1.msra.mxu0 %v5464
  %5497 = vmatprep.subr.mxu0 0.0
  %5498 = vmatpush1.msra.mxu0 %v5465
  %5499 = vmatprep.subr.mxu0 0.0
  %5500 = vmatpush1.msra.mxu0 %v5466
  %5501 = vmatprep.subr.mxu0 0.0
  %5502 = vmatpush1.msra.mxu0 %v5467
  %5503 = vmatprep.subr.mxu0 0.0
  %5504 = vmatpush1.msra.mxu0 %v5468
  %5505 = vmatprep.subr.mxu0 0.0
  %5506 = vmatpush1.msra.mxu0 %v5469
  %5507 = vmatprep.subr.mxu0 0.0
  %5508 = vmatpush1.msra.mxu0 %v5470
  %5509 = vmatprep.subr.mxu0 0.0
  %5510 = vmatpush1.msra.mxu0 %v5471
  %5511 = vmatprep.subr.mxu0 0.0
  %5512 = vmatpush1.msra.mxu0 0.0
  %5513 = vmatprep.subr.mxu0 0.0
  %5514 = vmatpush1.msra.mxu0 0.0
  %5515 = vmatprep.subr.mxu0 0.0
  %5516 = vmatpush1.msra.mxu0 0.0
  %5517 = vmatprep.subr.mxu0 0.0
  %5518 = vmatpush1.msra.mxu0 0.0
  %5519 = vmatprep.subr.mxu0 0.0
  %5520 = vmatpush1.msra.mxu0 0.0
  %5521 = vmatprep.subr.mxu0 0.0
  %5522 = vmatpush1.msra.mxu0 0.0
  %5523 = vmatprep.subr.mxu0 0.0
  %5524 = vmatpush1.msra.mxu0 0.0
  %5525 = vmatprep.subr.mxu0 0.0
  %5526 = vmatpush1.msra.mxu0 0.0
  %5527 = vmatprep.subr.mxu0 0.0
  %5528 = vmatpush1.msra.mxu0 0.0
  %5529 = vmatprep.subr.mxu0 0.0
  %5530 = vmatpush1.msra.mxu0 0.0
  %5531 = vmatprep.subr.mxu0 0.0
  %5532 = vmatpush1.msra.mxu0 0.0
  %5533 = vmatprep.subr.mxu0 0.0
  %5534 = vmatpush1.msra.mxu0 0.0
  %5535 = vmatprep.subr.mxu0 0.0
  %5536 = vmatpush1.msra.mxu0 0.0
  %5537 = vmatprep.subr.mxu0 0.0
  %5538 = vmatpush1.msra.mxu0 0.0
  %5539 = vmatprep.subr.mxu0 0.0
  %5540 = vmatpush1.msra.mxu0 0.0
  %5541 = vmatprep.subr.mxu0 0.0
  %5542 = vmatpush1.msra.mxu0 0.0
  %5543 = vmatprep.mubr.f32.mxu0 0.0
  %5544 = vmatmul.mubr.f32.gmra.mrb[0].mxu0 %v5455
  %v5545 = vpop.f32.mrb[0].mxu0
  %v5546 = vadd.f32 %v5477, %v5545
  %v5547 = vpop.f32.mrb[0].mxu0
  %5548 = vdwg.mxu0
  %5549 = vmax.xlane.f32.xlu0 %v5546
  %v5550 = vpop.xlane.xlu0 %5549
  %v5551 = vsub.f32 %v5546, %v5550
  %v5552 = vmul.f32 %v5551, 1.442695
  %v5553 = vpow.pop %v5552
  %5554 = vadd.xlane.f32.xlu0 %v5553
  %v5555 = vpop.xlane.xlu0 %5554
  %v5556 = vlog2.pop %v5555
  %v5557 = vmul.f32 %v5556, 0.6931472
  %v5558 = vadd.f32 %v5550, %v5557
  %v5559 = vsub.f32 %v5546, %v5558
  %5560 = vst [vmem:[%s9] sm:$0xff] %v5559
  // Predicated region
  $region38: #{vicnn_forward_pallas.3} parent=0 // pred_check
    _
  $region39: #{vicnn_forward_pallas.3} parent=0 // pred_check_branch
    %5562 = sbr.rel (0) target = $region41
  $region40: #{vicnn_forward_pallas.3} parent=0 // pred_region
    _
  $region41: #{vicnn_forward_pallas.3} parent=0 // pred_fallthru
    _
  // Predicated region
  $region42: #{vicnn_forward_pallas.3} parent=0 // pred_check
    _
  $region43: #{vicnn_forward_pallas.3} parent=0 // pred_check_branch
    %5564 = sbr.rel (0) target = $region45
  $region44: #{vicnn_forward_pallas.3} parent=0 // pred_region
    _
  $region45: #{vicnn_forward_pallas.3} parent=0 // pred_fallthru
    _

</llo_original>
